<compile_context>
chip_gen: v7x
topology: tpu7x:2x2x1
jax: 0.10.0
libtpu: 0.0.40
codegen_flags: <defaults>
</compile_context>

<pallas_src>
import math

import jax
import jax.numpy as jnp
from jax import lax
from jax.experimental import pallas as pl
from jax.experimental.pallas import tpu as pltpu

# ----------------------------- model hyperparams (small, synthetic) ----------
BATCH = 2
IMU_CHANNELS = 6        # real model: 6
IMU_LEN = 128           # real model: 2000
KERNEL_SIZE = 8         # real model: 8
IN_FEAT = IMU_CHANNELS * KERNEL_SIZE   # 48
D = 128                 # real model: 512
NUM_HEADS = 4           # real model: 8
HEAD_DIM = D // NUM_HEADS              # 32
MLP_HIDDEN = 4 * D      # real ratio: 4x
NUM_BLOCKS = 2          # real model: 6
OUT_DIM = 256           # real model: 1024
N_PATCHES = IMU_LEN // KERNEL_SIZE     # 16
N_TOKENS = N_PATCHES + 1               # 17 (cls + patches)
BIAS_SLOT = N_TOKENS                   # key/value slot holding bias_k / bias_v
L_PAD = 24                             # tokens padded to multiple of 8 (>= N_TOKENS + 1)
LOGIT_SCALE = 5.0

# matmul-operand dtype fed to the MXU (accumulation is always f32).
MXU_DTYPE = jnp.bfloat16

_SQRT1_2 = 1.0 / math.sqrt(2.0)


# ----------------------------- in-kernel helpers ------------------------------
def _layernorm(x, g, b, eps):
    x = x.astype(jnp.float32)
    mu = jnp.mean(x, axis=-1, keepdims=True)
    xc = x - mu
    var = jnp.mean(xc * xc, axis=-1, keepdims=True)
    return xc * lax.rsqrt(var + eps) * g + b


def _erf_approx(x):
    # TODO(synk): lax.erf has no guaranteed Mosaic lowering; use Abramowitz &
    # Stegun 7.1.26 (exp + polynomial, max abs err ~1.5e-7 ~= f32 exact).
    a1, a2, a3, a4, a5 = 0.254829592, -0.284496736, 1.421413741, -1.453152027, 1.061405429
    p = 0.3275911
    z = jnp.abs(x)
    t = 1.0 / (1.0 + p * z)
    poly = ((((a5 * t + a4) * t + a3) * t + a2) * t + a1) * t
    y = 1.0 - poly * jnp.exp(-z * z)
    return jnp.where(x < 0.0, -y, y)


def _gelu_exact(x):
    # torch.nn.GELU() default = exact erf GELU.
    return 0.5 * x * (1.0 + _erf_approx(x * _SQRT1_2))


# ----------------------------- Pallas kernels --------------------------------
def _stem_kernel(x_ref, w_ref, g_ref, b_ref, base_ref, o_ref):
    # stem Linear(48 -> D, no bias) + LayerNorm(eps=1e-5) + cls/pos assembly,
    # writing a padded (L_PAD, D) token stream (pad rows are zero).
    pat = x_ref[0]                                               # (N_PATCHES, IN_FEAT)
    y = jnp.dot(pat, w_ref[...], preferred_element_type=jnp.float32)
    y = _layernorm(y, g_ref[...], b_ref[...], 1e-5)              # (N_PATCHES, D)
    base = base_ref[...]                                         # (L_PAD, D)
    o_ref[0] = base                                              # row0=cls+pos0, pad=0
    o_ref[0, 1:1 + N_PATCHES, :] = y + base[1:1 + N_PATCHES, :]


def _block_kernel(x_ref, ln1g_ref, ln1b_ref, wqkv_ref, bqkv_ref, bk_ref, bv_ref,
                  wo_ref, bo_ref, ln2g_ref, ln2b_ref, w1_ref, b1_ref, w2_ref,
                  b2_ref, o_ref):
    x = x_ref[0]                                                 # (L_PAD, D) f32

    # ---- attention branch (pre-LN) ------------------------------------------
    xn = _layernorm(x, ln1g_ref[...], ln1b_ref[...], 1e-6)
    qkv = jnp.dot(xn.astype(MXU_DTYPE), wqkv_ref[...],
                  preferred_element_type=jnp.float32) + bqkv_ref[...]  # (L_PAD, 3D)
    q = qkv[:, 0:D]                       # 1/sqrt(dh) pre-folded into W_q / b_q
    k = qkv[:, D:2 * D]
    v = qkv[:, 2 * D:3 * D]

    # add_bias_kv=True: bias_k / bias_v live in key/value slot BIAS_SLOT (the
    # first pad row); remaining pad key slots are masked out of the softmax.
    row = lax.broadcasted_iota(jnp.int32, (L_PAD, 1), 0)
    is_bias_row = row == BIAS_SLOT
    k = jnp.where(is_bias_row, bk_ref[...], k)
    v = jnp.where(is_bias_row, bv_ref[...], v)

    key_ok = lax.broadcasted_iota(jnp.int32, (L_PAD, L_PAD), 1) <= BIAS_SLOT

    head_outs = []
    for h in range(NUM_HEADS):            # heads = static 32-lane slices, no transposes
        sl = slice(h * HEAD_DIM, (h + 1) * HEAD_DIM)
        qh = q[:, sl].astype(MXU_DTYPE)
        kh = k[:, sl].astype(MXU_DTYPE)
        vh = v[:, sl].astype(MXU_DTYPE)
        s = lax.dot_general(qh, kh, (((1,), (1,)), ((), ())),
                            preferred_element_type=jnp.float32)  # (L_PAD, L_PAD)
        s = jnp.where(key_ok, s, -1e30)
        s = s - jnp.max(s, axis=-1, keepdims=True)
        p = jnp.exp(s)
        p = p * pl.reciprocal(jnp.sum(p, axis=-1, keepdims=True), approx=True)
        head_outs.append(jnp.dot(p.astype(MXU_DTYPE), vh,
                                 preferred_element_type=jnp.float32))
    attn = jnp.concatenate(head_outs, axis=-1)                   # (L_PAD, D)
    attn = jnp.dot(attn.astype(MXU_DTYPE), wo_ref[...],
                   preferred_element_type=jnp.float32) + bo_ref[...]
    x = x + attn

    # ---- MLP branch (pre-LN), GELU in-kernel ---------------------------------
    xn2 = _layernorm(x, ln2g_ref[...], ln2b_ref[...], 1e-6)
    h1 = jnp.dot(xn2.astype(MXU_DTYPE), w1_ref[...],
                 preferred_element_type=jnp.float32) + b1_ref[...]
    h1 = _gelu_exact(h1)
    h2 = jnp.dot(h1.astype(MXU_DTYPE), w2_ref[...],
                 preferred_element_type=jnp.float32) + b2_ref[...]
    o_ref[0] = (x + h2).astype(o_ref.dtype)


def _head_kernel(x_ref, g_ref, b_ref, w_ref, o_ref):
    # LayerNorm(eps=1e-6) + Linear(D -> OUT_DIM, no bias) + L2-normalize * 5.0
    xn = _layernorm(x_ref[...], g_ref[...], b_ref[...], 1e-6)    # (B, D)
    y = jnp.dot(xn, w_ref[...], preferred_element_type=jnp.float32)  # (B, OUT_DIM)
    nrm = jnp.maximum(jnp.sqrt(jnp.sum(y * y, axis=-1, keepdims=True)), 1e-12)
    o_ref[...] = (y / nrm * LOGIT_SCALE).astype(o_ref.dtype)


# ----------------------------- pallas_call wrappers ---------------------------
def _bcast_spec(shape):
    # whole array, same block for every grid step (weights / parameters)
    return pl.BlockSpec(shape, lambda *_: (0,) * len(shape))


def stem_pallas(patches, pp):
    B = patches.shape[0]
    return pl.pallas_call(
        _stem_kernel,
        grid=(B,),
        in_specs=[
            pl.BlockSpec((1, N_PATCHES, IN_FEAT), lambda b: (b, 0, 0)),
            _bcast_spec((IN_FEAT, D)),
            _bcast_spec((1, D)),
            _bcast_spec((1, D)),
            _bcast_spec((L_PAD, D)),
        ],
        out_specs=pl.BlockSpec((1, L_PAD, D), lambda b: (b, 0, 0)),
        out_shape=jax.ShapeDtypeStruct((B, L_PAD, D), jnp.float32),
        compiler_params=pltpu.CompilerParams(dimension_semantics=("parallel",)),
    )(patches, pp["stem_w"], pp["stem_ln_g"], pp["stem_ln_b"], pp["tok_base"])


def block_pallas(x, bp):
    B = x.shape[0]
    return pl.pallas_call(
        _block_kernel,
        grid=(B,),
        in_specs=[
            pl.BlockSpec((1, L_PAD, D), lambda b: (b, 0, 0)),
            _bcast_spec((1, D)), _bcast_spec((1, D)),
            _bcast_spec((D, 3 * D)), _bcast_spec((1, 3 * D)),
            _bcast_spec((1, D)), _bcast_spec((1, D)),
            _bcast_spec((D, D)), _bcast_spec((1, D)),
            _bcast_spec((1, D)), _bcast_spec((1, D)),
            _bcast_spec((D, MLP_HIDDEN)), _bcast_spec((1, MLP_HIDDEN)),
            _bcast_spec((MLP_HIDDEN, D)), _bcast_spec((1, D)),
        ],
        out_specs=pl.BlockSpec((1, L_PAD, D), lambda b: (b, 0, 0)),
        out_shape=jax.ShapeDtypeStruct((B, L_PAD, D), jnp.float32),
        compiler_params=pltpu.CompilerParams(dimension_semantics=("parallel",)),
    )(x, bp["ln1_g"], bp["ln1_b"], bp["w_qkv"], bp["b_qkv"],
      bp["bias_k"], bp["bias_v"], bp["w_out"], bp["b_out"],
      bp["ln2_g"], bp["ln2_b"], bp["w1"], bp["b1"], bp["w2"], bp["b2"])


def head_pallas(cls_tok, pp):
    B = cls_tok.shape[0]
    return pl.pallas_call(
        _head_kernel,
        grid=(1,),
        in_specs=[
            _bcast_spec((B, D)),
            _bcast_spec((1, D)),
            _bcast_spec((1, D)),
            _bcast_spec((D, OUT_DIM)),
        ],
        out_specs=_bcast_spec((B, OUT_DIM)),
        out_shape=jax.ShapeDtypeStruct((B, OUT_DIM), jnp.float32),
    )(cls_tok, pp["head_ln_g"], pp["head_ln_b"], pp["head_w"])


# ----------------------------- model forward ----------------------------------
def imu_encoder_forward(params, imu):
    B, C, T = imu.shape
    n = T // KERNEL_SIZE
    # unfold(-1, k, k).permute(0,2,1,3).reshape(B, n, C*k)  (tiny, stays in XLA)
    patches = imu.reshape(B, C, n, KERNEL_SIZE).transpose(0, 2, 1, 3).reshape(
        B, n, C * KERNEL_SIZE)

    x = stem_pallas(patches, params)          # (B, L_PAD, D) padded token stream
    for bp in params["blocks"]:
        x = block_pallas(x, bp)               # one fused kernel per block

    # head: LN is per-token, so selecting token 0 first is mathematically
    # identical to LN-then-select; the select is a trivial XLA slice.
    cls_tok = x[:, 0, :]                      # (B, D)
    return head_pallas(cls_tok, params)       # (B, OUT_DIM), L2-normalized * 5


# ----------------------------- deterministic synthetic params -----------------
def init_params(key):
    keys = jax.random.split(key, 64)
    it = iter(keys)

    def nrm(shape, scale=0.02):
        return (scale * jax.random.normal(next(it), shape)).astype(jnp.float32)

    p = {
        "stem_w": nrm((IN_FEAT, D)),
        "stem_ln_g": jnp.ones((D,), jnp.float32),
        "stem_ln_b": jnp.zeros((D,), jnp.float32),
        "cls_token": nrm((1, 1, D)),
        "pos_embed": nrm((1, N_TOKENS, D)),
        "head_ln_g": jnp.ones((D,), jnp.float32),
        "head_ln_b": jnp.zeros((D,), jnp.float32),
        "head_w": nrm((D, OUT_DIM)),
        "blocks": [],
    }
    for _ in range(NUM_BLOCKS):
        p["blocks"].append({
            "ln1_g": jnp.ones((D,), jnp.float32),
            "ln1_b": jnp.zeros((D,), jnp.float32),
            "in_proj_w": nrm((D, 3 * D)),
            "in_proj_b": jnp.zeros((3 * D,), jnp.float32),
            "bias_k": nrm((D,)),
            "bias_v": nrm((D,)),
            "out_proj_w": nrm((D, D)),
            "out_proj_b": jnp.zeros((D,), jnp.float32),
            "ln2_g": jnp.ones((D,), jnp.float32),
            "ln2_b": jnp.zeros((D,), jnp.float32),
            "mlp_w1": nrm((D, MLP_HIDDEN)),
            "mlp_b1": jnp.zeros((MLP_HIDDEN,), jnp.float32),
            "mlp_w2": nrm((MLP_HIDDEN, D)),
            "mlp_b2": jnp.zeros((D,), jnp.float32),
        })
    return p


def prepare_params(p):
    """One-time reshaping / folding / casting into kernel-ready form."""
    scale = float(HEAD_DIM) ** -0.5
    pos = p["pos_embed"].reshape(N_TOKENS, D)
    cls = p["cls_token"].reshape(1, D)
    # token base: row0 = cls + pos[0]; rows 1..16 = pos; pad rows = 0
    tok_base = jnp.concatenate(
        [cls + pos[0:1], pos[1:N_TOKENS],
         jnp.zeros((L_PAD - N_TOKENS, D), jnp.float32)], axis=0)

    out = {
        "stem_w": p["stem_w"],                      # stem / head kept f32 (precision)
        "stem_ln_g": p["stem_ln_g"].reshape(1, D),
        "stem_ln_b": p["stem_ln_b"].reshape(1, D),
        "tok_base": tok_base,
        "head_ln_g": p["head_ln_g"].reshape(1, D),
        "head_ln_b": p["head_ln_b"].reshape(1, D),
        "head_w": p["head_w"],
        "blocks": [],
    }
    for blk in p["blocks"]:
        # fold 1/sqrt(dh) into the Q projection (weights + bias)
        w_qkv = blk["in_proj_w"].at[:, :D].multiply(scale)
        b_qkv = blk["in_proj_b"].at[:D].multiply(scale)
        out["blocks"].append({
            "ln1_g": blk["ln1_g"].reshape(1, D),
            "ln1_b": blk["ln1_b"].reshape(1, D),
            "w_qkv": w_qkv.astype(MXU_DTYPE),
            "b_qkv": b_qkv.reshape(1, 3 * D),
            "bias_k": blk["bias_k"].reshape(1, D),
            "bias_v": blk["bias_v"].reshape(1, D),
            "w_out": blk["out_proj_w"].astype(MXU_DTYPE),
            "b_out": blk["out_proj_b"].reshape(1, D),
            "ln2_g": blk["ln2_g"].reshape(1, D),
            "ln2_b": blk["ln2_b"].reshape(1, D),
            "w1": blk["mlp_w1"].astype(MXU_DTYPE),
            "b1": blk["mlp_b1"].reshape(1, MLP_HIDDEN),
            "w2": blk["mlp_w2"].astype(MXU_DTYPE),
            "b2": blk["mlp_b2"].reshape(1, D),
        })
    return out


if __name__ == "__main__":
    root = jax.random.PRNGKey(0)
    pkey, xkey = jax.random.split(root)
    params = prepare_params(init_params(pkey))
    imu = jax.random.normal(xkey, (BATCH, IMU_CHANNELS, IMU_LEN), jnp.float32)

    out = jax.jit(imu_encoder_forward)(params, imu)
    out = jax.block_until_ready(out)

    assert out.shape == (BATCH, OUT_DIM), out.shape
    assert bool(jnp.all(jnp.isfinite(out)))
    # postprocessor guarantees each row has L2 norm == LOGIT_SCALE
    norms = jnp.sqrt(jnp.sum(out * out, axis=-1))
    assert bool(jnp.allclose(norms, LOGIT_SCALE, atol=1e-3))
    print("KERNEL_OK")
</pallas_src>

<mosaic_0001>
module attributes {stable_mosaic.version = 11 : i64} {
  func.func @_stem_kernel(%arg0: i32, %arg1: memref<1x16x48xf32, #tpu.memory_space<vmem>>, %arg2: memref<48x128xf32, #tpu.memory_space<vmem>>, %arg3: memref<1x128xf32, #tpu.memory_space<vmem>>, %arg4: memref<1x128xf32, #tpu.memory_space<vmem>>, %arg5: memref<24x128xf32, #tpu.memory_space<vmem>>, %arg6: memref<1x24x128xf32, #tpu.memory_space<vmem>>) attributes {dimension_semantics = [#tpu.dimension_semantics<parallel>], iteration_bounds = array<i64: 2>, scalar_prefetch = 0 : i64, scratch_operands = 0 : i64, tpu.core_type = #tpu.core_type<tc>, window_params = [{transform_indices = @transform_0, window_bounds = array<i64: 1, 16, 48>}, {pipeline_mode = #tpu.pipeline_mode<synchronous>, transform_indices = @transform_1, window_bounds = array<i64: 48, 128>}, {pipeline_mode = #tpu.pipeline_mode<synchronous>, transform_indices = @transform_2, window_bounds = array<i64: 1, 128>}, {pipeline_mode = #tpu.pipeline_mode<synchronous>, transform_indices = @transform_3, window_bounds = array<i64: 1, 128>}, {pipeline_mode = #tpu.pipeline_mode<synchronous>, transform_indices = @transform_4, window_bounds = array<i64: 24, 128>}, {transform_indices = @transform_5, window_bounds = array<i64: 1, 24, 128>}]} {
    %c0 = arith.constant 0 : index
    %c0_0 = arith.constant 0 : index
    %c0_1 = arith.constant 0 : index
    %0 = vector.load %arg1[%c0, %c0_0, %c0_1] : memref<1x16x48xf32, #tpu.memory_space<vmem>>, vector<1x16x48xf32>
    %1 = vector.shape_cast %0 : vector<1x16x48xf32> to vector<16x48xf32>
    %c0_2 = arith.constant 0 : index
    %c0_3 = arith.constant 0 : index
    %2 = vector.load %arg2[%c0_2, %c0_3] : memref<48x128xf32, #tpu.memory_space<vmem>>, vector<48x128xf32>
    %cst = arith.constant dense<0.000000e+00> : vector<16x128xf32>
    %3 = tpu.matmul %1, %2, %cst {dimension_numbers = #tpu.dot_dimension_numbers<[1], [0], [0], [1], [0, 0, 1, 1], [], []>} : vector<16x48xf32>, vector<48x128xf32>, vector<16x128xf32> -> vector<16x128xf32>
    %c0_4 = arith.constant 0 : index
    %c0_5 = arith.constant 0 : index
    %4 = vector.load %arg3[%c0_4, %c0_5] : memref<1x128xf32, #tpu.memory_space<vmem>>, vector<1x128xf32>
    %c0_6 = arith.constant 0 : index
    %c0_7 = arith.constant 0 : index
    %5 = vector.load %arg4[%c0_6, %c0_7] : memref<1x128xf32, #tpu.memory_space<vmem>>, vector<1x128xf32>
    %cst_8 = arith.constant dense<0.000000e+00> : vector<16xf32>
    %6 = vector.multi_reduction <add>, %3, %cst_8 [1] : vector<16x128xf32> to vector<16xf32>
    %7 = vector.shape_cast %6 : vector<16xf32> to vector<16x1xf32>
    %cst_9 = arith.constant 1.280000e+02 : f32
    %8 = vector.broadcast %cst_9 : f32 to vector<16x1xf32>
    %9 = arith.divf %7, %8 : vector<16x1xf32>
    %10 = vector.broadcast %9 : vector<16x1xf32> to vector<16x128xf32>
    %11 = arith.subf %3, %10 : vector<16x128xf32>
    %12 = arith.mulf %11, %11 : vector<16x128xf32>
    %cst_10 = arith.constant dense<0.000000e+00> : vector<16xf32>
    %13 = vector.multi_reduction <add>, %12, %cst_10 [1] : vector<16x128xf32> to vector<16xf32>
    %14 = vector.shape_cast %13 : vector<16xf32> to vector<16x1xf32>
    %cst_11 = arith.constant 1.280000e+02 : f32
    %15 = vector.broadcast %cst_11 : f32 to vector<16x1xf32>
    %16 = arith.divf %14, %15 : vector<16x1xf32>
    %cst_12 = arith.constant 9.99999974E-6 : f32
    %17 = vector.broadcast %cst_12 : f32 to vector<16x1xf32>
    %18 = arith.addf %16, %17 : vector<16x1xf32>
    %19 = math.rsqrt %18 : vector<16x1xf32>
    %20 = vector.broadcast %19 : vector<16x1xf32> to vector<16x128xf32>
    %21 = arith.mulf %11, %20 : vector<16x128xf32>
    %22 = vector.broadcast %4 : vector<1x128xf32> to vector<16x128xf32>
    %23 = arith.mulf %21, %22 : vector<16x128xf32>
    %24 = vector.broadcast %5 : vector<1x128xf32> to vector<16x128xf32>
    %25 = arith.addf %23, %24 : vector<16x128xf32>
    %c0_13 = arith.constant 0 : index
    %c0_14 = arith.constant 0 : index
    %26 = vector.load %arg5[%c0_13, %c0_14] : memref<24x128xf32, #tpu.memory_space<vmem>>, vector<24x128xf32>
    %c0_15 = arith.constant 0 : index
    %c0_16 = arith.constant 0 : index
    %c0_17 = arith.constant 0 : index
    %27 = vector.load %arg6[%c0_15, %c0_16, %c0_17] : memref<1x24x128xf32, #tpu.memory_space<vmem>>, vector<1x24x128xf32>
    %28 = vector.shape_cast %27 : vector<1x24x128xf32> to vector<24x128xf32>
    %29 = vector.shape_cast %26 : vector<24x128xf32> to vector<1x24x128xf32>
    tpu.vector_store %arg6[%c0_15, %c0_16, %c0_17], %29 {strides = array<i32>} : memref<1x24x128xf32, #tpu.memory_space<vmem>>, vector<1x24x128xf32>,
    %30 = vector.extract_strided_slice %26 {offsets = [1, 0], sizes = [16, 128], strides = [1, 1]} : vector<24x128xf32> to vector<16x128xf32>
    %31 = arith.addf %25, %30 : vector<16x128xf32>
    %c0_18 = arith.constant 0 : index
    %c1 = arith.constant 1 : index
    %c0_19 = arith.constant 0 : index
    %32 = vector.load %arg6[%c0_18, %c1, %c0_19] : memref<1x24x128xf32, #tpu.memory_space<vmem>>, vector<1x16x128xf32>
    %33 = vector.shape_cast %32 : vector<1x16x128xf32> to vector<16x128xf32>
    %34 = vector.shape_cast %31 : vector<16x128xf32> to vector<1x16x128xf32>
    tpu.vector_store %arg6[%c0_18, %c1, %c0_19], %34 {strides = array<i32>} : memref<1x24x128xf32, #tpu.memory_space<vmem>>, vector<1x16x128xf32>,
    return
  }
  func.func @transform_0(%arg0: i32) -> (i32, i32, i32) {
    %c0_i32 = arith.constant 0 : i32
    %c0_i32_0 = arith.constant 0 : i32
    %c0_i32_1 = arith.constant 0 : i32
    return %arg0, %c0_i32, %c0_i32_0 : i32, i32, i32
  }
  func.func @transform_1(%arg0: i32) -> (i32, i32) {
    %c0_i32 = arith.constant 0 : i32
    %c0_i32_0 = arith.constant 0 : i32
    %c0_i32_1 = arith.constant 0 : i32
    return %c0_i32, %c0_i32_0 : i32, i32
  }
  func.func @transform_2(%arg0: i32) -> (i32, i32) {
    %c0_i32 = arith.constant 0 : i32
    %c0_i32_0 = arith.constant 0 : i32
    %c0_i32_1 = arith.constant 0 : i32
    return %c0_i32, %c0_i32_0 : i32, i32
  }
  func.func @transform_3(%arg0: i32) -> (i32, i32) {
    %c0_i32 = arith.constant 0 : i32
    %c0_i32_0 = arith.constant 0 : i32
    %c0_i32_1 = arith.constant 0 : i32
    return %c0_i32, %c0_i32_0 : i32, i32
  }
  func.func @transform_4(%arg0: i32) -> (i32, i32) {
    %c0_i32 = arith.constant 0 : i32
    %c0_i32_0 = arith.constant 0 : i32
    %c0_i32_1 = arith.constant 0 : i32
    return %c0_i32, %c0_i32_0 : i32, i32
  }
  func.func @transform_5(%arg0: i32) -> (i32, i32, i32) {
    %c0_i32 = arith.constant 0 : i32
    %c0_i32_0 = arith.constant 0 : i32
    %c0_i32_1 = arith.constant 0 : i32
    return %arg0, %c0_i32, %c0_i32_0 : i32, i32, i32
  }
}

module attributes {stable_mosaic.version = 11 : i64} {
  func.func @_block_kernel(%arg0: i32, %arg1: memref<1x24x128xf32, #tpu.memory_space<vmem>>, %arg2: memref<1x128xf32, #tpu.memory_space<vmem>>, %arg3: memref<1x128xf32, #tpu.memory_space<vmem>>, %arg4: memref<128x384xbf16, #tpu.memory_space<vmem>>, %arg5: memref<1x384xf32, #tpu.memory_space<vmem>>, %arg6: memref<1x128xf32, #tpu.memory_space<vmem>>, %arg7: memref<1x128xf32, #tpu.memory_space<vmem>>, %arg8: memref<128x128xbf16, #tpu.memory_space<vmem>>, %arg9: memref<1x128xf32, #tpu.memory_space<vmem>>, %arg10: memref<1x128xf32, #tpu.memory_space<vmem>>, %arg11: memref<1x128xf32, #tpu.memory_space<vmem>>, %arg12: memref<128x512xbf16, #tpu.memory_space<vmem>>, %arg13: memref<1x512xf32, #tpu.memory_space<vmem>>, %arg14: memref<512x128xbf16, #tpu.memory_space<vmem>>, %arg15: memref<1x128xf32, #tpu.memory_space<vmem>>, %arg16: memref<1x24x128xf32, #tpu.memory_space<vmem>>) attributes {dimension_semantics = [#tpu.dimension_semantics<parallel>], iteration_bounds = array<i64: 2>, scalar_prefetch = 0 : i64, scratch_operands = 0 : i64, tpu.core_type = #tpu.core_type<tc>, window_params = [{transform_indices = @transform_0, window_bounds = array<i64: 1, 24, 128>}, {pipeline_mode = #tpu.pipeline_mode<synchronous>, transform_indices = @transform_1, window_bounds = array<i64: 1, 128>}, {pipeline_mode = #tpu.pipeline_mode<synchronous>, transform_indices = @transform_2, window_bounds = array<i64: 1, 128>}, {pipeline_mode = #tpu.pipeline_mode<synchronous>, transform_indices = @transform_3, window_bounds = array<i64: 128, 384>}, {pipeline_mode = #tpu.pipeline_mode<synchronous>, transform_indices = @transform_4, window_bounds = array<i64: 1, 384>}, {pipeline_mode = #tpu.pipeline_mode<synchronous>, transform_indices = @transform_5, window_bounds = array<i64: 1, 128>}, {pipeline_mode = #tpu.pipeline_mode<synchronous>, transform_indices = @transform_6, window_bounds = array<i64: 1, 128>}, {pipeline_mode = #tpu.pipeline_mode<synchronous>, transform_indices = @transform_7, window_bounds = array<i64: 128, 128>}, {pipeline_mode = #tpu.pipeline_mode<synchronous>, transform_indices = @transform_8, window_bounds = array<i64: 1, 128>}, {pipeline_mode = #tpu.pipeline_mode<synchronous>, transform_indices = @transform_9, window_bounds = array<i64: 1, 128>}, {pipeline_mode = #tpu.pipeline_mode<synchronous>, transform_indices = @transform_10, window_bounds = array<i64: 1, 128>}, {pipeline_mode = #tpu.pipeline_mode<synchronous>, transform_indices = @transform_11, window_bounds = array<i64: 128, 512>}, {pipeline_mode = #tpu.pipeline_mode<synchronous>, transform_indices = @transform_12, window_bounds = array<i64: 1, 512>}, {pipeline_mode = #tpu.pipeline_mode<synchronous>, transform_indices = @transform_13, window_bounds = array<i64: 512, 128>}, {pipeline_mode = #tpu.pipeline_mode<synchronous>, transform_indices = @transform_14, window_bounds = array<i64: 1, 128>}, {transform_indices = @transform_15, window_bounds = array<i64: 1, 24, 128>}]} {
    %c0 = arith.constant 0 : index
    %c0_0 = arith.constant 0 : index
    %c0_1 = arith.constant 0 : index
    %0 = vector.load %arg1[%c0, %c0_0, %c0_1] : memref<1x24x128xf32, #tpu.memory_space<vmem>>, vector<1x24x128xf32>
    %1 = vector.shape_cast %0 : vector<1x24x128xf32> to vector<24x128xf32>
    %c0_2 = arith.constant 0 : index
    %c0_3 = arith.constant 0 : index
    %2 = vector.load %arg2[%c0_2, %c0_3] : memref<1x128xf32, #tpu.memory_space<vmem>>, vector<1x128xf32>
    %c0_4 = arith.constant 0 : index
    %c0_5 = arith.constant 0 : index
    %3 = vector.load %arg3[%c0_4, %c0_5] : memref<1x128xf32, #tpu.memory_space<vmem>>, vector<1x128xf32>
    %cst = arith.constant dense<0.000000e+00> : vector<24xf32>
    %4 = vector.multi_reduction <add>, %1, %cst [1] : vector<24x128xf32> to vector<24xf32>
    %5 = vector.shape_cast %4 : vector<24xf32> to vector<24x1xf32>
    %cst_6 = arith.constant 1.280000e+02 : f32
    %6 = vector.broadcast %cst_6 : f32 to vector<24x1xf32>
    %7 = arith.divf %5, %6 : vector<24x1xf32>
    %8 = vector.broadcast %7 : vector<24x1xf32> to vector<24x128xf32>
    %9 = arith.subf %1, %8 : vector<24x128xf32>
    %10 = arith.mulf %9, %9 : vector<24x128xf32>
    %cst_7 = arith.constant dense<0.000000e+00> : vector<24xf32>
    %11 = vector.multi_reduction <add>, %10, %cst_7 [1] : vector<24x128xf32> to vector<24xf32>
    %12 = vector.shape_cast %11 : vector<24xf32> to vector<24x1xf32>
    %cst_8 = arith.constant 1.280000e+02 : f32
    %13 = vector.broadcast %cst_8 : f32 to vector<24x1xf32>
    %14 = arith.divf %12, %13 : vector<24x1xf32>
    %cst_9 = arith.constant 9.99999997E-7 : f32
    %15 = vector.broadcast %cst_9 : f32 to vector<24x1xf32>
    %16 = arith.addf %14, %15 : vector<24x1xf32>
    %17 = math.rsqrt %16 : vector<24x1xf32>
    %18 = vector.broadcast %17 : vector<24x1xf32> to vector<24x128xf32>
    %19 = arith.mulf %9, %18 : vector<24x128xf32>
    %20 = vector.broadcast %2 : vector<1x128xf32> to vector<24x128xf32>
    %21 = arith.mulf %19, %20 : vector<24x128xf32>
    %22 = vector.broadcast %3 : vector<1x128xf32> to vector<24x128xf32>
    %23 = arith.addf %21, %22 : vector<24x128xf32>
    %24 = arith.truncf %23 : vector<24x128xf32> to vector<24x128xbf16>
    %c0_10 = arith.constant 0 : index
    %c0_11 = arith.constant 0 : index
    %25 = vector.load %arg4[%c0_10, %c0_11] : memref<128x384xbf16, #tpu.memory_space<vmem>>, vector<128x384xbf16>
    %cst_12 = arith.constant dense<0.000000e+00> : vector<24x384xf32>
    %26 = tpu.matmul %24, %25, %cst_12 {dimension_numbers = #tpu.dot_dimension_numbers<[1], [0], [0], [1], [0, 0, 1, 1], [], []>} : vector<24x128xbf16>, vector<128x384xbf16>, vector<24x384xf32> -> vector<24x384xf32>
    %c0_13 = arith.constant 0 : index
    %c0_14 = arith.constant 0 : index
    %27 = vector.load %arg5[%c0_13, %c0_14] : memref<1x384xf32, #tpu.memory_space<vmem>>, vector<1x384xf32>
    %28 = vector.broadcast %27 : vector<1x384xf32> to vector<24x384xf32>
    %29 = arith.addf %26, %28 : vector<24x384xf32>
    %30 = vector.extract_strided_slice %29 {offsets = [0, 0], sizes = [24, 128], strides = [1, 1]} : vector<24x384xf32> to vector<24x128xf32>
    %31 = vector.extract_strided_slice %29 {offsets = [0, 128], sizes = [24, 128], strides = [1, 1]} : vector<24x384xf32> to vector<24x128xf32>
    %32 = vector.extract_strided_slice %29 {offsets = [0, 256], sizes = [24, 128], strides = [1, 1]} : vector<24x384xf32> to vector<24x128xf32>
    %33 = tpu.iota {dimensions = array<i32: 0>} : vector<24x1xi32>
    %c17_i32 = arith.constant 17 : i32
    %34 = vector.broadcast %c17_i32 : i32 to vector<24x1xi32>
    %35 = arith.cmpi eq, %33, %34 : vector<24x1xi32>
    %c0_15 = arith.constant 0 : index
    %c0_16 = arith.constant 0 : index
    %36 = vector.load %arg6[%c0_15, %c0_16] : memref<1x128xf32, #tpu.memory_space<vmem>>, vector<1x128xf32>
    %37 = vector.shape_cast %35 : vector<24x1xi1> to vector<24x1xi1>
    %38 = vector.broadcast %37 : vector<24x1xi1> to vector<24x128xi1>
    %39 = vector.shape_cast %36 : vector<1x128xf32> to vector<1x128xf32>
    %40 = vector.broadcast %39 : vector<1x128xf32> to vector<24x128xf32>
    %41 = arith.select %38, %40, %31 : vector<24x128xi1>, vector<24x128xf32>
    %c0_17 = arith.constant 0 : index
    %c0_18 = arith.constant 0 : index
    %42 = vector.load %arg7[%c0_17, %c0_18] : memref<1x128xf32, #tpu.memory_space<vmem>>, vector<1x128xf32>
    %43 = vector.shape_cast %35 : vector<24x1xi1> to vector<24x1xi1>
    %44 = vector.broadcast %43 : vector<24x1xi1> to vector<24x128xi1>
    %45 = vector.shape_cast %42 : vector<1x128xf32> to vector<1x128xf32>
    %46 = vector.broadcast %45 : vector<1x128xf32> to vector<24x128xf32>
    %47 = arith.select %44, %46, %32 : vector<24x128xi1>, vector<24x128xf32>
    %48 = tpu.iota {dimensions = array<i32: 1>} : vector<24x24xi32>
    %c17_i32_19 = arith.constant 17 : i32
    %49 = vector.broadcast %c17_i32_19 : i32 to vector<24x24xi32>
    %50 = arith.cmpi sle, %48, %49 : vector<24x24xi32>
    %51 = vector.extract_strided_slice %30 {offsets = [0, 0], sizes = [24, 32], strides = [1, 1]} : vector<24x128xf32> to vector<24x32xf32>
    %52 = arith.truncf %51 : vector<24x32xf32> to vector<24x32xbf16>
    %53 = vector.extract_strided_slice %41 {offsets = [0, 0], sizes = [24, 32], strides = [1, 1]} : vector<24x128xf32> to vector<24x32xf32>
    %54 = arith.truncf %53 : vector<24x32xf32> to vector<24x32xbf16>
    %55 = vector.extract_strided_slice %47 {offsets = [0, 0], sizes = [24, 32], strides = [1, 1]} : vector<24x128xf32> to vector<24x32xf32>
    %56 = arith.truncf %55 : vector<24x32xf32> to vector<24x32xbf16>
    %cst_20 = arith.constant dense<0.000000e+00> : vector<24x24xf32>
    %57 = tpu.matmul %52, %54, %cst_20 {dimension_numbers = #tpu.dot_dimension_numbers<[1], [1], [0], [0], [0, 0, 1, 0], [], []>} : vector<24x32xbf16>, vector<24x32xbf16>, vector<24x24xf32> -> vector<24x24xf32>
    %cst_21 = arith.constant -1.000000e+30 : f32
    %58 = vector.broadcast %cst_21 : f32 to vector<24x24xf32>
    %59 = arith.select %50, %57, %58 : vector<24x24xi1>, vector<24x24xf32>
    %cst_22 = arith.constant dense<0xFF800000> : vector<24xf32>
    %60 = vector.multi_reduction <maximumf>, %59, %cst_22 [1] : vector<24x24xf32> to vector<24xf32>
    %61 = vector.shape_cast %60 : vector<24xf32> to vector<24x1xf32>
    %62 = vector.broadcast %61 : vector<24x1xf32> to vector<24x24xf32>
    %63 = arith.subf %59, %62 : vector<24x24xf32>
    %64 = math.exp %63 : vector<24x24xf32>
    %cst_23 = arith.constant dense<0.000000e+00> : vector<24xf32>
    %65 = vector.multi_reduction <add>, %64, %cst_23 [1] : vector<24x24xf32> to vector<24xf32>
    %66 = vector.shape_cast %65 : vector<24xf32> to vector<24x1xf32>
    %67 = tpu.reciprocal %66 {approx = true} : vector<24x1xf32> -> vector<24x1xf32>
    %68 = vector.broadcast %67 : vector<24x1xf32> to vector<24x24xf32>
    %69 = arith.mulf %64, %68 : vector<24x24xf32>
    %70 = arith.truncf %69 : vector<24x24xf32> to vector<24x24xbf16>
    %cst_24 = arith.constant dense<0.000000e+00> : vector<24x32xf32>
    %71 = tpu.matmul %70, %56, %cst_24 {dimension_numbers = #tpu.dot_dimension_numbers<[1], [0], [0], [1], [0, 0, 1, 1], [], []>} : vector<24x24xbf16>, vector<24x32xbf16>, vector<24x32xf32> -> vector<24x32xf32>
    %72 = vector.extract_strided_slice %30 {offsets = [0, 32], sizes = [24, 32], strides = [1, 1]} : vector<24x128xf32> to vector<24x32xf32>
    %73 = arith.truncf %72 : vector<24x32xf32> to vector<24x32xbf16>
    %74 = vector.extract_strided_slice %41 {offsets = [0, 32], sizes = [24, 32], strides = [1, 1]} : vector<24x128xf32> to vector<24x32xf32>
    %75 = arith.truncf %74 : vector<24x32xf32> to vector<24x32xbf16>
    %76 = vector.extract_strided_slice %47 {offsets = [0, 32], sizes = [24, 32], strides = [1, 1]} : vector<24x128xf32> to vector<24x32xf32>
    %77 = arith.truncf %76 : vector<24x32xf32> to vector<24x32xbf16>
    %cst_25 = arith.constant dense<0.000000e+00> : vector<24x24xf32>
    %78 = tpu.matmul %73, %75, %cst_25 {dimension_numbers = #tpu.dot_dimension_numbers<[1], [1], [0], [0], [0, 0, 1, 0], [], []>} : vector<24x32xbf16>, vector<24x32xbf16>, vector<24x24xf32> -> vector<24x24xf32>
    %cst_26 = arith.constant -1.000000e+30 : f32
    %79 = vector.broadcast %cst_26 : f32 to vector<24x24xf32>
    %80 = arith.select %50, %78, %79 : vector<24x24xi1>, vector<24x24xf32>
    %cst_27 = arith.constant dense<0xFF800000> : vector<24xf32>
    %81 = vector.multi_reduction <maximumf>, %80, %cst_27 [1] : vector<24x24xf32> to vector<24xf32>
    %82 = vector.shape_cast %81 : vector<24xf32> to vector<24x1xf32>
    %83 = vector.broadcast %82 : vector<24x1xf32> to vector<24x24xf32>
    %84 = arith.subf %80, %83 : vector<24x24xf32>
    %85 = math.exp %84 : vector<24x24xf32>
    %cst_28 = arith.constant dense<0.000000e+00> : vector<24xf32>
    %86 = vector.multi_reduction <add>, %85, %cst_28 [1] : vector<24x24xf32> to vector<24xf32>
    %87 = vector.shape_cast %86 : vector<24xf32> to vector<24x1xf32>
    %88 = tpu.reciprocal %87 {approx = true} : vector<24x1xf32> -> vector<24x1xf32>
    %89 = vector.broadcast %88 : vector<24x1xf32> to vector<24x24xf32>
    %90 = arith.mulf %85, %89 : vector<24x24xf32>
    %91 = arith.truncf %90 : vector<24x24xf32> to vector<24x24xbf16>
    %cst_29 = arith.constant dense<0.000000e+00> : vector<24x32xf32>
    %92 = tpu.matmul %91, %77, %cst_29 {dimension_numbers = #tpu.dot_dimension_numbers<[1], [0], [0], [1], [0, 0, 1, 1], [], []>} : vector<24x24xbf16>, vector<24x32xbf16>, vector<24x32xf32> -> vector<24x32xf32>
    %93 = vector.extract_strided_slice %30 {offsets = [0, 64], sizes = [24, 32], strides = [1, 1]} : vector<24x128xf32> to vector<24x32xf32>
    %94 = arith.truncf %93 : vector<24x32xf32> to vector<24x32xbf16>
    %95 = vector.extract_strided_slice %41 {offsets = [0, 64], sizes = [24, 32], strides = [1, 1]} : vector<24x128xf32> to vector<24x32xf32>
    %96 = arith.truncf %95 : vector<24x32xf32> to vector<24x32xbf16>
    %97 = vector.extract_strided_slice %47 {offsets = [0, 64], sizes = [24, 32], strides = [1, 1]} : vector<24x128xf32> to vector<24x32xf32>
    %98 = arith.truncf %97 : vector<24x32xf32> to vector<24x32xbf16>
    %cst_30 = arith.constant dense<0.000000e+00> : vector<24x24xf32>
    %99 = tpu.matmul %94, %96, %cst_30 {dimension_numbers = #tpu.dot_dimension_numbers<[1], [1], [0], [0], [0, 0, 1, 0], [], []>} : vector<24x32xbf16>, vector<24x32xbf16>, vector<24x24xf32> -> vector<24x24xf32>
    %cst_31 = arith.constant -1.000000e+30 : f32
    %100 = vector.broadcast %cst_31 : f32 to vector<24x24xf32>
    %101 = arith.select %50, %99, %100 : vector<24x24xi1>, vector<24x24xf32>
    %cst_32 = arith.constant dense<0xFF800000> : vector<24xf32>
    %102 = vector.multi_reduction <maximumf>, %101, %cst_32 [1] : vector<24x24xf32> to vector<24xf32>
    %103 = vector.shape_cast %102 : vector<24xf32> to vector<24x1xf32>
    %104 = vector.broadcast %103 : vector<24x1xf32> to vector<24x24xf32>
    %105 = arith.subf %101, %104 : vector<24x24xf32>
    %106 = math.exp %105 : vector<24x24xf32>
    %cst_33 = arith.constant dense<0.000000e+00> : vector<24xf32>
    %107 = vector.multi_reduction <add>, %106, %cst_33 [1] : vector<24x24xf32> to vector<24xf32>
    %108 = vector.shape_cast %107 : vector<24xf32> to vector<24x1xf32>
    %109 = tpu.reciprocal %108 {approx = true} : vector<24x1xf32> -> vector<24x1xf32>
    %110 = vector.broadcast %109 : vector<24x1xf32> to vector<24x24xf32>
    %111 = arith.mulf %106, %110 : vector<24x24xf32>
    %112 = arith.truncf %111 : vector<24x24xf32> to vector<24x24xbf16>
    %cst_34 = arith.constant dense<0.000000e+00> : vector<24x32xf32>
    %113 = tpu.matmul %112, %98, %cst_34 {dimension_numbers = #tpu.dot_dimension_numbers<[1], [0], [0], [1], [0, 0, 1, 1], [], []>} : vector<24x24xbf16>, vector<24x32xbf16>, vector<24x32xf32> -> vector<24x32xf32>
    %114 = vector.extract_strided_slice %30 {offsets = [0, 96], sizes = [24, 32], strides = [1, 1]} : vector<24x128xf32> to vector<24x32xf32>
    %115 = arith.truncf %114 : vector<24x32xf32> to vector<24x32xbf16>
    %116 = vector.extract_strided_slice %41 {offsets = [0, 96], sizes = [24, 32], strides = [1, 1]} : vector<24x128xf32> to vector<24x32xf32>
    %117 = arith.truncf %116 : vector<24x32xf32> to vector<24x32xbf16>
    %118 = vector.extract_strided_slice %47 {offsets = [0, 96], sizes = [24, 32], strides = [1, 1]} : vector<24x128xf32> to vector<24x32xf32>
    %119 = arith.truncf %118 : vector<24x32xf32> to vector<24x32xbf16>
    %cst_35 = arith.constant dense<0.000000e+00> : vector<24x24xf32>
    %120 = tpu.matmul %115, %117, %cst_35 {dimension_numbers = #tpu.dot_dimension_numbers<[1], [1], [0], [0], [0, 0, 1, 0], [], []>} : vector<24x32xbf16>, vector<24x32xbf16>, vector<24x24xf32> -> vector<24x24xf32>
    %cst_36 = arith.constant -1.000000e+30 : f32
    %121 = vector.broadcast %cst_36 : f32 to vector<24x24xf32>
    %122 = arith.select %50, %120, %121 : vector<24x24xi1>, vector<24x24xf32>
    %cst_37 = arith.constant dense<0xFF800000> : vector<24xf32>
    %123 = vector.multi_reduction <maximumf>, %122, %cst_37 [1] : vector<24x24xf32> to vector<24xf32>
    %124 = vector.shape_cast %123 : vector<24xf32> to vector<24x1xf32>
    %125 = vector.broadcast %124 : vector<24x1xf32> to vector<24x24xf32>
    %126 = arith.subf %122, %125 : vector<24x24xf32>
    %127 = math.exp %126 : vector<24x24xf32>
    %cst_38 = arith.constant dense<0.000000e+00> : vector<24xf32>
    %128 = vector.multi_reduction <add>, %127, %cst_38 [1] : vector<24x24xf32> to vector<24xf32>
    %129 = vector.shape_cast %128 : vector<24xf32> to vector<24x1xf32>
    %130 = tpu.reciprocal %129 {approx = true} : vector<24x1xf32> -> vector<24x1xf32>
    %131 = vector.broadcast %130 : vector<24x1xf32> to vector<24x24xf32>
    %132 = arith.mulf %127, %131 : vector<24x24xf32>
    %133 = arith.truncf %132 : vector<24x24xf32> to vector<24x24xbf16>
    %cst_39 = arith.constant dense<0.000000e+00> : vector<24x32xf32>
    %134 = tpu.matmul %133, %119, %cst_39 {dimension_numbers = #tpu.dot_dimension_numbers<[1], [0], [0], [1], [0, 0, 1, 1], [], []>} : vector<24x24xbf16>, vector<24x32xbf16>, vector<24x32xf32> -> vector<24x32xf32>
    %135 = tpu.concatenate %71, %92, %113, %134 in 1 : vector<24x32xf32>, vector<24x32xf32>, vector<24x32xf32>, vector<24x32xf32> -> vector<24x128xf32>
    %136 = arith.truncf %135 : vector<24x128xf32> to vector<24x128xbf16>
    %c0_40 = arith.constant 0 : index
    %c0_41 = arith.constant 0 : index
    %137 = vector.load %arg8[%c0_40, %c0_41] : memref<128x128xbf16, #tpu.memory_space<vmem>>, vector<128x128xbf16>
    %cst_42 = arith.constant dense<0.000000e+00> : vector<24x128xf32>
    %138 = tpu.matmul %136, %137, %cst_42 {dimension_numbers = #tpu.dot_dimension_numbers<[1], [0], [0], [1], [0, 0, 1, 1], [], []>} : vector<24x128xbf16>, vector<128x128xbf16>, vector<24x128xf32> -> vector<24x128xf32>
    %c0_43 = arith.constant 0 : index
    %c0_44 = arith.constant 0 : index
    %139 = vector.load %arg9[%c0_43, %c0_44] : memref<1x128xf32, #tpu.memory_space<vmem>>, vector<1x128xf32>
    %140 = vector.broadcast %139 : vector<1x128xf32> to vector<24x128xf32>
    %141 = arith.addf %138, %140 : vector<24x128xf32>
    %142 = arith.addf %1, %141 : vector<24x128xf32>
    %c0_45 = arith.constant 0 : index
    %c0_46 = arith.constant 0 : index
    %143 = vector.load %arg10[%c0_45, %c0_46] : memref<1x128xf32, #tpu.memory_space<vmem>>, vector<1x128xf32>
    %c0_47 = arith.constant 0 : index
    %c0_48 = arith.constant 0 : index
    %144 = vector.load %arg11[%c0_47, %c0_48] : memref<1x128xf32, #tpu.memory_space<vmem>>, vector<1x128xf32>
    %cst_49 = arith.constant dense<0.000000e+00> : vector<24xf32>
    %145 = vector.multi_reduction <add>, %142, %cst_49 [1] : vector<24x128xf32> to vector<24xf32>
    %146 = vector.shape_cast %145 : vector<24xf32> to vector<24x1xf32>
    %cst_50 = arith.constant 1.280000e+02 : f32
    %147 = vector.broadcast %cst_50 : f32 to vector<24x1xf32>
    %148 = arith.divf %146, %147 : vector<24x1xf32>
    %149 = vector.broadcast %148 : vector<24x1xf32> to vector<24x128xf32>
    %150 = arith.subf %142, %149 : vector<24x128xf32>
    %151 = arith.mulf %150, %150 : vector<24x128xf32>
    %cst_51 = arith.constant dense<0.000000e+00> : vector<24xf32>
    %152 = vector.multi_reduction <add>, %151, %cst_51 [1] : vector<24x128xf32> to vector<24xf32>
    %153 = vector.shape_cast %152 : vector<24xf32> to vector<24x1xf32>
    %cst_52 = arith.constant 1.280000e+02 : f32
    %154 = vector.broadcast %cst_52 : f32 to vector<24x1xf32>
    %155 = arith.divf %153, %154 : vector<24x1xf32>
    %cst_53 = arith.constant 9.99999997E-7 : f32
    %156 = vector.broadcast %cst_53 : f32 to vector<24x1xf32>
    %157 = arith.addf %155, %156 : vector<24x1xf32>
    %158 = math.rsqrt %157 : vector<24x1xf32>
    %159 = vector.broadcast %158 : vector<24x1xf32> to vector<24x128xf32>
    %160 = arith.mulf %150, %159 : vector<24x128xf32>
    %161 = vector.broadcast %143 : vector<1x128xf32> to vector<24x128xf32>
    %162 = arith.mulf %160, %161 : vector<24x128xf32>
    %163 = vector.broadcast %144 : vector<1x128xf32> to vector<24x128xf32>
    %164 = arith.addf %162, %163 : vector<24x128xf32>
    %165 = arith.truncf %164 : vector<24x128xf32> to vector<24x128xbf16>
    %c0_54 = arith.constant 0 : index
    %c0_55 = arith.constant 0 : index
    %166 = vector.load %arg12[%c0_54, %c0_55] : memref<128x512xbf16, #tpu.memory_space<vmem>>, vector<128x512xbf16>
    %cst_56 = arith.constant dense<0.000000e+00> : vector<24x512xf32>
    %167 = tpu.matmul %165, %166, %cst_56 {dimension_numbers = #tpu.dot_dimension_numbers<[1], [0], [0], [1], [0, 0, 1, 1], [], []>} : vector<24x128xbf16>, vector<128x512xbf16>, vector<24x512xf32> -> vector<24x512xf32>
    %c0_57 = arith.constant 0 : index
    %c0_58 = arith.constant 0 : index
    %168 = vector.load %arg13[%c0_57, %c0_58] : memref<1x512xf32, #tpu.memory_space<vmem>>, vector<1x512xf32>
    %169 = vector.broadcast %168 : vector<1x512xf32> to vector<24x512xf32>
    %170 = arith.addf %167, %169 : vector<24x512xf32>
    %cst_59 = arith.constant 5.000000e-01 : f32
    %171 = vector.broadcast %cst_59 : f32 to vector<24x512xf32>
    %172 = arith.mulf %171, %170 : vector<24x512xf32>
    %cst_60 = arith.constant 0.707106769 : f32
    %173 = vector.broadcast %cst_60 : f32 to vector<24x512xf32>
    %174 = arith.mulf %170, %173 : vector<24x512xf32>
    %175 = math.absf %174 : vector<24x512xf32>
    %cst_61 = arith.constant 0.327591091 : f32
    %176 = vector.broadcast %cst_61 : f32 to vector<24x512xf32>
    %177 = arith.mulf %176, %175 : vector<24x512xf32>
    %cst_62 = arith.constant 1.000000e+00 : f32
    %178 = vector.broadcast %cst_62 : f32 to vector<24x512xf32>
    %179 = arith.addf %178, %177 : vector<24x512xf32>
    %cst_63 = arith.constant 1.000000e+00 : f32
    %180 = vector.broadcast %cst_63 : f32 to vector<24x512xf32>
    %181 = arith.divf %180, %179 : vector<24x512xf32>
    %cst_64 = arith.constant 1.06140542 : f32
    %182 = vector.broadcast %cst_64 : f32 to vector<24x512xf32>
    %183 = arith.mulf %182, %181 : vector<24x512xf32>
    %cst_65 = arith.constant -1.45315206 : f32
    %184 = vector.broadcast %cst_65 : f32 to vector<24x512xf32>
    %185 = arith.addf %183, %184 : vector<24x512xf32>
    %186 = arith.mulf %185, %181 : vector<24x512xf32>
    %cst_66 = arith.constant 1.42141378 : f32
    %187 = vector.broadcast %cst_66 : f32 to vector<24x512xf32>
    %188 = arith.addf %186, %187 : vector<24x512xf32>
    %189 = arith.mulf %188, %181 : vector<24x512xf32>
    %cst_67 = arith.constant -0.284496725 : f32
    %190 = vector.broadcast %cst_67 : f32 to vector<24x512xf32>
    %191 = arith.addf %189, %190 : vector<24x512xf32>
    %192 = arith.mulf %191, %181 : vector<24x512xf32>
    %cst_68 = arith.constant 0.254829586 : f32
    %193 = vector.broadcast %cst_68 : f32 to vector<24x512xf32>
    %194 = arith.addf %192, %193 : vector<24x512xf32>
    %195 = arith.mulf %194, %181 : vector<24x512xf32>
    %cst_69 = arith.constant 0.000000e+00 : f32
    %196 = vector.broadcast %cst_69 : f32 to vector<24x512xf32>
    %197 = arith.subf %196, %175 : vector<24x512xf32>
    %198 = arith.mulf %197, %175 : vector<24x512xf32>
    %199 = math.exp %198 : vector<24x512xf32>
    %200 = arith.mulf %195, %199 : vector<24x512xf32>
    %cst_70 = arith.constant 1.000000e+00 : f32
    %201 = vector.broadcast %cst_70 : f32 to vector<24x512xf32>
    %202 = arith.subf %201, %200 : vector<24x512xf32>
    %cst_71 = arith.constant 0.000000e+00 : f32
    %203 = vector.broadcast %cst_71 : f32 to vector<24x512xf32>
    %204 = arith.cmpf olt, %174, %203 : vector<24x512xf32>
    %cst_72 = arith.constant 0.000000e+00 : f32
    %205 = vector.broadcast %cst_72 : f32 to vector<24x512xf32>
    %206 = arith.subf %205, %202 : vector<24x512xf32>
    %207 = arith.select %204, %206, %202 : vector<24x512xi1>, vector<24x512xf32>
    %cst_73 = arith.constant 1.000000e+00 : f32
    %208 = vector.broadcast %cst_73 : f32 to vector<24x512xf32>
    %209 = arith.addf %208, %207 : vector<24x512xf32>
    %210 = arith.mulf %172, %209 : vector<24x512xf32>
    %211 = arith.truncf %210 : vector<24x512xf32> to vector<24x512xbf16>
    %c0_74 = arith.constant 0 : index
    %c0_75 = arith.constant 0 : index
    %212 = vector.load %arg14[%c0_74, %c0_75] : memref<512x128xbf16, #tpu.memory_space<vmem>>, vector<512x128xbf16>
    %cst_76 = arith.constant dense<0.000000e+00> : vector<24x128xf32>
    %213 = tpu.matmul %211, %212, %cst_76 {dimension_numbers = #tpu.dot_dimension_numbers<[1], [0], [0], [1], [0, 0, 1, 1], [], []>} : vector<24x512xbf16>, vector<512x128xbf16>, vector<24x128xf32> -> vector<24x128xf32>
    %c0_77 = arith.constant 0 : index
    %c0_78 = arith.constant 0 : index
    %214 = vector.load %arg15[%c0_77, %c0_78] : memref<1x128xf32, #tpu.memory_space<vmem>>, vector<1x128xf32>
    %215 = vector.broadcast %214 : vector<1x128xf32> to vector<24x128xf32>
    %216 = arith.addf %213, %215 : vector<24x128xf32>
    %217 = arith.addf %142, %216 : vector<24x128xf32>
    %c0_79 = arith.constant 0 : index
    %c0_80 = arith.constant 0 : index
    %c0_81 = arith.constant 0 : index
    %218 = vector.load %arg16[%c0_79, %c0_80, %c0_81] : memref<1x24x128xf32, #tpu.memory_space<vmem>>, vector<1x24x128xf32>
    %219 = vector.shape_cast %218 : vector<1x24x128xf32> to vector<24x128xf32>
    %220 = vector.shape_cast %217 : vector<24x128xf32> to vector<1x24x128xf32>
    tpu.vector_store %arg16[%c0_79, %c0_80, %c0_81], %220 {strides = array<i32>} : memref<1x24x128xf32, #tpu.memory_space<vmem>>, vector<1x24x128xf32>,
    return
  }
  func.func @transform_0(%arg0: i32) -> (i32, i32, i32) {
    %c0_i32 = arith.constant 0 : i32
    %c0_i32_0 = arith.constant 0 : i32
    %c0_i32_1 = arith.constant 0 : i32
    return %arg0, %c0_i32, %c0_i32_0 : i32, i32, i32
  }
  func.func @transform_1(%arg0: i32) -> (i32, i32) {
    %c0_i32 = arith.constant 0 : i32
    %c0_i32_0 = arith.constant 0 : i32
    %c0_i32_1 = arith.constant 0 : i32
    return %c0_i32, %c0_i32_0 : i32, i32
  }
  func.func @transform_2(%arg0: i32) -> (i32, i32) {
    %c0_i32 = arith.constant 0 : i32
    %c0_i32_0 = arith.constant 0 : i32
    %c0_i32_1 = arith.constant 0 : i32
    return %c0_i32, %c0_i32_0 : i32, i32
  }
  func.func @transform_3(%arg0: i32) -> (i32, i32) {
    %c0_i32 = arith.constant 0 : i32
    %c0_i32_0 = arith.constant 0 : i32
    %c0_i32_1 = arith.constant 0 : i32
    return %c0_i32, %c0_i32_0 : i32, i32
  }
  func.func @transform_4(%arg0: i32) -> (i32, i32) {
    %c0_i32 = arith.constant 0 : i32
    %c0_i32_0 = arith.constant 0 : i32
    %c0_i32_1 = arith.constant 0 : i32
    return %c0_i32, %c0_i32_0 : i32, i32
  }
  func.func @transform_5(%arg0: i32) -> (i32, i32) {
    %c0_i32 = arith.constant 0 : i32
    %c0_i32_0 = arith.constant 0 : i32
    %c0_i32_1 = arith.constant 0 : i32
    return %c0_i32, %c0_i32_0 : i32, i32
  }
  func.func @transform_6(%arg0: i32) -> (i32, i32) {
    %c0_i32 = arith.constant 0 : i32
    %c0_i32_0 = arith.constant 0 : i32
    %c0_i32_1 = arith.constant 0 : i32
    return %c0_i32, %c0_i32_0 : i32, i32
  }
  func.func @transform_7(%arg0: i32) -> (i32, i32) {
    %c0_i32 = arith.constant 0 : i32
    %c0_i32_0 = arith.constant 0 : i32
    %c0_i32_1 = arith.constant 0 : i32
    return %c0_i32, %c0_i32_0 : i32, i32
  }
  func.func @transform_8(%arg0: i32) -> (i32, i32) {
    %c0_i32 = arith.constant 0 : i32
    %c0_i32_0 = arith.constant 0 : i32
    %c0_i32_1 = arith.constant 0 : i32
    return %c0_i32, %c0_i32_0 : i32, i32
  }
  func.func @transform_9(%arg0: i32) -> (i32, i32) {
    %c0_i32 = arith.constant 0 : i32
    %c0_i32_0 = arith.constant 0 : i32
    %c0_i32_1 = arith.constant 0 : i32
    return %c0_i32, %c0_i32_0 : i32, i32
  }
  func.func @transform_10(%arg0: i32) -> (i32, i32) {
    %c0_i32 = arith.constant 0 : i32
    %c0_i32_0 = arith.constant 0 : i32
    %c0_i32_1 = arith.constant 0 : i32
    return %c0_i32, %c0_i32_0 : i32, i32
  }
  func.func @transform_11(%arg0: i32) -> (i32, i32) {
    %c0_i32 = arith.constant 0 : i32
    %c0_i32_0 = arith.constant 0 : i32
    %c0_i32_1 = arith.constant 0 : i32
    return %c0_i32, %c0_i32_0 : i32, i32
  }
  func.func @transform_12(%arg0: i32) -> (i32, i32) {
    %c0_i32 = arith.constant 0 : i32
    %c0_i32_0 = arith.constant 0 : i32
    %c0_i32_1 = arith.constant 0 : i32
    return %c0_i32, %c0_i32_0 : i32, i32
  }
  func.func @transform_13(%arg0: i32) -> (i32, i32) {
    %c0_i32 = arith.constant 0 : i32
    %c0_i32_0 = arith.constant 0 : i32
    %c0_i32_1 = arith.constant 0 : i32
    return %c0_i32, %c0_i32_0 : i32, i32
  }
  func.func @transform_14(%arg0: i32) -> (i32, i32) {
    %c0_i32 = arith.constant 0 : i32
    %c0_i32_0 = arith.constant 0 : i32
    %c0_i32_1 = arith.constant 0 : i32
    return %c0_i32, %c0_i32_0 : i32, i32
  }
  func.func @transform_15(%arg0: i32) -> (i32, i32, i32) {
    %c0_i32 = arith.constant 0 : i32
    %c0_i32_0 = arith.constant 0 : i32
    %c0_i32_1 = arith.constant 0 : i32
    return %arg0, %c0_i32, %c0_i32_0 : i32, i32, i32
  }
}

module attributes {stable_mosaic.version = 11 : i64} {
  func.func @_block_kernel(%arg0: i32, %arg1: memref<1x24x128xf32, #tpu.memory_space<vmem>>, %arg2: memref<1x128xf32, #tpu.memory_space<vmem>>, %arg3: memref<1x128xf32, #tpu.memory_space<vmem>>, %arg4: memref<128x384xbf16, #tpu.memory_space<vmem>>, %arg5: memref<1x384xf32, #tpu.memory_space<vmem>>, %arg6: memref<1x128xf32, #tpu.memory_space<vmem>>, %arg7: memref<1x128xf32, #tpu.memory_space<vmem>>, %arg8: memref<128x128xbf16, #tpu.memory_space<vmem>>, %arg9: memref<1x128xf32, #tpu.memory_space<vmem>>, %arg10: memref<1x128xf32, #tpu.memory_space<vmem>>, %arg11: memref<1x128xf32, #tpu.memory_space<vmem>>, %arg12: memref<128x512xbf16, #tpu.memory_space<vmem>>, %arg13: memref<1x512xf32, #tpu.memory_space<vmem>>, %arg14: memref<512x128xbf16, #tpu.memory_space<vmem>>, %arg15: memref<1x128xf32, #tpu.memory_space<vmem>>, %arg16: memref<1x24x128xf32, #tpu.memory_space<vmem>>) attributes {dimension_semantics = [#tpu.dimension_semantics<parallel>], iteration_bounds = array<i64: 2>, scalar_prefetch = 0 : i64, scratch_operands = 0 : i64, tpu.core_type = #tpu.core_type<tc>, window_params = [{transform_indices = @transform_0, window_bounds = array<i64: 1, 24, 128>}, {pipeline_mode = #tpu.pipeline_mode<synchronous>, transform_indices = @transform_1, window_bounds = array<i64: 1, 128>}, {pipeline_mode = #tpu.pipeline_mode<synchronous>, transform_indices = @transform_2, window_bounds = array<i64: 1, 128>}, {pipeline_mode = #tpu.pipeline_mode<synchronous>, transform_indices = @transform_3, window_bounds = array<i64: 128, 384>}, {pipeline_mode = #tpu.pipeline_mode<synchronous>, transform_indices = @transform_4, window_bounds = array<i64: 1, 384>}, {pipeline_mode = #tpu.pipeline_mode<synchronous>, transform_indices = @transform_5, window_bounds = array<i64: 1, 128>}, {pipeline_mode = #tpu.pipeline_mode<synchronous>, transform_indices = @transform_6, window_bounds = array<i64: 1, 128>}, {pipeline_mode = #tpu.pipeline_mode<synchronous>, transform_indices = @transform_7, window_bounds = array<i64: 128, 128>}, {pipeline_mode = #tpu.pipeline_mode<synchronous>, transform_indices = @transform_8, window_bounds = array<i64: 1, 128>}, {pipeline_mode = #tpu.pipeline_mode<synchronous>, transform_indices = @transform_9, window_bounds = array<i64: 1, 128>}, {pipeline_mode = #tpu.pipeline_mode<synchronous>, transform_indices = @transform_10, window_bounds = array<i64: 1, 128>}, {pipeline_mode = #tpu.pipeline_mode<synchronous>, transform_indices = @transform_11, window_bounds = array<i64: 128, 512>}, {pipeline_mode = #tpu.pipeline_mode<synchronous>, transform_indices = @transform_12, window_bounds = array<i64: 1, 512>}, {pipeline_mode = #tpu.pipeline_mode<synchronous>, transform_indices = @transform_13, window_bounds = array<i64: 512, 128>}, {pipeline_mode = #tpu.pipeline_mode<synchronous>, transform_indices = @transform_14, window_bounds = array<i64: 1, 128>}, {transform_indices = @transform_15, window_bounds = array<i64: 1, 24, 128>}]} {
    %c0 = arith.constant 0 : index
    %c0_0 = arith.constant 0 : index
    %c0_1 = arith.constant 0 : index
    %0 = vector.load %arg1[%c0, %c0_0, %c0_1] : memref<1x24x128xf32, #tpu.memory_space<vmem>>, vector<1x24x128xf32>
    %1 = vector.shape_cast %0 : vector<1x24x128xf32> to vector<24x128xf32>
    %c0_2 = arith.constant 0 : index
    %c0_3 = arith.constant 0 : index
    %2 = vector.load %arg2[%c0_2, %c0_3] : memref<1x128xf32, #tpu.memory_space<vmem>>, vector<1x128xf32>
    %c0_4 = arith.constant 0 : index
    %c0_5 = arith.constant 0 : index
    %3 = vector.load %arg3[%c0_4, %c0_5] : memref<1x128xf32, #tpu.memory_space<vmem>>, vector<1x128xf32>
    %cst = arith.constant dense<0.000000e+00> : vector<24xf32>
    %4 = vector.multi_reduction <add>, %1, %cst [1] : vector<24x128xf32> to vector<24xf32>
    %5 = vector.shape_cast %4 : vector<24xf32> to vector<24x1xf32>
    %cst_6 = arith.constant 1.280000e+02 : f32
    %6 = vector.broadcast %cst_6 : f32 to vector<24x1xf32>
    %7 = arith.divf %5, %6 : vector<24x1xf32>
    %8 = vector.broadcast %7 : vector<24x1xf32> to vector<24x128xf32>
    %9 = arith.subf %1, %8 : vector<24x128xf32>
    %10 = arith.mulf %9, %9 : vector<24x128xf32>
    %cst_7 = arith.constant dense<0.000000e+00> : vector<24xf32>
    %11 = vector.multi_reduction <add>, %10, %cst_7 [1] : vector<24x128xf32> to vector<24xf32>
    %12 = vector.shape_cast %11 : vector<24xf32> to vector<24x1xf32>
    %cst_8 = arith.constant 1.280000e+02 : f32
    %13 = vector.broadcast %cst_8 : f32 to vector<24x1xf32>
    %14 = arith.divf %12, %13 : vector<24x1xf32>
    %cst_9 = arith.constant 9.99999997E-7 : f32
    %15 = vector.broadcast %cst_9 : f32 to vector<24x1xf32>
    %16 = arith.addf %14, %15 : vector<24x1xf32>
    %17 = math.rsqrt %16 : vector<24x1xf32>
    %18 = vector.broadcast %17 : vector<24x1xf32> to vector<24x128xf32>
    %19 = arith.mulf %9, %18 : vector<24x128xf32>
    %20 = vector.broadcast %2 : vector<1x128xf32> to vector<24x128xf32>
    %21 = arith.mulf %19, %20 : vector<24x128xf32>
    %22 = vector.broadcast %3 : vector<1x128xf32> to vector<24x128xf32>
    %23 = arith.addf %21, %22 : vector<24x128xf32>
    %24 = arith.truncf %23 : vector<24x128xf32> to vector<24x128xbf16>
    %c0_10 = arith.constant 0 : index
    %c0_11 = arith.constant 0 : index
    %25 = vector.load %arg4[%c0_10, %c0_11] : memref<128x384xbf16, #tpu.memory_space<vmem>>, vector<128x384xbf16>
    %cst_12 = arith.constant dense<0.000000e+00> : vector<24x384xf32>
    %26 = tpu.matmul %24, %25, %cst_12 {dimension_numbers = #tpu.dot_dimension_numbers<[1], [0], [0], [1], [0, 0, 1, 1], [], []>} : vector<24x128xbf16>, vector<128x384xbf16>, vector<24x384xf32> -> vector<24x384xf32>
    %c0_13 = arith.constant 0 : index
    %c0_14 = arith.constant 0 : index
    %27 = vector.load %arg5[%c0_13, %c0_14] : memref<1x384xf32, #tpu.memory_space<vmem>>, vector<1x384xf32>
    %28 = vector.broadcast %27 : vector<1x384xf32> to vector<24x384xf32>
    %29 = arith.addf %26, %28 : vector<24x384xf32>
    %30 = vector.extract_strided_slice %29 {offsets = [0, 0], sizes = [24, 128], strides = [1, 1]} : vector<24x384xf32> to vector<24x128xf32>
    %31 = vector.extract_strided_slice %29 {offsets = [0, 128], sizes = [24, 128], strides = [1, 1]} : vector<24x384xf32> to vector<24x128xf32>
    %32 = vector.extract_strided_slice %29 {offsets = [0, 256], sizes = [24, 128], strides = [1, 1]} : vector<24x384xf32> to vector<24x128xf32>
    %33 = tpu.iota {dimensions = array<i32: 0>} : vector<24x1xi32>
    %c17_i32 = arith.constant 17 : i32
    %34 = vector.broadcast %c17_i32 : i32 to vector<24x1xi32>
    %35 = arith.cmpi eq, %33, %34 : vector<24x1xi32>
    %c0_15 = arith.constant 0 : index
    %c0_16 = arith.constant 0 : index
    %36 = vector.load %arg6[%c0_15, %c0_16] : memref<1x128xf32, #tpu.memory_space<vmem>>, vector<1x128xf32>
    %37 = vector.shape_cast %35 : vector<24x1xi1> to vector<24x1xi1>
    %38 = vector.broadcast %37 : vector<24x1xi1> to vector<24x128xi1>
    %39 = vector.shape_cast %36 : vector<1x128xf32> to vector<1x128xf32>
    %40 = vector.broadcast %39 : vector<1x128xf32> to vector<24x128xf32>
    %41 = arith.select %38, %40, %31 : vector<24x128xi1>, vector<24x128xf32>
    %c0_17 = arith.constant 0 : index
    %c0_18 = arith.constant 0 : index
    %42 = vector.load %arg7[%c0_17, %c0_18] : memref<1x128xf32, #tpu.memory_space<vmem>>, vector<1x128xf32>
    %43 = vector.shape_cast %35 : vector<24x1xi1> to vector<24x1xi1>
    %44 = vector.broadcast %43 : vector<24x1xi1> to vector<24x128xi1>
    %45 = vector.shape_cast %42 : vector<1x128xf32> to vector<1x128xf32>
    %46 = vector.broadcast %45 : vector<1x128xf32> to vector<24x128xf32>
    %47 = arith.select %44, %46, %32 : vector<24x128xi1>, vector<24x128xf32>
    %48 = tpu.iota {dimensions = array<i32: 1>} : vector<24x24xi32>
    %c17_i32_19 = arith.constant 17 : i32
    %49 = vector.broadcast %c17_i32_19 : i32 to vector<24x24xi32>
    %50 = arith.cmpi sle, %48, %49 : vector<24x24xi32>
    %51 = vector.extract_strided_slice %30 {offsets = [0, 0], sizes = [24, 32], strides = [1, 1]} : vector<24x128xf32> to vector<24x32xf32>
    %52 = arith.truncf %51 : vector<24x32xf32> to vector<24x32xbf16>
    %53 = vector.extract_strided_slice %41 {offsets = [0, 0], sizes = [24, 32], strides = [1, 1]} : vector<24x128xf32> to vector<24x32xf32>
    %54 = arith.truncf %53 : vector<24x32xf32> to vector<24x32xbf16>
    %55 = vector.extract_strided_slice %47 {offsets = [0, 0], sizes = [24, 32], strides = [1, 1]} : vector<24x128xf32> to vector<24x32xf32>
    %56 = arith.truncf %55 : vector<24x32xf32> to vector<24x32xbf16>
    %cst_20 = arith.constant dense<0.000000e+00> : vector<24x24xf32>
    %57 = tpu.matmul %52, %54, %cst_20 {dimension_numbers = #tpu.dot_dimension_numbers<[1], [1], [0], [0], [0, 0, 1, 0], [], []>} : vector<24x32xbf16>, vector<24x32xbf16>, vector<24x24xf32> -> vector<24x24xf32>
    %cst_21 = arith.constant -1.000000e+30 : f32
    %58 = vector.broadcast %cst_21 : f32 to vector<24x24xf32>
    %59 = arith.select %50, %57, %58 : vector<24x24xi1>, vector<24x24xf32>
    %cst_22 = arith.constant dense<0xFF800000> : vector<24xf32>
    %60 = vector.multi_reduction <maximumf>, %59, %cst_22 [1] : vector<24x24xf32> to vector<24xf32>
    %61 = vector.shape_cast %60 : vector<24xf32> to vector<24x1xf32>
    %62 = vector.broadcast %61 : vector<24x1xf32> to vector<24x24xf32>
    %63 = arith.subf %59, %62 : vector<24x24xf32>
    %64 = math.exp %63 : vector<24x24xf32>
    %cst_23 = arith.constant dense<0.000000e+00> : vector<24xf32>
    %65 = vector.multi_reduction <add>, %64, %cst_23 [1] : vector<24x24xf32> to vector<24xf32>
    %66 = vector.shape_cast %65 : vector<24xf32> to vector<24x1xf32>
    %67 = tpu.reciprocal %66 {approx = true} : vector<24x1xf32> -> vector<24x1xf32>
    %68 = vector.broadcast %67 : vector<24x1xf32> to vector<24x24xf32>
    %69 = arith.mulf %64, %68 : vector<24x24xf32>
    %70 = arith.truncf %69 : vector<24x24xf32> to vector<24x24xbf16>
    %cst_24 = arith.constant dense<0.000000e+00> : vector<24x32xf32>
    %71 = tpu.matmul %70, %56, %cst_24 {dimension_numbers = #tpu.dot_dimension_numbers<[1], [0], [0], [1], [0, 0, 1, 1], [], []>} : vector<24x24xbf16>, vector<24x32xbf16>, vector<24x32xf32> -> vector<24x32xf32>
    %72 = vector.extract_strided_slice %30 {offsets = [0, 32], sizes = [24, 32], strides = [1, 1]} : vector<24x128xf32> to vector<24x32xf32>
    %73 = arith.truncf %72 : vector<24x32xf32> to vector<24x32xbf16>
    %74 = vector.extract_strided_slice %41 {offsets = [0, 32], sizes = [24, 32], strides = [1, 1]} : vector<24x128xf32> to vector<24x32xf32>
    %75 = arith.truncf %74 : vector<24x32xf32> to vector<24x32xbf16>
    %76 = vector.extract_strided_slice %47 {offsets = [0, 32], sizes = [24, 32], strides = [1, 1]} : vector<24x128xf32> to vector<24x32xf32>
    %77 = arith.truncf %76 : vector<24x32xf32> to vector<24x32xbf16>
    %cst_25 = arith.constant dense<0.000000e+00> : vector<24x24xf32>
    %78 = tpu.matmul %73, %75, %cst_25 {dimension_numbers = #tpu.dot_dimension_numbers<[1], [1], [0], [0], [0, 0, 1, 0], [], []>} : vector<24x32xbf16>, vector<24x32xbf16>, vector<24x24xf32> -> vector<24x24xf32>
    %cst_26 = arith.constant -1.000000e+30 : f32
    %79 = vector.broadcast %cst_26 : f32 to vector<24x24xf32>
    %80 = arith.select %50, %78, %79 : vector<24x24xi1>, vector<24x24xf32>
    %cst_27 = arith.constant dense<0xFF800000> : vector<24xf32>
    %81 = vector.multi_reduction <maximumf>, %80, %cst_27 [1] : vector<24x24xf32> to vector<24xf32>
    %82 = vector.shape_cast %81 : vector<24xf32> to vector<24x1xf32>
    %83 = vector.broadcast %82 : vector<24x1xf32> to vector<24x24xf32>
    %84 = arith.subf %80, %83 : vector<24x24xf32>
    %85 = math.exp %84 : vector<24x24xf32>
    %cst_28 = arith.constant dense<0.000000e+00> : vector<24xf32>
    %86 = vector.multi_reduction <add>, %85, %cst_28 [1] : vector<24x24xf32> to vector<24xf32>
    %87 = vector.shape_cast %86 : vector<24xf32> to vector<24x1xf32>
    %88 = tpu.reciprocal %87 {approx = true} : vector<24x1xf32> -> vector<24x1xf32>
    %89 = vector.broadcast %88 : vector<24x1xf32> to vector<24x24xf32>
    %90 = arith.mulf %85, %89 : vector<24x24xf32>
    %91 = arith.truncf %90 : vector<24x24xf32> to vector<24x24xbf16>
    %cst_29 = arith.constant dense<0.000000e+00> : vector<24x32xf32>
    %92 = tpu.matmul %91, %77, %cst_29 {dimension_numbers = #tpu.dot_dimension_numbers<[1], [0], [0], [1], [0, 0, 1, 1], [], []>} : vector<24x24xbf16>, vector<24x32xbf16>, vector<24x32xf32> -> vector<24x32xf32>
    %93 = vector.extract_strided_slice %30 {offsets = [0, 64], sizes = [24, 32], strides = [1, 1]} : vector<24x128xf32> to vector<24x32xf32>
    %94 = arith.truncf %93 : vector<24x32xf32> to vector<24x32xbf16>
    %95 = vector.extract_strided_slice %41 {offsets = [0, 64], sizes = [24, 32], strides = [1, 1]} : vector<24x128xf32> to vector<24x32xf32>
    %96 = arith.truncf %95 : vector<24x32xf32> to vector<24x32xbf16>
    %97 = vector.extract_strided_slice %47 {offsets = [0, 64], sizes = [24, 32], strides = [1, 1]} : vector<24x128xf32> to vector<24x32xf32>
    %98 = arith.truncf %97 : vector<24x32xf32> to vector<24x32xbf16>
    %cst_30 = arith.constant dense<0.000000e+00> : vector<24x24xf32>
    %99 = tpu.matmul %94, %96, %cst_30 {dimension_numbers = #tpu.dot_dimension_numbers<[1], [1], [0], [0], [0, 0, 1, 0], [], []>} : vector<24x32xbf16>, vector<24x32xbf16>, vector<24x24xf32> -> vector<24x24xf32>
    %cst_31 = arith.constant -1.000000e+30 : f32
    %100 = vector.broadcast %cst_31 : f32 to vector<24x24xf32>
    %101 = arith.select %50, %99, %100 : vector<24x24xi1>, vector<24x24xf32>
    %cst_32 = arith.constant dense<0xFF800000> : vector<24xf32>
    %102 = vector.multi_reduction <maximumf>, %101, %cst_32 [1] : vector<24x24xf32> to vector<24xf32>
    %103 = vector.shape_cast %102 : vector<24xf32> to vector<24x1xf32>
    %104 = vector.broadcast %103 : vector<24x1xf32> to vector<24x24xf32>
    %105 = arith.subf %101, %104 : vector<24x24xf32>
    %106 = math.exp %105 : vector<24x24xf32>
    %cst_33 = arith.constant dense<0.000000e+00> : vector<24xf32>
    %107 = vector.multi_reduction <add>, %106, %cst_33 [1] : vector<24x24xf32> to vector<24xf32>
    %108 = vector.shape_cast %107 : vector<24xf32> to vector<24x1xf32>
    %109 = tpu.reciprocal %108 {approx = true} : vector<24x1xf32> -> vector<24x1xf32>
    %110 = vector.broadcast %109 : vector<24x1xf32> to vector<24x24xf32>
    %111 = arith.mulf %106, %110 : vector<24x24xf32>
    %112 = arith.truncf %111 : vector<24x24xf32> to vector<24x24xbf16>
    %cst_34 = arith.constant dense<0.000000e+00> : vector<24x32xf32>
    %113 = tpu.matmul %112, %98, %cst_34 {dimension_numbers = #tpu.dot_dimension_numbers<[1], [0], [0], [1], [0, 0, 1, 1], [], []>} : vector<24x24xbf16>, vector<24x32xbf16>, vector<24x32xf32> -> vector<24x32xf32>
    %114 = vector.extract_strided_slice %30 {offsets = [0, 96], sizes = [24, 32], strides = [1, 1]} : vector<24x128xf32> to vector<24x32xf32>
    %115 = arith.truncf %114 : vector<24x32xf32> to vector<24x32xbf16>
    %116 = vector.extract_strided_slice %41 {offsets = [0, 96], sizes = [24, 32], strides = [1, 1]} : vector<24x128xf32> to vector<24x32xf32>
    %117 = arith.truncf %116 : vector<24x32xf32> to vector<24x32xbf16>
    %118 = vector.extract_strided_slice %47 {offsets = [0, 96], sizes = [24, 32], strides = [1, 1]} : vector<24x128xf32> to vector<24x32xf32>
    %119 = arith.truncf %118 : vector<24x32xf32> to vector<24x32xbf16>
    %cst_35 = arith.constant dense<0.000000e+00> : vector<24x24xf32>
    %120 = tpu.matmul %115, %117, %cst_35 {dimension_numbers = #tpu.dot_dimension_numbers<[1], [1], [0], [0], [0, 0, 1, 0], [], []>} : vector<24x32xbf16>, vector<24x32xbf16>, vector<24x24xf32> -> vector<24x24xf32>
    %cst_36 = arith.constant -1.000000e+30 : f32
    %121 = vector.broadcast %cst_36 : f32 to vector<24x24xf32>
    %122 = arith.select %50, %120, %121 : vector<24x24xi1>, vector<24x24xf32>
    %cst_37 = arith.constant dense<0xFF800000> : vector<24xf32>
    %123 = vector.multi_reduction <maximumf>, %122, %cst_37 [1] : vector<24x24xf32> to vector<24xf32>
    %124 = vector.shape_cast %123 : vector<24xf32> to vector<24x1xf32>
    %125 = vector.broadcast %124 : vector<24x1xf32> to vector<24x24xf32>
    %126 = arith.subf %122, %125 : vector<24x24xf32>
    %127 = math.exp %126 : vector<24x24xf32>
    %cst_38 = arith.constant dense<0.000000e+00> : vector<24xf32>
    %128 = vector.multi_reduction <add>, %127, %cst_38 [1] : vector<24x24xf32> to vector<24xf32>
    %129 = vector.shape_cast %128 : vector<24xf32> to vector<24x1xf32>
    %130 = tpu.reciprocal %129 {approx = true} : vector<24x1xf32> -> vector<24x1xf32>
    %131 = vector.broadcast %130 : vector<24x1xf32> to vector<24x24xf32>
    %132 = arith.mulf %127, %131 : vector<24x24xf32>
    %133 = arith.truncf %132 : vector<24x24xf32> to vector<24x24xbf16>
    %cst_39 = arith.constant dense<0.000000e+00> : vector<24x32xf32>
    %134 = tpu.matmul %133, %119, %cst_39 {dimension_numbers = #tpu.dot_dimension_numbers<[1], [0], [0], [1], [0, 0, 1, 1], [], []>} : vector<24x24xbf16>, vector<24x32xbf16>, vector<24x32xf32> -> vector<24x32xf32>
    %135 = tpu.concatenate %71, %92, %113, %134 in 1 : vector<24x32xf32>, vector<24x32xf32>, vector<24x32xf32>, vector<24x32xf32> -> vector<24x128xf32>
    %136 = arith.truncf %135 : vector<24x128xf32> to vector<24x128xbf16>
    %c0_40 = arith.constant 0 : index
    %c0_41 = arith.constant 0 : index
    %137 = vector.load %arg8[%c0_40, %c0_41] : memref<128x128xbf16, #tpu.memory_space<vmem>>, vector<128x128xbf16>
    %cst_42 = arith.constant dense<0.000000e+00> : vector<24x128xf32>
    %138 = tpu.matmul %136, %137, %cst_42 {dimension_numbers = #tpu.dot_dimension_numbers<[1], [0], [0], [1], [0, 0, 1, 1], [], []>} : vector<24x128xbf16>, vector<128x128xbf16>, vector<24x128xf32> -> vector<24x128xf32>
    %c0_43 = arith.constant 0 : index
    %c0_44 = arith.constant 0 : index
    %139 = vector.load %arg9[%c0_43, %c0_44] : memref<1x128xf32, #tpu.memory_space<vmem>>, vector<1x128xf32>
    %140 = vector.broadcast %139 : vector<1x128xf32> to vector<24x128xf32>
    %141 = arith.addf %138, %140 : vector<24x128xf32>
    %142 = arith.addf %1, %141 : vector<24x128xf32>
    %c0_45 = arith.constant 0 : index
    %c0_46 = arith.constant 0 : index
    %143 = vector.load %arg10[%c0_45, %c0_46] : memref<1x128xf32, #tpu.memory_space<vmem>>, vector<1x128xf32>
    %c0_47 = arith.constant 0 : index
    %c0_48 = arith.constant 0 : index
    %144 = vector.load %arg11[%c0_47, %c0_48] : memref<1x128xf32, #tpu.memory_space<vmem>>, vector<1x128xf32>
    %cst_49 = arith.constant dense<0.000000e+00> : vector<24xf32>
    %145 = vector.multi_reduction <add>, %142, %cst_49 [1] : vector<24x128xf32> to vector<24xf32>
    %146 = vector.shape_cast %145 : vector<24xf32> to vector<24x1xf32>
    %cst_50 = arith.constant 1.280000e+02 : f32
    %147 = vector.broadcast %cst_50 : f32 to vector<24x1xf32>
    %148 = arith.divf %146, %147 : vector<24x1xf32>
    %149 = vector.broadcast %148 : vector<24x1xf32> to vector<24x128xf32>
    %150 = arith.subf %142, %149 : vector<24x128xf32>
    %151 = arith.mulf %150, %150 : vector<24x128xf32>
    %cst_51 = arith.constant dense<0.000000e+00> : vector<24xf32>
    %152 = vector.multi_reduction <add>, %151, %cst_51 [1] : vector<24x128xf32> to vector<24xf32>
    %153 = vector.shape_cast %152 : vector<24xf32> to vector<24x1xf32>
    %cst_52 = arith.constant 1.280000e+02 : f32
    %154 = vector.broadcast %cst_52 : f32 to vector<24x1xf32>
    %155 = arith.divf %153, %154 : vector<24x1xf32>
    %cst_53 = arith.constant 9.99999997E-7 : f32
    %156 = vector.broadcast %cst_53 : f32 to vector<24x1xf32>
    %157 = arith.addf %155, %156 : vector<24x1xf32>
    %158 = math.rsqrt %157 : vector<24x1xf32>
    %159 = vector.broadcast %158 : vector<24x1xf32> to vector<24x128xf32>
    %160 = arith.mulf %150, %159 : vector<24x128xf32>
    %161 = vector.broadcast %143 : vector<1x128xf32> to vector<24x128xf32>
    %162 = arith.mulf %160, %161 : vector<24x128xf32>
    %163 = vector.broadcast %144 : vector<1x128xf32> to vector<24x128xf32>
    %164 = arith.addf %162, %163 : vector<24x128xf32>
    %165 = arith.truncf %164 : vector<24x128xf32> to vector<24x128xbf16>
    %c0_54 = arith.constant 0 : index
    %c0_55 = arith.constant 0 : index
    %166 = vector.load %arg12[%c0_54, %c0_55] : memref<128x512xbf16, #tpu.memory_space<vmem>>, vector<128x512xbf16>
    %cst_56 = arith.constant dense<0.000000e+00> : vector<24x512xf32>
    %167 = tpu.matmul %165, %166, %cst_56 {dimension_numbers = #tpu.dot_dimension_numbers<[1], [0], [0], [1], [0, 0, 1, 1], [], []>} : vector<24x128xbf16>, vector<128x512xbf16>, vector<24x512xf32> -> vector<24x512xf32>
    %c0_57 = arith.constant 0 : index
    %c0_58 = arith.constant 0 : index
    %168 = vector.load %arg13[%c0_57, %c0_58] : memref<1x512xf32, #tpu.memory_space<vmem>>, vector<1x512xf32>
    %169 = vector.broadcast %168 : vector<1x512xf32> to vector<24x512xf32>
    %170 = arith.addf %167, %169 : vector<24x512xf32>
    %cst_59 = arith.constant 5.000000e-01 : f32
    %171 = vector.broadcast %cst_59 : f32 to vector<24x512xf32>
    %172 = arith.mulf %171, %170 : vector<24x512xf32>
    %cst_60 = arith.constant 0.707106769 : f32
    %173 = vector.broadcast %cst_60 : f32 to vector<24x512xf32>
    %174 = arith.mulf %170, %173 : vector<24x512xf32>
    %175 = math.absf %174 : vector<24x512xf32>
    %cst_61 = arith.constant 0.327591091 : f32
    %176 = vector.broadcast %cst_61 : f32 to vector<24x512xf32>
    %177 = arith.mulf %176, %175 : vector<24x512xf32>
    %cst_62 = arith.constant 1.000000e+00 : f32
    %178 = vector.broadcast %cst_62 : f32 to vector<24x512xf32>
    %179 = arith.addf %178, %177 : vector<24x512xf32>
    %cst_63 = arith.constant 1.000000e+00 : f32
    %180 = vector.broadcast %cst_63 : f32 to vector<24x512xf32>
    %181 = arith.divf %180, %179 : vector<24x512xf32>
    %cst_64 = arith.constant 1.06140542 : f32
    %182 = vector.broadcast %cst_64 : f32 to vector<24x512xf32>
    %183 = arith.mulf %182, %181 : vector<24x512xf32>
    %cst_65 = arith.constant -1.45315206 : f32
    %184 = vector.broadcast %cst_65 : f32 to vector<24x512xf32>
    %185 = arith.addf %183, %184 : vector<24x512xf32>
    %186 = arith.mulf %185, %181 : vector<24x512xf32>
    %cst_66 = arith.constant 1.42141378 : f32
    %187 = vector.broadcast %cst_66 : f32 to vector<24x512xf32>
    %188 = arith.addf %186, %187 : vector<24x512xf32>
    %189 = arith.mulf %188, %181 : vector<24x512xf32>
    %cst_67 = arith.constant -0.284496725 : f32
    %190 = vector.broadcast %cst_67 : f32 to vector<24x512xf32>
    %191 = arith.addf %189, %190 : vector<24x512xf32>
    %192 = arith.mulf %191, %181 : vector<24x512xf32>
    %cst_68 = arith.constant 0.254829586 : f32
    %193 = vector.broadcast %cst_68 : f32 to vector<24x512xf32>
    %194 = arith.addf %192, %193 : vector<24x512xf32>
    %195 = arith.mulf %194, %181 : vector<24x512xf32>
    %cst_69 = arith.constant 0.000000e+00 : f32
    %196 = vector.broadcast %cst_69 : f32 to vector<24x512xf32>
    %197 = arith.subf %196, %175 : vector<24x512xf32>
    %198 = arith.mulf %197, %175 : vector<24x512xf32>
    %199 = math.exp %198 : vector<24x512xf32>
    %200 = arith.mulf %195, %199 : vector<24x512xf32>
    %cst_70 = arith.constant 1.000000e+00 : f32
    %201 = vector.broadcast %cst_70 : f32 to vector<24x512xf32>
    %202 = arith.subf %201, %200 : vector<24x512xf32>
    %cst_71 = arith.constant 0.000000e+00 : f32
    %203 = vector.broadcast %cst_71 : f32 to vector<24x512xf32>
    %204 = arith.cmpf olt, %174, %203 : vector<24x512xf32>
    %cst_72 = arith.constant 0.000000e+00 : f32
    %205 = vector.broadcast %cst_72 : f32 to vector<24x512xf32>
    %206 = arith.subf %205, %202 : vector<24x512xf32>
    %207 = arith.select %204, %206, %202 : vector<24x512xi1>, vector<24x512xf32>
    %cst_73 = arith.constant 1.000000e+00 : f32
    %208 = vector.broadcast %cst_73 : f32 to vector<24x512xf32>
    %209 = arith.addf %208, %207 : vector<24x512xf32>
    %210 = arith.mulf %172, %209 : vector<24x512xf32>
    %211 = arith.truncf %210 : vector<24x512xf32> to vector<24x512xbf16>
    %c0_74 = arith.constant 0 : index
    %c0_75 = arith.constant 0 : index
    %212 = vector.load %arg14[%c0_74, %c0_75] : memref<512x128xbf16, #tpu.memory_space<vmem>>, vector<512x128xbf16>
    %cst_76 = arith.constant dense<0.000000e+00> : vector<24x128xf32>
    %213 = tpu.matmul %211, %212, %cst_76 {dimension_numbers = #tpu.dot_dimension_numbers<[1], [0], [0], [1], [0, 0, 1, 1], [], []>} : vector<24x512xbf16>, vector<512x128xbf16>, vector<24x128xf32> -> vector<24x128xf32>
    %c0_77 = arith.constant 0 : index
    %c0_78 = arith.constant 0 : index
    %214 = vector.load %arg15[%c0_77, %c0_78] : memref<1x128xf32, #tpu.memory_space<vmem>>, vector<1x128xf32>
    %215 = vector.broadcast %214 : vector<1x128xf32> to vector<24x128xf32>
    %216 = arith.addf %213, %215 : vector<24x128xf32>
    %217 = arith.addf %142, %216 : vector<24x128xf32>
    %c0_79 = arith.constant 0 : index
    %c0_80 = arith.constant 0 : index
    %c0_81 = arith.constant 0 : index
    %218 = vector.load %arg16[%c0_79, %c0_80, %c0_81] : memref<1x24x128xf32, #tpu.memory_space<vmem>>, vector<1x24x128xf32>
    %219 = vector.shape_cast %218 : vector<1x24x128xf32> to vector<24x128xf32>
    %220 = vector.shape_cast %217 : vector<24x128xf32> to vector<1x24x128xf32>
    tpu.vector_store %arg16[%c0_79, %c0_80, %c0_81], %220 {strides = array<i32>} : memref<1x24x128xf32, #tpu.memory_space<vmem>>, vector<1x24x128xf32>,
    return
  }
  func.func @transform_0(%arg0: i32) -> (i32, i32, i32) {
    %c0_i32 = arith.constant 0 : i32
    %c0_i32_0 = arith.constant 0 : i32
    %c0_i32_1 = arith.constant 0 : i32
    return %arg0, %c0_i32, %c0_i32_0 : i32, i32, i32
  }
  func.func @transform_1(%arg0: i32) -> (i32, i32) {
    %c0_i32 = arith.constant 0 : i32
    %c0_i32_0 = arith.constant 0 : i32
    %c0_i32_1 = arith.constant 0 : i32
    return %c0_i32, %c0_i32_0 : i32, i32
  }
  func.func @transform_2(%arg0: i32) -> (i32, i32) {
    %c0_i32 = arith.constant 0 : i32
    %c0_i32_0 = arith.constant 0 : i32
    %c0_i32_1 = arith.constant 0 : i32
    return %c0_i32, %c0_i32_0 : i32, i32
  }
  func.func @transform_3(%arg0: i32) -> (i32, i32) {
    %c0_i32 = arith.constant 0 : i32
    %c0_i32_0 = arith.constant 0 : i32
    %c0_i32_1 = arith.constant 0 : i32
    return %c0_i32, %c0_i32_0 : i32, i32
  }
  func.func @transform_4(%arg0: i32) -> (i32, i32) {
    %c0_i32 = arith.constant 0 : i32
    %c0_i32_0 = arith.constant 0 : i32
    %c0_i32_1 = arith.constant 0 : i32
    return %c0_i32, %c0_i32_0 : i32, i32
  }
  func.func @transform_5(%arg0: i32) -> (i32, i32) {
    %c0_i32 = arith.constant 0 : i32
    %c0_i32_0 = arith.constant 0 : i32
    %c0_i32_1 = arith.constant 0 : i32
    return %c0_i32, %c0_i32_0 : i32, i32
  }
  func.func @transform_6(%arg0: i32) -> (i32, i32) {
    %c0_i32 = arith.constant 0 : i32
    %c0_i32_0 = arith.constant 0 : i32
    %c0_i32_1 = arith.constant 0 : i32
    return %c0_i32, %c0_i32_0 : i32, i32
  }
  func.func @transform_7(%arg0: i32) -> (i32, i32) {
    %c0_i32 = arith.constant 0 : i32
    %c0_i32_0 = arith.constant 0 : i32
    %c0_i32_1 = arith.constant 0 : i32
    return %c0_i32, %c0_i32_0 : i32, i32
  }
  func.func @transform_8(%arg0: i32) -> (i32, i32) {
    %c0_i32 = arith.constant 0 : i32
    %c0_i32_0 = arith.constant 0 : i32
    %c0_i32_1 = arith.constant 0 : i32
    return %c0_i32, %c0_i32_0 : i32, i32
  }
  func.func @transform_9(%arg0: i32) -> (i32, i32) {
    %c0_i32 = arith.constant 0 : i32
    %c0_i32_0 = arith.constant 0 : i32
    %c0_i32_1 = arith.constant 0 : i32
    return %c0_i32, %c0_i32_0 : i32, i32
  }
  func.func @transform_10(%arg0: i32) -> (i32, i32) {
    %c0_i32 = arith.constant 0 : i32
    %c0_i32_0 = arith.constant 0 : i32
    %c0_i32_1 = arith.constant 0 : i32
    return %c0_i32, %c0_i32_0 : i32, i32
  }
  func.func @transform_11(%arg0: i32) -> (i32, i32) {
    %c0_i32 = arith.constant 0 : i32
    %c0_i32_0 = arith.constant 0 : i32
    %c0_i32_1 = arith.constant 0 : i32
    return %c0_i32, %c0_i32_0 : i32, i32
  }
  func.func @transform_12(%arg0: i32) -> (i32, i32) {
    %c0_i32 = arith.constant 0 : i32
    %c0_i32_0 = arith.constant 0 : i32
    %c0_i32_1 = arith.constant 0 : i32
    return %c0_i32, %c0_i32_0 : i32, i32
  }
  func.func @transform_13(%arg0: i32) -> (i32, i32) {
    %c0_i32 = arith.constant 0 : i32
    %c0_i32_0 = arith.constant 0 : i32
    %c0_i32_1 = arith.constant 0 : i32
    return %c0_i32, %c0_i32_0 : i32, i32
  }
  func.func @transform_14(%arg0: i32) -> (i32, i32) {
    %c0_i32 = arith.constant 0 : i32
    %c0_i32_0 = arith.constant 0 : i32
    %c0_i32_1 = arith.constant 0 : i32
    return %c0_i32, %c0_i32_0 : i32, i32
  }
  func.func @transform_15(%arg0: i32) -> (i32, i32, i32) {
    %c0_i32 = arith.constant 0 : i32
    %c0_i32_0 = arith.constant 0 : i32
    %c0_i32_1 = arith.constant 0 : i32
    return %arg0, %c0_i32, %c0_i32_0 : i32, i32, i32
  }
}

module attributes {stable_mosaic.version = 11 : i64} {
  func.func @_head_kernel(%arg0: i32, %arg1: memref<2x128xf32, #tpu.memory_space<vmem>>, %arg2: memref<1x128xf32, #tpu.memory_space<vmem>>, %arg3: memref<1x128xf32, #tpu.memory_space<vmem>>, %arg4: memref<128x256xf32, #tpu.memory_space<vmem>>, %arg5: memref<2x256xf32, #tpu.memory_space<vmem>>) attributes {dimension_semantics = [#tpu.dimension_semantics<arbitrary>], iteration_bounds = array<i64: 1>, scalar_prefetch = 0 : i64, scratch_operands = 0 : i64, tpu.core_type = #tpu.core_type<tc>, window_params = [{pipeline_mode = #tpu.pipeline_mode<synchronous>, transform_indices = @transform_0, window_bounds = array<i64: 2, 128>}, {pipeline_mode = #tpu.pipeline_mode<synchronous>, transform_indices = @transform_1, window_bounds = array<i64: 1, 128>}, {pipeline_mode = #tpu.pipeline_mode<synchronous>, transform_indices = @transform_2, window_bounds = array<i64: 1, 128>}, {pipeline_mode = #tpu.pipeline_mode<synchronous>, transform_indices = @transform_3, window_bounds = array<i64: 128, 256>}, {pipeline_mode = #tpu.pipeline_mode<synchronous>, transform_indices = @transform_4, window_bounds = array<i64: 2, 256>}]} {
    %c0 = arith.constant 0 : index
    %c0_0 = arith.constant 0 : index
    %0 = vector.load %arg1[%c0, %c0_0] : memref<2x128xf32, #tpu.memory_space<vmem>>, vector<2x128xf32>
    %c0_1 = arith.constant 0 : index
    %c0_2 = arith.constant 0 : index
    %1 = vector.load %arg2[%c0_1, %c0_2] : memref<1x128xf32, #tpu.memory_space<vmem>>, vector<1x128xf32>
    %c0_3 = arith.constant 0 : index
    %c0_4 = arith.constant 0 : index
    %2 = vector.load %arg3[%c0_3, %c0_4] : memref<1x128xf32, #tpu.memory_space<vmem>>, vector<1x128xf32>
    %cst = arith.constant dense<0.000000e+00> : vector<2xf32>
    %3 = vector.multi_reduction <add>, %0, %cst [1] : vector<2x128xf32> to vector<2xf32>
    %4 = vector.shape_cast %3 : vector<2xf32> to vector<2x1xf32>
    %cst_5 = arith.constant 1.280000e+02 : f32
    %5 = vector.broadcast %cst_5 : f32 to vector<2x1xf32>
    %6 = arith.divf %4, %5 : vector<2x1xf32>
    %7 = vector.broadcast %6 : vector<2x1xf32> to vector<2x128xf32>
    %8 = arith.subf %0, %7 : vector<2x128xf32>
    %9 = arith.mulf %8, %8 : vector<2x128xf32>
    %cst_6 = arith.constant dense<0.000000e+00> : vector<2xf32>
    %10 = vector.multi_reduction <add>, %9, %cst_6 [1] : vector<2x128xf32> to vector<2xf32>
    %11 = vector.shape_cast %10 : vector<2xf32> to vector<2x1xf32>
    %cst_7 = arith.constant 1.280000e+02 : f32
    %12 = vector.broadcast %cst_7 : f32 to vector<2x1xf32>
    %13 = arith.divf %11, %12 : vector<2x1xf32>
    %cst_8 = arith.constant 9.99999997E-7 : f32
    %14 = vector.broadcast %cst_8 : f32 to vector<2x1xf32>
    %15 = arith.addf %13, %14 : vector<2x1xf32>
    %16 = math.rsqrt %15 : vector<2x1xf32>
    %17 = vector.broadcast %16 : vector<2x1xf32> to vector<2x128xf32>
    %18 = arith.mulf %8, %17 : vector<2x128xf32>
    %19 = vector.broadcast %1 : vector<1x128xf32> to vector<2x128xf32>
    %20 = arith.mulf %18, %19 : vector<2x128xf32>
    %21 = vector.broadcast %2 : vector<1x128xf32> to vector<2x128xf32>
    %22 = arith.addf %20, %21 : vector<2x128xf32>
    %c0_9 = arith.constant 0 : index
    %c0_10 = arith.constant 0 : index
    %23 = vector.load %arg4[%c0_9, %c0_10] : memref<128x256xf32, #tpu.memory_space<vmem>>, vector<128x256xf32>
    %cst_11 = arith.constant dense<0.000000e+00> : vector<2x256xf32>
    %24 = tpu.matmul %22, %23, %cst_11 {dimension_numbers = #tpu.dot_dimension_numbers<[1], [0], [0], [1], [0, 0, 1, 1], [], []>} : vector<2x128xf32>, vector<128x256xf32>, vector<2x256xf32> -> vector<2x256xf32>
    %25 = arith.mulf %24, %24 : vector<2x256xf32>
    %cst_12 = arith.constant dense<0.000000e+00> : vector<2xf32>
    %26 = vector.multi_reduction <add>, %25, %cst_12 [1] : vector<2x256xf32> to vector<2xf32>
    %27 = vector.shape_cast %26 : vector<2xf32> to vector<2x1xf32>
    %28 = math.sqrt %27 : vector<2x1xf32>
    %cst_13 = arith.constant 9.99999996E-13 : f32
    %29 = vector.broadcast %cst_13 : f32 to vector<2x1xf32>
    %30 = arith.maximumf %28, %29 : vector<2x1xf32>
    %31 = vector.broadcast %30 : vector<2x1xf32> to vector<2x256xf32>
    %32 = arith.divf %24, %31 : vector<2x256xf32>
    %cst_14 = arith.constant 5.000000e+00 : f32
    %33 = vector.broadcast %cst_14 : f32 to vector<2x256xf32>
    %34 = arith.mulf %32, %33 : vector<2x256xf32>
    %c0_15 = arith.constant 0 : index
    %c0_16 = arith.constant 0 : index
    %35 = vector.load %arg5[%c0_15, %c0_16] : memref<2x256xf32, #tpu.memory_space<vmem>>, vector<2x256xf32>
    tpu.vector_store %arg5[%c0_15, %c0_16], %34 {strides = array<i32>} : memref<2x256xf32, #tpu.memory_space<vmem>>, vector<2x256xf32>,
    return
  }
  func.func @transform_0(%arg0: i32) -> (i32, i32) {
    %c0_i32 = arith.constant 0 : i32
    %c0_i32_0 = arith.constant 0 : i32
    %c0_i32_1 = arith.constant 0 : i32
    return %c0_i32, %c0_i32_0 : i32, i32
  }
  func.func @transform_1(%arg0: i32) -> (i32, i32) {
    %c0_i32 = arith.constant 0 : i32
    %c0_i32_0 = arith.constant 0 : i32
    %c0_i32_1 = arith.constant 0 : i32
    return %c0_i32, %c0_i32_0 : i32, i32
  }
  func.func @transform_2(%arg0: i32) -> (i32, i32) {
    %c0_i32 = arith.constant 0 : i32
    %c0_i32_0 = arith.constant 0 : i32
    %c0_i32_1 = arith.constant 0 : i32
    return %c0_i32, %c0_i32_0 : i32, i32
  }
  func.func @transform_3(%arg0: i32) -> (i32, i32) {
    %c0_i32 = arith.constant 0 : i32
    %c0_i32_0 = arith.constant 0 : i32
    %c0_i32_1 = arith.constant 0 : i32
    return %c0_i32, %c0_i32_0 : i32, i32
  }
  func.func @transform_4(%arg0: i32) -> (i32, i32) {
    %c0_i32 = arith.constant 0 : i32
    %c0_i32_0 = arith.constant 0 : i32
    %c0_i32_1 = arith.constant 0 : i32
    return %c0_i32, %c0_i32_0 : i32, i32
  }
}

</mosaic_0001>

<llo_original>
// kernel: imu_encoder_forward.4
$region0: #{imu_encoder_forward.4}
  #allocation0 [shape = 'u32[]', space=smem, size = 0x4, offset = 0x4, fixed_abs, tag = 'smem constant byte address 0x4 - core index']
  #allocation1 [shape = 'u32[144,128]{1,0:T(1,128)}', space=vmem, size = 0x12000, scoped, tag = 'internal scratch']
  %s0 = inlined_call_operand.vmem [shape: f32[2,16,48], index: 0, kind: input, shape index: {}]
  %s1 = inlined_call_operand.vmem [shape: f32[48,128], index: 1, kind: input, shape index: {}]
  %s2 = inlined_call_operand.vmem [shape: f32[1,128], index: 2, kind: input, shape index: {}]
  %s3 = inlined_call_operand.vmem [shape: f32[1,128], index: 3, kind: input, shape index: {}]
  %s4 = inlined_call_operand.vmem [shape: f32[24,128], index: 4, kind: input, shape index: {}]
  %s5 = inlined_call_operand.vmem [shape: f32[2,24,128], index: 5, kind: output, shape index: {}]
  %s6 = sld [smem:[#allocation0]]
  $region53: #{imu_encoder_forward.4} parent=0
    _
  %s8 = ssub.s32 1, %s6
  %s9 = scalar_select 0, %s8, %s6
  loop: start=0, step=1, limit=4
  $region2: #{imu_encoder_forward.4} parent=0 // loop_pre_header
    _
  $region3: #{imu_encoder_forward.4} parent=0 // loop_header
    %s11 = sphi 0, %s15
    %p12 = scmp.ge.s32.totalorder %s11, 4
    %s21 = sphi 0, %s23
    %s24 = sphi 0, %s21
    %s25 = sphi 0, %s24
    %s41 = sphi 0, %s25
    %s45 = sphi 0, %s45
    %s47 = sphi 0, %s45
    %s48 = sphi 0, %s47
    %s62 = sphi 0, %s48
    %s66 = sphi 0, %s66
    %s68 = sphi 0, %s66
    %s69 = sphi 0, %s68
    %s83 = sphi 0, %s69
    %s87 = sphi 0, %s87
    %s89 = sphi 0, %s87
    %s90 = sphi 0, %s89
    %s104 = sphi 0, %s90
    %s108 = sphi 0, %s108
    %s110 = sphi 0, %s108
    %s111 = sphi 0, %s110
    %s125 = sphi 0, %s111
    %s131 = sphi 0, %s133
    %s134 = sphi 0, %s131
    %s135 = sphi 0, %s134
    %s151 = sphi 0, %s135
  $region4: #{imu_encoder_forward.4} parent=0 // loop_header_branch
    %14 = sbr.rel (%p12) target = $region8
  $region5: #{imu_encoder_forward.4} parent=0 // loop_body
    %s16 = ssub.s32 %s11, 1
    %s17 = ssub.s32 %s11, 2
    %s18 = sadd.s32 %s11, 1
    %s19 = ssub.s32 %s11, %s18
    %p20 = scmp.eq.s32.totalorder %s19, 0
    %s22 = sadd.s32 %s21, 1
    %s23 = scalar_select %p20, %s21, %s22
    %p26 = pneg %p20
    %p27 = scmp.eq.s32.totalorder %s11, 1
    %p28 = por %p26, %p27
    %p29 = scmp.ne.s32.totalorder %s21, %s24
    %p30 = scmp.eq.s32.totalorder %s11, 0
    %p31 = por %p29, %p30
    %p32 = scmp.ne.s32.totalorder %s21, %s24
    %p33 = scmp.eq.s32.totalorder %s16, 1
    %p34 = por %p32, %p33
    %p35 = scmp.ne.s32.totalorder %s24, %s25
    %p36 = scmp.eq.s32.totalorder %s16, 0
    %p37 = por %p35, %p36
    %p38 = scmp.ne.s32.totalorder %s24, %s25
    %p39 = scmp.eq.s32.totalorder %s17, 1
    %p40 = por %p38, %p39
    %p42 = scmp.ne.s32.totalorder %s25, %s41
    %p43 = scmp.eq.s32.totalorder %s17, 0
    %p44 = por %p42, %p43
    %s46 = sadd.s32 %s45, 1
    %p49 = scmp.eq.s32.totalorder %s11, 1
    %p50 = scmp.ne.s32.totalorder %s45, %s47
    %p51 = scmp.eq.s32.totalorder %s11, 0
    %p52 = por %p50, %p51
    %p53 = scmp.ne.s32.totalorder %s45, %s47
    %p54 = scmp.eq.s32.totalorder %s16, 1
    %p55 = por %p53, %p54
    %p56 = scmp.ne.s32.totalorder %s47, %s48
    %p57 = scmp.eq.s32.totalorder %s16, 0
    %p58 = por %p56, %p57
    %p59 = scmp.ne.s32.totalorder %s47, %s48
    %p60 = scmp.eq.s32.totalorder %s17, 1
    %p61 = por %p59, %p60
    %p63 = scmp.ne.s32.totalorder %s48, %s62
    %p64 = scmp.eq.s32.totalorder %s17, 0
    %p65 = por %p63, %p64
    %s67 = sadd.s32 %s66, 1
    %p70 = scmp.eq.s32.totalorder %s11, 1
    %p71 = scmp.ne.s32.totalorder %s66, %s68
    %p72 = scmp.eq.s32.totalorder %s11, 0
    %p73 = por %p71, %p72
    %p74 = scmp.ne.s32.totalorder %s66, %s68
    %p75 = scmp.eq.s32.totalorder %s16, 1
    %p76 = por %p74, %p75
    %p77 = scmp.ne.s32.totalorder %s68, %s69
    %p78 = scmp.eq.s32.totalorder %s16, 0
    %p79 = por %p77, %p78
    %p80 = scmp.ne.s32.totalorder %s68, %s69
    %p81 = scmp.eq.s32.totalorder %s17, 1
    %p82 = por %p80, %p81
    %p84 = scmp.ne.s32.totalorder %s69, %s83
    %p85 = scmp.eq.s32.totalorder %s17, 0
    %p86 = por %p84, %p85
    %s88 = sadd.s32 %s87, 1
    %p91 = scmp.eq.s32.totalorder %s11, 1
    %p92 = scmp.ne.s32.totalorder %s87, %s89
    %p93 = scmp.eq.s32.totalorder %s11, 0
    %p94 = por %p92, %p93
    %p95 = scmp.ne.s32.totalorder %s87, %s89
    %p96 = scmp.eq.s32.totalorder %s16, 1
    %p97 = por %p95, %p96
    %p98 = scmp.ne.s32.totalorder %s89, %s90
    %p99 = scmp.eq.s32.totalorder %s16, 0
    %p100 = por %p98, %p99
    %p101 = scmp.ne.s32.totalorder %s89, %s90
    %p102 = scmp.eq.s32.totalorder %s17, 1
    %p103 = por %p101, %p102
    %p105 = scmp.ne.s32.totalorder %s90, %s104
    %p106 = scmp.eq.s32.totalorder %s17, 0
    %p107 = por %p105, %p106
    %s109 = sadd.s32 %s108, 1
    %p112 = scmp.eq.s32.totalorder %s11, 1
    %p113 = scmp.ne.s32.totalorder %s108, %s110
    %p114 = scmp.eq.s32.totalorder %s11, 0
    %p115 = por %p113, %p114
    %p116 = scmp.ne.s32.totalorder %s108, %s110
    %p117 = scmp.eq.s32.totalorder %s16, 1
    %p118 = por %p116, %p117
    %p119 = scmp.ne.s32.totalorder %s110, %s111
    %p120 = scmp.eq.s32.totalorder %s16, 0
    %p121 = por %p119, %p120
    %p122 = scmp.ne.s32.totalorder %s110, %s111
    %p123 = scmp.eq.s32.totalorder %s17, 1
    %p124 = por %p122, %p123
    %p126 = scmp.ne.s32.totalorder %s111, %s125
    %p127 = scmp.eq.s32.totalorder %s17, 0
    %p128 = por %p126, %p127
    %s129 = ssub.s32 %s11, %s18
    %p130 = scmp.eq.s32.totalorder %s129, 0
    %s132 = sadd.s32 %s131, 1
    %s133 = scalar_select %p130, %s131, %s132
    %p136 = pneg %p130
    %p137 = scmp.eq.s32.totalorder %s11, 1
    %p138 = por %p136, %p137
    %p139 = scmp.ne.s32.totalorder %s131, %s134
    %p140 = scmp.eq.s32.totalorder %s11, 0
    %p141 = por %p139, %p140
    %p142 = scmp.ne.s32.totalorder %s131, %s134
    %p143 = scmp.eq.s32.totalorder %s16, 1
    %p144 = por %p142, %p143
    %p145 = scmp.ne.s32.totalorder %s134, %s135
    %p146 = scmp.eq.s32.totalorder %s16, 0
    %p147 = por %p145, %p146
    %p148 = scmp.ne.s32.totalorder %s134, %s135
    %p149 = scmp.eq.s32.totalorder %s17, 1
    %p150 = por %p148, %p149
    %p152 = scmp.ne.s32.totalorder %s135, %s151
    %p153 = scmp.eq.s32.totalorder %s17, 0
    %p154 = por %p152, %p153
    %p155 = scmp.le.s32.totalorder 1, %s11
    %p156 = scmp.lt.s32.totalorder %s11, 3
    %p157 = pnand %p155, %p156
    %p158 = pneg %p157
    // Predicated region
    $region9: #{imu_encoder_forward.4} parent=5 // pred_check
      _
    $region10: #{imu_encoder_forward.4} parent=5 // pred_check_branch
      %160 = sbr.rel (%p157) target = $region12
    $region11: #{imu_encoder_forward.4} parent=5 // pred_region
      %s161 = ssub.s32 %s11, 1
      // Predicated region
      $region13: #{imu_encoder_forward.4} parent=11 // pred_check
        %p162 = pneg %p58
      $region14: #{imu_encoder_forward.4} parent=11 // pred_check_branch
        %164 = sbr.rel (%p162) target = $region16
      $region15: #{imu_encoder_forward.4} parent=11 // pred_region
        _
      $region16: #{imu_encoder_forward.4} parent=11 // pred_fallthru
        _
      // Predicated region
      $region17: #{imu_encoder_forward.4} parent=11 // pred_check
        %p165 = pneg %p79
      $region18: #{imu_encoder_forward.4} parent=11 // pred_check_branch
        %167 = sbr.rel (%p165) target = $region20
      $region19: #{imu_encoder_forward.4} parent=11 // pred_region
        _
      $region20: #{imu_encoder_forward.4} parent=11 // pred_fallthru
        _
      // Predicated region
      $region21: #{imu_encoder_forward.4} parent=11 // pred_check
        %p168 = pneg %p100
      $region22: #{imu_encoder_forward.4} parent=11 // pred_check_branch
        %170 = sbr.rel (%p168) target = $region24
      $region23: #{imu_encoder_forward.4} parent=11 // pred_region
        _
      $region24: #{imu_encoder_forward.4} parent=11 // pred_fallthru
        _
      // Predicated region
      $region25: #{imu_encoder_forward.4} parent=11 // pred_check
        %p171 = pneg %p121
      $region26: #{imu_encoder_forward.4} parent=11 // pred_check_branch
        %173 = sbr.rel (%p171) target = $region28
      $region27: #{imu_encoder_forward.4} parent=11 // pred_region
        _
      $region28: #{imu_encoder_forward.4} parent=11 // pred_fallthru
        _
    $region12: #{imu_encoder_forward.4} parent=5 // pred_fallthru
      _
    %p174 = scmp.lt.s32.totalorder %s11, 2
    // Predicated region
    $region29: #{imu_encoder_forward.4} parent=5 // pred_check
      %p175 = pneg %p174
    $region30: #{imu_encoder_forward.4} parent=5 // pred_check_branch
      %177 = sbr.rel (%p175) target = $region32
    $region31: #{imu_encoder_forward.4} parent=5 // pred_region
      // Predicated region
      $region33: #{imu_encoder_forward.4} parent=31 // pred_check
        %p178 = pneg %p31
      $region34: #{imu_encoder_forward.4} parent=31 // pred_check_branch
        %180 = sbr.rel (%p178) target = $region36
      $region35: #{imu_encoder_forward.4} parent=31 // pred_region
        %p181 = scmp.lt.s32.totalorder %s11, 1
        %s182 = scalar_select %p181, %s11, 1
        %s183 = smul.addr %s182, 2
        %s184 = smul.addr %s183, 8
        %s185 = scalar_lea.vmem %s0, %s184
      $region36: #{imu_encoder_forward.4} parent=31 // pred_fallthru
        _
    $region32: #{imu_encoder_forward.4} parent=5 // pred_fallthru
      _
    %p186 = scmp.le.s32.totalorder 1, %s11
    %p187 = scmp.lt.s32.totalorder %s11, 3
    %p188 = pnand %p186, %p187
    %p189 = pneg %p188
    // Predicated region
    $region37: #{imu_encoder_forward.4} parent=5 // pred_check
      _
    $region38: #{imu_encoder_forward.4} parent=5 // pred_check_branch
      %191 = sbr.rel (%p188) target = $region40
    $region39: #{imu_encoder_forward.4} parent=5 // pred_region
      %s192 = ssub.s32 %s11, 1
      %p193 = scmp.lt.s32.totalorder %s16, 1
      %s194 = scalar_select %p193, %s16, 1
      %s195 = smul.addr %s194, 2
      %s196 = smul.addr %s195, 8
      %s197 = scalar_lea.vmem %s0, %s196
      %p198 = pneg %p37
      %p199 = pneg %p34
      %p200 = pneg %p58
      %p201 = pneg %p55
      %p202 = pneg %p79
      %p203 = pneg %p76
      %p204 = pneg %p100
      %p205 = pneg %p97
      %p206 = pneg %p121
      %p207 = pneg %p118
      %p208 = pneg %p147
      %p209 = pneg %p144
      %p210 = scmp.lt.s32.totalorder %s16, 1
      %s211 = scalar_select %p210, %s16, 1
      %s212 = smul.addr %s211, 3
      %s213 = smul.addr %s212, 8
      %s214 = scalar_lea.vmem %s5, %s213
      %p215 = scmp.lt.s32.totalorder %s16, 1
      %s216 = scalar_select %p215, %s16, 1
      %s217 = smul.addr %s216, 2
      %s218 = smul.addr %s217, 8
      %s219 = scalar_lea.vmem %s0, %s218
      %p220 = scmp.lt.s32.totalorder %s16, 1
      %s221 = scalar_select %p220, %s16, 1
      %s222 = smul.addr %s221, 3
      %s223 = smul.addr %s222, 8
      %s224 = scalar_lea.vmem %s5, %s223
      %v225 = vld [vmem:[%s219] sm:$0xff]
      %v226 = vld [vmem:[%s219 + $0x8] sm:$0xff]
      %v227 = vld [vmem:[%s1] sm:$0xff]
      %v228 = vld [vmem:[%s1 + $0x8] sm:$0xff]
      %v229 = vld [vmem:[%s1 + $0x10] sm:$0xff]
      %v230 = vld [vmem:[%s1 + $0x18] sm:$0xff]
      %v231 = vld [vmem:[%s1 + $0x20] sm:$0xff]
      %v232 = vld [vmem:[%s1 + $0x28] sm:$0xff]
      %vm233 = vcmask 392192
      %v235 = vsel %vm233, %v225, 0
      %v238 = vsel %vm233, %v226, 0
      %240 = vmatprep.subr.mxu0 0.0
      %241 = vmatpush1.msra.mxu0 %v227
      %242 = vmatprep.subr.mxu0 0.0
      %243 = vmatpush1.msra.mxu0 %v228
      %244 = vmatprep.subr.mxu0 0.0
      %245 = vmatpush1.msra.mxu0 %v229
      %246 = vmatprep.subr.mxu0 0.0
      %247 = vmatpush1.msra.mxu0 %v230
      %248 = vmatprep.subr.mxu0 0.0
      %249 = vmatpush1.msra.mxu0 %v231
      %250 = vmatprep.subr.mxu0 0.0
      %251 = vmatpush1.msra.mxu0 %v232
      %252 = vmatprep.subr.mxu0 0.0
      %253 = vmatpush1.msra.mxu0 0.0
      %254 = vmatprep.subr.mxu0 0.0
      %255 = vmatpush1.msra.mxu0 0.0
      %256 = vmatprep.subr.mxu0 0.0
      %257 = vmatpush1.msra.mxu0 0.0
      %258 = vmatprep.subr.mxu0 0.0
      %259 = vmatpush1.msra.mxu0 0.0
      %260 = vmatprep.subr.mxu0 0.0
      %261 = vmatpush1.msra.mxu0 0.0
      %262 = vmatprep.subr.mxu0 0.0
      %263 = vmatpush1.msra.mxu0 0.0
      %264 = vmatprep.subr.mxu0 0.0
      %265 = vmatpush1.msra.mxu0 0.0
      %266 = vmatprep.subr.mxu0 0.0
      %267 = vmatpush1.msra.mxu0 0.0
      %268 = vmatprep.subr.mxu0 0.0
      %269 = vmatpush1.msra.mxu0 0.0
      %270 = vmatprep.subr.mxu0 0.0
      %271 = vmatpush1.msra.mxu0 0.0
      %272 = vmatprep.subr.mxu0 0.0
      %273 = vmatpush1.msra.mxu0 0.0
      %274 = vmatprep.subr.mxu0 0.0
      %275 = vmatpush1.msra.mxu0 0.0
      %276 = vmatprep.subr.mxu0 0.0
      %277 = vmatpush1.msra.mxu0 0.0
      %278 = vmatprep.subr.mxu0 0.0
      %279 = vmatpush1.msra.mxu0 0.0
      %280 = vmatprep.subr.mxu0 0.0
      %281 = vmatpush1.msra.mxu0 0.0
      %282 = vmatprep.subr.mxu0 0.0
      %283 = vmatpush1.msra.mxu0 0.0
      %284 = vmatprep.subr.mxu0 0.0
      %285 = vmatpush1.msra.mxu0 0.0
      %286 = vmatprep.subr.mxu0 0.0
      %287 = vmatpush1.msra.mxu0 0.0
      %288 = vmatprep.subr.mxu0 0.0
      %289 = vmatpush1.msra.mxu0 0.0
      %290 = vmatprep.subr.mxu0 0.0
      %291 = vmatpush1.msra.mxu0 0.0
      %292 = vmatprep.subr.mxu0 0.0
      %293 = vmatpush1.msra.mxu0 0.0
      %294 = vmatprep.subr.mxu0 0.0
      %295 = vmatpush1.msra.mxu0 0.0
      %296 = vmatprep.subr.mxu0 0.0
      %297 = vmatpush1.msra.mxu0 0.0
      %298 = vmatprep.subr.mxu0 0.0
      %299 = vmatpush1.msra.mxu0 0.0
      %300 = vmatprep.subr.mxu0 0.0
      %301 = vmatpush1.msra.mxu0 0.0
      %302 = vmatprep.subr.mxu0 0.0
      %303 = vmatpush1.msra.mxu0 0.0
      %304 = vmatprep.mubr.f32.mxu0 0.0
      %305 = vmatmul.mubr.f32.gmra.mrb[0].mxu0 %v235
      %v306 = vpop.f32.mrb[0].mxu0
      %v307 = vadd.f32 0.0, %v306
      %v308 = vpop.f32.mrb[0].mxu0
      %309 = vmatprep.mubr.f32.mxu0 0.0
      %310 = vmatmul.mubr.f32.gmra.mrb[0].mxu0 %v238
      %v311 = vpop.f32.mrb[0].mxu0
      %v312 = vadd.f32 0.0, %v311
      %v313 = vpop.f32.mrb[0].mxu0
      %314 = vdwg.mxu0
      %v315 = vld [vmem:[%s2] sm:$0x1]
      %v316 = vld [vmem:[%s3] sm:$0x1]
      %317 = vadd.xlane.f32.xlu0 %v307
      %v318 = vpop.xlane.xlu0 %317
      %319 = vadd.xlane.f32.xlu0 %v312
      %v320 = vpop.xlane.xlu0 %319
      %v321 = vrcp.pop 128.0
      %v322 = vmul.f32 %v318, %v321
      %v323 = vmul.f32 %v320, %v321
      %v324 = vsub.f32 %v307, %v322
      %v325 = vsub.f32 %v312, %v323
      %v326 = vmul.f32 %v324, %v324
      %v327 = vmul.f32 %v325, %v325
      %328 = vadd.xlane.f32.xlu0 %v326
      %v329 = vpop.xlane.xlu0 %328
      %330 = vadd.xlane.f32.xlu0 %v327
      %v331 = vpop.xlane.xlu0 %330
      %v332 = vmul.f32 %v329, %v321
      %v333 = vmul.f32 %v331, %v321
      %v334 = vadd.f32 %v332, 1e-05
      %v335 = vadd.f32 %v333, 1e-05
      %v336 = vrsqrt.pop %v334
      %v337 = vrsqrt.pop %v335
      %v338 = vmul.f32 %v324, %v336
      %v339 = vmul.f32 %v325, %v337
      %v341 = vlaneseq
      %v342 = vshrl.u32 %v341, 7
      %v343 = vsub.s32 0, %v342
      %v344 = vrot.slane %v315, %v343
      %v346 = vmul.f32 %v338, %v344
      %v347 = vmul.f32 %v339, %v344
      %v349 = vlaneseq
      %v350 = vshrl.u32 %v349, 7
      %v351 = vsub.s32 0, %v350
      %v352 = vrot.slane %v316, %v351
      %v354 = vadd.f32 %v346, %v352
      %v355 = vadd.f32 %v347, %v352
      %v356 = vld [vmem:[%s4] sm:$0xff]
      %v357 = vld [vmem:[%s4 + $0x8] sm:$0xff]
      %v358 = vld [vmem:[%s4 + $0x10] sm:$0xff]
      %359 = vst [vmem:[%s224] sm:$0xff] %v356
      %360 = vst [vmem:[%s224 + $0x8] sm:$0xff] %v357
      %361 = vst [vmem:[%s224 + $0x10] sm:$0xff] %v358
      %vm365 = vcmask 1046528
      %v366 = vrot.slane %v356, 1
      %v367 = vrot.slane %v357, 1
      %v368 = vsel %vm365, %v366, %v367
      %v369 = vrot.slane %v358, 1
      %v370 = vsel %vm365, %v367, %v369
      %v373 = vadd.f32 %v354, %v368
      %v374 = vadd.f32 %v355, %v370
      %375 = vst [vmem:[%s224 + $0x1] sm:$0xff] %v373
      %376 = vst [vmem:[%s224 + $0x9] sm:$0xff] %v374
      %p377 = scmp.lt.s32.totalorder %s16, 1
      %s378 = scalar_select %p377, %s16, 1
      %s379 = smul.addr %s378, 3
      %s380 = smul.addr %s379, 8
      %s381 = scalar_lea.vmem %s5, %s380
      // Predicated region
      $region41: #{imu_encoder_forward.4} parent=39 // pred_check
        %p382 = pneg %p144
      $region42: #{imu_encoder_forward.4} parent=39 // pred_check_branch
        %384 = sbr.rel (%p382) target = $region44
      $region43: #{imu_encoder_forward.4} parent=39 // pred_region
        _
      $region44: #{imu_encoder_forward.4} parent=39 // pred_fallthru
        _
    $region40: #{imu_encoder_forward.4} parent=5 // pred_fallthru
      _
    %p385 = scmp.le.s32.totalorder 2, %s11
    // Predicated region
    $region45: #{imu_encoder_forward.4} parent=5 // pred_check
      %p386 = pneg %p385
    $region46: #{imu_encoder_forward.4} parent=5 // pred_check_branch
      %388 = sbr.rel (%p386) target = $region48
    $region47: #{imu_encoder_forward.4} parent=5 // pred_region
      %s389 = ssub.s32 %s11, 2
      // Predicated region
      $region49: #{imu_encoder_forward.4} parent=47 // pred_check
        %p390 = pneg %p150
      $region50: #{imu_encoder_forward.4} parent=47 // pred_check_branch
        %392 = sbr.rel (%p390) target = $region52
      $region51: #{imu_encoder_forward.4} parent=47 // pred_region
        %p393 = scmp.lt.s32.totalorder %s17, 1
        %s394 = scalar_select %p393, %s17, 1
        %s395 = smul.addr %s394, 3
        %s396 = smul.addr %s395, 8
        %s397 = scalar_lea.vmem %s5, %s396
      $region52: #{imu_encoder_forward.4} parent=47 // pred_fallthru
        _
    $region48: #{imu_encoder_forward.4} parent=5 // pred_fallthru
      _
  $region6: #{imu_encoder_forward.4} parent=0 // loop_footer
    %s15 = sadd.s32 1, %s11
  $region7: #{imu_encoder_forward.4} parent=0 // loop_footer_branch
    %10 = sbr.rel target = $region3
  $region8: #{imu_encoder_forward.4} parent=0 // loop_exit
    _

// kernel: imu_encoder_forward.7
$region0: #{imu_encoder_forward.7}
  #allocation0 [shape = 'u32[]', space=smem, size = 0x4, offset = 0x4, fixed_abs, tag = 'smem constant byte address 0x4 - core index']
  #allocation1 [shape = 'u32[144,128]{1,0:T(1,128)}', space=vmem, size = 0x12000, scoped, tag = 'internal scratch']
  %s0 = inlined_call_operand.vmem [shape: f32[2,128], index: 0, kind: input, shape index: {}]
  %s1 = inlined_call_operand.vmem [shape: f32[1,128], index: 1, kind: input, shape index: {}]
  %s2 = inlined_call_operand.vmem [shape: f32[1,128], index: 2, kind: input, shape index: {}]
  %s3 = inlined_call_operand.vmem [shape: f32[128,256], index: 3, kind: input, shape index: {}]
  %s4 = inlined_call_operand.hbm [shape: f32[2,256], index: 4, kind: output, shape index: {}]
  %s5 = sld [smem:[#allocation0]]
  $region26: #{imu_encoder_forward.7} parent=0
    _
  %s7 = ssub.s32 1, %s5
  %s8 = scalar_select 0, %s7, %s5
  $region1: #{imu_encoder_forward.7} parent=0
    #allocation2 [shape = 'u8[2048]{0}', space=vmem, size = 0x800, scoped, tag = 'output window, operand 0, single buffered']
    #allocation3 [shape = 's32[1]{0}', space=sflag, size = 0x4, scoped, tag = 'scoped memory for imu_encoder_forward.7']
    %9 = vsyncpa [#allocation3], 0
    // Predicated region
    $region2: #{imu_encoder_forward.7} parent=1 // pred_check
      _
    $region3: #{imu_encoder_forward.7} parent=1 // pred_check_branch
      %11 = sbr.rel (0) target = $region5
    $region4: #{imu_encoder_forward.7} parent=1 // pred_region
      _
    $region5: #{imu_encoder_forward.7} parent=1 // pred_fallthru
      _
    // Predicated region
    $region6: #{imu_encoder_forward.7} parent=1 // pred_check
      _
    $region7: #{imu_encoder_forward.7} parent=1 // pred_check_branch
      %13 = sbr.rel (0) target = $region9
    $region8: #{imu_encoder_forward.7} parent=1 // pred_region
      _
    $region9: #{imu_encoder_forward.7} parent=1 // pred_fallthru
      _
    // Predicated region
    $region10: #{imu_encoder_forward.7} parent=1 // pred_check
      _
    $region11: #{imu_encoder_forward.7} parent=1 // pred_check_branch
      %15 = sbr.rel (0) target = $region13
    $region12: #{imu_encoder_forward.7} parent=1 // pred_region
      _
    $region13: #{imu_encoder_forward.7} parent=1 // pred_fallthru
      _
    // Predicated region
    $region14: #{imu_encoder_forward.7} parent=1 // pred_check
      _
    $region15: #{imu_encoder_forward.7} parent=1 // pred_check_branch
      %17 = sbr.rel (0) target = $region17
    $region16: #{imu_encoder_forward.7} parent=1 // pred_region
      _
    $region17: #{imu_encoder_forward.7} parent=1 // pred_fallthru
      _
    %v18 = vld [vmem:[%s0] sm:$0x3]
    %v19 = vld [vmem:[%s1] sm:$0x1]
    %v20 = vld [vmem:[%s2] sm:$0x1]
    %vm21 = vcmask 1041408
    %v22 = vsel %vm21, %v18, 0.0
    %23 = vadd.xlane.f32.xlu0 %v22
    %v24 = vpop.xlane.xlu0 %23
    %v25 = vrcp.pop 128.0
    %v26 = vmul.f32 %v24, %v25
    %v27 = vsub.f32 %v18, %v26
    %v28 = vmul.f32 %v27, %v27
    %v29 = vsel %vm21, %v28, 0.0
    %30 = vadd.xlane.f32.xlu0 %v29
    %v31 = vpop.xlane.xlu0 %30
    %v32 = vmul.f32 %v31, %v25
    %v33 = vadd.f32 %v32, 1e-06
    %v34 = vrsqrt.pop %v33
    %v35 = vmul.f32 %v27, %v34
    %v37 = vlaneseq
    %v38 = vshrl.u32 %v37, 7
    %v39 = vsub.s32 0, %v38
    %v40 = vrot.slane %v19, %v39
    %v42 = vmul.f32 %v35, %v40
    %v44 = vlaneseq
    %v45 = vshrl.u32 %v44, 7
    %v46 = vsub.s32 0, %v45
    %v47 = vrot.slane %v20, %v46
    %v49 = vadd.f32 %v42, %v47
    %v50 = vld [vmem:[%s3] sm:$0xff]
    %v51 = vld [vmem:[%s3 + $0x8] sm:$0xff]
    %v52 = vld [vmem:[%s3 + $0x10] sm:$0xff]
    %v53 = vld [vmem:[%s3 + $0x18] sm:$0xff]
    %v54 = vld [vmem:[%s3 + $0x20] sm:$0xff]
    %v55 = vld [vmem:[%s3 + $0x28] sm:$0xff]
    %v56 = vld [vmem:[%s3 + $0x30] sm:$0xff]
    %v57 = vld [vmem:[%s3 + $0x38] sm:$0xff]
    %v58 = vld [vmem:[%s3 + $0x40] sm:$0xff]
    %v59 = vld [vmem:[%s3 + $0x48] sm:$0xff]
    %v60 = vld [vmem:[%s3 + $0x50] sm:$0xff]
    %v61 = vld [vmem:[%s3 + $0x58] sm:$0xff]
    %v62 = vld [vmem:[%s3 + $0x60] sm:$0xff]
    %v63 = vld [vmem:[%s3 + $0x68] sm:$0xff]
    %v64 = vld [vmem:[%s3 + $0x70] sm:$0xff]
    %v65 = vld [vmem:[%s3 + $0x78] sm:$0xff]
    %v66 = vld [vmem:[%s3 + $0x80] sm:$0xff]
    %v67 = vld [vmem:[%s3 + $0x88] sm:$0xff]
    %v68 = vld [vmem:[%s3 + $0x90] sm:$0xff]
    %v69 = vld [vmem:[%s3 + $0x98] sm:$0xff]
    %v70 = vld [vmem:[%s3 + $0xa0] sm:$0xff]
    %v71 = vld [vmem:[%s3 + $0xa8] sm:$0xff]
    %v72 = vld [vmem:[%s3 + $0xb0] sm:$0xff]
    %v73 = vld [vmem:[%s3 + $0xb8] sm:$0xff]
    %v74 = vld [vmem:[%s3 + $0xc0] sm:$0xff]
    %v75 = vld [vmem:[%s3 + $0xc8] sm:$0xff]
    %v76 = vld [vmem:[%s3 + $0xd0] sm:$0xff]
    %v77 = vld [vmem:[%s3 + $0xd8] sm:$0xff]
    %v78 = vld [vmem:[%s3 + $0xe0] sm:$0xff]
    %v79 = vld [vmem:[%s3 + $0xe8] sm:$0xff]
    %v80 = vld [vmem:[%s3 + $0xf0] sm:$0xff]
    %v81 = vld [vmem:[%s3 + $0xf8] sm:$0xff]
    %82 = vmatprep.subr.mxu0 %v51
    %83 = vmatpush1.msra.mxu0 %v50
    %84 = vmatprep.subr.mxu0 %v53
    %85 = vmatpush1.msra.mxu0 %v52
    %86 = vmatprep.subr.mxu0 %v55
    %87 = vmatpush1.msra.mxu0 %v54
    %88 = vmatprep.subr.mxu0 %v57
    %89 = vmatpush1.msra.mxu0 %v56
    %90 = vmatprep.subr.mxu0 %v59
    %91 = vmatpush1.msra.mxu0 %v58
    %92 = vmatprep.subr.mxu0 %v61
    %93 = vmatpush1.msra.mxu0 %v60
    %94 = vmatprep.subr.mxu0 %v63
    %95 = vmatpush1.msra.mxu0 %v62
    %96 = vmatprep.subr.mxu0 %v65
    %97 = vmatpush1.msra.mxu0 %v64
    %98 = vmatprep.subr.mxu0 %v67
    %99 = vmatpush1.msra.mxu0 %v66
    %100 = vmatprep.subr.mxu0 %v69
    %101 = vmatpush1.msra.mxu0 %v68
    %102 = vmatprep.subr.mxu0 %v71
    %103 = vmatpush1.msra.mxu0 %v70
    %104 = vmatprep.subr.mxu0 %v73
    %105 = vmatpush1.msra.mxu0 %v72
    %106 = vmatprep.subr.mxu0 %v75
    %107 = vmatpush1.msra.mxu0 %v74
    %108 = vmatprep.subr.mxu0 %v77
    %109 = vmatpush1.msra.mxu0 %v76
    %110 = vmatprep.subr.mxu0 %v79
    %111 = vmatpush1.msra.mxu0 %v78
    %112 = vmatprep.subr.mxu0 %v81
    %113 = vmatpush1.msra.mxu0 %v80
    %114 = vmatprep.subr.mxu0 0.0
    %115 = vmatpush1.msra.mxu0 0.0
    %116 = vmatprep.subr.mxu0 0.0
    %117 = vmatpush1.msra.mxu0 0.0
    %118 = vmatprep.subr.mxu0 0.0
    %119 = vmatpush1.msra.mxu0 0.0
    %120 = vmatprep.subr.mxu0 0.0
    %121 = vmatpush1.msra.mxu0 0.0
    %122 = vmatprep.subr.mxu0 0.0
    %123 = vmatpush1.msra.mxu0 0.0
    %124 = vmatprep.subr.mxu0 0.0
    %125 = vmatpush1.msra.mxu0 0.0
    %126 = vmatprep.subr.mxu0 0.0
    %127 = vmatpush1.msra.mxu0 0.0
    %128 = vmatprep.subr.mxu0 0.0
    %129 = vmatpush1.msra.mxu0 0.0
    %130 = vmatprep.subr.mxu0 0.0
    %131 = vmatpush1.msra.mxu0 0.0
    %132 = vmatprep.subr.mxu0 0.0
    %133 = vmatpush1.msra.mxu0 0.0
    %134 = vmatprep.subr.mxu0 0.0
    %135 = vmatpush1.msra.mxu0 0.0
    %136 = vmatprep.subr.mxu0 0.0
    %137 = vmatpush1.msra.mxu0 0.0
    %138 = vmatprep.subr.mxu0 0.0
    %139 = vmatpush1.msra.mxu0 0.0
    %140 = vmatprep.subr.mxu0 0.0
    %141 = vmatpush1.msra.mxu0 0.0
    %142 = vmatprep.subr.mxu0 0.0
    %143 = vmatpush1.msra.mxu0 0.0
    %144 = vmatprep.subr.mxu0 0.0
    %145 = vmatpush1.msra.mxu0 0.0
    %146 = vmatprep.mubr.f32.mxu0 0.0
    %147 = vmatmul.mubr.f32.gmra.mrb[0].mxu0 %v49
    %v148 = vpop.f32.mrb[0].mxu0
    %v149 = vadd.f32 0.0, %v148
    %v150 = vpop.f32.mrb[0].mxu0
    %v151 = vadd.f32 0.0, %v150
    %152 = vdwg.mxu0
    %v153 = vmul.f32 %v149, %v149
    %v154 = vmul.f32 %v151, %v151
    %v155 = vsel %vm21, %v153, 0.0
    %v156 = vsel %vm21, %v154, 0.0
    %v157 = vadd.f32 %v155, %v156
    %158 = vadd.xlane.f32.xlu0 %v157
    %v159 = vpop.xlane.xlu0 %158
    %v160 = vrsqrt.pop %v159
    %v161 = vmul.f32 %v159, %v160
    %vm162 = vcmp.eq.f32.partialorder %v159, inf
    %v163 = vsel %vm162, %v159, %v161
    %vm164 = vcmp.eq.f32.partialorder %v159, 0.0
    %v165 = vand.u32 %v159, 2147483648
    %v166 = vsel %vm164, %v165, %v163
    %v167 = vmax.f32 %v166, 1e-12
    %v168 = vrcp.pop %v167
    %v169 = vmul.f32 %v149, %v168
    %v170 = vmul.f32 %v151, %v168
    %v171 = vmul.f32 %v169, 5.0
    %v172 = vmul.f32 %v170, 5.0
    %v175 = vcombine.low %v171, %v172
    %v177 = vunpack.c.l.s4 1983009808
    %v178 = vunpack.c.0.s8 %v177
    %v179 = vlaneseq
    %v180 = vshrl.u32 %v179, 7
    %v181 = vsub.s32 %v178, %v180
    %v182 = vrot.slane %v175, %v181
    %184 = vst [vmem:[#allocation2] sm:$0xf] %v182
    // Predicated region
    $region18: #{imu_encoder_forward.7} parent=1 // pred_check
      _
    $region19: #{imu_encoder_forward.7} parent=1 // pred_check_branch
      %186 = sbr.rel (0) target = $region21
    $region20: #{imu_encoder_forward.7} parent=1 // pred_region
      %s188 = ssub.s32 64, 64
      %189 = vsyncadd [#allocation3], %s188
      %s191 = sshll.u32 [#allocation2], 4
      %s192 = int_to_ptr.vmem [resolvable:$true] %s191
      %194 = dma.vmem_to_hbm [thread:$0]  %s192, 64, %s4, [#allocation3]
    $region21: #{imu_encoder_forward.7} parent=1 // pred_fallthru
      _
    // Predicated region
    $region22: #{imu_encoder_forward.7} parent=1 // pred_check
      _
    $region23: #{imu_encoder_forward.7} parent=1 // pred_check_branch
      %196 = sbr.rel (0) target = $region25
    $region24: #{imu_encoder_forward.7} parent=1 // pred_region
      %197 = dma.done [#allocation3], 64
    $region25: #{imu_encoder_forward.7} parent=1 // pred_fallthru
      _
    %198 = vsyncpa [#allocation3], 1

// kernel: imu_encoder_forward.6
$region0: #{imu_encoder_forward.6}
  #allocation0 [shape = 'u32[]', space=smem, size = 0x4, offset = 0x4, fixed_abs, tag = 'smem constant byte address 0x4 - core index']
  #allocation1 [shape = 'u32[144,128]{1,0:T(1,128)}', space=vmem, size = 0x12000, scoped, tag = 'internal scratch']
  %s0 = inlined_call_operand.vmem [shape: f32[2,24,128], index: 0, kind: input, shape index: {}]
  %s1 = inlined_call_operand.vmem [shape: f32[1,128], index: 1, kind: input, shape index: {}]
  %s2 = inlined_call_operand.vmem [shape: f32[1,128], index: 2, kind: input, shape index: {}]
  %s3 = inlined_call_operand.vmem [shape: bf16[128,384], index: 3, kind: input, shape index: {}]
  %s4 = inlined_call_operand.vmem [shape: f32[1,384], index: 4, kind: input, shape index: {}]
  %s5 = inlined_call_operand.vmem [shape: f32[1,128], index: 5, kind: input, shape index: {}]
  %s6 = inlined_call_operand.vmem [shape: f32[1,128], index: 6, kind: input, shape index: {}]
  %s7 = inlined_call_operand.vmem [shape: bf16[128,128], index: 7, kind: input, shape index: {}]
  %s8 = inlined_call_operand.vmem [shape: f32[1,128], index: 8, kind: input, shape index: {}]
  %s9 = inlined_call_operand.vmem [shape: f32[1,128], index: 9, kind: input, shape index: {}]
  %s10 = inlined_call_operand.vmem [shape: f32[1,128], index: 10, kind: input, shape index: {}]
  %s11 = inlined_call_operand.vmem [shape: bf16[128,512], index: 11, kind: input, shape index: {}]
  %s12 = inlined_call_operand.vmem [shape: f32[1,512], index: 12, kind: input, shape index: {}]
  %s13 = inlined_call_operand.vmem [shape: bf16[512,128], index: 13, kind: input, shape index: {}]
  %s14 = inlined_call_operand.vmem [shape: f32[1,128], index: 14, kind: input, shape index: {}]
  %s15 = inlined_call_operand.vmem [shape: f32[2,24,128], index: 15, kind: output, shape index: {}]
  %s16 = sld [smem:[#allocation0]]
  $region93: #{imu_encoder_forward.6} parent=0
    _
  %s18 = ssub.s32 1, %s16
  %s19 = scalar_select 0, %s18, %s16
  loop: start=0, step=1, limit=4
  $region2: #{imu_encoder_forward.6} parent=0 // loop_pre_header
    _
  $region3: #{imu_encoder_forward.6} parent=0 // loop_header
    %s21 = sphi 0, %s25
    %p22 = scmp.ge.s32.totalorder %s21, 4
    %s31 = sphi 0, %s33
    %s34 = sphi 0, %s31
    %s35 = sphi 0, %s34
    %s51 = sphi 0, %s35
    %s55 = sphi 0, %s55
    %s57 = sphi 0, %s55
    %s58 = sphi 0, %s57
    %s72 = sphi 0, %s58
    %s76 = sphi 0, %s76
    %s78 = sphi 0, %s76
    %s79 = sphi 0, %s78
    %s93 = sphi 0, %s79
    %s97 = sphi 0, %s97
    %s99 = sphi 0, %s97
    %s100 = sphi 0, %s99
    %s114 = sphi 0, %s100
    %s118 = sphi 0, %s118
    %s120 = sphi 0, %s118
    %s121 = sphi 0, %s120
    %s135 = sphi 0, %s121
    %s139 = sphi 0, %s139
    %s141 = sphi 0, %s139
    %s142 = sphi 0, %s141
    %s156 = sphi 0, %s142
    %s160 = sphi 0, %s160
    %s162 = sphi 0, %s160
    %s163 = sphi 0, %s162
    %s177 = sphi 0, %s163
    %s181 = sphi 0, %s181
    %s183 = sphi 0, %s181
    %s184 = sphi 0, %s183
    %s198 = sphi 0, %s184
    %s202 = sphi 0, %s202
    %s204 = sphi 0, %s202
    %s205 = sphi 0, %s204
    %s219 = sphi 0, %s205
    %s223 = sphi 0, %s223
    %s225 = sphi 0, %s223
    %s226 = sphi 0, %s225
    %s240 = sphi 0, %s226
    %s244 = sphi 0, %s244
    %s246 = sphi 0, %s244
    %s247 = sphi 0, %s246
    %s261 = sphi 0, %s247
    %s265 = sphi 0, %s265
    %s267 = sphi 0, %s265
    %s268 = sphi 0, %s267
    %s282 = sphi 0, %s268
    %s286 = sphi 0, %s286
    %s288 = sphi 0, %s286
    %s289 = sphi 0, %s288
    %s303 = sphi 0, %s289
    %s307 = sphi 0, %s307
    %s309 = sphi 0, %s307
    %s310 = sphi 0, %s309
    %s324 = sphi 0, %s310
    %s328 = sphi 0, %s328
    %s330 = sphi 0, %s328
    %s331 = sphi 0, %s330
    %s345 = sphi 0, %s331
    %s351 = sphi 0, %s353
    %s354 = sphi 0, %s351
    %s355 = sphi 0, %s354
    %s371 = sphi 0, %s355
  $region4: #{imu_encoder_forward.6} parent=0 // loop_header_branch
    %24 = sbr.rel (%p22) target = $region8
  $region5: #{imu_encoder_forward.6} parent=0 // loop_body
    %s26 = ssub.s32 %s21, 1
    %s27 = ssub.s32 %s21, 2
    %s28 = sadd.s32 %s21, 1
    %s29 = ssub.s32 %s21, %s28
    %p30 = scmp.eq.s32.totalorder %s29, 0
    %s32 = sadd.s32 %s31, 1
    %s33 = scalar_select %p30, %s31, %s32
    %p36 = pneg %p30
    %p37 = scmp.eq.s32.totalorder %s21, 1
    %p38 = por %p36, %p37
    %p39 = scmp.ne.s32.totalorder %s31, %s34
    %p40 = scmp.eq.s32.totalorder %s21, 0
    %p41 = por %p39, %p40
    %p42 = scmp.ne.s32.totalorder %s31, %s34
    %p43 = scmp.eq.s32.totalorder %s26, 1
    %p44 = por %p42, %p43
    %p45 = scmp.ne.s32.totalorder %s34, %s35
    %p46 = scmp.eq.s32.totalorder %s26, 0
    %p47 = por %p45, %p46
    %p48 = scmp.ne.s32.totalorder %s34, %s35
    %p49 = scmp.eq.s32.totalorder %s27, 1
    %p50 = por %p48, %p49
    %p52 = scmp.ne.s32.totalorder %s35, %s51
    %p53 = scmp.eq.s32.totalorder %s27, 0
    %p54 = por %p52, %p53
    %s56 = sadd.s32 %s55, 1
    %p59 = scmp.eq.s32.totalorder %s21, 1
    %p60 = scmp.ne.s32.totalorder %s55, %s57
    %p61 = scmp.eq.s32.totalorder %s21, 0
    %p62 = por %p60, %p61
    %p63 = scmp.ne.s32.totalorder %s55, %s57
    %p64 = scmp.eq.s32.totalorder %s26, 1
    %p65 = por %p63, %p64
    %p66 = scmp.ne.s32.totalorder %s57, %s58
    %p67 = scmp.eq.s32.totalorder %s26, 0
    %p68 = por %p66, %p67
    %p69 = scmp.ne.s32.totalorder %s57, %s58
    %p70 = scmp.eq.s32.totalorder %s27, 1
    %p71 = por %p69, %p70
    %p73 = scmp.ne.s32.totalorder %s58, %s72
    %p74 = scmp.eq.s32.totalorder %s27, 0
    %p75 = por %p73, %p74
    %s77 = sadd.s32 %s76, 1
    %p80 = scmp.eq.s32.totalorder %s21, 1
    %p81 = scmp.ne.s32.totalorder %s76, %s78
    %p82 = scmp.eq.s32.totalorder %s21, 0
    %p83 = por %p81, %p82
    %p84 = scmp.ne.s32.totalorder %s76, %s78
    %p85 = scmp.eq.s32.totalorder %s26, 1
    %p86 = por %p84, %p85
    %p87 = scmp.ne.s32.totalorder %s78, %s79
    %p88 = scmp.eq.s32.totalorder %s26, 0
    %p89 = por %p87, %p88
    %p90 = scmp.ne.s32.totalorder %s78, %s79
    %p91 = scmp.eq.s32.totalorder %s27, 1
    %p92 = por %p90, %p91
    %p94 = scmp.ne.s32.totalorder %s79, %s93
    %p95 = scmp.eq.s32.totalorder %s27, 0
    %p96 = por %p94, %p95
    %s98 = sadd.s32 %s97, 1
    %p101 = scmp.eq.s32.totalorder %s21, 1
    %p102 = scmp.ne.s32.totalorder %s97, %s99
    %p103 = scmp.eq.s32.totalorder %s21, 0
    %p104 = por %p102, %p103
    %p105 = scmp.ne.s32.totalorder %s97, %s99
    %p106 = scmp.eq.s32.totalorder %s26, 1
    %p107 = por %p105, %p106
    %p108 = scmp.ne.s32.totalorder %s99, %s100
    %p109 = scmp.eq.s32.totalorder %s26, 0
    %p110 = por %p108, %p109
    %p111 = scmp.ne.s32.totalorder %s99, %s100
    %p112 = scmp.eq.s32.totalorder %s27, 1
    %p113 = por %p111, %p112
    %p115 = scmp.ne.s32.totalorder %s100, %s114
    %p116 = scmp.eq.s32.totalorder %s27, 0
    %p117 = por %p115, %p116
    %s119 = sadd.s32 %s118, 1
    %p122 = scmp.eq.s32.totalorder %s21, 1
    %p123 = scmp.ne.s32.totalorder %s118, %s120
    %p124 = scmp.eq.s32.totalorder %s21, 0
    %p125 = por %p123, %p124
    %p126 = scmp.ne.s32.totalorder %s118, %s120
    %p127 = scmp.eq.s32.totalorder %s26, 1
    %p128 = por %p126, %p127
    %p129 = scmp.ne.s32.totalorder %s120, %s121
    %p130 = scmp.eq.s32.totalorder %s26, 0
    %p131 = por %p129, %p130
    %p132 = scmp.ne.s32.totalorder %s120, %s121
    %p133 = scmp.eq.s32.totalorder %s27, 1
    %p134 = por %p132, %p133
    %p136 = scmp.ne.s32.totalorder %s121, %s135
    %p137 = scmp.eq.s32.totalorder %s27, 0
    %p138 = por %p136, %p137
    %s140 = sadd.s32 %s139, 1
    %p143 = scmp.eq.s32.totalorder %s21, 1
    %p144 = scmp.ne.s32.totalorder %s139, %s141
    %p145 = scmp.eq.s32.totalorder %s21, 0
    %p146 = por %p144, %p145
    %p147 = scmp.ne.s32.totalorder %s139, %s141
    %p148 = scmp.eq.s32.totalorder %s26, 1
    %p149 = por %p147, %p148
    %p150 = scmp.ne.s32.totalorder %s141, %s142
    %p151 = scmp.eq.s32.totalorder %s26, 0
    %p152 = por %p150, %p151
    %p153 = scmp.ne.s32.totalorder %s141, %s142
    %p154 = scmp.eq.s32.totalorder %s27, 1
    %p155 = por %p153, %p154
    %p157 = scmp.ne.s32.totalorder %s142, %s156
    %p158 = scmp.eq.s32.totalorder %s27, 0
    %p159 = por %p157, %p158
    %s161 = sadd.s32 %s160, 1
    %p164 = scmp.eq.s32.totalorder %s21, 1
    %p165 = scmp.ne.s32.totalorder %s160, %s162
    %p166 = scmp.eq.s32.totalorder %s21, 0
    %p167 = por %p165, %p166
    %p168 = scmp.ne.s32.totalorder %s160, %s162
    %p169 = scmp.eq.s32.totalorder %s26, 1
    %p170 = por %p168, %p169
    %p171 = scmp.ne.s32.totalorder %s162, %s163
    %p172 = scmp.eq.s32.totalorder %s26, 0
    %p173 = por %p171, %p172
    %p174 = scmp.ne.s32.totalorder %s162, %s163
    %p175 = scmp.eq.s32.totalorder %s27, 1
    %p176 = por %p174, %p175
    %p178 = scmp.ne.s32.totalorder %s163, %s177
    %p179 = scmp.eq.s32.totalorder %s27, 0
    %p180 = por %p178, %p179
    %s182 = sadd.s32 %s181, 1
    %p185 = scmp.eq.s32.totalorder %s21, 1
    %p186 = scmp.ne.s32.totalorder %s181, %s183
    %p187 = scmp.eq.s32.totalorder %s21, 0
    %p188 = por %p186, %p187
    %p189 = scmp.ne.s32.totalorder %s181, %s183
    %p190 = scmp.eq.s32.totalorder %s26, 1
    %p191 = por %p189, %p190
    %p192 = scmp.ne.s32.totalorder %s183, %s184
    %p193 = scmp.eq.s32.totalorder %s26, 0
    %p194 = por %p192, %p193
    %p195 = scmp.ne.s32.totalorder %s183, %s184
    %p196 = scmp.eq.s32.totalorder %s27, 1
    %p197 = por %p195, %p196
    %p199 = scmp.ne.s32.totalorder %s184, %s198
    %p200 = scmp.eq.s32.totalorder %s27, 0
    %p201 = por %p199, %p200
    %s203 = sadd.s32 %s202, 1
    %p206 = scmp.eq.s32.totalorder %s21, 1
    %p207 = scmp.ne.s32.totalorder %s202, %s204
    %p208 = scmp.eq.s32.totalorder %s21, 0
    %p209 = por %p207, %p208
    %p210 = scmp.ne.s32.totalorder %s202, %s204
    %p211 = scmp.eq.s32.totalorder %s26, 1
    %p212 = por %p210, %p211
    %p213 = scmp.ne.s32.totalorder %s204, %s205
    %p214 = scmp.eq.s32.totalorder %s26, 0
    %p215 = por %p213, %p214
    %p216 = scmp.ne.s32.totalorder %s204, %s205
    %p217 = scmp.eq.s32.totalorder %s27, 1
    %p218 = por %p216, %p217
    %p220 = scmp.ne.s32.totalorder %s205, %s219
    %p221 = scmp.eq.s32.totalorder %s27, 0
    %p222 = por %p220, %p221
    %s224 = sadd.s32 %s223, 1
    %p227 = scmp.eq.s32.totalorder %s21, 1
    %p228 = scmp.ne.s32.totalorder %s223, %s225
    %p229 = scmp.eq.s32.totalorder %s21, 0
    %p230 = por %p228, %p229
    %p231 = scmp.ne.s32.totalorder %s223, %s225
    %p232 = scmp.eq.s32.totalorder %s26, 1
    %p233 = por %p231, %p232
    %p234 = scmp.ne.s32.totalorder %s225, %s226
    %p235 = scmp.eq.s32.totalorder %s26, 0
    %p236 = por %p234, %p235
    %p237 = scmp.ne.s32.totalorder %s225, %s226
    %p238 = scmp.eq.s32.totalorder %s27, 1
    %p239 = por %p237, %p238
    %p241 = scmp.ne.s32.totalorder %s226, %s240
    %p242 = scmp.eq.s32.totalorder %s27, 0
    %p243 = por %p241, %p242
    %s245 = sadd.s32 %s244, 1
    %p248 = scmp.eq.s32.totalorder %s21, 1
    %p249 = scmp.ne.s32.totalorder %s244, %s246
    %p250 = scmp.eq.s32.totalorder %s21, 0
    %p251 = por %p249, %p250
    %p252 = scmp.ne.s32.totalorder %s244, %s246
    %p253 = scmp.eq.s32.totalorder %s26, 1
    %p254 = por %p252, %p253
    %p255 = scmp.ne.s32.totalorder %s246, %s247
    %p256 = scmp.eq.s32.totalorder %s26, 0
    %p257 = por %p255, %p256
    %p258 = scmp.ne.s32.totalorder %s246, %s247
    %p259 = scmp.eq.s32.totalorder %s27, 1
    %p260 = por %p258, %p259
    %p262 = scmp.ne.s32.totalorder %s247, %s261
    %p263 = scmp.eq.s32.totalorder %s27, 0
    %p264 = por %p262, %p263
    %s266 = sadd.s32 %s265, 1
    %p269 = scmp.eq.s32.totalorder %s21, 1
    %p270 = scmp.ne.s32.totalorder %s265, %s267
    %p271 = scmp.eq.s32.totalorder %s21, 0
    %p272 = por %p270, %p271
    %p273 = scmp.ne.s32.totalorder %s265, %s267
    %p274 = scmp.eq.s32.totalorder %s26, 1
    %p275 = por %p273, %p274
    %p276 = scmp.ne.s32.totalorder %s267, %s268
    %p277 = scmp.eq.s32.totalorder %s26, 0
    %p278 = por %p276, %p277
    %p279 = scmp.ne.s32.totalorder %s267, %s268
    %p280 = scmp.eq.s32.totalorder %s27, 1
    %p281 = por %p279, %p280
    %p283 = scmp.ne.s32.totalorder %s268, %s282
    %p284 = scmp.eq.s32.totalorder %s27, 0
    %p285 = por %p283, %p284
    %s287 = sadd.s32 %s286, 1
    %p290 = scmp.eq.s32.totalorder %s21, 1
    %p291 = scmp.ne.s32.totalorder %s286, %s288
    %p292 = scmp.eq.s32.totalorder %s21, 0
    %p293 = por %p291, %p292
    %p294 = scmp.ne.s32.totalorder %s286, %s288
    %p295 = scmp.eq.s32.totalorder %s26, 1
    %p296 = por %p294, %p295
    %p297 = scmp.ne.s32.totalorder %s288, %s289
    %p298 = scmp.eq.s32.totalorder %s26, 0
    %p299 = por %p297, %p298
    %p300 = scmp.ne.s32.totalorder %s288, %s289
    %p301 = scmp.eq.s32.totalorder %s27, 1
    %p302 = por %p300, %p301
    %p304 = scmp.ne.s32.totalorder %s289, %s303
    %p305 = scmp.eq.s32.totalorder %s27, 0
    %p306 = por %p304, %p305
    %s308 = sadd.s32 %s307, 1
    %p311 = scmp.eq.s32.totalorder %s21, 1
    %p312 = scmp.ne.s32.totalorder %s307, %s309
    %p313 = scmp.eq.s32.totalorder %s21, 0
    %p314 = por %p312, %p313
    %p315 = scmp.ne.s32.totalorder %s307, %s309
    %p316 = scmp.eq.s32.totalorder %s26, 1
    %p317 = por %p315, %p316
    %p318 = scmp.ne.s32.totalorder %s309, %s310
    %p319 = scmp.eq.s32.totalorder %s26, 0
    %p320 = por %p318, %p319
    %p321 = scmp.ne.s32.totalorder %s309, %s310
    %p322 = scmp.eq.s32.totalorder %s27, 1
    %p323 = por %p321, %p322
    %p325 = scmp.ne.s32.totalorder %s310, %s324
    %p326 = scmp.eq.s32.totalorder %s27, 0
    %p327 = por %p325, %p326
    %s329 = sadd.s32 %s328, 1
    %p332 = scmp.eq.s32.totalorder %s21, 1
    %p333 = scmp.ne.s32.totalorder %s328, %s330
    %p334 = scmp.eq.s32.totalorder %s21, 0
    %p335 = por %p333, %p334
    %p336 = scmp.ne.s32.totalorder %s328, %s330
    %p337 = scmp.eq.s32.totalorder %s26, 1
    %p338 = por %p336, %p337
    %p339 = scmp.ne.s32.totalorder %s330, %s331
    %p340 = scmp.eq.s32.totalorder %s26, 0
    %p341 = por %p339, %p340
    %p342 = scmp.ne.s32.totalorder %s330, %s331
    %p343 = scmp.eq.s32.totalorder %s27, 1
    %p344 = por %p342, %p343
    %p346 = scmp.ne.s32.totalorder %s331, %s345
    %p347 = scmp.eq.s32.totalorder %s27, 0
    %p348 = por %p346, %p347
    %s349 = ssub.s32 %s21, %s28
    %p350 = scmp.eq.s32.totalorder %s349, 0
    %s352 = sadd.s32 %s351, 1
    %s353 = scalar_select %p350, %s351, %s352
    %p356 = pneg %p350
    %p357 = scmp.eq.s32.totalorder %s21, 1
    %p358 = por %p356, %p357
    %p359 = scmp.ne.s32.totalorder %s351, %s354
    %p360 = scmp.eq.s32.totalorder %s21, 0
    %p361 = por %p359, %p360
    %p362 = scmp.ne.s32.totalorder %s351, %s354
    %p363 = scmp.eq.s32.totalorder %s26, 1
    %p364 = por %p362, %p363
    %p365 = scmp.ne.s32.totalorder %s354, %s355
    %p366 = scmp.eq.s32.totalorder %s26, 0
    %p367 = por %p365, %p366
    %p368 = scmp.ne.s32.totalorder %s354, %s355
    %p369 = scmp.eq.s32.totalorder %s27, 1
    %p370 = por %p368, %p369
    %p372 = scmp.ne.s32.totalorder %s355, %s371
    %p373 = scmp.eq.s32.totalorder %s27, 0
    %p374 = por %p372, %p373
    %p375 = scmp.le.s32.totalorder 1, %s21
    %p376 = scmp.lt.s32.totalorder %s21, 3
    %p377 = pnand %p375, %p376
    %p378 = pneg %p377
    // Predicated region
    $region9: #{imu_encoder_forward.6} parent=5 // pred_check
      _
    $region10: #{imu_encoder_forward.6} parent=5 // pred_check_branch
      %380 = sbr.rel (%p377) target = $region12
    $region11: #{imu_encoder_forward.6} parent=5 // pred_region
      %s381 = ssub.s32 %s21, 1
      // Predicated region
      $region13: #{imu_encoder_forward.6} parent=11 // pred_check
        %p382 = pneg %p68
      $region14: #{imu_encoder_forward.6} parent=11 // pred_check_branch
        %384 = sbr.rel (%p382) target = $region16
      $region15: #{imu_encoder_forward.6} parent=11 // pred_region
        _
      $region16: #{imu_encoder_forward.6} parent=11 // pred_fallthru
        _
      // Predicated region
      $region17: #{imu_encoder_forward.6} parent=11 // pred_check
        %p385 = pneg %p89
      $region18: #{imu_encoder_forward.6} parent=11 // pred_check_branch
        %387 = sbr.rel (%p385) target = $region20
      $region19: #{imu_encoder_forward.6} parent=11 // pred_region
        _
      $region20: #{imu_encoder_forward.6} parent=11 // pred_fallthru
        _
      // Predicated region
      $region21: #{imu_encoder_forward.6} parent=11 // pred_check
        %p388 = pneg %p110
      $region22: #{imu_encoder_forward.6} parent=11 // pred_check_branch
        %390 = sbr.rel (%p388) target = $region24
      $region23: #{imu_encoder_forward.6} parent=11 // pred_region
        _
      $region24: #{imu_encoder_forward.6} parent=11 // pred_fallthru
        _
      // Predicated region
      $region25: #{imu_encoder_forward.6} parent=11 // pred_check
        %p391 = pneg %p131
      $region26: #{imu_encoder_forward.6} parent=11 // pred_check_branch
        %393 = sbr.rel (%p391) target = $region28
      $region27: #{imu_encoder_forward.6} parent=11 // pred_region
        _
      $region28: #{imu_encoder_forward.6} parent=11 // pred_fallthru
        _
      // Predicated region
      $region29: #{imu_encoder_forward.6} parent=11 // pred_check
        %p394 = pneg %p152
      $region30: #{imu_encoder_forward.6} parent=11 // pred_check_branch
        %396 = sbr.rel (%p394) target = $region32
      $region31: #{imu_encoder_forward.6} parent=11 // pred_region
        _
      $region32: #{imu_encoder_forward.6} parent=11 // pred_fallthru
        _
      // Predicated region
      $region33: #{imu_encoder_forward.6} parent=11 // pred_check
        %p397 = pneg %p173
      $region34: #{imu_encoder_forward.6} parent=11 // pred_check_branch
        %399 = sbr.rel (%p397) target = $region36
      $region35: #{imu_encoder_forward.6} parent=11 // pred_region
        _
      $region36: #{imu_encoder_forward.6} parent=11 // pred_fallthru
        _
      // Predicated region
      $region37: #{imu_encoder_forward.6} parent=11 // pred_check
        %p400 = pneg %p194
      $region38: #{imu_encoder_forward.6} parent=11 // pred_check_branch
        %402 = sbr.rel (%p400) target = $region40
      $region39: #{imu_encoder_forward.6} parent=11 // pred_region
        _
      $region40: #{imu_encoder_forward.6} parent=11 // pred_fallthru
        _
      // Predicated region
      $region41: #{imu_encoder_forward.6} parent=11 // pred_check
        %p403 = pneg %p215
      $region42: #{imu_encoder_forward.6} parent=11 // pred_check_branch
        %405 = sbr.rel (%p403) target = $region44
      $region43: #{imu_encoder_forward.6} parent=11 // pred_region
        _
      $region44: #{imu_encoder_forward.6} parent=11 // pred_fallthru
        _
      // Predicated region
      $region45: #{imu_encoder_forward.6} parent=11 // pred_check
        %p406 = pneg %p236
      $region46: #{imu_encoder_forward.6} parent=11 // pred_check_branch
        %408 = sbr.rel (%p406) target = $region48
      $region47: #{imu_encoder_forward.6} parent=11 // pred_region
        _
      $region48: #{imu_encoder_forward.6} parent=11 // pred_fallthru
        _
      // Predicated region
      $region49: #{imu_encoder_forward.6} parent=11 // pred_check
        %p409 = pneg %p257
      $region50: #{imu_encoder_forward.6} parent=11 // pred_check_branch
        %411 = sbr.rel (%p409) target = $region52
      $region51: #{imu_encoder_forward.6} parent=11 // pred_region
        _
      $region52: #{imu_encoder_forward.6} parent=11 // pred_fallthru
        _
      // Predicated region
      $region53: #{imu_encoder_forward.6} parent=11 // pred_check
        %p412 = pneg %p278
      $region54: #{imu_encoder_forward.6} parent=11 // pred_check_branch
        %414 = sbr.rel (%p412) target = $region56
      $region55: #{imu_encoder_forward.6} parent=11 // pred_region
        _
      $region56: #{imu_encoder_forward.6} parent=11 // pred_fallthru
        _
      // Predicated region
      $region57: #{imu_encoder_forward.6} parent=11 // pred_check
        %p415 = pneg %p299
      $region58: #{imu_encoder_forward.6} parent=11 // pred_check_branch
        %417 = sbr.rel (%p415) target = $region60
      $region59: #{imu_encoder_forward.6} parent=11 // pred_region
        _
      $region60: #{imu_encoder_forward.6} parent=11 // pred_fallthru
        _
      // Predicated region
      $region61: #{imu_encoder_forward.6} parent=11 // pred_check
        %p418 = pneg %p320
      $region62: #{imu_encoder_forward.6} parent=11 // pred_check_branch
        %420 = sbr.rel (%p418) target = $region64
      $region63: #{imu_encoder_forward.6} parent=11 // pred_region
        _
      $region64: #{imu_encoder_forward.6} parent=11 // pred_fallthru
        _
      // Predicated region
      $region65: #{imu_encoder_forward.6} parent=11 // pred_check
        %p421 = pneg %p341
      $region66: #{imu_encoder_forward.6} parent=11 // pred_check_branch
        %423 = sbr.rel (%p421) target = $region68
      $region67: #{imu_encoder_forward.6} parent=11 // pred_region
        _
      $region68: #{imu_encoder_forward.6} parent=11 // pred_fallthru
        _
    $region12: #{imu_encoder_forward.6} parent=5 // pred_fallthru
      _
    %p424 = scmp.lt.s32.totalorder %s21, 2
    // Predicated region
    $region69: #{imu_encoder_forward.6} parent=5 // pred_check
      %p425 = pneg %p424
    $region70: #{imu_encoder_forward.6} parent=5 // pred_check_branch
      %427 = sbr.rel (%p425) target = $region72
    $region71: #{imu_encoder_forward.6} parent=5 // pred_region
      // Predicated region
      $region73: #{imu_encoder_forward.6} parent=71 // pred_check
        %p428 = pneg %p41
      $region74: #{imu_encoder_forward.6} parent=71 // pred_check_branch
        %430 = sbr.rel (%p428) target = $region76
      $region75: #{imu_encoder_forward.6} parent=71 // pred_region
        %p431 = scmp.lt.s32.totalorder %s21, 1
        %s432 = scalar_select %p431, %s21, 1
        %s433 = smul.addr %s432, 3
        %s434 = smul.addr %s433, 8
        %s435 = scalar_lea.vmem %s0, %s434
      $region76: #{imu_encoder_forward.6} parent=71 // pred_fallthru
        _
    $region72: #{imu_encoder_forward.6} parent=5 // pred_fallthru
      _
    %p436 = scmp.le.s32.totalorder 1, %s21
    %p437 = scmp.lt.s32.totalorder %s21, 3
    %p438 = pnand %p436, %p437
    %p439 = pneg %p438
    // Predicated region
    $region77: #{imu_encoder_forward.6} parent=5 // pred_check
      _
    $region78: #{imu_encoder_forward.6} parent=5 // pred_check_branch
      %441 = sbr.rel (%p438) target = $region80
    $region79: #{imu_encoder_forward.6} parent=5 // pred_region
      %s442 = ssub.s32 %s21, 1
      %p443 = scmp.lt.s32.totalorder %s26, 1
      %s444 = scalar_select %p443, %s26, 1
      %s445 = smul.addr %s444, 3
      %s446 = smul.addr %s445, 8
      %s447 = scalar_lea.vmem %s0, %s446
      %p448 = pneg %p47
      %p449 = pneg %p44
      %p450 = pneg %p68
      %p451 = pneg %p65
      %p452 = pneg %p89
      %p453 = pneg %p86
      %p454 = pneg %p110
      %p455 = pneg %p107
      %p456 = pneg %p131
      %p457 = pneg %p128
      %p458 = pneg %p152
      %p459 = pneg %p149
      %p460 = pneg %p173
      %p461 = pneg %p170
      %p462 = pneg %p194
      %p463 = pneg %p191
      %p464 = pneg %p215
      %p465 = pneg %p212
      %p466 = pneg %p236
      %p467 = pneg %p233
      %p468 = pneg %p257
      %p469 = pneg %p254
      %p470 = pneg %p278
      %p471 = pneg %p275
      %p472 = pneg %p299
      %p473 = pneg %p296
      %p474 = pneg %p320
      %p475 = pneg %p317
      %p476 = pneg %p341
      %p477 = pneg %p338
      %p478 = pneg %p367
      %p479 = pneg %p364
      %p480 = scmp.lt.s32.totalorder %s26, 1
      %s481 = scalar_select %p480, %s26, 1
      %s482 = smul.addr %s481, 3
      %s483 = smul.addr %s482, 8
      %s484 = scalar_lea.vmem %s15, %s483
      %p485 = scmp.lt.s32.totalorder %s26, 1
      %s486 = scalar_select %p485, %s26, 1
      %s487 = smul.addr %s486, 3
      %s488 = smul.addr %s487, 8
      %s489 = scalar_lea.vmem %s0, %s488
      %p490 = scmp.lt.s32.totalorder %s26, 1
      %s491 = scalar_select %p490, %s26, 1
      %s492 = smul.addr %s491, 3
      %s493 = smul.addr %s492, 8
      %s494 = scalar_lea.vmem %s15, %s493
      %v496 = vld [vmem:[%s489] sm:$0xff]
      %v497 = vld [vmem:[%s489 + $0x8] sm:$0xff]
      %v498 = vld [vmem:[%s489 + $0x10] sm:$0xff]
      %v499 = vld [vmem:[%s1] sm:$0x1]
      %v500 = vld [vmem:[%s2] sm:$0x1]
      %501 = vadd.xlane.f32.xlu0 %v496
      %v502 = vpop.xlane.xlu0 %501
      %503 = vadd.xlane.f32.xlu0 %v497
      %v504 = vpop.xlane.xlu0 %503
      %505 = vadd.xlane.f32.xlu0 %v498
      %v506 = vpop.xlane.xlu0 %505
      %v507 = vrcp.pop 128.0
      %v508 = vmul.f32 %v502, %v507
      %v509 = vmul.f32 %v504, %v507
      %v510 = vmul.f32 %v506, %v507
      %v511 = vsub.f32 %v496, %v508
      %v512 = vsub.f32 %v497, %v509
      %v513 = vsub.f32 %v498, %v510
      %v514 = vmul.f32 %v511, %v511
      %v515 = vmul.f32 %v512, %v512
      %v516 = vmul.f32 %v513, %v513
      %517 = vadd.xlane.f32.xlu0 %v514
      %v518 = vpop.xlane.xlu0 %517
      %519 = vadd.xlane.f32.xlu0 %v515
      %v520 = vpop.xlane.xlu0 %519
      %521 = vadd.xlane.f32.xlu0 %v516
      %v522 = vpop.xlane.xlu0 %521
      %v523 = vmul.f32 %v518, %v507
      %v524 = vmul.f32 %v520, %v507
      %v525 = vmul.f32 %v522, %v507
      %v526 = vadd.f32 %v523, 1e-06
      %v527 = vadd.f32 %v524, 1e-06
      %v528 = vadd.f32 %v525, 1e-06
      %v529 = vrsqrt.pop %v526
      %v530 = vrsqrt.pop %v527
      %v531 = vrsqrt.pop %v528
      %v532 = vmul.f32 %v511, %v529
      %v533 = vmul.f32 %v512, %v530
      %v534 = vmul.f32 %v513, %v531
      %v536 = vlaneseq
      %v537 = vshrl.u32 %v536, 7
      %v538 = vsub.s32 0, %v537
      %v539 = vrot.slane %v499, %v538
      %v541 = vmul.f32 %v532, %v539
      %v542 = vmul.f32 %v533, %v539
      %v543 = vmul.f32 %v534, %v539
      %v545 = vlaneseq
      %v546 = vshrl.u32 %v545, 7
      %v547 = vsub.s32 0, %v546
      %v548 = vrot.slane %v500, %v547
      %v550 = vadd.f32 %v541, %v548
      %v551 = vadd.f32 %v542, %v548
      %v552 = vadd.f32 %v543, %v548
      %v553 = vpack.c.bf16 %v551, %v550
      %v554 = vpack.c.bf16 %v552, %v552
      %v555 = vld [vmem:[%s3] sm:$0xff]
      %v556 = vld [vmem:[%s3 + $0x8] sm:$0xf]
      %v557 = vld [vmem:[%s3 + $0xc] sm:$0xff]
      %v558 = vld [vmem:[%s3 + $0x14] sm:$0xf]
      %v559 = vld [vmem:[%s3 + $0x18] sm:$0xff]
      %v560 = vld [vmem:[%s3 + $0x20] sm:$0xf]
      %v561 = vld [vmem:[%s3 + $0x24] sm:$0xff]
      %v562 = vld [vmem:[%s3 + $0x2c] sm:$0xf]
      %v563 = vld [vmem:[%s3 + $0x30] sm:$0xff]
      %v564 = vld [vmem:[%s3 + $0x38] sm:$0xf]
      %v565 = vld [vmem:[%s3 + $0x3c] sm:$0xff]
      %v566 = vld [vmem:[%s3 + $0x44] sm:$0xf]
      %v567 = vld [vmem:[%s3 + $0x48] sm:$0xff]
      %v568 = vld [vmem:[%s3 + $0x50] sm:$0xf]
      %v569 = vld [vmem:[%s3 + $0x54] sm:$0xff]
      %v570 = vld [vmem:[%s3 + $0x5c] sm:$0xf]
      %v571 = vld [vmem:[%s3 + $0x60] sm:$0xff]
      %v572 = vld [vmem:[%s3 + $0x68] sm:$0xf]
      %v573 = vld [vmem:[%s3 + $0x6c] sm:$0xff]
      %v574 = vld [vmem:[%s3 + $0x74] sm:$0xf]
      %v575 = vld [vmem:[%s3 + $0x78] sm:$0xff]
      %v576 = vld [vmem:[%s3 + $0x80] sm:$0xf]
      %v577 = vld [vmem:[%s3 + $0x84] sm:$0xff]
      %v578 = vld [vmem:[%s3 + $0x8c] sm:$0xf]
      %v579 = vld [vmem:[%s3 + $0x90] sm:$0xff]
      %v580 = vld [vmem:[%s3 + $0x98] sm:$0xf]
      %v581 = vld [vmem:[%s3 + $0x9c] sm:$0xff]
      %v582 = vld [vmem:[%s3 + $0xa4] sm:$0xf]
      %v583 = vld [vmem:[%s3 + $0xa8] sm:$0xff]
      %v584 = vld [vmem:[%s3 + $0xb0] sm:$0xf]
      %v585 = vld [vmem:[%s3 + $0xb4] sm:$0xff]
      %v586 = vld [vmem:[%s3 + $0xbc] sm:$0xf]
      %v587 = vld [vmem:[%s4] sm:$0x7]
      %v589 = vlaneseq
      %v590 = vshrl.u32 %v589, 7
      %v591 = vsub.s32 0, %v590
      %v592 = vrot.slane %v587, %v591
      %v593 = vlaneseq
      %v594 = vshrl.u32 %v593, 7
      %v595 = vsub.s32 1, %v594
      %v596 = vrot.slane %v587, %v595
      %v597 = vlaneseq
      %v598 = vshrl.u32 %v597, 7
      %v599 = vsub.s32 2, %v598
      %v600 = vrot.slane %v587, %v599
      %v636 = vunpack.c.l.b16 %v555
      %v637 = vunpack.c.h.b16 %v555
      %v638 = vunpack.c.l.b16 %v556
      %v639 = vunpack.c.l.b16 %v557
      %v640 = vunpack.c.h.b16 %v557
      %v641 = vunpack.c.l.b16 %v558
      %v642 = vunpack.c.l.b16 %v559
      %v643 = vunpack.c.h.b16 %v559
      %v644 = vunpack.c.l.b16 %v560
      %v645 = vunpack.c.l.b16 %v561
      %v646 = vunpack.c.h.b16 %v561
      %v647 = vunpack.c.l.b16 %v562
      %v648 = vunpack.c.l.b16 %v563
      %v649 = vunpack.c.h.b16 %v563
      %v650 = vunpack.c.l.b16 %v564
      %v651 = vunpack.c.l.b16 %v565
      %v652 = vunpack.c.h.b16 %v565
      %v653 = vunpack.c.l.b16 %v566
      %v654 = vunpack.c.l.b16 %v567
      %v655 = vunpack.c.h.b16 %v567
      %v656 = vunpack.c.l.b16 %v568
      %v657 = vunpack.c.l.b16 %v569
      %v658 = vunpack.c.h.b16 %v569
      %v659 = vunpack.c.l.b16 %v570
      %v660 = vunpack.c.l.b16 %v571
      %v661 = vunpack.c.h.b16 %v571
      %v662 = vunpack.c.l.b16 %v572
      %v663 = vunpack.c.l.b16 %v573
      %v664 = vunpack.c.h.b16 %v573
      %v665 = vunpack.c.l.b16 %v574
      %v666 = vunpack.c.l.b16 %v575
      %v667 = vunpack.c.h.b16 %v575
      %v668 = vunpack.c.l.b16 %v576
      %v669 = vunpack.c.l.b16 %v577
      %v670 = vunpack.c.h.b16 %v577
      %v671 = vunpack.c.l.b16 %v578
      %v672 = vunpack.c.l.b16 %v579
      %v673 = vunpack.c.h.b16 %v579
      %v674 = vunpack.c.l.b16 %v580
      %v675 = vunpack.c.l.b16 %v581
      %v676 = vunpack.c.h.b16 %v581
      %v677 = vunpack.c.l.b16 %v582
      %v678 = vunpack.c.l.b16 %v583
      %v679 = vunpack.c.h.b16 %v583
      %v680 = vunpack.c.l.b16 %v584
      %v681 = vunpack.c.l.b16 %v585
      %v682 = vunpack.c.h.b16 %v585
      %v683 = vunpack.c.l.b16 %v586
      %v684 = vpack.c.b16 %v639, %v636
      %v685 = vpack.c.b16 %v640, %v637
      %v686 = vpack.c.b16 %v641, %v638
      %v687 = vpack.c.b16 %v645, %v642
      %v688 = vpack.c.b16 %v646, %v643
      %v689 = vpack.c.b16 %v647, %v644
      %v690 = vpack.c.b16 %v651, %v648
      %v691 = vpack.c.b16 %v652, %v649
      %v692 = vpack.c.b16 %v653, %v650
      %v693 = vpack.c.b16 %v657, %v654
      %v694 = vpack.c.b16 %v658, %v655
      %v695 = vpack.c.b16 %v659, %v656
      %v696 = vpack.c.b16 %v663, %v660
      %v697 = vpack.c.b16 %v664, %v661
      %v698 = vpack.c.b16 %v665, %v662
      %v699 = vpack.c.b16 %v669, %v666
      %v700 = vpack.c.b16 %v670, %v667
      %v701 = vpack.c.b16 %v671, %v668
      %v702 = vpack.c.b16 %v675, %v672
      %v703 = vpack.c.b16 %v676, %v673
      %v704 = vpack.c.b16 %v677, %v674
      %v705 = vpack.c.b16 %v681, %v678
      %v706 = vpack.c.b16 %v682, %v679
      %v707 = vpack.c.b16 %v683, %v680
      %732 = vmatprep.subr.bf16.mxu0 %v685
      %733 = vmatpush1.bf16.msra.mxu0 %v684
      %734 = vmatprep.subr.bf16.mxu0 %v688
      %735 = vmatpush1.bf16.msra.mxu0 %v687
      %736 = vmatprep.subr.bf16.mxu0 %v691
      %737 = vmatpush1.bf16.msra.mxu0 %v690
      %738 = vmatprep.subr.bf16.mxu0 %v694
      %739 = vmatpush1.bf16.msra.mxu0 %v693
      %740 = vmatprep.subr.bf16.mxu0 %v697
      %741 = vmatpush1.bf16.msra.mxu0 %v696
      %742 = vmatprep.subr.bf16.mxu0 %v700
      %743 = vmatpush1.bf16.msra.mxu0 %v699
      %744 = vmatprep.subr.bf16.mxu0 %v703
      %745 = vmatpush1.bf16.msra.mxu0 %v702
      %746 = vmatprep.subr.bf16.mxu0 %v706
      %747 = vmatpush1.bf16.msra.mxu0 %v705
      %748 = vmatprep.subr.bf16.mxu0 0
      %749 = vmatpush1.bf16.msra.mxu0 0
      %750 = vmatprep.subr.bf16.mxu0 0
      %751 = vmatpush1.bf16.msra.mxu0 0
      %752 = vmatprep.subr.bf16.mxu0 0
      %753 = vmatpush1.bf16.msra.mxu0 0
      %754 = vmatprep.subr.bf16.mxu0 0
      %755 = vmatpush1.bf16.msra.mxu0 0
      %756 = vmatprep.subr.bf16.mxu0 0
      %757 = vmatpush1.bf16.msra.mxu0 0
      %758 = vmatprep.subr.bf16.mxu0 0
      %759 = vmatpush1.bf16.msra.mxu0 0
      %760 = vmatprep.subr.bf16.mxu0 0
      %761 = vmatpush1.bf16.msra.mxu0 0
      %762 = vmatprep.subr.bf16.mxu0 0
      %763 = vmatpush1.bf16.msra.mxu0 0
      %764 = vmatprep.mubr.bf16.mxu0 0
      %765 = vmatmul.mubr.bf16.gmra.mrb[0].mxu0 %v553
      %v766 = vpop.f32.mrb[0].mxu0
      %v767 = vadd.f32 %v592, %v766
      %v768 = vpop.f32.mrb[0].mxu0
      %v769 = vadd.f32 %v596, %v768
      %v770 = vpop.f32.mrb[0].mxu0
      %v771 = vadd.f32 %v592, %v770
      %v772 = vpop.f32.mrb[0].mxu0
      %v773 = vadd.f32 %v596, %v772
      %774 = vmatprep.mubr.bf16.mxu0 0
      %775 = vmatmul.mubr.bf16.gmra.mrb[0].mxu0 %v554
      %v776 = vpop.f32.mrb[0].mxu0
      %v777 = vadd.f32 %v592, %v776
      %v778 = vpop.f32.mrb[0].mxu0
      %v779 = vadd.f32 %v596, %v778
      %v780 = vpop.f32.mrb[0].mxu0
      %v781 = vpop.f32.mrb[0].mxu0
      %782 = vdwg.mxu0
      %783 = vmatprep.subr.bf16.mxu0 0
      %784 = vmatpush1.bf16.msra.mxu0 %v686
      %785 = vmatprep.subr.bf16.mxu0 0
      %786 = vmatpush1.bf16.msra.mxu0 %v689
      %787 = vmatprep.subr.bf16.mxu0 0
      %788 = vmatpush1.bf16.msra.mxu0 %v692
      %789 = vmatprep.subr.bf16.mxu0 0
      %790 = vmatpush1.bf16.msra.mxu0 %v695
      %791 = vmatprep.subr.bf16.mxu0 0
      %792 = vmatpush1.bf16.msra.mxu0 %v698
      %793 = vmatprep.subr.bf16.mxu0 0
      %794 = vmatpush1.bf16.msra.mxu0 %v701
      %795 = vmatprep.subr.bf16.mxu0 0
      %796 = vmatpush1.bf16.msra.mxu0 %v704
      %797 = vmatprep.subr.bf16.mxu0 0
      %798 = vmatpush1.bf16.msra.mxu0 %v707
      %799 = vmatprep.subr.bf16.mxu0 0
      %800 = vmatpush1.bf16.msra.mxu0 0
      %801 = vmatprep.subr.bf16.mxu0 0
      %802 = vmatpush1.bf16.msra.mxu0 0
      %803 = vmatprep.subr.bf16.mxu0 0
      %804 = vmatpush1.bf16.msra.mxu0 0
      %805 = vmatprep.subr.bf16.mxu0 0
      %806 = vmatpush1.bf16.msra.mxu0 0
      %807 = vmatprep.subr.bf16.mxu0 0
      %808 = vmatpush1.bf16.msra.mxu0 0
      %809 = vmatprep.subr.bf16.mxu0 0
      %810 = vmatpush1.bf16.msra.mxu0 0
      %811 = vmatprep.subr.bf16.mxu0 0
      %812 = vmatpush1.bf16.msra.mxu0 0
      %813 = vmatprep.subr.bf16.mxu0 0
      %814 = vmatpush1.bf16.msra.mxu0 0
      %815 = vmatprep.mubr.bf16.mxu0 0
      %816 = vmatmul.mubr.bf16.gmra.mrb[0].mxu0 %v553
      %v817 = vpop.f32.mrb[0].mxu0
      %v818 = vadd.f32 %v600, %v817
      %v819 = vpop.f32.mrb[0].mxu0
      %v820 = vpop.f32.mrb[0].mxu0
      %v821 = vadd.f32 %v600, %v820
      %v822 = vpop.f32.mrb[0].mxu0
      %823 = vmatprep.mubr.bf16.mxu0 0
      %824 = vmatmul.mubr.bf16.gmra.mrb[0].mxu0 %v554
      %v825 = vpop.f32.mrb[0].mxu0
      %v826 = vadd.f32 %v600, %v825
      %v827 = vpop.f32.mrb[0].mxu0
      %v828 = vpop.f32.mrb[0].mxu0
      %v829 = vpop.f32.mrb[0].mxu0
      %830 = vdwg.mxu0
      %v831 = vlaneseq
      %v832 = vshrl.u32 %v831, 7
      %v833 = vadd.s32 %v832, 8
      %v834 = vadd.s32 %v832, 16
      %vm835 = vcmp.eq.s32.totalorder %v832, 17
      %vm836 = vcmp.eq.s32.totalorder %v833, 17
      %vm837 = vcmp.eq.s32.totalorder %v834, 17
      %v838 = vld [vmem:[%s5] sm:$0x1]
      %v839 = vsel %vm835, 1, 0
      %v840 = vsel %vm836, 1, 0
      %v841 = vsel %vm837, 1, 0
      %vm842 = vcmp.eq.s32.totalorder %v839, 1
      %vm843 = vcmp.eq.s32.totalorder %v840, 1
      %vm844 = vcmp.eq.s32.totalorder %v841, 1
      %v846 = vlaneseq
      %v847 = vshrl.u32 %v846, 7
      %v848 = vsub.s32 0, %v847
      %v849 = vrot.slane %v838, %v848
      %v851 = vsel %vm842, %v849, %v769
      %v852 = vsel %vm843, %v849, %v773
      %v853 = vsel %vm844, %v849, %v779
      %v854 = vld [vmem:[%s6] sm:$0x1]
      %v856 = vlaneseq
      %v857 = vshrl.u32 %v856, 7
      %v858 = vsub.s32 0, %v857
      %v859 = vrot.slane %v854, %v858
      %v861 = vsel %vm842, %v859, %v818
      %v862 = vsel %vm843, %v859, %v821
      %v863 = vsel %vm844, %v859, %v826
      %v864 = vlaneseq
      %v865 = vand.u32 %v864, 127
      %vm866 = vcmp.le.s32.totalorder %v865, 17
      %v867 = vpack.c.bf16 %v771, %v767
      %v868 = vpack.c.bf16 %v777, %v777
      %v869 = vpack.c.bf16 %v852, %v851
      %v870 = vpack.c.bf16 %v853, %v853
      %v871 = vpack.c.bf16 %v862, %v861
      %v872 = vpack.c.bf16 %v863, %v863
      %vm873 = vcmask 261120
      %v875 = vsel %vm873, %v867, 0
      %v878 = vsel %vm873, %v868, 0
      %v881 = vsel %vm873, %v869, 0
      %v884 = vsel %vm873, %v870, 0
      %886 = vmatprep.subr.bf16.mxu0 0
      %887 = vmatpush1.bf16.xpose.msra.mxu0 %v881
      %888 = vmatprep.subr.bf16.mxu0 0
      %889 = vmatpush1.bf16.xpose.msra.mxu0 %v884
      %890 = vmatprep.subr.bf16.mxu0 0
      %891 = vmatpush1.bf16.xpose.msra.mxu0 0
      %892 = vmatprep.subr.bf16.mxu0 0
      %893 = vmatpush1.bf16.xpose.msra.mxu0 0
      %894 = vmatprep.subr.bf16.mxu0 0
      %895 = vmatpush1.bf16.xpose.msra.mxu0 0
      %896 = vmatprep.subr.bf16.mxu0 0
      %897 = vmatpush1.bf16.xpose.msra.mxu0 0
      %898 = vmatprep.subr.bf16.mxu0 0
      %899 = vmatpush1.bf16.xpose.msra.mxu0 0
      %900 = vmatprep.subr.bf16.mxu0 0
      %901 = vmatpush1.bf16.xpose.msra.mxu0 0
      %902 = vmatprep.subr.bf16.mxu0 0
      %903 = vmatpush1.bf16.xpose.msra.mxu0 0
      %904 = vmatprep.subr.bf16.mxu0 0
      %905 = vmatpush1.bf16.xpose.msra.mxu0 0
      %906 = vmatprep.subr.bf16.mxu0 0
      %907 = vmatpush1.bf16.xpose.msra.mxu0 0
      %908 = vmatprep.subr.bf16.mxu0 0
      %909 = vmatpush1.bf16.xpose.msra.mxu0 0
      %910 = vmatprep.subr.bf16.mxu0 0
      %911 = vmatpush1.bf16.xpose.msra.mxu0 0
      %912 = vmatprep.subr.bf16.mxu0 0
      %913 = vmatpush1.bf16.xpose.msra.mxu0 0
      %914 = vmatprep.subr.bf16.mxu0 0
      %915 = vmatpush1.bf16.xpose.msra.mxu0 0
      %916 = vmatprep.subr.bf16.mxu0 0
      %917 = vmatpush1.bf16.xpose.msra.mxu0 0
      %918 = vmatprep.mubr.bf16.mxu0 0
      %919 = vmatmul.mubr.bf16.gmra.mrb[0].mxu0 %v875
      %v920 = vpop.f32.mrb[0].mxu0
      %v921 = vadd.f32 0.0, %v920
      %v922 = vpop.f32.mrb[0].mxu0
      %v923 = vpop.f32.mrb[0].mxu0
      %v924 = vadd.f32 0.0, %v923
      %v925 = vpop.f32.mrb[0].mxu0
      %926 = vmatprep.mubr.bf16.mxu0 0
      %927 = vmatmul.mubr.bf16.gmra.mrb[0].mxu0 %v878
      %v928 = vpop.f32.mrb[0].mxu0
      %v929 = vadd.f32 0.0, %v928
      %v930 = vpop.f32.mrb[0].mxu0
      %v931 = vpop.f32.mrb[0].mxu0
      %v932 = vpop.f32.mrb[0].mxu0
      %933 = vdwg.mxu0
      %v934 = vsel %vm866, %v921, -1e+30
      %v935 = vsel %vm866, %v924, -1e+30
      %v936 = vsel %vm866, %v929, -1e+30
      %vm937 = vcmask 195584
      %v938 = vsel %vm937, %v934, -inf
      %939 = vmax.xlane.f32.xlu0 %v938
      %v940 = vpop.xlane.xlu0 %939
      %v941 = vsel %vm937, %v935, -inf
      %942 = vmax.xlane.f32.xlu0 %v941
      %v943 = vpop.xlane.xlu0 %942
      %v944 = vsel %vm937, %v936, -inf
      %945 = vmax.xlane.f32.xlu0 %v944
      %v946 = vpop.xlane.xlu0 %945
      %v947 = vsub.f32 %v934, %v940
      %v948 = vsub.f32 %v935, %v943
      %v949 = vsub.f32 %v936, %v946
      %v950 = vmul.f32 %v947, 1.442695
      %v951 = vpow.pop %v950
      %v952 = vmul.f32 %v948, 1.442695
      %v953 = vpow.pop %v952
      %v954 = vmul.f32 %v949, 1.442695
      %v955 = vpow.pop %v954
      %v956 = vsel %vm937, %v951, 0.0
      %957 = vadd.xlane.f32.xlu0 %v956
      %v958 = vpop.xlane.xlu0 %957
      %v959 = vsel %vm937, %v953, 0.0
      %960 = vadd.xlane.f32.xlu0 %v959
      %v961 = vpop.xlane.xlu0 %960
      %v962 = vsel %vm937, %v955, 0.0
      %963 = vadd.xlane.f32.xlu0 %v962
      %v964 = vpop.xlane.xlu0 %963
      %v965 = vrcp.pop %v958
      %v966 = vrcp.pop %v961
      %v967 = vrcp.pop %v964
      %v968 = vmul.f32 %v951, %v965
      %v969 = vmul.f32 %v953, %v966
      %v970 = vmul.f32 %v955, %v967
      %v971 = vpack.c.bf16 %v969, %v968
      %v972 = vpack.c.bf16 %v970, %v970
      %v974 = vsel %vm937, %v971, 0
      %v977 = vsel %vm937, %v972, 0
      %vm979 = vcmask 1043456
      %v981 = vsel %vm979, %v872, 0
      %983 = vmatprep.subr.bf16.mxu0 0
      %984 = vmatpush1.bf16.msra.mxu0 %v871
      %985 = vmatprep.subr.bf16.mxu0 0
      %986 = vmatpush1.bf16.msra.mxu0 %v981
      %987 = vmatprep.subr.bf16.mxu0 0
      %988 = vmatpush1.bf16.msra.mxu0 0
      %989 = vmatprep.subr.bf16.mxu0 0
      %990 = vmatpush1.bf16.msra.mxu0 0
      %991 = vmatprep.subr.bf16.mxu0 0
      %992 = vmatpush1.bf16.msra.mxu0 0
      %993 = vmatprep.subr.bf16.mxu0 0
      %994 = vmatpush1.bf16.msra.mxu0 0
      %995 = vmatprep.subr.bf16.mxu0 0
      %996 = vmatpush1.bf16.msra.mxu0 0
      %997 = vmatprep.subr.bf16.mxu0 0
      %998 = vmatpush1.bf16.msra.mxu0 0
      %999 = vmatprep.subr.bf16.mxu0 0
      %1000 = vmatpush1.bf16.msra.mxu0 0
      %1001 = vmatprep.subr.bf16.mxu0 0
      %1002 = vmatpush1.bf16.msra.mxu0 0
      %1003 = vmatprep.subr.bf16.mxu0 0
      %1004 = vmatpush1.bf16.msra.mxu0 0
      %1005 = vmatprep.subr.bf16.mxu0 0
      %1006 = vmatpush1.bf16.msra.mxu0 0
      %1007 = vmatprep.subr.bf16.mxu0 0
      %1008 = vmatpush1.bf16.msra.mxu0 0
      %1009 = vmatprep.subr.bf16.mxu0 0
      %1010 = vmatpush1.bf16.msra.mxu0 0
      %1011 = vmatprep.subr.bf16.mxu0 0
      %1012 = vmatpush1.bf16.msra.mxu0 0
      %1013 = vmatprep.subr.bf16.mxu0 0
      %1014 = vmatpush1.bf16.msra.mxu0 0
      %1015 = vmatprep.mubr.bf16.mxu0 0
      %1016 = vmatmul.mubr.bf16.gmra.mrb[0].mxu0 %v974
      %v1017 = vpop.f32.mrb[0].mxu0
      %v1018 = vadd.f32 0.0, %v1017
      %v1019 = vpop.f32.mrb[0].mxu0
      %v1020 = vpop.f32.mrb[0].mxu0
      %v1021 = vadd.f32 0.0, %v1020
      %v1022 = vpop.f32.mrb[0].mxu0
      %1023 = vmatprep.mubr.bf16.mxu0 0
      %1024 = vmatmul.mubr.bf16.gmra.mrb[0].mxu0 %v977
      %v1025 = vpop.f32.mrb[0].mxu0
      %v1026 = vadd.f32 0.0, %v1025
      %v1027 = vpop.f32.mrb[0].mxu0
      %v1028 = vpop.f32.mrb[0].mxu0
      %v1029 = vpop.f32.mrb[0].mxu0
      %1030 = vdwg.mxu0
      %1033 = vrot.lane.b32.xlu0 %v867, 96
      %v1034 = vpop.permute.xlu0 %1033
      %1035 = vrot.lane.b32.xlu0 %v868, 96
      %v1036 = vpop.permute.xlu0 %1035
      %1039 = vrot.lane.b32.xlu0 %v869, 96
      %v1040 = vpop.permute.xlu0 %1039
      %1041 = vrot.lane.b32.xlu0 %v870, 96
      %v1042 = vpop.permute.xlu0 %1041
      %v1044 = vsel %vm873, %v1034, 0
      %v1047 = vsel %vm873, %v1036, 0
      %v1050 = vsel %vm873, %v1040, 0
      %v1053 = vsel %vm873, %v1042, 0
      %1055 = vmatprep.subr.bf16.mxu0 0
      %1056 = vmatpush1.bf16.xpose.msra.mxu0 %v1050
      %1057 = vmatprep.subr.bf16.mxu0 0
      %1058 = vmatpush1.bf16.xpose.msra.mxu0 %v1053
      %1059 = vmatprep.subr.bf16.mxu0 0
      %1060 = vmatpush1.bf16.xpose.msra.mxu0 0
      %1061 = vmatprep.subr.bf16.mxu0 0
      %1062 = vmatpush1.bf16.xpose.msra.mxu0 0
      %1063 = vmatprep.subr.bf16.mxu0 0
      %1064 = vmatpush1.bf16.xpose.msra.mxu0 0
      %1065 = vmatprep.subr.bf16.mxu0 0
      %1066 = vmatpush1.bf16.xpose.msra.mxu0 0
      %1067 = vmatprep.subr.bf16.mxu0 0
      %1068 = vmatpush1.bf16.xpose.msra.mxu0 0
      %1069 = vmatprep.subr.bf16.mxu0 0
      %1070 = vmatpush1.bf16.xpose.msra.mxu0 0
      %1071 = vmatprep.subr.bf16.mxu0 0
      %1072 = vmatpush1.bf16.xpose.msra.mxu0 0
      %1073 = vmatprep.subr.bf16.mxu0 0
      %1074 = vmatpush1.bf16.xpose.msra.mxu0 0
      %1075 = vmatprep.subr.bf16.mxu0 0
      %1076 = vmatpush1.bf16.xpose.msra.mxu0 0
      %1077 = vmatprep.subr.bf16.mxu0 0
      %1078 = vmatpush1.bf16.xpose.msra.mxu0 0
      %1079 = vmatprep.subr.bf16.mxu0 0
      %1080 = vmatpush1.bf16.xpose.msra.mxu0 0
      %1081 = vmatprep.subr.bf16.mxu0 0
      %1082 = vmatpush1.bf16.xpose.msra.mxu0 0
      %1083 = vmatprep.subr.bf16.mxu0 0
      %1084 = vmatpush1.bf16.xpose.msra.mxu0 0
      %1085 = vmatprep.subr.bf16.mxu0 0
      %1086 = vmatpush1.bf16.xpose.msra.mxu0 0
      %1087 = vmatprep.mubr.bf16.mxu0 0
      %1088 = vmatmul.mubr.bf16.gmra.mrb[0].mxu0 %v1044
      %v1089 = vpop.f32.mrb[0].mxu0
      %v1090 = vadd.f32 0.0, %v1089
      %v1091 = vpop.f32.mrb[0].mxu0
      %v1092 = vpop.f32.mrb[0].mxu0
      %v1093 = vadd.f32 0.0, %v1092
      %v1094 = vpop.f32.mrb[0].mxu0
      %1095 = vmatprep.mubr.bf16.mxu0 0
      %1096 = vmatmul.mubr.bf16.gmra.mrb[0].mxu0 %v1047
      %v1097 = vpop.f32.mrb[0].mxu0
      %v1098 = vadd.f32 0.0, %v1097
      %v1099 = vpop.f32.mrb[0].mxu0
      %v1100 = vpop.f32.mrb[0].mxu0
      %v1101 = vpop.f32.mrb[0].mxu0
      %1102 = vdwg.mxu0
      %v1103 = vsel %vm866, %v1090, -1e+30
      %v1104 = vsel %vm866, %v1093, -1e+30
      %v1105 = vsel %vm866, %v1098, -1e+30
      %v1106 = vsel %vm937, %v1103, -inf
      %1107 = vmax.xlane.f32.xlu0 %v1106
      %v1108 = vpop.xlane.xlu0 %1107
      %v1109 = vsel %vm937, %v1104, -inf
      %1110 = vmax.xlane.f32.xlu0 %v1109
      %v1111 = vpop.xlane.xlu0 %1110
      %v1112 = vsel %vm937, %v1105, -inf
      %1113 = vmax.xlane.f32.xlu0 %v1112
      %v1114 = vpop.xlane.xlu0 %1113
      %v1115 = vsub.f32 %v1103, %v1108
      %v1116 = vsub.f32 %v1104, %v1111
      %v1117 = vsub.f32 %v1105, %v1114
      %v1118 = vmul.f32 %v1115, 1.442695
      %v1119 = vpow.pop %v1118
      %v1120 = vmul.f32 %v1116, 1.442695
      %v1121 = vpow.pop %v1120
      %v1122 = vmul.f32 %v1117, 1.442695
      %v1123 = vpow.pop %v1122
      %v1124 = vsel %vm937, %v1119, 0.0
      %1125 = vadd.xlane.f32.xlu0 %v1124
      %v1126 = vpop.xlane.xlu0 %1125
      %v1127 = vsel %vm937, %v1121, 0.0
      %1128 = vadd.xlane.f32.xlu0 %v1127
      %v1129 = vpop.xlane.xlu0 %1128
      %v1130 = vsel %vm937, %v1123, 0.0
      %1131 = vadd.xlane.f32.xlu0 %v1130
      %v1132 = vpop.xlane.xlu0 %1131
      %v1133 = vrcp.pop %v1126
      %v1134 = vrcp.pop %v1129
      %v1135 = vrcp.pop %v1132
      %v1136 = vmul.f32 %v1119, %v1133
      %v1137 = vmul.f32 %v1121, %v1134
      %v1138 = vmul.f32 %v1123, %v1135
      %v1139 = vpack.c.bf16 %v1137, %v1136
      %v1140 = vpack.c.bf16 %v1138, %v1138
      %1143 = vrot.lane.b32.xlu0 %v871, 96
      %v1144 = vpop.permute.xlu0 %1143
      %1145 = vrot.lane.b32.xlu0 %v872, 96
      %v1146 = vpop.permute.xlu0 %1145
      %v1149 = vsel %vm937, %v1139, 0
      %v1152 = vsel %vm937, %v1140, 0
      %v1155 = vsel %vm979, %v1146, 0
      %1157 = vmatprep.subr.bf16.mxu0 0
      %1158 = vmatpush1.bf16.msra.mxu0 %v1144
      %1159 = vmatprep.subr.bf16.mxu0 0
      %1160 = vmatpush1.bf16.msra.mxu0 %v1155
      %1161 = vmatprep.subr.bf16.mxu0 0
      %1162 = vmatpush1.bf16.msra.mxu0 0
      %1163 = vmatprep.subr.bf16.mxu0 0
      %1164 = vmatpush1.bf16.msra.mxu0 0
      %1165 = vmatprep.subr.bf16.mxu0 0
      %1166 = vmatpush1.bf16.msra.mxu0 0
      %1167 = vmatprep.subr.bf16.mxu0 0
      %1168 = vmatpush1.bf16.msra.mxu0 0
      %1169 = vmatprep.subr.bf16.mxu0 0
      %1170 = vmatpush1.bf16.msra.mxu0 0
      %1171 = vmatprep.subr.bf16.mxu0 0
      %1172 = vmatpush1.bf16.msra.mxu0 0
      %1173 = vmatprep.subr.bf16.mxu0 0
      %1174 = vmatpush1.bf16.msra.mxu0 0
      %1175 = vmatprep.subr.bf16.mxu0 0
      %1176 = vmatpush1.bf16.msra.mxu0 0
      %1177 = vmatprep.subr.bf16.mxu0 0
      %1178 = vmatpush1.bf16.msra.mxu0 0
      %1179 = vmatprep.subr.bf16.mxu0 0
      %1180 = vmatpush1.bf16.msra.mxu0 0
      %1181 = vmatprep.subr.bf16.mxu0 0
      %1182 = vmatpush1.bf16.msra.mxu0 0
      %1183 = vmatprep.subr.bf16.mxu0 0
      %1184 = vmatpush1.bf16.msra.mxu0 0
      %1185 = vmatprep.subr.bf16.mxu0 0
      %1186 = vmatpush1.bf16.msra.mxu0 0
      %1187 = vmatprep.subr.bf16.mxu0 0
      %1188 = vmatpush1.bf16.msra.mxu0 0
      %1189 = vmatprep.mubr.bf16.mxu0 0
      %1190 = vmatmul.mubr.bf16.gmra.mrb[0].mxu0 %v1149
      %v1191 = vpop.f32.mrb[0].mxu0
      %v1192 = vadd.f32 0.0, %v1191
      %v1193 = vpop.f32.mrb[0].mxu0
      %v1194 = vpop.f32.mrb[0].mxu0
      %v1195 = vadd.f32 0.0, %v1194
      %v1196 = vpop.f32.mrb[0].mxu0
      %1197 = vmatprep.mubr.bf16.mxu0 0
      %1198 = vmatmul.mubr.bf16.gmra.mrb[0].mxu0 %v1152
      %v1199 = vpop.f32.mrb[0].mxu0
      %v1200 = vadd.f32 0.0, %v1199
      %v1201 = vpop.f32.mrb[0].mxu0
      %v1202 = vpop.f32.mrb[0].mxu0
      %v1203 = vpop.f32.mrb[0].mxu0
      %1204 = vdwg.mxu0
      %1205 = vrot.lane.b32.xlu0 %v867, 64
      %v1206 = vpop.permute.xlu0 %1205
      %1207 = vrot.lane.b32.xlu0 %v868, 64
      %v1208 = vpop.permute.xlu0 %1207
      %1209 = vrot.lane.b32.xlu0 %v869, 64
      %v1210 = vpop.permute.xlu0 %1209
      %1211 = vrot.lane.b32.xlu0 %v870, 64
      %v1212 = vpop.permute.xlu0 %1211
      %v1214 = vsel %vm873, %v1206, 0
      %v1217 = vsel %vm873, %v1208, 0
      %v1220 = vsel %vm873, %v1210, 0
      %v1223 = vsel %vm873, %v1212, 0
      %1225 = vmatprep.subr.bf16.mxu0 0
      %1226 = vmatpush1.bf16.xpose.msra.mxu0 %v1220
      %1227 = vmatprep.subr.bf16.mxu0 0
      %1228 = vmatpush1.bf16.xpose.msra.mxu0 %v1223
      %1229 = vmatprep.subr.bf16.mxu0 0
      %1230 = vmatpush1.bf16.xpose.msra.mxu0 0
      %1231 = vmatprep.subr.bf16.mxu0 0
      %1232 = vmatpush1.bf16.xpose.msra.mxu0 0
      %1233 = vmatprep.subr.bf16.mxu0 0
      %1234 = vmatpush1.bf16.xpose.msra.mxu0 0
      %1235 = vmatprep.subr.bf16.mxu0 0
      %1236 = vmatpush1.bf16.xpose.msra.mxu0 0
      %1237 = vmatprep.subr.bf16.mxu0 0
      %1238 = vmatpush1.bf16.xpose.msra.mxu0 0
      %1239 = vmatprep.subr.bf16.mxu0 0
      %1240 = vmatpush1.bf16.xpose.msra.mxu0 0
      %1241 = vmatprep.subr.bf16.mxu0 0
      %1242 = vmatpush1.bf16.xpose.msra.mxu0 0
      %1243 = vmatprep.subr.bf16.mxu0 0
      %1244 = vmatpush1.bf16.xpose.msra.mxu0 0
      %1245 = vmatprep.subr.bf16.mxu0 0
      %1246 = vmatpush1.bf16.xpose.msra.mxu0 0
      %1247 = vmatprep.subr.bf16.mxu0 0
      %1248 = vmatpush1.bf16.xpose.msra.mxu0 0
      %1249 = vmatprep.subr.bf16.mxu0 0
      %1250 = vmatpush1.bf16.xpose.msra.mxu0 0
      %1251 = vmatprep.subr.bf16.mxu0 0
      %1252 = vmatpush1.bf16.xpose.msra.mxu0 0
      %1253 = vmatprep.subr.bf16.mxu0 0
      %1254 = vmatpush1.bf16.xpose.msra.mxu0 0
      %1255 = vmatprep.subr.bf16.mxu0 0
      %1256 = vmatpush1.bf16.xpose.msra.mxu0 0
      %1257 = vmatprep.mubr.bf16.mxu0 0
      %1258 = vmatmul.mubr.bf16.gmra.mrb[0].mxu0 %v1214
      %v1259 = vpop.f32.mrb[0].mxu0
      %v1260 = vadd.f32 0.0, %v1259
      %v1261 = vpop.f32.mrb[0].mxu0
      %v1262 = vpop.f32.mrb[0].mxu0
      %v1263 = vadd.f32 0.0, %v1262
      %v1264 = vpop.f32.mrb[0].mxu0
      %1265 = vmatprep.mubr.bf16.mxu0 0
      %1266 = vmatmul.mubr.bf16.gmra.mrb[0].mxu0 %v1217
      %v1267 = vpop.f32.mrb[0].mxu0
      %v1268 = vadd.f32 0.0, %v1267
      %v1269 = vpop.f32.mrb[0].mxu0
      %v1270 = vpop.f32.mrb[0].mxu0
      %v1271 = vpop.f32.mrb[0].mxu0
      %1272 = vdwg.mxu0
      %v1273 = vsel %vm866, %v1260, -1e+30
      %v1274 = vsel %vm866, %v1263, -1e+30
      %v1275 = vsel %vm866, %v1268, -1e+30
      %v1276 = vsel %vm937, %v1273, -inf
      %1277 = vmax.xlane.f32.xlu0 %v1276
      %v1278 = vpop.xlane.xlu0 %1277
      %v1279 = vsel %vm937, %v1274, -inf
      %1280 = vmax.xlane.f32.xlu0 %v1279
      %v1281 = vpop.xlane.xlu0 %1280
      %v1282 = vsel %vm937, %v1275, -inf
      %1283 = vmax.xlane.f32.xlu0 %v1282
      %v1284 = vpop.xlane.xlu0 %1283
      %v1285 = vsub.f32 %v1273, %v1278
      %v1286 = vsub.f32 %v1274, %v1281
      %v1287 = vsub.f32 %v1275, %v1284
      %v1288 = vmul.f32 %v1285, 1.442695
      %v1289 = vpow.pop %v1288
      %v1290 = vmul.f32 %v1286, 1.442695
      %v1291 = vpow.pop %v1290
      %v1292 = vmul.f32 %v1287, 1.442695
      %v1293 = vpow.pop %v1292
      %v1294 = vsel %vm937, %v1289, 0.0
      %1295 = vadd.xlane.f32.xlu0 %v1294
      %v1296 = vpop.xlane.xlu0 %1295
      %v1297 = vsel %vm937, %v1291, 0.0
      %1298 = vadd.xlane.f32.xlu0 %v1297
      %v1299 = vpop.xlane.xlu0 %1298
      %v1300 = vsel %vm937, %v1293, 0.0
      %1301 = vadd.xlane.f32.xlu0 %v1300
      %v1302 = vpop.xlane.xlu0 %1301
      %v1303 = vrcp.pop %v1296
      %v1304 = vrcp.pop %v1299
      %v1305 = vrcp.pop %v1302
      %v1306 = vmul.f32 %v1289, %v1303
      %v1307 = vmul.f32 %v1291, %v1304
      %v1308 = vmul.f32 %v1293, %v1305
      %v1309 = vpack.c.bf16 %v1307, %v1306
      %v1310 = vpack.c.bf16 %v1308, %v1308
      %1311 = vrot.lane.b32.xlu0 %v871, 64
      %v1312 = vpop.permute.xlu0 %1311
      %1313 = vrot.lane.b32.xlu0 %v872, 64
      %v1314 = vpop.permute.xlu0 %1313
      %v1317 = vsel %vm937, %v1309, 0
      %v1320 = vsel %vm937, %v1310, 0
      %v1323 = vsel %vm979, %v1314, 0
      %1325 = vmatprep.subr.bf16.mxu0 0
      %1326 = vmatpush1.bf16.msra.mxu0 %v1312
      %1327 = vmatprep.subr.bf16.mxu0 0
      %1328 = vmatpush1.bf16.msra.mxu0 %v1323
      %1329 = vmatprep.subr.bf16.mxu0 0
      %1330 = vmatpush1.bf16.msra.mxu0 0
      %1331 = vmatprep.subr.bf16.mxu0 0
      %1332 = vmatpush1.bf16.msra.mxu0 0
      %1333 = vmatprep.subr.bf16.mxu0 0
      %1334 = vmatpush1.bf16.msra.mxu0 0
      %1335 = vmatprep.subr.bf16.mxu0 0
      %1336 = vmatpush1.bf16.msra.mxu0 0
      %1337 = vmatprep.subr.bf16.mxu0 0
      %1338 = vmatpush1.bf16.msra.mxu0 0
      %1339 = vmatprep.subr.bf16.mxu0 0
      %1340 = vmatpush1.bf16.msra.mxu0 0
      %1341 = vmatprep.subr.bf16.mxu0 0
      %1342 = vmatpush1.bf16.msra.mxu0 0
      %1343 = vmatprep.subr.bf16.mxu0 0
      %1344 = vmatpush1.bf16.msra.mxu0 0
      %1345 = vmatprep.subr.bf16.mxu0 0
      %1346 = vmatpush1.bf16.msra.mxu0 0
      %1347 = vmatprep.subr.bf16.mxu0 0
      %1348 = vmatpush1.bf16.msra.mxu0 0
      %1349 = vmatprep.subr.bf16.mxu0 0
      %1350 = vmatpush1.bf16.msra.mxu0 0
      %1351 = vmatprep.subr.bf16.mxu0 0
      %1352 = vmatpush1.bf16.msra.mxu0 0
      %1353 = vmatprep.subr.bf16.mxu0 0
      %1354 = vmatpush1.bf16.msra.mxu0 0
      %1355 = vmatprep.subr.bf16.mxu0 0
      %1356 = vmatpush1.bf16.msra.mxu0 0
      %1357 = vmatprep.mubr.bf16.mxu0 0
      %1358 = vmatmul.mubr.bf16.gmra.mrb[0].mxu0 %v1317
      %v1359 = vpop.f32.mrb[0].mxu0
      %v1360 = vadd.f32 0.0, %v1359
      %v1361 = vpop.f32.mrb[0].mxu0
      %v1362 = vpop.f32.mrb[0].mxu0
      %v1363 = vadd.f32 0.0, %v1362
      %v1364 = vpop.f32.mrb[0].mxu0
      %1365 = vmatprep.mubr.bf16.mxu0 0
      %1366 = vmatmul.mubr.bf16.gmra.mrb[0].mxu0 %v1320
      %v1367 = vpop.f32.mrb[0].mxu0
      %v1368 = vadd.f32 0.0, %v1367
      %v1369 = vpop.f32.mrb[0].mxu0
      %v1370 = vpop.f32.mrb[0].mxu0
      %v1371 = vpop.f32.mrb[0].mxu0
      %1372 = vdwg.mxu0
      %1373 = vrot.lane.b32.xlu0 %v867, 32
      %v1374 = vpop.permute.xlu0 %1373
      %1375 = vrot.lane.b32.xlu0 %v868, 32
      %v1376 = vpop.permute.xlu0 %1375
      %1377 = vrot.lane.b32.xlu0 %v869, 32
      %v1378 = vpop.permute.xlu0 %1377
      %1379 = vrot.lane.b32.xlu0 %v870, 32
      %v1380 = vpop.permute.xlu0 %1379
      %v1382 = vsel %vm873, %v1374, 0
      %v1385 = vsel %vm873, %v1376, 0
      %v1388 = vsel %vm873, %v1378, 0
      %v1391 = vsel %vm873, %v1380, 0
      %1393 = vmatprep.subr.bf16.mxu0 0
      %1394 = vmatpush1.bf16.xpose.msra.mxu0 %v1388
      %1395 = vmatprep.subr.bf16.mxu0 0
      %1396 = vmatpush1.bf16.xpose.msra.mxu0 %v1391
      %1397 = vmatprep.subr.bf16.mxu0 0
      %1398 = vmatpush1.bf16.xpose.msra.mxu0 0
      %1399 = vmatprep.subr.bf16.mxu0 0
      %1400 = vmatpush1.bf16.xpose.msra.mxu0 0
      %1401 = vmatprep.subr.bf16.mxu0 0
      %1402 = vmatpush1.bf16.xpose.msra.mxu0 0
      %1403 = vmatprep.subr.bf16.mxu0 0
      %1404 = vmatpush1.bf16.xpose.msra.mxu0 0
      %1405 = vmatprep.subr.bf16.mxu0 0
      %1406 = vmatpush1.bf16.xpose.msra.mxu0 0
      %1407 = vmatprep.subr.bf16.mxu0 0
      %1408 = vmatpush1.bf16.xpose.msra.mxu0 0
      %1409 = vmatprep.subr.bf16.mxu0 0
      %1410 = vmatpush1.bf16.xpose.msra.mxu0 0
      %1411 = vmatprep.subr.bf16.mxu0 0
      %1412 = vmatpush1.bf16.xpose.msra.mxu0 0
      %1413 = vmatprep.subr.bf16.mxu0 0
      %1414 = vmatpush1.bf16.xpose.msra.mxu0 0
      %1415 = vmatprep.subr.bf16.mxu0 0
      %1416 = vmatpush1.bf16.xpose.msra.mxu0 0
      %1417 = vmatprep.subr.bf16.mxu0 0
      %1418 = vmatpush1.bf16.xpose.msra.mxu0 0
      %1419 = vmatprep.subr.bf16.mxu0 0
      %1420 = vmatpush1.bf16.xpose.msra.mxu0 0
      %1421 = vmatprep.subr.bf16.mxu0 0
      %1422 = vmatpush1.bf16.xpose.msra.mxu0 0
      %1423 = vmatprep.subr.bf16.mxu0 0
      %1424 = vmatpush1.bf16.xpose.msra.mxu0 0
      %1425 = vmatprep.mubr.bf16.mxu0 0
      %1426 = vmatmul.mubr.bf16.gmra.mrb[0].mxu0 %v1382
      %v1427 = vpop.f32.mrb[0].mxu0
      %v1428 = vadd.f32 0.0, %v1427
      %v1429 = vpop.f32.mrb[0].mxu0
      %v1430 = vpop.f32.mrb[0].mxu0
      %v1431 = vadd.f32 0.0, %v1430
      %v1432 = vpop.f32.mrb[0].mxu0
      %1433 = vmatprep.mubr.bf16.mxu0 0
      %1434 = vmatmul.mubr.bf16.gmra.mrb[0].mxu0 %v1385
      %v1435 = vpop.f32.mrb[0].mxu0
      %v1436 = vadd.f32 0.0, %v1435
      %v1437 = vpop.f32.mrb[0].mxu0
      %v1438 = vpop.f32.mrb[0].mxu0
      %v1439 = vpop.f32.mrb[0].mxu0
      %1440 = vdwg.mxu0
      %v1441 = vsel %vm866, %v1428, -1e+30
      %v1442 = vsel %vm866, %v1431, -1e+30
      %v1443 = vsel %vm866, %v1436, -1e+30
      %v1444 = vsel %vm937, %v1441, -inf
      %1445 = vmax.xlane.f32.xlu0 %v1444
      %v1446 = vpop.xlane.xlu0 %1445
      %v1447 = vsel %vm937, %v1442, -inf
      %1448 = vmax.xlane.f32.xlu0 %v1447
      %v1449 = vpop.xlane.xlu0 %1448
      %v1450 = vsel %vm937, %v1443, -inf
      %1451 = vmax.xlane.f32.xlu0 %v1450
      %v1452 = vpop.xlane.xlu0 %1451
      %v1453 = vsub.f32 %v1441, %v1446
      %v1454 = vsub.f32 %v1442, %v1449
      %v1455 = vsub.f32 %v1443, %v1452
      %v1456 = vmul.f32 %v1453, 1.442695
      %v1457 = vpow.pop %v1456
      %v1458 = vmul.f32 %v1454, 1.442695
      %v1459 = vpow.pop %v1458
      %v1460 = vmul.f32 %v1455, 1.442695
      %v1461 = vpow.pop %v1460
      %v1462 = vsel %vm937, %v1457, 0.0
      %1463 = vadd.xlane.f32.xlu0 %v1462
      %v1464 = vpop.xlane.xlu0 %1463
      %v1465 = vsel %vm937, %v1459, 0.0
      %1466 = vadd.xlane.f32.xlu0 %v1465
      %v1467 = vpop.xlane.xlu0 %1466
      %v1468 = vsel %vm937, %v1461, 0.0
      %1469 = vadd.xlane.f32.xlu0 %v1468
      %v1470 = vpop.xlane.xlu0 %1469
      %v1471 = vrcp.pop %v1464
      %v1472 = vrcp.pop %v1467
      %v1473 = vrcp.pop %v1470
      %v1474 = vmul.f32 %v1457, %v1471
      %v1475 = vmul.f32 %v1459, %v1472
      %v1476 = vmul.f32 %v1461, %v1473
      %v1477 = vpack.c.bf16 %v1475, %v1474
      %v1478 = vpack.c.bf16 %v1476, %v1476
      %1479 = vrot.lane.b32.xlu0 %v871, 32
      %v1480 = vpop.permute.xlu0 %1479
      %1481 = vrot.lane.b32.xlu0 %v872, 32
      %v1482 = vpop.permute.xlu0 %1481
      %v1485 = vsel %vm937, %v1477, 0
      %v1488 = vsel %vm937, %v1478, 0
      %v1491 = vsel %vm979, %v1482, 0
      %1493 = vmatprep.subr.bf16.mxu0 0
      %1494 = vmatpush1.bf16.msra.mxu0 %v1480
      %1495 = vmatprep.subr.bf16.mxu0 0
      %1496 = vmatpush1.bf16.msra.mxu0 %v1491
      %1497 = vmatprep.subr.bf16.mxu0 0
      %1498 = vmatpush1.bf16.msra.mxu0 0
      %1499 = vmatprep.subr.bf16.mxu0 0
      %1500 = vmatpush1.bf16.msra.mxu0 0
      %1501 = vmatprep.subr.bf16.mxu0 0
      %1502 = vmatpush1.bf16.msra.mxu0 0
      %1503 = vmatprep.subr.bf16.mxu0 0
      %1504 = vmatpush1.bf16.msra.mxu0 0
      %1505 = vmatprep.subr.bf16.mxu0 0
      %1506 = vmatpush1.bf16.msra.mxu0 0
      %1507 = vmatprep.subr.bf16.mxu0 0
      %1508 = vmatpush1.bf16.msra.mxu0 0
      %1509 = vmatprep.subr.bf16.mxu0 0
      %1510 = vmatpush1.bf16.msra.mxu0 0
      %1511 = vmatprep.subr.bf16.mxu0 0
      %1512 = vmatpush1.bf16.msra.mxu0 0
      %1513 = vmatprep.subr.bf16.mxu0 0
      %1514 = vmatpush1.bf16.msra.mxu0 0
      %1515 = vmatprep.subr.bf16.mxu0 0
      %1516 = vmatpush1.bf16.msra.mxu0 0
      %1517 = vmatprep.subr.bf16.mxu0 0
      %1518 = vmatpush1.bf16.msra.mxu0 0
      %1519 = vmatprep.subr.bf16.mxu0 0
      %1520 = vmatpush1.bf16.msra.mxu0 0
      %1521 = vmatprep.subr.bf16.mxu0 0
      %1522 = vmatpush1.bf16.msra.mxu0 0
      %1523 = vmatprep.subr.bf16.mxu0 0
      %1524 = vmatpush1.bf16.msra.mxu0 0
      %1525 = vmatprep.mubr.bf16.mxu0 0
      %1526 = vmatmul.mubr.bf16.gmra.mrb[0].mxu0 %v1485
      %v1527 = vpop.f32.mrb[0].mxu0
      %v1528 = vadd.f32 0.0, %v1527
      %v1529 = vpop.f32.mrb[0].mxu0
      %v1530 = vpop.f32.mrb[0].mxu0
      %v1531 = vadd.f32 0.0, %v1530
      %v1532 = vpop.f32.mrb[0].mxu0
      %1533 = vmatprep.mubr.bf16.mxu0 0
      %1534 = vmatmul.mubr.bf16.gmra.mrb[0].mxu0 %v1488
      %v1535 = vpop.f32.mrb[0].mxu0
      %v1536 = vadd.f32 0.0, %v1535
      %v1537 = vpop.f32.mrb[0].mxu0
      %v1538 = vpop.f32.mrb[0].mxu0
      %v1539 = vpop.f32.mrb[0].mxu0
      %1540 = vdwg.mxu0
      %1544 = vrot.lane.b32.xlu0 %v1192, 32
      %v1545 = vpop.permute.xlu0 %1544
      %1546 = vrot.lane.b32.xlu0 %v1195, 32
      %v1547 = vpop.permute.xlu0 %1546
      %1548 = vrot.lane.b32.xlu0 %v1200, 32
      %v1549 = vpop.permute.xlu0 %1548
      %1556 = vrot.lane.b32.xlu0 %v1360, 64
      %v1557 = vpop.permute.xlu0 %1556
      %1558 = vrot.lane.b32.xlu0 %v1363, 64
      %v1559 = vpop.permute.xlu0 %1558
      %1560 = vrot.lane.b32.xlu0 %v1368, 64
      %v1561 = vpop.permute.xlu0 %1560
      %1568 = vrot.lane.b32.xlu0 %v1528, 96
      %v1569 = vpop.permute.xlu0 %1568
      %1570 = vrot.lane.b32.xlu0 %v1531, 96
      %v1571 = vpop.permute.xlu0 %1570
      %1572 = vrot.lane.b32.xlu0 %v1536, 96
      %v1573 = vpop.permute.xlu0 %1572
      %v1577 = vsel %vm873, %v1018, %v1545
      %v1578 = vsel %vm873, %v1021, %v1547
      %v1579 = vsel %vm873, %v1026, %v1549
      %vm1580 = vcmask 523264
      %v1581 = vsel %vm1580, %v1577, %v1557
      %v1582 = vsel %vm1580, %v1578, %v1559
      %v1583 = vsel %vm1580, %v1579, %v1561
      %vm1584 = vcmask 785408
      %v1585 = vsel %vm1584, %v1581, %v1569
      %v1586 = vsel %vm1584, %v1582, %v1571
      %v1587 = vsel %vm1584, %v1583, %v1573
      %v1588 = vpack.c.bf16 %v1586, %v1585
      %v1589 = vpack.c.bf16 %v1587, %v1587
      %v1590 = vld [vmem:[%s7] sm:$0xf]
      %v1591 = vld [vmem:[%s7 + $0x4] sm:$0xf]
      %v1592 = vld [vmem:[%s7 + $0x8] sm:$0xf]
      %v1593 = vld [vmem:[%s7 + $0xc] sm:$0xf]
      %v1594 = vld [vmem:[%s7 + $0x10] sm:$0xf]
      %v1595 = vld [vmem:[%s7 + $0x14] sm:$0xf]
      %v1596 = vld [vmem:[%s7 + $0x18] sm:$0xf]
      %v1597 = vld [vmem:[%s7 + $0x1c] sm:$0xf]
      %v1598 = vld [vmem:[%s7 + $0x20] sm:$0xf]
      %v1599 = vld [vmem:[%s7 + $0x24] sm:$0xf]
      %v1600 = vld [vmem:[%s7 + $0x28] sm:$0xf]
      %v1601 = vld [vmem:[%s7 + $0x2c] sm:$0xf]
      %v1602 = vld [vmem:[%s7 + $0x30] sm:$0xf]
      %v1603 = vld [vmem:[%s7 + $0x34] sm:$0xf]
      %v1604 = vld [vmem:[%s7 + $0x38] sm:$0xf]
      %v1605 = vld [vmem:[%s7 + $0x3c] sm:$0xf]
      %v1606 = vld [vmem:[%s8] sm:$0x1]
      %v1608 = vlaneseq
      %v1609 = vshrl.u32 %v1608, 7
      %v1610 = vsub.s32 0, %v1609
      %v1611 = vrot.slane %v1606, %v1610
      %v1629 = vunpack.c.l.b16 %v1590
      %v1630 = vunpack.c.l.b16 %v1591
      %v1631 = vunpack.c.l.b16 %v1592
      %v1632 = vunpack.c.l.b16 %v1593
      %v1633 = vunpack.c.l.b16 %v1594
      %v1634 = vunpack.c.l.b16 %v1595
      %v1635 = vunpack.c.l.b16 %v1596
      %v1636 = vunpack.c.l.b16 %v1597
      %v1637 = vunpack.c.l.b16 %v1598
      %v1638 = vunpack.c.l.b16 %v1599
      %v1639 = vunpack.c.l.b16 %v1600
      %v1640 = vunpack.c.l.b16 %v1601
      %v1641 = vunpack.c.l.b16 %v1602
      %v1642 = vunpack.c.l.b16 %v1603
      %v1643 = vunpack.c.l.b16 %v1604
      %v1644 = vunpack.c.l.b16 %v1605
      %v1645 = vpack.c.b16 %v1630, %v1629
      %v1646 = vpack.c.b16 %v1632, %v1631
      %v1647 = vpack.c.b16 %v1634, %v1633
      %v1648 = vpack.c.b16 %v1636, %v1635
      %v1649 = vpack.c.b16 %v1638, %v1637
      %v1650 = vpack.c.b16 %v1640, %v1639
      %v1651 = vpack.c.b16 %v1642, %v1641
      %v1652 = vpack.c.b16 %v1644, %v1643
      %1661 = vmatprep.subr.bf16.mxu0 0
      %1662 = vmatpush1.bf16.msra.mxu0 %v1645
      %1663 = vmatprep.subr.bf16.mxu0 0
      %1664 = vmatpush1.bf16.msra.mxu0 %v1646
      %1665 = vmatprep.subr.bf16.mxu0 0
      %1666 = vmatpush1.bf16.msra.mxu0 %v1647
      %1667 = vmatprep.subr.bf16.mxu0 0
      %1668 = vmatpush1.bf16.msra.mxu0 %v1648
      %1669 = vmatprep.subr.bf16.mxu0 0
      %1670 = vmatpush1.bf16.msra.mxu0 %v1649
      %1671 = vmatprep.subr.bf16.mxu0 0
      %1672 = vmatpush1.bf16.msra.mxu0 %v1650
      %1673 = vmatprep.subr.bf16.mxu0 0
      %1674 = vmatpush1.bf16.msra.mxu0 %v1651
      %1675 = vmatprep.subr.bf16.mxu0 0
      %1676 = vmatpush1.bf16.msra.mxu0 %v1652
      %1677 = vmatprep.subr.bf16.mxu0 0
      %1678 = vmatpush1.bf16.msra.mxu0 0
      %1679 = vmatprep.subr.bf16.mxu0 0
      %1680 = vmatpush1.bf16.msra.mxu0 0
      %1681 = vmatprep.subr.bf16.mxu0 0
      %1682 = vmatpush1.bf16.msra.mxu0 0
      %1683 = vmatprep.subr.bf16.mxu0 0
      %1684 = vmatpush1.bf16.msra.mxu0 0
      %1685 = vmatprep.subr.bf16.mxu0 0
      %1686 = vmatpush1.bf16.msra.mxu0 0
      %1687 = vmatprep.subr.bf16.mxu0 0
      %1688 = vmatpush1.bf16.msra.mxu0 0
      %1689 = vmatprep.subr.bf16.mxu0 0
      %1690 = vmatpush1.bf16.msra.mxu0 0
      %1691 = vmatprep.subr.bf16.mxu0 0
      %1692 = vmatpush1.bf16.msra.mxu0 0
      %1693 = vmatprep.mubr.bf16.mxu0 0
      %1694 = vmatmul.mubr.bf16.gmra.mrb[0].mxu0 %v1588
      %v1695 = vpop.f32.mrb[0].mxu0
      %v1696 = vadd.f32 %v1611, %v1695
      %v1697 = vpop.f32.mrb[0].mxu0
      %v1698 = vpop.f32.mrb[0].mxu0
      %v1699 = vadd.f32 %v1611, %v1698
      %v1700 = vpop.f32.mrb[0].mxu0
      %1701 = vmatprep.mubr.bf16.mxu0 0
      %1702 = vmatmul.mubr.bf16.gmra.mrb[0].mxu0 %v1589
      %v1703 = vpop.f32.mrb[0].mxu0
      %v1704 = vadd.f32 %v1611, %v1703
      %v1705 = vpop.f32.mrb[0].mxu0
      %v1706 = vpop.f32.mrb[0].mxu0
      %v1707 = vpop.f32.mrb[0].mxu0
      %1708 = vdwg.mxu0
      %v1709 = vadd.f32 %v496, %v1696
      %v1710 = vadd.f32 %v497, %v1699
      %v1711 = vadd.f32 %v498, %v1704
      %v1712 = vld [vmem:[%s9] sm:$0x1]
      %v1713 = vld [vmem:[%s10] sm:$0x1]
      %1714 = vadd.xlane.f32.xlu0 %v1709
      %v1715 = vpop.xlane.xlu0 %1714
      %1716 = vadd.xlane.f32.xlu0 %v1710
      %v1717 = vpop.xlane.xlu0 %1716
      %1718 = vadd.xlane.f32.xlu0 %v1711
      %v1719 = vpop.xlane.xlu0 %1718
      %v1720 = vmul.f32 %v1715, %v507
      %v1721 = vmul.f32 %v1717, %v507
      %v1722 = vmul.f32 %v1719, %v507
      %v1723 = vsub.f32 %v1709, %v1720
      %v1724 = vsub.f32 %v1710, %v1721
      %v1725 = vsub.f32 %v1711, %v1722
      %v1726 = vmul.f32 %v1723, %v1723
      %v1727 = vmul.f32 %v1724, %v1724
      %v1728 = vmul.f32 %v1725, %v1725
      %1729 = vadd.xlane.f32.xlu0 %v1726
      %v1730 = vpop.xlane.xlu0 %1729
      %1731 = vadd.xlane.f32.xlu0 %v1727
      %v1732 = vpop.xlane.xlu0 %1731
      %1733 = vadd.xlane.f32.xlu0 %v1728
      %v1734 = vpop.xlane.xlu0 %1733
      %v1735 = vmul.f32 %v1730, %v507
      %v1736 = vmul.f32 %v1732, %v507
      %v1737 = vmul.f32 %v1734, %v507
      %v1738 = vadd.f32 %v1735, 1e-06
      %v1739 = vadd.f32 %v1736, 1e-06
      %v1740 = vadd.f32 %v1737, 1e-06
      %v1741 = vrsqrt.pop %v1738
      %v1742 = vrsqrt.pop %v1739
      %v1743 = vrsqrt.pop %v1740
      %v1744 = vmul.f32 %v1723, %v1741
      %v1745 = vmul.f32 %v1724, %v1742
      %v1746 = vmul.f32 %v1725, %v1743
      %v1748 = vlaneseq
      %v1749 = vshrl.u32 %v1748, 7
      %v1750 = vsub.s32 0, %v1749
      %v1751 = vrot.slane %v1712, %v1750
      %v1753 = vmul.f32 %v1744, %v1751
      %v1754 = vmul.f32 %v1745, %v1751
      %v1755 = vmul.f32 %v1746, %v1751
      %v1757 = vlaneseq
      %v1758 = vshrl.u32 %v1757, 7
      %v1759 = vsub.s32 0, %v1758
      %v1760 = vrot.slane %v1713, %v1759
      %v1762 = vadd.f32 %v1753, %v1760
      %v1763 = vadd.f32 %v1754, %v1760
      %v1764 = vadd.f32 %v1755, %v1760
      %v1765 = vpack.c.bf16 %v1763, %v1762
      %v1766 = vpack.c.bf16 %v1764, %v1764
      %v1767 = vld [vmem:[%s11] sm:$0xff]
      %v1768 = vld [vmem:[%s11 + $0x8] sm:$0xff]
      %v1769 = vld [vmem:[%s11 + $0x10] sm:$0xff]
      %v1770 = vld [vmem:[%s11 + $0x18] sm:$0xff]
      %v1771 = vld [vmem:[%s11 + $0x20] sm:$0xff]
      %v1772 = vld [vmem:[%s11 + $0x28] sm:$0xff]
      %v1773 = vld [vmem:[%s11 + $0x30] sm:$0xff]
      %v1774 = vld [vmem:[%s11 + $0x38] sm:$0xff]
      %v1775 = vld [vmem:[%s11 + $0x40] sm:$0xff]
      %v1776 = vld [vmem:[%s11 + $0x48] sm:$0xff]
      %v1777 = vld [vmem:[%s11 + $0x50] sm:$0xff]
      %v1778 = vld [vmem:[%s11 + $0x58] sm:$0xff]
      %v1779 = vld [vmem:[%s11 + $0x60] sm:$0xff]
      %v1780 = vld [vmem:[%s11 + $0x68] sm:$0xff]
      %v1781 = vld [vmem:[%s11 + $0x70] sm:$0xff]
      %v1782 = vld [vmem:[%s11 + $0x78] sm:$0xff]
      %v1783 = vld [vmem:[%s11 + $0x80] sm:$0xff]
      %v1784 = vld [vmem:[%s11 + $0x88] sm:$0xff]
      %v1785 = vld [vmem:[%s11 + $0x90] sm:$0xff]
      %v1786 = vld [vmem:[%s11 + $0x98] sm:$0xff]
      %v1787 = vld [vmem:[%s11 + $0xa0] sm:$0xff]
      %v1788 = vld [vmem:[%s11 + $0xa8] sm:$0xff]
      %v1789 = vld [vmem:[%s11 + $0xb0] sm:$0xff]
      %v1790 = vld [vmem:[%s11 + $0xb8] sm:$0xff]
      %v1791 = vld [vmem:[%s11 + $0xc0] sm:$0xff]
      %v1792 = vld [vmem:[%s11 + $0xc8] sm:$0xff]
      %v1793 = vld [vmem:[%s11 + $0xd0] sm:$0xff]
      %v1794 = vld [vmem:[%s11 + $0xd8] sm:$0xff]
      %v1795 = vld [vmem:[%s11 + $0xe0] sm:$0xff]
      %v1796 = vld [vmem:[%s11 + $0xe8] sm:$0xff]
      %v1797 = vld [vmem:[%s11 + $0xf0] sm:$0xff]
      %v1798 = vld [vmem:[%s11 + $0xf8] sm:$0xff]
      %v1799 = vld [vmem:[%s12] sm:$0xf]
      %v1801 = vlaneseq
      %v1802 = vshrl.u32 %v1801, 7
      %v1803 = vsub.s32 0, %v1802
      %v1804 = vrot.slane %v1799, %v1803
      %v1805 = vlaneseq
      %v1806 = vshrl.u32 %v1805, 7
      %v1807 = vsub.s32 1, %v1806
      %v1808 = vrot.slane %v1799, %v1807
      %v1809 = vlaneseq
      %v1810 = vshrl.u32 %v1809, 7
      %v1811 = vsub.s32 2, %v1810
      %v1812 = vrot.slane %v1799, %v1811
      %v1813 = vlaneseq
      %v1814 = vshrl.u32 %v1813, 7
      %v1815 = vsub.s32 3, %v1814
      %v1816 = vrot.slane %v1799, %v1815
      %v1853 = vunpack.c.l.b16 %v1767
      %v1854 = vunpack.c.h.b16 %v1767
      %v1855 = vunpack.c.l.b16 %v1768
      %v1856 = vunpack.c.h.b16 %v1768
      %v1857 = vunpack.c.l.b16 %v1769
      %v1858 = vunpack.c.h.b16 %v1769
      %v1859 = vunpack.c.l.b16 %v1770
      %v1860 = vunpack.c.h.b16 %v1770
      %v1861 = vunpack.c.l.b16 %v1771
      %v1862 = vunpack.c.h.b16 %v1771
      %v1863 = vunpack.c.l.b16 %v1772
      %v1864 = vunpack.c.h.b16 %v1772
      %v1865 = vunpack.c.l.b16 %v1773
      %v1866 = vunpack.c.h.b16 %v1773
      %v1867 = vunpack.c.l.b16 %v1774
      %v1868 = vunpack.c.h.b16 %v1774
      %v1869 = vunpack.c.l.b16 %v1775
      %v1870 = vunpack.c.h.b16 %v1775
      %v1871 = vunpack.c.l.b16 %v1776
      %v1872 = vunpack.c.h.b16 %v1776
      %v1873 = vunpack.c.l.b16 %v1777
      %v1874 = vunpack.c.h.b16 %v1777
      %v1875 = vunpack.c.l.b16 %v1778
      %v1876 = vunpack.c.h.b16 %v1778
      %v1877 = vunpack.c.l.b16 %v1779
      %v1878 = vunpack.c.h.b16 %v1779
      %v1879 = vunpack.c.l.b16 %v1780
      %v1880 = vunpack.c.h.b16 %v1780
      %v1881 = vunpack.c.l.b16 %v1781
      %v1882 = vunpack.c.h.b16 %v1781
      %v1883 = vunpack.c.l.b16 %v1782
      %v1884 = vunpack.c.h.b16 %v1782
      %v1885 = vunpack.c.l.b16 %v1783
      %v1886 = vunpack.c.h.b16 %v1783
      %v1887 = vunpack.c.l.b16 %v1784
      %v1888 = vunpack.c.h.b16 %v1784
      %v1889 = vunpack.c.l.b16 %v1785
      %v1890 = vunpack.c.h.b16 %v1785
      %v1891 = vunpack.c.l.b16 %v1786
      %v1892 = vunpack.c.h.b16 %v1786
      %v1893 = vunpack.c.l.b16 %v1787
      %v1894 = vunpack.c.h.b16 %v1787
      %v1895 = vunpack.c.l.b16 %v1788
      %v1896 = vunpack.c.h.b16 %v1788
      %v1897 = vunpack.c.l.b16 %v1789
      %v1898 = vunpack.c.h.b16 %v1789
      %v1899 = vunpack.c.l.b16 %v1790
      %v1900 = vunpack.c.h.b16 %v1790
      %v1901 = vunpack.c.l.b16 %v1791
      %v1902 = vunpack.c.h.b16 %v1791
      %v1903 = vunpack.c.l.b16 %v1792
      %v1904 = vunpack.c.h.b16 %v1792
      %v1905 = vunpack.c.l.b16 %v1793
      %v1906 = vunpack.c.h.b16 %v1793
      %v1907 = vunpack.c.l.b16 %v1794
      %v1908 = vunpack.c.h.b16 %v1794
      %v1909 = vunpack.c.l.b16 %v1795
      %v1910 = vunpack.c.h.b16 %v1795
      %v1911 = vunpack.c.l.b16 %v1796
      %v1912 = vunpack.c.h.b16 %v1796
      %v1913 = vunpack.c.l.b16 %v1797
      %v1914 = vunpack.c.h.b16 %v1797
      %v1915 = vunpack.c.l.b16 %v1798
      %v1916 = vunpack.c.h.b16 %v1798
      %v1917 = vpack.c.b16 %v1857, %v1853
      %v1918 = vpack.c.b16 %v1858, %v1854
      %v1919 = vpack.c.b16 %v1859, %v1855
      %v1920 = vpack.c.b16 %v1860, %v1856
      %v1921 = vpack.c.b16 %v1865, %v1861
      %v1922 = vpack.c.b16 %v1866, %v1862
      %v1923 = vpack.c.b16 %v1867, %v1863
      %v1924 = vpack.c.b16 %v1868, %v1864
      %v1925 = vpack.c.b16 %v1873, %v1869
      %v1926 = vpack.c.b16 %v1874, %v1870
      %v1927 = vpack.c.b16 %v1875, %v1871
      %v1928 = vpack.c.b16 %v1876, %v1872
      %v1929 = vpack.c.b16 %v1881, %v1877
      %v1930 = vpack.c.b16 %v1882, %v1878
      %v1931 = vpack.c.b16 %v1883, %v1879
      %v1932 = vpack.c.b16 %v1884, %v1880
      %v1933 = vpack.c.b16 %v1889, %v1885
      %v1934 = vpack.c.b16 %v1890, %v1886
      %v1935 = vpack.c.b16 %v1891, %v1887
      %v1936 = vpack.c.b16 %v1892, %v1888
      %v1937 = vpack.c.b16 %v1897, %v1893
      %v1938 = vpack.c.b16 %v1898, %v1894
      %v1939 = vpack.c.b16 %v1899, %v1895
      %v1940 = vpack.c.b16 %v1900, %v1896
      %v1941 = vpack.c.b16 %v1905, %v1901
      %v1942 = vpack.c.b16 %v1906, %v1902
      %v1943 = vpack.c.b16 %v1907, %v1903
      %v1944 = vpack.c.b16 %v1908, %v1904
      %v1945 = vpack.c.b16 %v1913, %v1909
      %v1946 = vpack.c.b16 %v1914, %v1910
      %v1947 = vpack.c.b16 %v1915, %v1911
      %v1948 = vpack.c.b16 %v1916, %v1912
      %1981 = vmatprep.subr.bf16.mxu0 %v1918
      %1982 = vmatpush1.bf16.msra.mxu0 %v1917
      %1983 = vmatprep.subr.bf16.mxu0 %v1922
      %1984 = vmatpush1.bf16.msra.mxu0 %v1921
      %1985 = vmatprep.subr.bf16.mxu0 %v1926
      %1986 = vmatpush1.bf16.msra.mxu0 %v1925
      %1987 = vmatprep.subr.bf16.mxu0 %v1930
      %1988 = vmatpush1.bf16.msra.mxu0 %v1929
      %1989 = vmatprep.subr.bf16.mxu0 %v1934
      %1990 = vmatpush1.bf16.msra.mxu0 %v1933
      %1991 = vmatprep.subr.bf16.mxu0 %v1938
      %1992 = vmatpush1.bf16.msra.mxu0 %v1937
      %1993 = vmatprep.subr.bf16.mxu0 %v1942
      %1994 = vmatpush1.bf16.msra.mxu0 %v1941
      %1995 = vmatprep.subr.bf16.mxu0 %v1946
      %1996 = vmatpush1.bf16.msra.mxu0 %v1945
      %1997 = vmatprep.subr.bf16.mxu0 0
      %1998 = vmatpush1.bf16.msra.mxu0 0
      %1999 = vmatprep.subr.bf16.mxu0 0
      %2000 = vmatpush1.bf16.msra.mxu0 0
      %2001 = vmatprep.subr.bf16.mxu0 0
      %2002 = vmatpush1.bf16.msra.mxu0 0
      %2003 = vmatprep.subr.bf16.mxu0 0
      %2004 = vmatpush1.bf16.msra.mxu0 0
      %2005 = vmatprep.subr.bf16.mxu0 0
      %2006 = vmatpush1.bf16.msra.mxu0 0
      %2007 = vmatprep.subr.bf16.mxu0 0
      %2008 = vmatpush1.bf16.msra.mxu0 0
      %2009 = vmatprep.subr.bf16.mxu0 0
      %2010 = vmatpush1.bf16.msra.mxu0 0
      %2011 = vmatprep.subr.bf16.mxu0 0
      %2012 = vmatpush1.bf16.msra.mxu0 0
      %2013 = vmatprep.mubr.bf16.mxu0 0
      %2014 = vmatmul.mubr.bf16.gmra.mrb[0].mxu0 %v1765
      %v2015 = vpop.f32.mrb[0].mxu0
      %v2016 = vadd.f32 %v1804, %v2015
      %v2017 = vpop.f32.mrb[0].mxu0
      %v2018 = vadd.f32 %v1808, %v2017
      %v2019 = vpop.f32.mrb[0].mxu0
      %v2020 = vadd.f32 %v1804, %v2019
      %v2021 = vpop.f32.mrb[0].mxu0
      %v2022 = vadd.f32 %v1808, %v2021
      %2023 = vmatprep.mubr.bf16.mxu0 0
      %2024 = vmatmul.mubr.bf16.gmra.mrb[0].mxu0 %v1766
      %v2025 = vpop.f32.mrb[0].mxu0
      %v2026 = vadd.f32 %v1804, %v2025
      %v2027 = vpop.f32.mrb[0].mxu0
      %v2028 = vadd.f32 %v1808, %v2027
      %v2029 = vpop.f32.mrb[0].mxu0
      %v2030 = vpop.f32.mrb[0].mxu0
      %2031 = vdwg.mxu0
      %2032 = vmatprep.subr.bf16.mxu0 %v1920
      %2033 = vmatpush1.bf16.msra.mxu0 %v1919
      %2034 = vmatprep.subr.bf16.mxu0 %v1924
      %2035 = vmatpush1.bf16.msra.mxu0 %v1923
      %2036 = vmatprep.subr.bf16.mxu0 %v1928
      %2037 = vmatpush1.bf16.msra.mxu0 %v1927
      %2038 = vmatprep.subr.bf16.mxu0 %v1932
      %2039 = vmatpush1.bf16.msra.mxu0 %v1931
      %2040 = vmatprep.subr.bf16.mxu0 %v1936
      %2041 = vmatpush1.bf16.msra.mxu0 %v1935
      %2042 = vmatprep.subr.bf16.mxu0 %v1940
      %2043 = vmatpush1.bf16.msra.mxu0 %v1939
      %2044 = vmatprep.subr.bf16.mxu0 %v1944
      %2045 = vmatpush1.bf16.msra.mxu0 %v1943
      %2046 = vmatprep.subr.bf16.mxu0 %v1948
      %2047 = vmatpush1.bf16.msra.mxu0 %v1947
      %2048 = vmatprep.subr.bf16.mxu0 0
      %2049 = vmatpush1.bf16.msra.mxu0 0
      %2050 = vmatprep.subr.bf16.mxu0 0
      %2051 = vmatpush1.bf16.msra.mxu0 0
      %2052 = vmatprep.subr.bf16.mxu0 0
      %2053 = vmatpush1.bf16.msra.mxu0 0
      %2054 = vmatprep.subr.bf16.mxu0 0
      %2055 = vmatpush1.bf16.msra.mxu0 0
      %2056 = vmatprep.subr.bf16.mxu0 0
      %2057 = vmatpush1.bf16.msra.mxu0 0
      %2058 = vmatprep.subr.bf16.mxu0 0
      %2059 = vmatpush1.bf16.msra.mxu0 0
      %2060 = vmatprep.subr.bf16.mxu0 0
      %2061 = vmatpush1.bf16.msra.mxu0 0
      %2062 = vmatprep.subr.bf16.mxu0 0
      %2063 = vmatpush1.bf16.msra.mxu0 0
      %2064 = vmatprep.mubr.bf16.mxu0 0
      %2065 = vmatmul.mubr.bf16.gmra.mrb[0].mxu0 %v1765
      %v2066 = vpop.f32.mrb[0].mxu0
      %v2067 = vadd.f32 %v1812, %v2066
      %v2068 = vpop.f32.mrb[0].mxu0
      %v2069 = vadd.f32 %v1816, %v2068
      %v2070 = vpop.f32.mrb[0].mxu0
      %v2071 = vadd.f32 %v1812, %v2070
      %v2072 = vpop.f32.mrb[0].mxu0
      %v2073 = vadd.f32 %v1816, %v2072
      %2074 = vmatprep.mubr.bf16.mxu0 0
      %2075 = vmatmul.mubr.bf16.gmra.mrb[0].mxu0 %v1766
      %v2076 = vpop.f32.mrb[0].mxu0
      %v2077 = vadd.f32 %v1812, %v2076
      %v2078 = vpop.f32.mrb[0].mxu0
      %v2079 = vadd.f32 %v1816, %v2078
      %v2080 = vpop.f32.mrb[0].mxu0
      %v2081 = vpop.f32.mrb[0].mxu0
      %2082 = vdwg.mxu0
      %v2083 = vmul.f32 %v2016, 0.5
      %v2084 = vmul.f32 %v2018, 0.5
      %v2085 = vmul.f32 %v2067, 0.5
      %v2086 = vmul.f32 %v2069, 0.5
      %v2087 = vmul.f32 %v2020, 0.5
      %v2088 = vmul.f32 %v2022, 0.5
      %v2089 = vmul.f32 %v2071, 0.5
      %v2090 = vmul.f32 %v2073, 0.5
      %v2091 = vmul.f32 %v2026, 0.5
      %v2092 = vmul.f32 %v2028, 0.5
      %v2093 = vmul.f32 %v2077, 0.5
      %v2094 = vmul.f32 %v2079, 0.5
      %v2095 = vmul.f32 %v2016, 0.70710677
      %v2096 = vmul.f32 %v2018, 0.70710677
      %v2097 = vmul.f32 %v2067, 0.70710677
      %v2098 = vmul.f32 %v2069, 0.70710677
      %v2099 = vmul.f32 %v2020, 0.70710677
      %v2100 = vmul.f32 %v2022, 0.70710677
      %v2101 = vmul.f32 %v2071, 0.70710677
      %v2102 = vmul.f32 %v2073, 0.70710677
      %v2103 = vmul.f32 %v2026, 0.70710677
      %v2104 = vmul.f32 %v2028, 0.70710677
      %v2105 = vmul.f32 %v2077, 0.70710677
      %v2106 = vmul.f32 %v2079, 0.70710677
      %v2107 = vand.u32 2147483647, %v2095
      %v2108 = vand.u32 2147483647, %v2096
      %v2109 = vand.u32 2147483647, %v2097
      %v2110 = vand.u32 2147483647, %v2098
      %v2111 = vand.u32 2147483647, %v2099
      %v2112 = vand.u32 2147483647, %v2100
      %v2113 = vand.u32 2147483647, %v2101
      %v2114 = vand.u32 2147483647, %v2102
      %v2115 = vand.u32 2147483647, %v2103
      %v2116 = vand.u32 2147483647, %v2104
      %v2117 = vand.u32 2147483647, %v2105
      %v2118 = vand.u32 2147483647, %v2106
      %v2119 = vmul.f32 %v2107, 0.3275911
      %v2120 = vmul.f32 %v2108, 0.3275911
      %v2121 = vmul.f32 %v2109, 0.3275911
      %v2122 = vmul.f32 %v2110, 0.3275911
      %v2123 = vmul.f32 %v2111, 0.3275911
      %v2124 = vmul.f32 %v2112, 0.3275911
      %v2125 = vmul.f32 %v2113, 0.3275911
      %v2126 = vmul.f32 %v2114, 0.3275911
      %v2127 = vmul.f32 %v2115, 0.3275911
      %v2128 = vmul.f32 %v2116, 0.3275911
      %v2129 = vmul.f32 %v2117, 0.3275911
      %v2130 = vmul.f32 %v2118, 0.3275911
      %v2131 = vadd.f32 %v2119, 1.0
      %v2132 = vadd.f32 %v2120, 1.0
      %v2133 = vadd.f32 %v2121, 1.0
      %v2134 = vadd.f32 %v2122, 1.0
      %v2135 = vadd.f32 %v2123, 1.0
      %v2136 = vadd.f32 %v2124, 1.0
      %v2137 = vadd.f32 %v2125, 1.0
      %v2138 = vadd.f32 %v2126, 1.0
      %v2139 = vadd.f32 %v2127, 1.0
      %v2140 = vadd.f32 %v2128, 1.0
      %v2141 = vadd.f32 %v2129, 1.0
      %v2142 = vadd.f32 %v2130, 1.0
      %v2143 = vrcp.pop %v2131
      %v2144 = vmul.f32 1.0, %v2143
      %v2145 = vrcp.pop %v2132
      %v2146 = vmul.f32 1.0, %v2145
      %v2147 = vrcp.pop %v2133
      %v2148 = vmul.f32 1.0, %v2147
      %v2149 = vrcp.pop %v2134
      %v2150 = vmul.f32 1.0, %v2149
      %v2151 = vrcp.pop %v2135
      %v2152 = vmul.f32 1.0, %v2151
      %v2153 = vrcp.pop %v2136
      %v2154 = vmul.f32 1.0, %v2153
      %v2155 = vrcp.pop %v2137
      %v2156 = vmul.f32 1.0, %v2155
      %v2157 = vrcp.pop %v2138
      %v2158 = vmul.f32 1.0, %v2157
      %v2159 = vrcp.pop %v2139
      %v2160 = vmul.f32 1.0, %v2159
      %v2161 = vrcp.pop %v2140
      %v2162 = vmul.f32 1.0, %v2161
      %v2163 = vrcp.pop %v2141
      %v2164 = vmul.f32 1.0, %v2163
      %v2165 = vrcp.pop %v2142
      %v2166 = vmul.f32 1.0, %v2165
      %v2167 = vmul.f32 %v2144, 1.0614054
      %v2168 = vmul.f32 %v2146, 1.0614054
      %v2169 = vmul.f32 %v2148, 1.0614054
      %v2170 = vmul.f32 %v2150, 1.0614054
      %v2171 = vmul.f32 %v2152, 1.0614054
      %v2172 = vmul.f32 %v2154, 1.0614054
      %v2173 = vmul.f32 %v2156, 1.0614054
      %v2174 = vmul.f32 %v2158, 1.0614054
      %v2175 = vmul.f32 %v2160, 1.0614054
      %v2176 = vmul.f32 %v2162, 1.0614054
      %v2177 = vmul.f32 %v2164, 1.0614054
      %v2178 = vmul.f32 %v2166, 1.0614054
      %v2179 = vadd.f32 %v2167, -1.4531521
      %v2180 = vadd.f32 %v2168, -1.4531521
      %v2181 = vadd.f32 %v2169, -1.4531521
      %v2182 = vadd.f32 %v2170, -1.4531521
      %v2183 = vadd.f32 %v2171, -1.4531521
      %v2184 = vadd.f32 %v2172, -1.4531521
      %v2185 = vadd.f32 %v2173, -1.4531521
      %v2186 = vadd.f32 %v2174, -1.4531521
      %v2187 = vadd.f32 %v2175, -1.4531521
      %v2188 = vadd.f32 %v2176, -1.4531521
      %v2189 = vadd.f32 %v2177, -1.4531521
      %v2190 = vadd.f32 %v2178, -1.4531521
      %v2191 = vmul.f32 %v2179, %v2144
      %v2192 = vmul.f32 %v2180, %v2146
      %v2193 = vmul.f32 %v2181, %v2148
      %v2194 = vmul.f32 %v2182, %v2150
      %v2195 = vmul.f32 %v2183, %v2152
      %v2196 = vmul.f32 %v2184, %v2154
      %v2197 = vmul.f32 %v2185, %v2156
      %v2198 = vmul.f32 %v2186, %v2158
      %v2199 = vmul.f32 %v2187, %v2160
      %v2200 = vmul.f32 %v2188, %v2162
      %v2201 = vmul.f32 %v2189, %v2164
      %v2202 = vmul.f32 %v2190, %v2166
      %v2203 = vadd.f32 %v2191, 1.4214138
      %v2204 = vadd.f32 %v2192, 1.4214138
      %v2205 = vadd.f32 %v2193, 1.4214138
      %v2206 = vadd.f32 %v2194, 1.4214138
      %v2207 = vadd.f32 %v2195, 1.4214138
      %v2208 = vadd.f32 %v2196, 1.4214138
      %v2209 = vadd.f32 %v2197, 1.4214138
      %v2210 = vadd.f32 %v2198, 1.4214138
      %v2211 = vadd.f32 %v2199, 1.4214138
      %v2212 = vadd.f32 %v2200, 1.4214138
      %v2213 = vadd.f32 %v2201, 1.4214138
      %v2214 = vadd.f32 %v2202, 1.4214138
      %v2215 = vmul.f32 %v2203, %v2144
      %v2216 = vmul.f32 %v2204, %v2146
      %v2217 = vmul.f32 %v2205, %v2148
      %v2218 = vmul.f32 %v2206, %v2150
      %v2219 = vmul.f32 %v2207, %v2152
      %v2220 = vmul.f32 %v2208, %v2154
      %v2221 = vmul.f32 %v2209, %v2156
      %v2222 = vmul.f32 %v2210, %v2158
      %v2223 = vmul.f32 %v2211, %v2160
      %v2224 = vmul.f32 %v2212, %v2162
      %v2225 = vmul.f32 %v2213, %v2164
      %v2226 = vmul.f32 %v2214, %v2166
      %v2227 = vadd.f32 %v2215, -0.28449672
      %v2228 = vadd.f32 %v2216, -0.28449672
      %v2229 = vadd.f32 %v2217, -0.28449672
      %v2230 = vadd.f32 %v2218, -0.28449672
      %v2231 = vadd.f32 %v2219, -0.28449672
      %v2232 = vadd.f32 %v2220, -0.28449672
      %v2233 = vadd.f32 %v2221, -0.28449672
      %v2234 = vadd.f32 %v2222, -0.28449672
      %v2235 = vadd.f32 %v2223, -0.28449672
      %v2236 = vadd.f32 %v2224, -0.28449672
      %v2237 = vadd.f32 %v2225, -0.28449672
      %v2238 = vadd.f32 %v2226, -0.28449672
      %v2239 = vmul.f32 %v2227, %v2144
      %v2240 = vmul.f32 %v2228, %v2146
      %v2241 = vmul.f32 %v2229, %v2148
      %v2242 = vmul.f32 %v2230, %v2150
      %v2243 = vmul.f32 %v2231, %v2152
      %v2244 = vmul.f32 %v2232, %v2154
      %v2245 = vmul.f32 %v2233, %v2156
      %v2246 = vmul.f32 %v2234, %v2158
      %v2247 = vmul.f32 %v2235, %v2160
      %v2248 = vmul.f32 %v2236, %v2162
      %v2249 = vmul.f32 %v2237, %v2164
      %v2250 = vmul.f32 %v2238, %v2166
      %v2251 = vadd.f32 %v2239, 0.2548296
      %v2252 = vadd.f32 %v2240, 0.2548296
      %v2253 = vadd.f32 %v2241, 0.2548296
      %v2254 = vadd.f32 %v2242, 0.2548296
      %v2255 = vadd.f32 %v2243, 0.2548296
      %v2256 = vadd.f32 %v2244, 0.2548296
      %v2257 = vadd.f32 %v2245, 0.2548296
      %v2258 = vadd.f32 %v2246, 0.2548296
      %v2259 = vadd.f32 %v2247, 0.2548296
      %v2260 = vadd.f32 %v2248, 0.2548296
      %v2261 = vadd.f32 %v2249, 0.2548296
      %v2262 = vadd.f32 %v2250, 0.2548296
      %v2263 = vmul.f32 %v2251, %v2144
      %v2264 = vmul.f32 %v2252, %v2146
      %v2265 = vmul.f32 %v2253, %v2148
      %v2266 = vmul.f32 %v2254, %v2150
      %v2267 = vmul.f32 %v2255, %v2152
      %v2268 = vmul.f32 %v2256, %v2154
      %v2269 = vmul.f32 %v2257, %v2156
      %v2270 = vmul.f32 %v2258, %v2158
      %v2271 = vmul.f32 %v2259, %v2160
      %v2272 = vmul.f32 %v2260, %v2162
      %v2273 = vmul.f32 %v2261, %v2164
      %v2274 = vmul.f32 %v2262, %v2166
      %v2275 = vsub.f32 0.0, %v2107
      %v2276 = vsub.f32 0.0, %v2108
      %v2277 = vsub.f32 0.0, %v2109
      %v2278 = vsub.f32 0.0, %v2110
      %v2279 = vsub.f32 0.0, %v2111
      %v2280 = vsub.f32 0.0, %v2112
      %v2281 = vsub.f32 0.0, %v2113
      %v2282 = vsub.f32 0.0, %v2114
      %v2283 = vsub.f32 0.0, %v2115
      %v2284 = vsub.f32 0.0, %v2116
      %v2285 = vsub.f32 0.0, %v2117
      %v2286 = vsub.f32 0.0, %v2118
      %v2287 = vmul.f32 %v2275, %v2107
      %v2288 = vmul.f32 %v2276, %v2108
      %v2289 = vmul.f32 %v2277, %v2109
      %v2290 = vmul.f32 %v2278, %v2110
      %v2291 = vmul.f32 %v2279, %v2111
      %v2292 = vmul.f32 %v2280, %v2112
      %v2293 = vmul.f32 %v2281, %v2113
      %v2294 = vmul.f32 %v2282, %v2114
      %v2295 = vmul.f32 %v2283, %v2115
      %v2296 = vmul.f32 %v2284, %v2116
      %v2297 = vmul.f32 %v2285, %v2117
      %v2298 = vmul.f32 %v2286, %v2118
      %v2299 = vmul.f32 %v2287, 1.442695
      %v2300 = vpow.pop %v2299
      %v2301 = vmul.f32 %v2288, 1.442695
      %v2302 = vpow.pop %v2301
      %v2303 = vmul.f32 %v2289, 1.442695
      %v2304 = vpow.pop %v2303
      %v2305 = vmul.f32 %v2290, 1.442695
      %v2306 = vpow.pop %v2305
      %v2307 = vmul.f32 %v2291, 1.442695
      %v2308 = vpow.pop %v2307
      %v2309 = vmul.f32 %v2292, 1.442695
      %v2310 = vpow.pop %v2309
      %v2311 = vmul.f32 %v2293, 1.442695
      %v2312 = vpow.pop %v2311
      %v2313 = vmul.f32 %v2294, 1.442695
      %v2314 = vpow.pop %v2313
      %v2315 = vmul.f32 %v2295, 1.442695
      %v2316 = vpow.pop %v2315
      %v2317 = vmul.f32 %v2296, 1.442695
      %v2318 = vpow.pop %v2317
      %v2319 = vmul.f32 %v2297, 1.442695
      %v2320 = vpow.pop %v2319
      %v2321 = vmul.f32 %v2298, 1.442695
      %v2322 = vpow.pop %v2321
      %v2323 = vmul.f32 %v2263, %v2300
      %v2324 = vmul.f32 %v2264, %v2302
      %v2325 = vmul.f32 %v2265, %v2304
      %v2326 = vmul.f32 %v2266, %v2306
      %v2327 = vmul.f32 %v2267, %v2308
      %v2328 = vmul.f32 %v2268, %v2310
      %v2329 = vmul.f32 %v2269, %v2312
      %v2330 = vmul.f32 %v2270, %v2314
      %v2331 = vmul.f32 %v2271, %v2316
      %v2332 = vmul.f32 %v2272, %v2318
      %v2333 = vmul.f32 %v2273, %v2320
      %v2334 = vmul.f32 %v2274, %v2322
      %v2335 = vsub.f32 1.0, %v2323
      %v2336 = vsub.f32 1.0, %v2324
      %v2337 = vsub.f32 1.0, %v2325
      %v2338 = vsub.f32 1.0, %v2326
      %v2339 = vsub.f32 1.0, %v2327
      %v2340 = vsub.f32 1.0, %v2328
      %v2341 = vsub.f32 1.0, %v2329
      %v2342 = vsub.f32 1.0, %v2330
      %v2343 = vsub.f32 1.0, %v2331
      %v2344 = vsub.f32 1.0, %v2332
      %v2345 = vsub.f32 1.0, %v2333
      %v2346 = vsub.f32 1.0, %v2334
      %vm2347 = vcmp.lt.f32.partialorder %v2095, 0.0
      %vm2348 = vcmp.lt.f32.partialorder %v2096, 0.0
      %vm2349 = vcmp.lt.f32.partialorder %v2097, 0.0
      %vm2350 = vcmp.lt.f32.partialorder %v2098, 0.0
      %vm2351 = vcmp.lt.f32.partialorder %v2099, 0.0
      %vm2352 = vcmp.lt.f32.partialorder %v2100, 0.0
      %vm2353 = vcmp.lt.f32.partialorder %v2101, 0.0
      %vm2354 = vcmp.lt.f32.partialorder %v2102, 0.0
      %vm2355 = vcmp.lt.f32.partialorder %v2103, 0.0
      %vm2356 = vcmp.lt.f32.partialorder %v2104, 0.0
      %vm2357 = vcmp.lt.f32.partialorder %v2105, 0.0
      %vm2358 = vcmp.lt.f32.partialorder %v2106, 0.0
      %v2359 = vsub.f32 0.0, %v2335
      %v2360 = vsub.f32 0.0, %v2336
      %v2361 = vsub.f32 0.0, %v2337
      %v2362 = vsub.f32 0.0, %v2338
      %v2363 = vsub.f32 0.0, %v2339
      %v2364 = vsub.f32 0.0, %v2340
      %v2365 = vsub.f32 0.0, %v2341
      %v2366 = vsub.f32 0.0, %v2342
      %v2367 = vsub.f32 0.0, %v2343
      %v2368 = vsub.f32 0.0, %v2344
      %v2369 = vsub.f32 0.0, %v2345
      %v2370 = vsub.f32 0.0, %v2346
      %v2371 = vsel %vm2347, %v2359, %v2335
      %v2372 = vsel %vm2348, %v2360, %v2336
      %v2373 = vsel %vm2349, %v2361, %v2337
      %v2374 = vsel %vm2350, %v2362, %v2338
      %v2375 = vsel %vm2351, %v2363, %v2339
      %v2376 = vsel %vm2352, %v2364, %v2340
      %v2377 = vsel %vm2353, %v2365, %v2341
      %v2378 = vsel %vm2354, %v2366, %v2342
      %v2379 = vsel %vm2355, %v2367, %v2343
      %v2380 = vsel %vm2356, %v2368, %v2344
      %v2381 = vsel %vm2357, %v2369, %v2345
      %v2382 = vsel %vm2358, %v2370, %v2346
      %v2383 = vadd.f32 %v2371, 1.0
      %v2384 = vadd.f32 %v2372, 1.0
      %v2385 = vadd.f32 %v2373, 1.0
      %v2386 = vadd.f32 %v2374, 1.0
      %v2387 = vadd.f32 %v2375, 1.0
      %v2388 = vadd.f32 %v2376, 1.0
      %v2389 = vadd.f32 %v2377, 1.0
      %v2390 = vadd.f32 %v2378, 1.0
      %v2391 = vadd.f32 %v2379, 1.0
      %v2392 = vadd.f32 %v2380, 1.0
      %v2393 = vadd.f32 %v2381, 1.0
      %v2394 = vadd.f32 %v2382, 1.0
      %v2395 = vmul.f32 %v2083, %v2383
      %v2396 = vmul.f32 %v2084, %v2384
      %v2397 = vmul.f32 %v2085, %v2385
      %v2398 = vmul.f32 %v2086, %v2386
      %v2399 = vmul.f32 %v2087, %v2387
      %v2400 = vmul.f32 %v2088, %v2388
      %v2401 = vmul.f32 %v2089, %v2389
      %v2402 = vmul.f32 %v2090, %v2390
      %v2403 = vmul.f32 %v2091, %v2391
      %v2404 = vmul.f32 %v2092, %v2392
      %v2405 = vmul.f32 %v2093, %v2393
      %v2406 = vmul.f32 %v2094, %v2394
      %v2407 = vpack.c.bf16 %v2399, %v2395
      %v2408 = vpack.c.bf16 %v2400, %v2396
      %v2409 = vpack.c.bf16 %v2401, %v2397
      %v2410 = vpack.c.bf16 %v2402, %v2398
      %v2411 = vpack.c.bf16 %v2403, %v2403
      %v2412 = vpack.c.bf16 %v2404, %v2404
      %v2413 = vpack.c.bf16 %v2405, %v2405
      %v2414 = vpack.c.bf16 %v2406, %v2406
      %v2415 = vld [vmem:[%s13] sm:$0xf]
      %v2416 = vld [vmem:[%s13 + $0x4] sm:$0xf]
      %v2417 = vld [vmem:[%s13 + $0x8] sm:$0xf]
      %v2418 = vld [vmem:[%s13 + $0xc] sm:$0xf]
      %v2419 = vld [vmem:[%s13 + $0x10] sm:$0xf]
      %v2420 = vld [vmem:[%s13 + $0x14] sm:$0xf]
      %v2421 = vld [vmem:[%s13 + $0x18] sm:$0xf]
      %v2422 = vld [vmem:[%s13 + $0x1c] sm:$0xf]
      %v2423 = vld [vmem:[%s13 + $0x20] sm:$0xf]
      %v2424 = vld [vmem:[%s13 + $0x24] sm:$0xf]
      %v2425 = vld [vmem:[%s13 + $0x28] sm:$0xf]
      %v2426 = vld [vmem:[%s13 + $0x2c] sm:$0xf]
      %v2427 = vld [vmem:[%s13 + $0x30] sm:$0xf]
      %v2428 = vld [vmem:[%s13 + $0x34] sm:$0xf]
      %v2429 = vld [vmem:[%s13 + $0x38] sm:$0xf]
      %v2430 = vld [vmem:[%s13 + $0x3c] sm:$0xf]
      %v2431 = vld [vmem:[%s13 + $0x40] sm:$0xf]
      %v2432 = vld [vmem:[%s13 + $0x44] sm:$0xf]
      %v2433 = vld [vmem:[%s13 + $0x48] sm:$0xf]
      %v2434 = vld [vmem:[%s13 + $0x4c] sm:$0xf]
      %v2435 = vld [vmem:[%s13 + $0x50] sm:$0xf]
      %v2436 = vld [vmem:[%s13 + $0x54] sm:$0xf]
      %v2437 = vld [vmem:[%s13 + $0x58] sm:$0xf]
      %v2438 = vld [vmem:[%s13 + $0x5c] sm:$0xf]
      %v2439 = vld [vmem:[%s13 + $0x60] sm:$0xf]
      %v2440 = vld [vmem:[%s13 + $0x64] sm:$0xf]
      %v2441 = vld [vmem:[%s13 + $0x68] sm:$0xf]
      %v2442 = vld [vmem:[%s13 + $0x6c] sm:$0xf]
      %v2443 = vld [vmem:[%s13 + $0x70] sm:$0xf]
      %v2444 = vld [vmem:[%s13 + $0x74] sm:$0xf]
      %v2445 = vld [vmem:[%s13 + $0x78] sm:$0xf]
      %v2446 = vld [vmem:[%s13 + $0x7c] sm:$0xf]
      %v2447 = vld [vmem:[%s13 + $0x80] sm:$0xf]
      %v2448 = vld [vmem:[%s13 + $0x84] sm:$0xf]
      %v2449 = vld [vmem:[%s13 + $0x88] sm:$0xf]
      %v2450 = vld [vmem:[%s13 + $0x8c] sm:$0xf]
      %v2451 = vld [vmem:[%s13 + $0x90] sm:$0xf]
      %v2452 = vld [vmem:[%s13 + $0x94] sm:$0xf]
      %v2453 = vld [vmem:[%s13 + $0x98] sm:$0xf]
      %v2454 = vld [vmem:[%s13 + $0x9c] sm:$0xf]
      %v2455 = vld [vmem:[%s13 + $0xa0] sm:$0xf]
      %v2456 = vld [vmem:[%s13 + $0xa4] sm:$0xf]
      %v2457 = vld [vmem:[%s13 + $0xa8] sm:$0xf]
      %v2458 = vld [vmem:[%s13 + $0xac] sm:$0xf]
      %v2459 = vld [vmem:[%s13 + $0xb0] sm:$0xf]
      %v2460 = vld [vmem:[%s13 + $0xb4] sm:$0xf]
      %v2461 = vld [vmem:[%s13 + $0xb8] sm:$0xf]
      %v2462 = vld [vmem:[%s13 + $0xbc] sm:$0xf]
      %v2463 = vld [vmem:[%s13 + $0xc0] sm:$0xf]
      %v2464 = vld [vmem:[%s13 + $0xc4] sm:$0xf]
      %v2465 = vld [vmem:[%s13 + $0xc8] sm:$0xf]
      %v2466 = vld [vmem:[%s13 + $0xcc] sm:$0xf]
      %v2467 = vld [vmem:[%s13 + $0xd0] sm:$0xf]
      %v2468 = vld [vmem:[%s13 + $0xd4] sm:$0xf]
      %v2469 = vld [vmem:[%s13 + $0xd8] sm:$0xf]
      %v2470 = vld [vmem:[%s13 + $0xdc] sm:$0xf]
      %v2471 = vld [vmem:[%s13 + $0xe0] sm:$0xf]
      %v2472 = vld [vmem:[%s13 + $0xe4] sm:$0xf]
      %v2473 = vld [vmem:[%s13 + $0xe8] sm:$0xf]
      %v2474 = vld [vmem:[%s13 + $0xec] sm:$0xf]
      %v2475 = vld [vmem:[%s13 + $0xf0] sm:$0xf]
      %v2476 = vld [vmem:[%s13 + $0xf4] sm:$0xf]
      %v2477 = vld [vmem:[%s13 + $0xf8] sm:$0xf]
      %v2478 = vld [vmem:[%s13 + $0xfc] sm:$0xf]
      %v2479 = vld [vmem:[%s14] sm:$0x1]
      %v2481 = vlaneseq
      %v2482 = vshrl.u32 %v2481, 7
      %v2483 = vsub.s32 0, %v2482
      %v2484 = vrot.slane %v2479, %v2483
      %v2550 = vunpack.c.l.b16 %v2415
      %v2551 = vunpack.c.l.b16 %v2416
      %v2552 = vunpack.c.l.b16 %v2417
      %v2553 = vunpack.c.l.b16 %v2418
      %v2554 = vunpack.c.l.b16 %v2419
      %v2555 = vunpack.c.l.b16 %v2420
      %v2556 = vunpack.c.l.b16 %v2421
      %v2557 = vunpack.c.l.b16 %v2422
      %v2558 = vunpack.c.l.b16 %v2423
      %v2559 = vunpack.c.l.b16 %v2424
      %v2560 = vunpack.c.l.b16 %v2425
      %v2561 = vunpack.c.l.b16 %v2426
      %v2562 = vunpack.c.l.b16 %v2427
      %v2563 = vunpack.c.l.b16 %v2428
      %v2564 = vunpack.c.l.b16 %v2429
      %v2565 = vunpack.c.l.b16 %v2430
      %v2566 = vunpack.c.l.b16 %v2431
      %v2567 = vunpack.c.l.b16 %v2432
      %v2568 = vunpack.c.l.b16 %v2433
      %v2569 = vunpack.c.l.b16 %v2434
      %v2570 = vunpack.c.l.b16 %v2435
      %v2571 = vunpack.c.l.b16 %v2436
      %v2572 = vunpack.c.l.b16 %v2437
      %v2573 = vunpack.c.l.b16 %v2438
      %v2574 = vunpack.c.l.b16 %v2439
      %v2575 = vunpack.c.l.b16 %v2440
      %v2576 = vunpack.c.l.b16 %v2441
      %v2577 = vunpack.c.l.b16 %v2442
      %v2578 = vunpack.c.l.b16 %v2443
      %v2579 = vunpack.c.l.b16 %v2444
      %v2580 = vunpack.c.l.b16 %v2445
      %v2581 = vunpack.c.l.b16 %v2446
      %v2582 = vunpack.c.l.b16 %v2447
      %v2583 = vunpack.c.l.b16 %v2448
      %v2584 = vunpack.c.l.b16 %v2449
      %v2585 = vunpack.c.l.b16 %v2450
      %v2586 = vunpack.c.l.b16 %v2451
      %v2587 = vunpack.c.l.b16 %v2452
      %v2588 = vunpack.c.l.b16 %v2453
      %v2589 = vunpack.c.l.b16 %v2454
      %v2590 = vunpack.c.l.b16 %v2455
      %v2591 = vunpack.c.l.b16 %v2456
      %v2592 = vunpack.c.l.b16 %v2457
      %v2593 = vunpack.c.l.b16 %v2458
      %v2594 = vunpack.c.l.b16 %v2459
      %v2595 = vunpack.c.l.b16 %v2460
      %v2596 = vunpack.c.l.b16 %v2461
      %v2597 = vunpack.c.l.b16 %v2462
      %v2598 = vunpack.c.l.b16 %v2463
      %v2599 = vunpack.c.l.b16 %v2464
      %v2600 = vunpack.c.l.b16 %v2465
      %v2601 = vunpack.c.l.b16 %v2466
      %v2602 = vunpack.c.l.b16 %v2467
      %v2603 = vunpack.c.l.b16 %v2468
      %v2604 = vunpack.c.l.b16 %v2469
      %v2605 = vunpack.c.l.b16 %v2470
      %v2606 = vunpack.c.l.b16 %v2471
      %v2607 = vunpack.c.l.b16 %v2472
      %v2608 = vunpack.c.l.b16 %v2473
      %v2609 = vunpack.c.l.b16 %v2474
      %v2610 = vunpack.c.l.b16 %v2475
      %v2611 = vunpack.c.l.b16 %v2476
      %v2612 = vunpack.c.l.b16 %v2477
      %v2613 = vunpack.c.l.b16 %v2478
      %v2614 = vpack.c.b16 %v2551, %v2550
      %v2615 = vpack.c.b16 %v2553, %v2552
      %v2616 = vpack.c.b16 %v2555, %v2554
      %v2617 = vpack.c.b16 %v2557, %v2556
      %v2618 = vpack.c.b16 %v2559, %v2558
      %v2619 = vpack.c.b16 %v2561, %v2560
      %v2620 = vpack.c.b16 %v2563, %v2562
      %v2621 = vpack.c.b16 %v2565, %v2564
      %v2622 = vpack.c.b16 %v2567, %v2566
      %v2623 = vpack.c.b16 %v2569, %v2568
      %v2624 = vpack.c.b16 %v2571, %v2570
      %v2625 = vpack.c.b16 %v2573, %v2572
      %v2626 = vpack.c.b16 %v2575, %v2574
      %v2627 = vpack.c.b16 %v2577, %v2576
      %v2628 = vpack.c.b16 %v2579, %v2578
      %v2629 = vpack.c.b16 %v2581, %v2580
      %v2630 = vpack.c.b16 %v2583, %v2582
      %v2631 = vpack.c.b16 %v2585, %v2584
      %v2632 = vpack.c.b16 %v2587, %v2586
      %v2633 = vpack.c.b16 %v2589, %v2588
      %v2634 = vpack.c.b16 %v2591, %v2590
      %v2635 = vpack.c.b16 %v2593, %v2592
      %v2636 = vpack.c.b16 %v2595, %v2594
      %v2637 = vpack.c.b16 %v2597, %v2596
      %v2638 = vpack.c.b16 %v2599, %v2598
      %v2639 = vpack.c.b16 %v2601, %v2600
      %v2640 = vpack.c.b16 %v2603, %v2602
      %v2641 = vpack.c.b16 %v2605, %v2604
      %v2642 = vpack.c.b16 %v2607, %v2606
      %v2643 = vpack.c.b16 %v2609, %v2608
      %v2644 = vpack.c.b16 %v2611, %v2610
      %v2645 = vpack.c.b16 %v2613, %v2612
      %2678 = vmatprep.subr.bf16.mxu0 0
      %2679 = vmatpush1.bf16.msra.mxu0 %v2614
      %2680 = vmatprep.subr.bf16.mxu0 0
      %2681 = vmatpush1.bf16.msra.mxu0 %v2615
      %2682 = vmatprep.subr.bf16.mxu0 0
      %2683 = vmatpush1.bf16.msra.mxu0 %v2616
      %2684 = vmatprep.subr.bf16.mxu0 0
      %2685 = vmatpush1.bf16.msra.mxu0 %v2617
      %2686 = vmatprep.subr.bf16.mxu0 0
      %2687 = vmatpush1.bf16.msra.mxu0 %v2618
      %2688 = vmatprep.subr.bf16.mxu0 0
      %2689 = vmatpush1.bf16.msra.mxu0 %v2619
      %2690 = vmatprep.subr.bf16.mxu0 0
      %2691 = vmatpush1.bf16.msra.mxu0 %v2620
      %2692 = vmatprep.subr.bf16.mxu0 0
      %2693 = vmatpush1.bf16.msra.mxu0 %v2621
      %2694 = vmatprep.subr.bf16.mxu0 0
      %2695 = vmatpush1.bf16.msra.mxu0 %v2622
      %2696 = vmatprep.subr.bf16.mxu0 0
      %2697 = vmatpush1.bf16.msra.mxu0 %v2623
      %2698 = vmatprep.subr.bf16.mxu0 0
      %2699 = vmatpush1.bf16.msra.mxu0 %v2624
      %2700 = vmatprep.subr.bf16.mxu0 0
      %2701 = vmatpush1.bf16.msra.mxu0 %v2625
      %2702 = vmatprep.subr.bf16.mxu0 0
      %2703 = vmatpush1.bf16.msra.mxu0 %v2626
      %2704 = vmatprep.subr.bf16.mxu0 0
      %2705 = vmatpush1.bf16.msra.mxu0 %v2627
      %2706 = vmatprep.subr.bf16.mxu0 0
      %2707 = vmatpush1.bf16.msra.mxu0 %v2628
      %2708 = vmatprep.subr.bf16.mxu0 0
      %2709 = vmatpush1.bf16.msra.mxu0 %v2629
      %2710 = vmatprep.mubr.bf16.mxu0 %v2408
      %2711 = vmatmul.mubr.bf16.gmra.mrb[0].mxu0 %v2407
      %v2712 = vpop.f32.mrb[0].mxu0
      %v2713 = vadd.f32 %v2484, %v2712
      %v2714 = vpop.f32.mrb[0].mxu0
      %v2715 = vpop.f32.mrb[0].mxu0
      %v2716 = vadd.f32 %v2484, %v2715
      %v2717 = vpop.f32.mrb[0].mxu0
      %2718 = vmatprep.mubr.bf16.mxu0 %v2412
      %2719 = vmatmul.mubr.bf16.gmra.mrb[0].mxu0 %v2411
      %v2720 = vpop.f32.mrb[0].mxu0
      %v2721 = vadd.f32 %v2484, %v2720
      %v2722 = vpop.f32.mrb[0].mxu0
      %v2723 = vpop.f32.mrb[0].mxu0
      %v2724 = vpop.f32.mrb[0].mxu0
      %2725 = vdwg.mxu0
      %2726 = vmatprep.subr.bf16.mxu0 0
      %2727 = vmatpush1.bf16.msra.mxu0 %v2630
      %2728 = vmatprep.subr.bf16.mxu0 0
      %2729 = vmatpush1.bf16.msra.mxu0 %v2631
      %2730 = vmatprep.subr.bf16.mxu0 0
      %2731 = vmatpush1.bf16.msra.mxu0 %v2632
      %2732 = vmatprep.subr.bf16.mxu0 0
      %2733 = vmatpush1.bf16.msra.mxu0 %v2633
      %2734 = vmatprep.subr.bf16.mxu0 0
      %2735 = vmatpush1.bf16.msra.mxu0 %v2634
      %2736 = vmatprep.subr.bf16.mxu0 0
      %2737 = vmatpush1.bf16.msra.mxu0 %v2635
      %2738 = vmatprep.subr.bf16.mxu0 0
      %2739 = vmatpush1.bf16.msra.mxu0 %v2636
      %2740 = vmatprep.subr.bf16.mxu0 0
      %2741 = vmatpush1.bf16.msra.mxu0 %v2637
      %2742 = vmatprep.subr.bf16.mxu0 0
      %2743 = vmatpush1.bf16.msra.mxu0 %v2638
      %2744 = vmatprep.subr.bf16.mxu0 0
      %2745 = vmatpush1.bf16.msra.mxu0 %v2639
      %2746 = vmatprep.subr.bf16.mxu0 0
      %2747 = vmatpush1.bf16.msra.mxu0 %v2640
      %2748 = vmatprep.subr.bf16.mxu0 0
      %2749 = vmatpush1.bf16.msra.mxu0 %v2641
      %2750 = vmatprep.subr.bf16.mxu0 0
      %2751 = vmatpush1.bf16.msra.mxu0 %v2642
      %2752 = vmatprep.subr.bf16.mxu0 0
      %2753 = vmatpush1.bf16.msra.mxu0 %v2643
      %2754 = vmatprep.subr.bf16.mxu0 0
      %2755 = vmatpush1.bf16.msra.mxu0 %v2644
      %2756 = vmatprep.subr.bf16.mxu0 0
      %2757 = vmatpush1.bf16.msra.mxu0 %v2645
      %2758 = vmatprep.mubr.bf16.mxu0 %v2410
      %2759 = vmatmul.mubr.bf16.gmra.mrb[0].mxu0 %v2409
      %v2760 = vpop.f32.mrb[0].mxu0
      %v2761 = vadd.f32 %v2713, %v2760
      %v2762 = vpop.f32.mrb[0].mxu0
      %v2763 = vpop.f32.mrb[0].mxu0
      %v2764 = vadd.f32 %v2716, %v2763
      %v2765 = vpop.f32.mrb[0].mxu0
      %2766 = vmatprep.mubr.bf16.mxu0 %v2414
      %2767 = vmatmul.mubr.bf16.gmra.mrb[0].mxu0 %v2413
      %v2768 = vpop.f32.mrb[0].mxu0
      %v2769 = vadd.f32 %v2721, %v2768
      %v2770 = vpop.f32.mrb[0].mxu0
      %v2771 = vpop.f32.mrb[0].mxu0
      %v2772 = vpop.f32.mrb[0].mxu0
      %2773 = vdwg.mxu0
      %v2774 = vadd.f32 %v1709, %v2761
      %v2775 = vadd.f32 %v1710, %v2764
      %v2776 = vadd.f32 %v1711, %v2769
      %2777 = vst [vmem:[%s494] sm:$0xff] %v2774
      %2778 = vst [vmem:[%s494 + $0x8] sm:$0xff] %v2775
      %2779 = vst [vmem:[%s494 + $0x10] sm:$0xff] %v2776
      %p2780 = scmp.lt.s32.totalorder %s26, 1
      %s2781 = scalar_select %p2780, %s26, 1
      %s2782 = smul.addr %s2781, 3
      %s2783 = smul.addr %s2782, 8
      %s2784 = scalar_lea.vmem %s15, %s2783
      // Predicated region
      $region81: #{imu_encoder_forward.6} parent=79 // pred_check
        %p2785 = pneg %p364
      $region82: #{imu_encoder_forward.6} parent=79 // pred_check_branch
        %2787 = sbr.rel (%p2785) target = $region84
      $region83: #{imu_encoder_forward.6} parent=79 // pred_region
        _
      $region84: #{imu_encoder_forward.6} parent=79 // pred_fallthru
        _
    $region80: #{imu_encoder_forward.6} parent=5 // pred_fallthru
      _
    %p2788 = scmp.le.s32.totalorder 2, %s21
    // Predicated region
    $region85: #{imu_encoder_forward.6} parent=5 // pred_check
      %p2789 = pneg %p2788
    $region86: #{imu_encoder_forward.6} parent=5 // pred_check_branch
      %2791 = sbr.rel (%p2789) target = $region88
    $region87: #{imu_encoder_forward.6} parent=5 // pred_region
      %s2792 = ssub.s32 %s21, 2
      // Predicated region
      $region89: #{imu_encoder_forward.6} parent=87 // pred_check
        %p2793 = pneg %p370
      $region90: #{imu_encoder_forward.6} parent=87 // pred_check_branch
        %2795 = sbr.rel (%p2793) target = $region92
      $region91: #{imu_encoder_forward.6} parent=87 // pred_region
        %p2796 = scmp.lt.s32.totalorder %s27, 1
        %s2797 = scalar_select %p2796, %s27, 1
        %s2798 = smul.addr %s2797, 3
        %s2799 = smul.addr %s2798, 8
        %s2800 = scalar_lea.vmem %s15, %s2799
      $region92: #{imu_encoder_forward.6} parent=87 // pred_fallthru
        _
    $region88: #{imu_encoder_forward.6} parent=5 // pred_fallthru
      _
  $region6: #{imu_encoder_forward.6} parent=0 // loop_footer
    %s25 = sadd.s32 1, %s21
  $region7: #{imu_encoder_forward.6} parent=0 // loop_footer_branch
    %20 = sbr.rel target = $region3
  $region8: #{imu_encoder_forward.6} parent=0 // loop_exit
    _

// kernel: imu_encoder_forward.5
$region0: #{imu_encoder_forward.5}
  #allocation0 [shape = 'u32[]', space=smem, size = 0x4, offset = 0x4, fixed_abs, tag = 'smem constant byte address 0x4 - core index']
  #allocation1 [shape = 'u32[144,128]{1,0:T(1,128)}', space=vmem, size = 0x12000, scoped, tag = 'internal scratch']
  %s0 = inlined_call_operand.vmem [shape: f32[2,24,128], index: 0, kind: input, shape index: {}]
  %s1 = inlined_call_operand.hbm [shape: f32[1,128], index: 1, kind: input, shape index: {}]
  %s2 = inlined_call_operand.hbm [shape: f32[1,128], index: 2, kind: input, shape index: {}]
  %s3 = inlined_call_operand.vmem [shape: bf16[128,384], index: 3, kind: input, shape index: {}]
  %s4 = inlined_call_operand.hbm [shape: f32[1,384], index: 4, kind: input, shape index: {}]
  %s5 = inlined_call_operand.hbm [shape: f32[1,128], index: 5, kind: input, shape index: {}]
  %s6 = inlined_call_operand.hbm [shape: f32[1,128], index: 6, kind: input, shape index: {}]
  %s7 = inlined_call_operand.vmem [shape: bf16[128,128], index: 7, kind: input, shape index: {}]
  %s8 = inlined_call_operand.hbm [shape: f32[1,128], index: 8, kind: input, shape index: {}]
  %s9 = inlined_call_operand.hbm [shape: f32[1,128], index: 9, kind: input, shape index: {}]
  %s10 = inlined_call_operand.hbm [shape: f32[1,128], index: 10, kind: input, shape index: {}]
  %s11 = inlined_call_operand.vmem [shape: bf16[128,512], index: 11, kind: input, shape index: {}]
  %s12 = inlined_call_operand.hbm [shape: f32[1,512], index: 12, kind: input, shape index: {}]
  %s13 = inlined_call_operand.vmem [shape: bf16[512,128], index: 13, kind: input, shape index: {}]
  %s14 = inlined_call_operand.hbm [shape: f32[1,128], index: 14, kind: input, shape index: {}]
  %s15 = inlined_call_operand.vmem [shape: f32[2,24,128], index: 15, kind: output, shape index: {}]
  %s16 = sld [smem:[#allocation0]]
  $region133: #{imu_encoder_forward.5} parent=0
    _
  %s18 = ssub.s32 1, %s16
  %s19 = scalar_select 0, %s18, %s16
  $region1: #{imu_encoder_forward.5} parent=0
    #allocation2 [shape = 'u8[512]{0}', space=vmem, size = 0x400, scoped, tag = 'input window, operand 1, single buffered']
    #allocation3 [shape = 's32[2]{0}', space=sflag, size = 0x8, scoped, tag = 'scoped memory for imu_encoder_forward.5']
    #allocation4 [shape = 'u8[512]{0}', space=vmem, size = 0x400, scoped, tag = 'input window, operand 2, single buffered']
    #allocation5 [shape = 's32[1]{0}', space=sflag, size = 0x4, scoped, tag = 'scoped memory for imu_encoder_forward.5']
    #allocation6 [shape = 'u8[1536]{0}', space=vmem, size = 0x800, scoped, tag = 'input window, operand 4, single buffered']
    #allocation7 [shape = 'u8[512]{0}', space=vmem, size = 0x400, scoped, tag = 'input window, operand 5, single buffered']
    #allocation8 [shape = 's32[1]{0}', space=sflag, size = 0x4, scoped, tag = 'scoped memory for imu_encoder_forward.5']
    #allocation9 [shape = 'u8[512]{0}', space=vmem, size = 0x400, scoped, tag = 'input window, operand 6, single buffered']
    #allocation10 [shape = 'u8[512]{0}', space=vmem, size = 0x400, scoped, tag = 'input window, operand 8, single buffered']
    #allocation11 [shape = 's32[1]{0}', space=sflag, size = 0x4, scoped, tag = 'scoped memory for imu_encoder_forward.5']
    #allocation12 [shape = 'u8[512]{0}', space=vmem, size = 0x400, scoped, tag = 'input window, operand 9, single buffered']
    #allocation13 [shape = 'u8[512]{0}', space=vmem, size = 0x400, scoped, tag = 'input window, operand 10, single buffered']
    #allocation14 [shape = 's32[1]{0}', space=sflag, size = 0x4, scoped, tag = 'scoped memory for imu_encoder_forward.5']
    #allocation15 [shape = 'u8[2048]{0}', space=vmem, size = 0x800, scoped, tag = 'input window, operand 12, single buffered']
    #allocation16 [shape = 'u8[512]{0}', space=vmem, size = 0x400, scoped, tag = 'input window, operand 14, single buffered']
    #allocation17 [shape = 's32[1]{0}', space=sflag, size = 0x4, scoped, tag = 'scoped memory for imu_encoder_forward.5']
    %20 = vsyncpa [#allocation3], 0
    %21 = vsyncpa [#allocation5], 0
    %22 = vsyncpa [#allocation8], 0
    %23 = vsyncpa [#allocation11], 0
    %24 = vsyncpa [#allocation14], 0
    %25 = vsyncpa [#allocation17], 0
    loop: start=0, step=1, limit=4
    $region2: #{imu_encoder_forward.5} parent=1 // loop_pre_header
      _
    $region3: #{imu_encoder_forward.5} parent=1 // loop_header
      %s27 = sphi 0, %s31
      %p28 = scmp.ge.s32.totalorder %s27, 4
      %s37 = sphi 0, %s39
      %s40 = sphi 0, %s37
      %s41 = sphi 0, %s40
      %s57 = sphi 0, %s41
      %s61 = sphi 0, %s61
      %s63 = sphi 0, %s61
      %s64 = sphi 0, %s63
      %s78 = sphi 0, %s64
      %s82 = sphi 0, %s82
      %s84 = sphi 0, %s82
      %s85 = sphi 0, %s84
      %s99 = sphi 0, %s85
      %s103 = sphi 0, %s103
      %s105 = sphi 0, %s103
      %s106 = sphi 0, %s105
      %s120 = sphi 0, %s106
      %s124 = sphi 0, %s124
      %s126 = sphi 0, %s124
      %s127 = sphi 0, %s126
      %s141 = sphi 0, %s127
      %s145 = sphi 0, %s145
      %s147 = sphi 0, %s145
      %s148 = sphi 0, %s147
      %s162 = sphi 0, %s148
      %s166 = sphi 0, %s166
      %s168 = sphi 0, %s166
      %s169 = sphi 0, %s168
      %s183 = sphi 0, %s169
      %s187 = sphi 0, %s187
      %s189 = sphi 0, %s187
      %s190 = sphi 0, %s189
      %s204 = sphi 0, %s190
      %s208 = sphi 0, %s208
      %s210 = sphi 0, %s208
      %s211 = sphi 0, %s210
      %s225 = sphi 0, %s211
      %s229 = sphi 0, %s229
      %s231 = sphi 0, %s229
      %s232 = sphi 0, %s231
      %s246 = sphi 0, %s232
      %s250 = sphi 0, %s250
      %s252 = sphi 0, %s250
      %s253 = sphi 0, %s252
      %s267 = sphi 0, %s253
      %s271 = sphi 0, %s271
      %s273 = sphi 0, %s271
      %s274 = sphi 0, %s273
      %s288 = sphi 0, %s274
      %s292 = sphi 0, %s292
      %s294 = sphi 0, %s292
      %s295 = sphi 0, %s294
      %s309 = sphi 0, %s295
      %s313 = sphi 0, %s313
      %s315 = sphi 0, %s313
      %s316 = sphi 0, %s315
      %s330 = sphi 0, %s316
      %s334 = sphi 0, %s334
      %s336 = sphi 0, %s334
      %s337 = sphi 0, %s336
      %s351 = sphi 0, %s337
      %s357 = sphi 0, %s359
      %s360 = sphi 0, %s357
      %s361 = sphi 0, %s360
      %s377 = sphi 0, %s361
    $region4: #{imu_encoder_forward.5} parent=1 // loop_header_branch
      %30 = sbr.rel (%p28) target = $region8
    $region5: #{imu_encoder_forward.5} parent=1 // loop_body
      %s32 = ssub.s32 %s27, 1
      %s33 = ssub.s32 %s27, 2
      %s34 = sadd.s32 %s27, 1
      %s35 = ssub.s32 %s27, %s34
      %p36 = scmp.eq.s32.totalorder %s35, 0
      %s38 = sadd.s32 %s37, 1
      %s39 = scalar_select %p36, %s37, %s38
      %p42 = pneg %p36
      %p43 = scmp.eq.s32.totalorder %s27, 1
      %p44 = por %p42, %p43
      %p45 = scmp.ne.s32.totalorder %s37, %s40
      %p46 = scmp.eq.s32.totalorder %s27, 0
      %p47 = por %p45, %p46
      %p48 = scmp.ne.s32.totalorder %s37, %s40
      %p49 = scmp.eq.s32.totalorder %s32, 1
      %p50 = por %p48, %p49
      %p51 = scmp.ne.s32.totalorder %s40, %s41
      %p52 = scmp.eq.s32.totalorder %s32, 0
      %p53 = por %p51, %p52
      %p54 = scmp.ne.s32.totalorder %s40, %s41
      %p55 = scmp.eq.s32.totalorder %s33, 1
      %p56 = por %p54, %p55
      %p58 = scmp.ne.s32.totalorder %s41, %s57
      %p59 = scmp.eq.s32.totalorder %s33, 0
      %p60 = por %p58, %p59
      %s62 = sadd.s32 %s61, 1
      %p65 = scmp.eq.s32.totalorder %s27, 1
      %p66 = scmp.ne.s32.totalorder %s61, %s63
      %p67 = scmp.eq.s32.totalorder %s27, 0
      %p68 = por %p66, %p67
      %p69 = scmp.ne.s32.totalorder %s61, %s63
      %p70 = scmp.eq.s32.totalorder %s32, 1
      %p71 = por %p69, %p70
      %p72 = scmp.ne.s32.totalorder %s63, %s64
      %p73 = scmp.eq.s32.totalorder %s32, 0
      %p74 = por %p72, %p73
      %p75 = scmp.ne.s32.totalorder %s63, %s64
      %p76 = scmp.eq.s32.totalorder %s33, 1
      %p77 = por %p75, %p76
      %p79 = scmp.ne.s32.totalorder %s64, %s78
      %p80 = scmp.eq.s32.totalorder %s33, 0
      %p81 = por %p79, %p80
      %s83 = sadd.s32 %s82, 1
      %p86 = scmp.eq.s32.totalorder %s27, 1
      %p87 = scmp.ne.s32.totalorder %s82, %s84
      %p88 = scmp.eq.s32.totalorder %s27, 0
      %p89 = por %p87, %p88
      %p90 = scmp.ne.s32.totalorder %s82, %s84
      %p91 = scmp.eq.s32.totalorder %s32, 1
      %p92 = por %p90, %p91
      %p93 = scmp.ne.s32.totalorder %s84, %s85
      %p94 = scmp.eq.s32.totalorder %s32, 0
      %p95 = por %p93, %p94
      %p96 = scmp.ne.s32.totalorder %s84, %s85
      %p97 = scmp.eq.s32.totalorder %s33, 1
      %p98 = por %p96, %p97
      %p100 = scmp.ne.s32.totalorder %s85, %s99
      %p101 = scmp.eq.s32.totalorder %s33, 0
      %p102 = por %p100, %p101
      %s104 = sadd.s32 %s103, 1
      %p107 = scmp.eq.s32.totalorder %s27, 1
      %p108 = scmp.ne.s32.totalorder %s103, %s105
      %p109 = scmp.eq.s32.totalorder %s27, 0
      %p110 = por %p108, %p109
      %p111 = scmp.ne.s32.totalorder %s103, %s105
      %p112 = scmp.eq.s32.totalorder %s32, 1
      %p113 = por %p111, %p112
      %p114 = scmp.ne.s32.totalorder %s105, %s106
      %p115 = scmp.eq.s32.totalorder %s32, 0
      %p116 = por %p114, %p115
      %p117 = scmp.ne.s32.totalorder %s105, %s106
      %p118 = scmp.eq.s32.totalorder %s33, 1
      %p119 = por %p117, %p118
      %p121 = scmp.ne.s32.totalorder %s106, %s120
      %p122 = scmp.eq.s32.totalorder %s33, 0
      %p123 = por %p121, %p122
      %s125 = sadd.s32 %s124, 1
      %p128 = scmp.eq.s32.totalorder %s27, 1
      %p129 = scmp.ne.s32.totalorder %s124, %s126
      %p130 = scmp.eq.s32.totalorder %s27, 0
      %p131 = por %p129, %p130
      %p132 = scmp.ne.s32.totalorder %s124, %s126
      %p133 = scmp.eq.s32.totalorder %s32, 1
      %p134 = por %p132, %p133
      %p135 = scmp.ne.s32.totalorder %s126, %s127
      %p136 = scmp.eq.s32.totalorder %s32, 0
      %p137 = por %p135, %p136
      %p138 = scmp.ne.s32.totalorder %s126, %s127
      %p139 = scmp.eq.s32.totalorder %s33, 1
      %p140 = por %p138, %p139
      %p142 = scmp.ne.s32.totalorder %s127, %s141
      %p143 = scmp.eq.s32.totalorder %s33, 0
      %p144 = por %p142, %p143
      %s146 = sadd.s32 %s145, 1
      %p149 = scmp.eq.s32.totalorder %s27, 1
      %p150 = scmp.ne.s32.totalorder %s145, %s147
      %p151 = scmp.eq.s32.totalorder %s27, 0
      %p152 = por %p150, %p151
      %p153 = scmp.ne.s32.totalorder %s145, %s147
      %p154 = scmp.eq.s32.totalorder %s32, 1
      %p155 = por %p153, %p154
      %p156 = scmp.ne.s32.totalorder %s147, %s148
      %p157 = scmp.eq.s32.totalorder %s32, 0
      %p158 = por %p156, %p157
      %p159 = scmp.ne.s32.totalorder %s147, %s148
      %p160 = scmp.eq.s32.totalorder %s33, 1
      %p161 = por %p159, %p160
      %p163 = scmp.ne.s32.totalorder %s148, %s162
      %p164 = scmp.eq.s32.totalorder %s33, 0
      %p165 = por %p163, %p164
      %s167 = sadd.s32 %s166, 1
      %p170 = scmp.eq.s32.totalorder %s27, 1
      %p171 = scmp.ne.s32.totalorder %s166, %s168
      %p172 = scmp.eq.s32.totalorder %s27, 0
      %p173 = por %p171, %p172
      %p174 = scmp.ne.s32.totalorder %s166, %s168
      %p175 = scmp.eq.s32.totalorder %s32, 1
      %p176 = por %p174, %p175
      %p177 = scmp.ne.s32.totalorder %s168, %s169
      %p178 = scmp.eq.s32.totalorder %s32, 0
      %p179 = por %p177, %p178
      %p180 = scmp.ne.s32.totalorder %s168, %s169
      %p181 = scmp.eq.s32.totalorder %s33, 1
      %p182 = por %p180, %p181
      %p184 = scmp.ne.s32.totalorder %s169, %s183
      %p185 = scmp.eq.s32.totalorder %s33, 0
      %p186 = por %p184, %p185
      %s188 = sadd.s32 %s187, 1
      %p191 = scmp.eq.s32.totalorder %s27, 1
      %p192 = scmp.ne.s32.totalorder %s187, %s189
      %p193 = scmp.eq.s32.totalorder %s27, 0
      %p194 = por %p192, %p193
      %p195 = scmp.ne.s32.totalorder %s187, %s189
      %p196 = scmp.eq.s32.totalorder %s32, 1
      %p197 = por %p195, %p196
      %p198 = scmp.ne.s32.totalorder %s189, %s190
      %p199 = scmp.eq.s32.totalorder %s32, 0
      %p200 = por %p198, %p199
      %p201 = scmp.ne.s32.totalorder %s189, %s190
      %p202 = scmp.eq.s32.totalorder %s33, 1
      %p203 = por %p201, %p202
      %p205 = scmp.ne.s32.totalorder %s190, %s204
      %p206 = scmp.eq.s32.totalorder %s33, 0
      %p207 = por %p205, %p206
      %s209 = sadd.s32 %s208, 1
      %p212 = scmp.eq.s32.totalorder %s27, 1
      %p213 = scmp.ne.s32.totalorder %s208, %s210
      %p214 = scmp.eq.s32.totalorder %s27, 0
      %p215 = por %p213, %p214
      %p216 = scmp.ne.s32.totalorder %s208, %s210
      %p217 = scmp.eq.s32.totalorder %s32, 1
      %p218 = por %p216, %p217
      %p219 = scmp.ne.s32.totalorder %s210, %s211
      %p220 = scmp.eq.s32.totalorder %s32, 0
      %p221 = por %p219, %p220
      %p222 = scmp.ne.s32.totalorder %s210, %s211
      %p223 = scmp.eq.s32.totalorder %s33, 1
      %p224 = por %p222, %p223
      %p226 = scmp.ne.s32.totalorder %s211, %s225
      %p227 = scmp.eq.s32.totalorder %s33, 0
      %p228 = por %p226, %p227
      %s230 = sadd.s32 %s229, 1
      %p233 = scmp.eq.s32.totalorder %s27, 1
      %p234 = scmp.ne.s32.totalorder %s229, %s231
      %p235 = scmp.eq.s32.totalorder %s27, 0
      %p236 = por %p234, %p235
      %p237 = scmp.ne.s32.totalorder %s229, %s231
      %p238 = scmp.eq.s32.totalorder %s32, 1
      %p239 = por %p237, %p238
      %p240 = scmp.ne.s32.totalorder %s231, %s232
      %p241 = scmp.eq.s32.totalorder %s32, 0
      %p242 = por %p240, %p241
      %p243 = scmp.ne.s32.totalorder %s231, %s232
      %p244 = scmp.eq.s32.totalorder %s33, 1
      %p245 = por %p243, %p244
      %p247 = scmp.ne.s32.totalorder %s232, %s246
      %p248 = scmp.eq.s32.totalorder %s33, 0
      %p249 = por %p247, %p248
      %s251 = sadd.s32 %s250, 1
      %p254 = scmp.eq.s32.totalorder %s27, 1
      %p255 = scmp.ne.s32.totalorder %s250, %s252
      %p256 = scmp.eq.s32.totalorder %s27, 0
      %p257 = por %p255, %p256
      %p258 = scmp.ne.s32.totalorder %s250, %s252
      %p259 = scmp.eq.s32.totalorder %s32, 1
      %p260 = por %p258, %p259
      %p261 = scmp.ne.s32.totalorder %s252, %s253
      %p262 = scmp.eq.s32.totalorder %s32, 0
      %p263 = por %p261, %p262
      %p264 = scmp.ne.s32.totalorder %s252, %s253
      %p265 = scmp.eq.s32.totalorder %s33, 1
      %p266 = por %p264, %p265
      %p268 = scmp.ne.s32.totalorder %s253, %s267
      %p269 = scmp.eq.s32.totalorder %s33, 0
      %p270 = por %p268, %p269
      %s272 = sadd.s32 %s271, 1
      %p275 = scmp.eq.s32.totalorder %s27, 1
      %p276 = scmp.ne.s32.totalorder %s271, %s273
      %p277 = scmp.eq.s32.totalorder %s27, 0
      %p278 = por %p276, %p277
      %p279 = scmp.ne.s32.totalorder %s271, %s273
      %p280 = scmp.eq.s32.totalorder %s32, 1
      %p281 = por %p279, %p280
      %p282 = scmp.ne.s32.totalorder %s273, %s274
      %p283 = scmp.eq.s32.totalorder %s32, 0
      %p284 = por %p282, %p283
      %p285 = scmp.ne.s32.totalorder %s273, %s274
      %p286 = scmp.eq.s32.totalorder %s33, 1
      %p287 = por %p285, %p286
      %p289 = scmp.ne.s32.totalorder %s274, %s288
      %p290 = scmp.eq.s32.totalorder %s33, 0
      %p291 = por %p289, %p290
      %s293 = sadd.s32 %s292, 1
      %p296 = scmp.eq.s32.totalorder %s27, 1
      %p297 = scmp.ne.s32.totalorder %s292, %s294
      %p298 = scmp.eq.s32.totalorder %s27, 0
      %p299 = por %p297, %p298
      %p300 = scmp.ne.s32.totalorder %s292, %s294
      %p301 = scmp.eq.s32.totalorder %s32, 1
      %p302 = por %p300, %p301
      %p303 = scmp.ne.s32.totalorder %s294, %s295
      %p304 = scmp.eq.s32.totalorder %s32, 0
      %p305 = por %p303, %p304
      %p306 = scmp.ne.s32.totalorder %s294, %s295
      %p307 = scmp.eq.s32.totalorder %s33, 1
      %p308 = por %p306, %p307
      %p310 = scmp.ne.s32.totalorder %s295, %s309
      %p311 = scmp.eq.s32.totalorder %s33, 0
      %p312 = por %p310, %p311
      %s314 = sadd.s32 %s313, 1
      %p317 = scmp.eq.s32.totalorder %s27, 1
      %p318 = scmp.ne.s32.totalorder %s313, %s315
      %p319 = scmp.eq.s32.totalorder %s27, 0
      %p320 = por %p318, %p319
      %p321 = scmp.ne.s32.totalorder %s313, %s315
      %p322 = scmp.eq.s32.totalorder %s32, 1
      %p323 = por %p321, %p322
      %p324 = scmp.ne.s32.totalorder %s315, %s316
      %p325 = scmp.eq.s32.totalorder %s32, 0
      %p326 = por %p324, %p325
      %p327 = scmp.ne.s32.totalorder %s315, %s316
      %p328 = scmp.eq.s32.totalorder %s33, 1
      %p329 = por %p327, %p328
      %p331 = scmp.ne.s32.totalorder %s316, %s330
      %p332 = scmp.eq.s32.totalorder %s33, 0
      %p333 = por %p331, %p332
      %s335 = sadd.s32 %s334, 1
      %p338 = scmp.eq.s32.totalorder %s27, 1
      %p339 = scmp.ne.s32.totalorder %s334, %s336
      %p340 = scmp.eq.s32.totalorder %s27, 0
      %p341 = por %p339, %p340
      %p342 = scmp.ne.s32.totalorder %s334, %s336
      %p343 = scmp.eq.s32.totalorder %s32, 1
      %p344 = por %p342, %p343
      %p345 = scmp.ne.s32.totalorder %s336, %s337
      %p346 = scmp.eq.s32.totalorder %s32, 0
      %p347 = por %p345, %p346
      %p348 = scmp.ne.s32.totalorder %s336, %s337
      %p349 = scmp.eq.s32.totalorder %s33, 1
      %p350 = por %p348, %p349
      %p352 = scmp.ne.s32.totalorder %s337, %s351
      %p353 = scmp.eq.s32.totalorder %s33, 0
      %p354 = por %p352, %p353
      %s355 = ssub.s32 %s27, %s34
      %p356 = scmp.eq.s32.totalorder %s355, 0
      %s358 = sadd.s32 %s357, 1
      %s359 = scalar_select %p356, %s357, %s358
      %p362 = pneg %p356
      %p363 = scmp.eq.s32.totalorder %s27, 1
      %p364 = por %p362, %p363
      %p365 = scmp.ne.s32.totalorder %s357, %s360
      %p366 = scmp.eq.s32.totalorder %s27, 0
      %p367 = por %p365, %p366
      %p368 = scmp.ne.s32.totalorder %s357, %s360
      %p369 = scmp.eq.s32.totalorder %s32, 1
      %p370 = por %p368, %p369
      %p371 = scmp.ne.s32.totalorder %s360, %s361
      %p372 = scmp.eq.s32.totalorder %s32, 0
      %p373 = por %p371, %p372
      %p374 = scmp.ne.s32.totalorder %s360, %s361
      %p375 = scmp.eq.s32.totalorder %s33, 1
      %p376 = por %p374, %p375
      %p378 = scmp.ne.s32.totalorder %s361, %s377
      %p379 = scmp.eq.s32.totalorder %s33, 0
      %p380 = por %p378, %p379
      %p381 = scmp.le.s32.totalorder 1, %s27
      %p382 = scmp.lt.s32.totalorder %s27, 3
      %p383 = pnand %p381, %p382
      %p384 = pneg %p383
      // Predicated region
      $region9: #{imu_encoder_forward.5} parent=5 // pred_check
        _
      $region10: #{imu_encoder_forward.5} parent=5 // pred_check_branch
        %386 = sbr.rel (%p383) target = $region12
      $region11: #{imu_encoder_forward.5} parent=5 // pred_region
        %s387 = ssub.s32 %s27, 1
        // Predicated region
        $region13: #{imu_encoder_forward.5} parent=11 // pred_check
          %p388 = pneg %p74
        $region14: #{imu_encoder_forward.5} parent=11 // pred_check_branch
          %390 = sbr.rel (%p388) target = $region16
        $region15: #{imu_encoder_forward.5} parent=11 // pred_region
          %s392 = ssub.s32 16, 16
          %393 = vsyncadd [#allocation3], %s392
          %s395 = sshll.u32 [#allocation2], 4
          %s396 = int_to_ptr.vmem [resolvable:$true] %s395
          %398 = dma.hbm_to_vmem [thread:$0]  %s1, 16, %s396, [#allocation3]
        $region16: #{imu_encoder_forward.5} parent=11 // pred_fallthru
          _
        // Predicated region
        $region17: #{imu_encoder_forward.5} parent=11 // pred_check
          %p399 = pneg %p95
        $region18: #{imu_encoder_forward.5} parent=11 // pred_check_branch
          %401 = sbr.rel (%p399) target = $region20
        $region19: #{imu_encoder_forward.5} parent=11 // pred_region
          %s403 = ssub.s32 16, 16
          %404 = vsyncadd [#allocation5], %s403
          %s406 = sshll.u32 [#allocation4], 4
          %s407 = int_to_ptr.vmem [resolvable:$true] %s406
          %409 = dma.hbm_to_vmem [thread:$0]  %s2, 16, %s407, [#allocation5]
        $region20: #{imu_encoder_forward.5} parent=11 // pred_fallthru
          _
        // Predicated region
        $region21: #{imu_encoder_forward.5} parent=11 // pred_check
          %p410 = pneg %p116
        $region22: #{imu_encoder_forward.5} parent=11 // pred_check_branch
          %412 = sbr.rel (%p410) target = $region24
        $region23: #{imu_encoder_forward.5} parent=11 // pred_region
          _
        $region24: #{imu_encoder_forward.5} parent=11 // pred_fallthru
          _
        // Predicated region
        $region25: #{imu_encoder_forward.5} parent=11 // pred_check
          %p413 = pneg %p137
        $region26: #{imu_encoder_forward.5} parent=11 // pred_check_branch
          %415 = sbr.rel (%p413) target = $region28
        $region27: #{imu_encoder_forward.5} parent=11 // pred_region
          %s417 = ssub.s32 48, 48
          %418 = vsyncadd [#allocation5], %s417
          %s420 = sshll.u32 [#allocation6], 4
          %s421 = int_to_ptr.vmem [resolvable:$true] %s420
          %423 = dma.hbm_to_vmem [thread:$0]  %s4, 48, %s421, [#allocation5]
        $region28: #{imu_encoder_forward.5} parent=11 // pred_fallthru
          _
        // Predicated region
        $region29: #{imu_encoder_forward.5} parent=11 // pred_check
          %p424 = pneg %p158
        $region30: #{imu_encoder_forward.5} parent=11 // pred_check_branch
          %426 = sbr.rel (%p424) target = $region32
        $region31: #{imu_encoder_forward.5} parent=11 // pred_region
          %s428 = ssub.s32 16, 16
          %429 = vsyncadd [#allocation8], %s428
          %s431 = sshll.u32 [#allocation7], 4
          %s432 = int_to_ptr.vmem [resolvable:$true] %s431
          %434 = dma.hbm_to_vmem [thread:$0]  %s5, 16, %s432, [#allocation8]
        $region32: #{imu_encoder_forward.5} parent=11 // pred_fallthru
          _
        // Predicated region
        $region33: #{imu_encoder_forward.5} parent=11 // pred_check
          %p435 = pneg %p179
        $region34: #{imu_encoder_forward.5} parent=11 // pred_check_branch
          %437 = sbr.rel (%p435) target = $region36
        $region35: #{imu_encoder_forward.5} parent=11 // pred_region
          %s439 = ssub.s32 16, 16
          %440 = vsyncadd [#allocation8], %s439
          %s442 = sshll.u32 [#allocation9], 4
          %s443 = int_to_ptr.vmem [resolvable:$true] %s442
          %445 = dma.hbm_to_vmem [thread:$0]  %s6, 16, %s443, [#allocation8]
        $region36: #{imu_encoder_forward.5} parent=11 // pred_fallthru
          _
        // Predicated region
        $region37: #{imu_encoder_forward.5} parent=11 // pred_check
          %p446 = pneg %p200
        $region38: #{imu_encoder_forward.5} parent=11 // pred_check_branch
          %448 = sbr.rel (%p446) target = $region40
        $region39: #{imu_encoder_forward.5} parent=11 // pred_region
          _
        $region40: #{imu_encoder_forward.5} parent=11 // pred_fallthru
          _
        // Predicated region
        $region41: #{imu_encoder_forward.5} parent=11 // pred_check
          %p449 = pneg %p221
        $region42: #{imu_encoder_forward.5} parent=11 // pred_check_branch
          %451 = sbr.rel (%p449) target = $region44
        $region43: #{imu_encoder_forward.5} parent=11 // pred_region
          %s453 = ssub.s32 16, 16
          %454 = vsyncadd [#allocation11], %s453
          %s456 = sshll.u32 [#allocation10], 4
          %s457 = int_to_ptr.vmem [resolvable:$true] %s456
          %459 = dma.hbm_to_vmem [thread:$0]  %s8, 16, %s457, [#allocation11]
        $region44: #{imu_encoder_forward.5} parent=11 // pred_fallthru
          _
        // Predicated region
        $region45: #{imu_encoder_forward.5} parent=11 // pred_check
          %p460 = pneg %p242
        $region46: #{imu_encoder_forward.5} parent=11 // pred_check_branch
          %462 = sbr.rel (%p460) target = $region48
        $region47: #{imu_encoder_forward.5} parent=11 // pred_region
          %s464 = ssub.s32 16, 16
          %465 = vsyncadd [#allocation11], %s464
          %s467 = sshll.u32 [#allocation12], 4
          %s468 = int_to_ptr.vmem [resolvable:$true] %s467
          %470 = dma.hbm_to_vmem [thread:$0]  %s9, 16, %s468, [#allocation11]
        $region48: #{imu_encoder_forward.5} parent=11 // pred_fallthru
          _
        // Predicated region
        $region49: #{imu_encoder_forward.5} parent=11 // pred_check
          %p471 = pneg %p263
        $region50: #{imu_encoder_forward.5} parent=11 // pred_check_branch
          %473 = sbr.rel (%p471) target = $region52
        $region51: #{imu_encoder_forward.5} parent=11 // pred_region
          %s475 = ssub.s32 16, 16
          %476 = vsyncadd [#allocation14], %s475
          %s478 = sshll.u32 [#allocation13], 4
          %s479 = int_to_ptr.vmem [resolvable:$true] %s478
          %481 = dma.hbm_to_vmem [thread:$0]  %s10, 16, %s479, [#allocation14]
        $region52: #{imu_encoder_forward.5} parent=11 // pred_fallthru
          _
        // Predicated region
        $region53: #{imu_encoder_forward.5} parent=11 // pred_check
          %p482 = pneg %p284
        $region54: #{imu_encoder_forward.5} parent=11 // pred_check_branch
          %484 = sbr.rel (%p482) target = $region56
        $region55: #{imu_encoder_forward.5} parent=11 // pred_region
          _
        $region56: #{imu_encoder_forward.5} parent=11 // pred_fallthru
          _
        // Predicated region
        $region57: #{imu_encoder_forward.5} parent=11 // pred_check
          %p485 = pneg %p305
        $region58: #{imu_encoder_forward.5} parent=11 // pred_check_branch
          %487 = sbr.rel (%p485) target = $region60
        $region59: #{imu_encoder_forward.5} parent=11 // pred_region
          %s489 = ssub.s32 64, 64
          %490 = vsyncadd [#allocation14], %s489
          %s492 = sshll.u32 [#allocation15], 4
          %s493 = int_to_ptr.vmem [resolvable:$true] %s492
          %495 = dma.hbm_to_vmem [thread:$0]  %s12, 64, %s493, [#allocation14]
        $region60: #{imu_encoder_forward.5} parent=11 // pred_fallthru
          _
        // Predicated region
        $region61: #{imu_encoder_forward.5} parent=11 // pred_check
          %p496 = pneg %p326
        $region62: #{imu_encoder_forward.5} parent=11 // pred_check_branch
          %498 = sbr.rel (%p496) target = $region64
        $region63: #{imu_encoder_forward.5} parent=11 // pred_region
          _
        $region64: #{imu_encoder_forward.5} parent=11 // pred_fallthru
          _
        // Predicated region
        $region65: #{imu_encoder_forward.5} parent=11 // pred_check
          %p499 = pneg %p347
        $region66: #{imu_encoder_forward.5} parent=11 // pred_check_branch
          %501 = sbr.rel (%p499) target = $region68
        $region67: #{imu_encoder_forward.5} parent=11 // pred_region
          %s503 = ssub.s32 16, 16
          %504 = vsyncadd [#allocation17], %s503
          %s506 = sshll.u32 [#allocation16], 4
          %s507 = int_to_ptr.vmem [resolvable:$true] %s506
          %509 = dma.hbm_to_vmem [thread:$0]  %s14, 16, %s507, [#allocation17]
        $region68: #{imu_encoder_forward.5} parent=11 // pred_fallthru
          _
      $region12: #{imu_encoder_forward.5} parent=5 // pred_fallthru
        _
      %p510 = scmp.lt.s32.totalorder %s27, 2
      // Predicated region
      $region69: #{imu_encoder_forward.5} parent=5 // pred_check
        %p511 = pneg %p510
      $region70: #{imu_encoder_forward.5} parent=5 // pred_check_branch
        %513 = sbr.rel (%p511) target = $region72
      $region71: #{imu_encoder_forward.5} parent=5 // pred_region
        // Predicated region
        $region73: #{imu_encoder_forward.5} parent=71 // pred_check
          %p514 = pneg %p47
        $region74: #{imu_encoder_forward.5} parent=71 // pred_check_branch
          %516 = sbr.rel (%p514) target = $region76
        $region75: #{imu_encoder_forward.5} parent=71 // pred_region
          %p517 = scmp.lt.s32.totalorder %s27, 1
          %s518 = scalar_select %p517, %s27, 1
          %s519 = smul.addr %s518, 3
          %s520 = smul.addr %s519, 8
          %s521 = scalar_lea.vmem %s0, %s520
        $region76: #{imu_encoder_forward.5} parent=71 // pred_fallthru
          _
      $region72: #{imu_encoder_forward.5} parent=5 // pred_fallthru
        _
      %p522 = scmp.le.s32.totalorder 1, %s27
      %p523 = scmp.lt.s32.totalorder %s27, 3
      %p524 = pnand %p522, %p523
      %p525 = pneg %p524
      // Predicated region
      $region77: #{imu_encoder_forward.5} parent=5 // pred_check
        _
      $region78: #{imu_encoder_forward.5} parent=5 // pred_check_branch
        %527 = sbr.rel (%p524) target = $region80
      $region79: #{imu_encoder_forward.5} parent=5 // pred_region
        %s528 = ssub.s32 %s27, 1
        // Predicated region
        $region81: #{imu_encoder_forward.5} parent=79 // pred_check
          %p529 = pneg %p74
        $region82: #{imu_encoder_forward.5} parent=79 // pred_check_branch
          %531 = sbr.rel (%p529) target = $region84
        $region83: #{imu_encoder_forward.5} parent=79 // pred_region
          %532 = dma.done [#allocation3], 16
        $region84: #{imu_encoder_forward.5} parent=79 // pred_fallthru
          _
        // Predicated region
        $region85: #{imu_encoder_forward.5} parent=79 // pred_check
          %p533 = pneg %p95
        $region86: #{imu_encoder_forward.5} parent=79 // pred_check_branch
          %535 = sbr.rel (%p533) target = $region88
        $region87: #{imu_encoder_forward.5} parent=79 // pred_region
          %536 = dma.done [#allocation5], 16
        $region88: #{imu_encoder_forward.5} parent=79 // pred_fallthru
          _
        // Predicated region
        $region89: #{imu_encoder_forward.5} parent=79 // pred_check
          %p537 = pneg %p137
        $region90: #{imu_encoder_forward.5} parent=79 // pred_check_branch
          %539 = sbr.rel (%p537) target = $region92
        $region91: #{imu_encoder_forward.5} parent=79 // pred_region
          %540 = dma.done [#allocation5], 48
        $region92: #{imu_encoder_forward.5} parent=79 // pred_fallthru
          _
        // Predicated region
        $region93: #{imu_encoder_forward.5} parent=79 // pred_check
          %p541 = pneg %p158
        $region94: #{imu_encoder_forward.5} parent=79 // pred_check_branch
          %543 = sbr.rel (%p541) target = $region96
        $region95: #{imu_encoder_forward.5} parent=79 // pred_region
          %544 = dma.done [#allocation8], 16
        $region96: #{imu_encoder_forward.5} parent=79 // pred_fallthru
          _
        // Predicated region
        $region97: #{imu_encoder_forward.5} parent=79 // pred_check
          %p545 = pneg %p179
        $region98: #{imu_encoder_forward.5} parent=79 // pred_check_branch
          %547 = sbr.rel (%p545) target = $region100
        $region99: #{imu_encoder_forward.5} parent=79 // pred_region
          %548 = dma.done [#allocation8], 16
        $region100: #{imu_encoder_forward.5} parent=79 // pred_fallthru
          _
        // Predicated region
        $region101: #{imu_encoder_forward.5} parent=79 // pred_check
          %p549 = pneg %p221
        $region102: #{imu_encoder_forward.5} parent=79 // pred_check_branch
          %551 = sbr.rel (%p549) target = $region104
        $region103: #{imu_encoder_forward.5} parent=79 // pred_region
          %552 = dma.done [#allocation11], 16
        $region104: #{imu_encoder_forward.5} parent=79 // pred_fallthru
          _
        // Predicated region
        $region105: #{imu_encoder_forward.5} parent=79 // pred_check
          %p553 = pneg %p242
        $region106: #{imu_encoder_forward.5} parent=79 // pred_check_branch
          %555 = sbr.rel (%p553) target = $region108
        $region107: #{imu_encoder_forward.5} parent=79 // pred_region
          %556 = dma.done [#allocation11], 16
        $region108: #{imu_encoder_forward.5} parent=79 // pred_fallthru
          _
        // Predicated region
        $region109: #{imu_encoder_forward.5} parent=79 // pred_check
          %p557 = pneg %p263
        $region110: #{imu_encoder_forward.5} parent=79 // pred_check_branch
          %559 = sbr.rel (%p557) target = $region112
        $region111: #{imu_encoder_forward.5} parent=79 // pred_region
          %560 = dma.done [#allocation14], 16
        $region112: #{imu_encoder_forward.5} parent=79 // pred_fallthru
          _
        // Predicated region
        $region113: #{imu_encoder_forward.5} parent=79 // pred_check
          %p561 = pneg %p305
        $region114: #{imu_encoder_forward.5} parent=79 // pred_check_branch
          %563 = sbr.rel (%p561) target = $region116
        $region115: #{imu_encoder_forward.5} parent=79 // pred_region
          %564 = dma.done [#allocation14], 64
        $region116: #{imu_encoder_forward.5} parent=79 // pred_fallthru
          _
        // Predicated region
        $region117: #{imu_encoder_forward.5} parent=79 // pred_check
          %p565 = pneg %p347
        $region118: #{imu_encoder_forward.5} parent=79 // pred_check_branch
          %567 = sbr.rel (%p565) target = $region120
        $region119: #{imu_encoder_forward.5} parent=79 // pred_region
          %568 = dma.done [#allocation17], 16
        $region120: #{imu_encoder_forward.5} parent=79 // pred_fallthru
          _
        %p569 = scmp.lt.s32.totalorder %s32, 1
        %s570 = scalar_select %p569, %s32, 1
        %s571 = smul.addr %s570, 3
        %s572 = smul.addr %s571, 8
        %s573 = scalar_lea.vmem %s0, %s572
        %p574 = pneg %p53
        %p575 = pneg %p50
        %p576 = pneg %p74
        %p577 = pneg %p71
        %p578 = pneg %p95
        %p579 = pneg %p92
        %p580 = pneg %p116
        %p581 = pneg %p113
        %p582 = pneg %p137
        %p583 = pneg %p134
        %p584 = pneg %p158
        %p585 = pneg %p155
        %p586 = pneg %p179
        %p587 = pneg %p176
        %p588 = pneg %p200
        %p589 = pneg %p197
        %p590 = pneg %p221
        %p591 = pneg %p218
        %p592 = pneg %p242
        %p593 = pneg %p239
        %p594 = pneg %p263
        %p595 = pneg %p260
        %p596 = pneg %p284
        %p597 = pneg %p281
        %p598 = pneg %p305
        %p599 = pneg %p302
        %p600 = pneg %p326
        %p601 = pneg %p323
        %p602 = pneg %p347
        %p603 = pneg %p344
        %p604 = pneg %p373
        %p605 = pneg %p370
        %p606 = scmp.lt.s32.totalorder %s32, 1
        %s607 = scalar_select %p606, %s32, 1
        %s608 = smul.addr %s607, 3
        %s609 = smul.addr %s608, 8
        %s610 = scalar_lea.vmem %s15, %s609
        %p611 = scmp.lt.s32.totalorder %s32, 1
        %s612 = scalar_select %p611, %s32, 1
        %s613 = smul.addr %s612, 3
        %s614 = smul.addr %s613, 8
        %s615 = scalar_lea.vmem %s0, %s614
        %p616 = scmp.lt.s32.totalorder %s32, 1
        %s617 = scalar_select %p616, %s32, 1
        %s618 = smul.addr %s617, 3
        %s619 = smul.addr %s618, 8
        %s620 = scalar_lea.vmem %s15, %s619
        %v622 = vld [vmem:[%s615] sm:$0xff]
        %v623 = vld [vmem:[%s615 + $0x8] sm:$0xff]
        %v624 = vld [vmem:[%s615 + $0x10] sm:$0xff]
        %v625 = vld [vmem:[#allocation2] sm:$0x1]
        %v626 = vld [vmem:[#allocation4] sm:$0x1]
        %627 = vadd.xlane.f32.xlu0 %v622
        %v628 = vpop.xlane.xlu0 %627
        %629 = vadd.xlane.f32.xlu0 %v623
        %v630 = vpop.xlane.xlu0 %629
        %631 = vadd.xlane.f32.xlu0 %v624
        %v632 = vpop.xlane.xlu0 %631
        %v633 = vrcp.pop 128.0
        %v634 = vmul.f32 %v628, %v633
        %v635 = vmul.f32 %v630, %v633
        %v636 = vmul.f32 %v632, %v633
        %v637 = vsub.f32 %v622, %v634
        %v638 = vsub.f32 %v623, %v635
        %v639 = vsub.f32 %v624, %v636
        %v640 = vmul.f32 %v637, %v637
        %v641 = vmul.f32 %v638, %v638
        %v642 = vmul.f32 %v639, %v639
        %643 = vadd.xlane.f32.xlu0 %v640
        %v644 = vpop.xlane.xlu0 %643
        %645 = vadd.xlane.f32.xlu0 %v641
        %v646 = vpop.xlane.xlu0 %645
        %647 = vadd.xlane.f32.xlu0 %v642
        %v648 = vpop.xlane.xlu0 %647
        %v649 = vmul.f32 %v644, %v633
        %v650 = vmul.f32 %v646, %v633
        %v651 = vmul.f32 %v648, %v633
        %v652 = vadd.f32 %v649, 1e-06
        %v653 = vadd.f32 %v650, 1e-06
        %v654 = vadd.f32 %v651, 1e-06
        %v655 = vrsqrt.pop %v652
        %v656 = vrsqrt.pop %v653
        %v657 = vrsqrt.pop %v654
        %v658 = vmul.f32 %v637, %v655
        %v659 = vmul.f32 %v638, %v656
        %v660 = vmul.f32 %v639, %v657
        %v662 = vlaneseq
        %v663 = vshrl.u32 %v662, 7
        %v664 = vsub.s32 0, %v663
        %v665 = vrot.slane %v625, %v664
        %v667 = vmul.f32 %v658, %v665
        %v668 = vmul.f32 %v659, %v665
        %v669 = vmul.f32 %v660, %v665
        %v671 = vlaneseq
        %v672 = vshrl.u32 %v671, 7
        %v673 = vsub.s32 0, %v672
        %v674 = vrot.slane %v626, %v673
        %v676 = vadd.f32 %v667, %v674
        %v677 = vadd.f32 %v668, %v674
        %v678 = vadd.f32 %v669, %v674
        %v679 = vpack.c.bf16 %v677, %v676
        %v680 = vpack.c.bf16 %v678, %v678
        %v681 = vld [vmem:[%s3] sm:$0xff]
        %v682 = vld [vmem:[%s3 + $0x8] sm:$0xf]
        %v683 = vld [vmem:[%s3 + $0xc] sm:$0xff]
        %v684 = vld [vmem:[%s3 + $0x14] sm:$0xf]
        %v685 = vld [vmem:[%s3 + $0x18] sm:$0xff]
        %v686 = vld [vmem:[%s3 + $0x20] sm:$0xf]
        %v687 = vld [vmem:[%s3 + $0x24] sm:$0xff]
        %v688 = vld [vmem:[%s3 + $0x2c] sm:$0xf]
        %v689 = vld [vmem:[%s3 + $0x30] sm:$0xff]
        %v690 = vld [vmem:[%s3 + $0x38] sm:$0xf]
        %v691 = vld [vmem:[%s3 + $0x3c] sm:$0xff]
        %v692 = vld [vmem:[%s3 + $0x44] sm:$0xf]
        %v693 = vld [vmem:[%s3 + $0x48] sm:$0xff]
        %v694 = vld [vmem:[%s3 + $0x50] sm:$0xf]
        %v695 = vld [vmem:[%s3 + $0x54] sm:$0xff]
        %v696 = vld [vmem:[%s3 + $0x5c] sm:$0xf]
        %v697 = vld [vmem:[%s3 + $0x60] sm:$0xff]
        %v698 = vld [vmem:[%s3 + $0x68] sm:$0xf]
        %v699 = vld [vmem:[%s3 + $0x6c] sm:$0xff]
        %v700 = vld [vmem:[%s3 + $0x74] sm:$0xf]
        %v701 = vld [vmem:[%s3 + $0x78] sm:$0xff]
        %v702 = vld [vmem:[%s3 + $0x80] sm:$0xf]
        %v703 = vld [vmem:[%s3 + $0x84] sm:$0xff]
        %v704 = vld [vmem:[%s3 + $0x8c] sm:$0xf]
        %v705 = vld [vmem:[%s3 + $0x90] sm:$0xff]
        %v706 = vld [vmem:[%s3 + $0x98] sm:$0xf]
        %v707 = vld [vmem:[%s3 + $0x9c] sm:$0xff]
        %v708 = vld [vmem:[%s3 + $0xa4] sm:$0xf]
        %v709 = vld [vmem:[%s3 + $0xa8] sm:$0xff]
        %v710 = vld [vmem:[%s3 + $0xb0] sm:$0xf]
        %v711 = vld [vmem:[%s3 + $0xb4] sm:$0xff]
        %v712 = vld [vmem:[%s3 + $0xbc] sm:$0xf]
        %v713 = vld [vmem:[#allocation6] sm:$0x7]
        %v715 = vlaneseq
        %v716 = vshrl.u32 %v715, 7
        %v717 = vsub.s32 0, %v716
        %v718 = vrot.slane %v713, %v717
        %v719 = vlaneseq
        %v720 = vshrl.u32 %v719, 7
        %v721 = vsub.s32 1, %v720
        %v722 = vrot.slane %v713, %v721
        %v723 = vlaneseq
        %v724 = vshrl.u32 %v723, 7
        %v725 = vsub.s32 2, %v724
        %v726 = vrot.slane %v713, %v725
        %v762 = vunpack.c.l.b16 %v681
        %v763 = vunpack.c.h.b16 %v681
        %v764 = vunpack.c.l.b16 %v682
        %v765 = vunpack.c.l.b16 %v683
        %v766 = vunpack.c.h.b16 %v683
        %v767 = vunpack.c.l.b16 %v684
        %v768 = vunpack.c.l.b16 %v685
        %v769 = vunpack.c.h.b16 %v685
        %v770 = vunpack.c.l.b16 %v686
        %v771 = vunpack.c.l.b16 %v687
        %v772 = vunpack.c.h.b16 %v687
        %v773 = vunpack.c.l.b16 %v688
        %v774 = vunpack.c.l.b16 %v689
        %v775 = vunpack.c.h.b16 %v689
        %v776 = vunpack.c.l.b16 %v690
        %v777 = vunpack.c.l.b16 %v691
        %v778 = vunpack.c.h.b16 %v691
        %v779 = vunpack.c.l.b16 %v692
        %v780 = vunpack.c.l.b16 %v693
        %v781 = vunpack.c.h.b16 %v693
        %v782 = vunpack.c.l.b16 %v694
        %v783 = vunpack.c.l.b16 %v695
        %v784 = vunpack.c.h.b16 %v695
        %v785 = vunpack.c.l.b16 %v696
        %v786 = vunpack.c.l.b16 %v697
        %v787 = vunpack.c.h.b16 %v697
        %v788 = vunpack.c.l.b16 %v698
        %v789 = vunpack.c.l.b16 %v699
        %v790 = vunpack.c.h.b16 %v699
        %v791 = vunpack.c.l.b16 %v700
        %v792 = vunpack.c.l.b16 %v701
        %v793 = vunpack.c.h.b16 %v701
        %v794 = vunpack.c.l.b16 %v702
        %v795 = vunpack.c.l.b16 %v703
        %v796 = vunpack.c.h.b16 %v703
        %v797 = vunpack.c.l.b16 %v704
        %v798 = vunpack.c.l.b16 %v705
        %v799 = vunpack.c.h.b16 %v705
        %v800 = vunpack.c.l.b16 %v706
        %v801 = vunpack.c.l.b16 %v707
        %v802 = vunpack.c.h.b16 %v707
        %v803 = vunpack.c.l.b16 %v708
        %v804 = vunpack.c.l.b16 %v709
        %v805 = vunpack.c.h.b16 %v709
        %v806 = vunpack.c.l.b16 %v710
        %v807 = vunpack.c.l.b16 %v711
        %v808 = vunpack.c.h.b16 %v711
        %v809 = vunpack.c.l.b16 %v712
        %v810 = vpack.c.b16 %v765, %v762
        %v811 = vpack.c.b16 %v766, %v763
        %v812 = vpack.c.b16 %v767, %v764
        %v813 = vpack.c.b16 %v771, %v768
        %v814 = vpack.c.b16 %v772, %v769
        %v815 = vpack.c.b16 %v773, %v770
        %v816 = vpack.c.b16 %v777, %v774
        %v817 = vpack.c.b16 %v778, %v775
        %v818 = vpack.c.b16 %v779, %v776
        %v819 = vpack.c.b16 %v783, %v780
        %v820 = vpack.c.b16 %v784, %v781
        %v821 = vpack.c.b16 %v785, %v782
        %v822 = vpack.c.b16 %v789, %v786
        %v823 = vpack.c.b16 %v790, %v787
        %v824 = vpack.c.b16 %v791, %v788
        %v825 = vpack.c.b16 %v795, %v792
        %v826 = vpack.c.b16 %v796, %v793
        %v827 = vpack.c.b16 %v797, %v794
        %v828 = vpack.c.b16 %v801, %v798
        %v829 = vpack.c.b16 %v802, %v799
        %v830 = vpack.c.b16 %v803, %v800
        %v831 = vpack.c.b16 %v807, %v804
        %v832 = vpack.c.b16 %v808, %v805
        %v833 = vpack.c.b16 %v809, %v806
        %858 = vmatprep.subr.bf16.mxu0 %v811
        %859 = vmatpush1.bf16.msra.mxu0 %v810
        %860 = vmatprep.subr.bf16.mxu0 %v814
        %861 = vmatpush1.bf16.msra.mxu0 %v813
        %862 = vmatprep.subr.bf16.mxu0 %v817
        %863 = vmatpush1.bf16.msra.mxu0 %v816
        %864 = vmatprep.subr.bf16.mxu0 %v820
        %865 = vmatpush1.bf16.msra.mxu0 %v819
        %866 = vmatprep.subr.bf16.mxu0 %v823
        %867 = vmatpush1.bf16.msra.mxu0 %v822
        %868 = vmatprep.subr.bf16.mxu0 %v826
        %869 = vmatpush1.bf16.msra.mxu0 %v825
        %870 = vmatprep.subr.bf16.mxu0 %v829
        %871 = vmatpush1.bf16.msra.mxu0 %v828
        %872 = vmatprep.subr.bf16.mxu0 %v832
        %873 = vmatpush1.bf16.msra.mxu0 %v831
        %874 = vmatprep.subr.bf16.mxu0 0
        %875 = vmatpush1.bf16.msra.mxu0 0
        %876 = vmatprep.subr.bf16.mxu0 0
        %877 = vmatpush1.bf16.msra.mxu0 0
        %878 = vmatprep.subr.bf16.mxu0 0
        %879 = vmatpush1.bf16.msra.mxu0 0
        %880 = vmatprep.subr.bf16.mxu0 0
        %881 = vmatpush1.bf16.msra.mxu0 0
        %882 = vmatprep.subr.bf16.mxu0 0
        %883 = vmatpush1.bf16.msra.mxu0 0
        %884 = vmatprep.subr.bf16.mxu0 0
        %885 = vmatpush1.bf16.msra.mxu0 0
        %886 = vmatprep.subr.bf16.mxu0 0
        %887 = vmatpush1.bf16.msra.mxu0 0
        %888 = vmatprep.subr.bf16.mxu0 0
        %889 = vmatpush1.bf16.msra.mxu0 0
        %890 = vmatprep.mubr.bf16.mxu0 0
        %891 = vmatmul.mubr.bf16.gmra.mrb[0].mxu0 %v679
        %v892 = vpop.f32.mrb[0].mxu0
        %v893 = vadd.f32 %v718, %v892
        %v894 = vpop.f32.mrb[0].mxu0
        %v895 = vadd.f32 %v722, %v894
        %v896 = vpop.f32.mrb[0].mxu0
        %v897 = vadd.f32 %v718, %v896
        %v898 = vpop.f32.mrb[0].mxu0
        %v899 = vadd.f32 %v722, %v898
        %900 = vmatprep.mubr.bf16.mxu0 0
        %901 = vmatmul.mubr.bf16.gmra.mrb[0].mxu0 %v680
        %v902 = vpop.f32.mrb[0].mxu0
        %v903 = vadd.f32 %v718, %v902
        %v904 = vpop.f32.mrb[0].mxu0
        %v905 = vadd.f32 %v722, %v904
        %v906 = vpop.f32.mrb[0].mxu0
        %v907 = vpop.f32.mrb[0].mxu0
        %908 = vdwg.mxu0
        %909 = vmatprep.subr.bf16.mxu0 0
        %910 = vmatpush1.bf16.msra.mxu0 %v812
        %911 = vmatprep.subr.bf16.mxu0 0
        %912 = vmatpush1.bf16.msra.mxu0 %v815
        %913 = vmatprep.subr.bf16.mxu0 0
        %914 = vmatpush1.bf16.msra.mxu0 %v818
        %915 = vmatprep.subr.bf16.mxu0 0
        %916 = vmatpush1.bf16.msra.mxu0 %v821
        %917 = vmatprep.subr.bf16.mxu0 0
        %918 = vmatpush1.bf16.msra.mxu0 %v824
        %919 = vmatprep.subr.bf16.mxu0 0
        %920 = vmatpush1.bf16.msra.mxu0 %v827
        %921 = vmatprep.subr.bf16.mxu0 0
        %922 = vmatpush1.bf16.msra.mxu0 %v830
        %923 = vmatprep.subr.bf16.mxu0 0
        %924 = vmatpush1.bf16.msra.mxu0 %v833
        %925 = vmatprep.subr.bf16.mxu0 0
        %926 = vmatpush1.bf16.msra.mxu0 0
        %927 = vmatprep.subr.bf16.mxu0 0
        %928 = vmatpush1.bf16.msra.mxu0 0
        %929 = vmatprep.subr.bf16.mxu0 0
        %930 = vmatpush1.bf16.msra.mxu0 0
        %931 = vmatprep.subr.bf16.mxu0 0
        %932 = vmatpush1.bf16.msra.mxu0 0
        %933 = vmatprep.subr.bf16.mxu0 0
        %934 = vmatpush1.bf16.msra.mxu0 0
        %935 = vmatprep.subr.bf16.mxu0 0
        %936 = vmatpush1.bf16.msra.mxu0 0
        %937 = vmatprep.subr.bf16.mxu0 0
        %938 = vmatpush1.bf16.msra.mxu0 0
        %939 = vmatprep.subr.bf16.mxu0 0
        %940 = vmatpush1.bf16.msra.mxu0 0
        %941 = vmatprep.mubr.bf16.mxu0 0
        %942 = vmatmul.mubr.bf16.gmra.mrb[0].mxu0 %v679
        %v943 = vpop.f32.mrb[0].mxu0
        %v944 = vadd.f32 %v726, %v943
        %v945 = vpop.f32.mrb[0].mxu0
        %v946 = vpop.f32.mrb[0].mxu0
        %v947 = vadd.f32 %v726, %v946
        %v948 = vpop.f32.mrb[0].mxu0
        %949 = vmatprep.mubr.bf16.mxu0 0
        %950 = vmatmul.mubr.bf16.gmra.mrb[0].mxu0 %v680
        %v951 = vpop.f32.mrb[0].mxu0
        %v952 = vadd.f32 %v726, %v951
        %v953 = vpop.f32.mrb[0].mxu0
        %v954 = vpop.f32.mrb[0].mxu0
        %v955 = vpop.f32.mrb[0].mxu0
        %956 = vdwg.mxu0
        %v957 = vlaneseq
        %v958 = vshrl.u32 %v957, 7
        %v959 = vadd.s32 %v958, 8
        %v960 = vadd.s32 %v958, 16
        %vm961 = vcmp.eq.s32.totalorder %v958, 17
        %vm962 = vcmp.eq.s32.totalorder %v959, 17
        %vm963 = vcmp.eq.s32.totalorder %v960, 17
        %v964 = vld [vmem:[#allocation7] sm:$0x1]
        %v965 = vsel %vm961, 1, 0
        %v966 = vsel %vm962, 1, 0
        %v967 = vsel %vm963, 1, 0
        %vm968 = vcmp.eq.s32.totalorder %v965, 1
        %vm969 = vcmp.eq.s32.totalorder %v966, 1
        %vm970 = vcmp.eq.s32.totalorder %v967, 1
        %v972 = vlaneseq
        %v973 = vshrl.u32 %v972, 7
        %v974 = vsub.s32 0, %v973
        %v975 = vrot.slane %v964, %v974
        %v977 = vsel %vm968, %v975, %v895
        %v978 = vsel %vm969, %v975, %v899
        %v979 = vsel %vm970, %v975, %v905
        %v980 = vld [vmem:[#allocation9] sm:$0x1]
        %v982 = vlaneseq
        %v983 = vshrl.u32 %v982, 7
        %v984 = vsub.s32 0, %v983
        %v985 = vrot.slane %v980, %v984
        %v987 = vsel %vm968, %v985, %v944
        %v988 = vsel %vm969, %v985, %v947
        %v989 = vsel %vm970, %v985, %v952
        %v990 = vlaneseq
        %v991 = vand.u32 %v990, 127
        %vm992 = vcmp.le.s32.totalorder %v991, 17
        %v993 = vpack.c.bf16 %v897, %v893
        %v994 = vpack.c.bf16 %v903, %v903
        %v995 = vpack.c.bf16 %v978, %v977
        %v996 = vpack.c.bf16 %v979, %v979
        %v997 = vpack.c.bf16 %v988, %v987
        %v998 = vpack.c.bf16 %v989, %v989
        %vm999 = vcmask 261120
        %v1001 = vsel %vm999, %v993, 0
        %v1004 = vsel %vm999, %v994, 0
        %v1007 = vsel %vm999, %v995, 0
        %v1010 = vsel %vm999, %v996, 0
        %1012 = vmatprep.subr.bf16.mxu0 0
        %1013 = vmatpush1.bf16.xpose.msra.mxu0 %v1007
        %1014 = vmatprep.subr.bf16.mxu0 0
        %1015 = vmatpush1.bf16.xpose.msra.mxu0 %v1010
        %1016 = vmatprep.subr.bf16.mxu0 0
        %1017 = vmatpush1.bf16.xpose.msra.mxu0 0
        %1018 = vmatprep.subr.bf16.mxu0 0
        %1019 = vmatpush1.bf16.xpose.msra.mxu0 0
        %1020 = vmatprep.subr.bf16.mxu0 0
        %1021 = vmatpush1.bf16.xpose.msra.mxu0 0
        %1022 = vmatprep.subr.bf16.mxu0 0
        %1023 = vmatpush1.bf16.xpose.msra.mxu0 0
        %1024 = vmatprep.subr.bf16.mxu0 0
        %1025 = vmatpush1.bf16.xpose.msra.mxu0 0
        %1026 = vmatprep.subr.bf16.mxu0 0
        %1027 = vmatpush1.bf16.xpose.msra.mxu0 0
        %1028 = vmatprep.subr.bf16.mxu0 0
        %1029 = vmatpush1.bf16.xpose.msra.mxu0 0
        %1030 = vmatprep.subr.bf16.mxu0 0
        %1031 = vmatpush1.bf16.xpose.msra.mxu0 0
        %1032 = vmatprep.subr.bf16.mxu0 0
        %1033 = vmatpush1.bf16.xpose.msra.mxu0 0
        %1034 = vmatprep.subr.bf16.mxu0 0
        %1035 = vmatpush1.bf16.xpose.msra.mxu0 0
        %1036 = vmatprep.subr.bf16.mxu0 0
        %1037 = vmatpush1.bf16.xpose.msra.mxu0 0
        %1038 = vmatprep.subr.bf16.mxu0 0
        %1039 = vmatpush1.bf16.xpose.msra.mxu0 0
        %1040 = vmatprep.subr.bf16.mxu0 0
        %1041 = vmatpush1.bf16.xpose.msra.mxu0 0
        %1042 = vmatprep.subr.bf16.mxu0 0
        %1043 = vmatpush1.bf16.xpose.msra.mxu0 0
        %1044 = vmatprep.mubr.bf16.mxu0 0
        %1045 = vmatmul.mubr.bf16.gmra.mrb[0].mxu0 %v1001
        %v1046 = vpop.f32.mrb[0].mxu0
        %v1047 = vadd.f32 0.0, %v1046
        %v1048 = vpop.f32.mrb[0].mxu0
        %v1049 = vpop.f32.mrb[0].mxu0
        %v1050 = vadd.f32 0.0, %v1049
        %v1051 = vpop.f32.mrb[0].mxu0
        %1052 = vmatprep.mubr.bf16.mxu0 0
        %1053 = vmatmul.mubr.bf16.gmra.mrb[0].mxu0 %v1004
        %v1054 = vpop.f32.mrb[0].mxu0
        %v1055 = vadd.f32 0.0, %v1054
        %v1056 = vpop.f32.mrb[0].mxu0
        %v1057 = vpop.f32.mrb[0].mxu0
        %v1058 = vpop.f32.mrb[0].mxu0
        %1059 = vdwg.mxu0
        %v1060 = vsel %vm992, %v1047, -1e+30
        %v1061 = vsel %vm992, %v1050, -1e+30
        %v1062 = vsel %vm992, %v1055, -1e+30
        %vm1063 = vcmask 195584
        %v1064 = vsel %vm1063, %v1060, -inf
        %1065 = vmax.xlane.f32.xlu0 %v1064
        %v1066 = vpop.xlane.xlu0 %1065
        %v1067 = vsel %vm1063, %v1061, -inf
        %1068 = vmax.xlane.f32.xlu0 %v1067
        %v1069 = vpop.xlane.xlu0 %1068
        %v1070 = vsel %vm1063, %v1062, -inf
        %1071 = vmax.xlane.f32.xlu0 %v1070
        %v1072 = vpop.xlane.xlu0 %1071
        %v1073 = vsub.f32 %v1060, %v1066
        %v1074 = vsub.f32 %v1061, %v1069
        %v1075 = vsub.f32 %v1062, %v1072
        %v1076 = vmul.f32 %v1073, 1.442695
        %v1077 = vpow.pop %v1076
        %v1078 = vmul.f32 %v1074, 1.442695
        %v1079 = vpow.pop %v1078
        %v1080 = vmul.f32 %v1075, 1.442695
        %v1081 = vpow.pop %v1080
        %v1082 = vsel %vm1063, %v1077, 0.0
        %1083 = vadd.xlane.f32.xlu0 %v1082
        %v1084 = vpop.xlane.xlu0 %1083
        %v1085 = vsel %vm1063, %v1079, 0.0
        %1086 = vadd.xlane.f32.xlu0 %v1085
        %v1087 = vpop.xlane.xlu0 %1086
        %v1088 = vsel %vm1063, %v1081, 0.0
        %1089 = vadd.xlane.f32.xlu0 %v1088
        %v1090 = vpop.xlane.xlu0 %1089
        %v1091 = vrcp.pop %v1084
        %v1092 = vrcp.pop %v1087
        %v1093 = vrcp.pop %v1090
        %v1094 = vmul.f32 %v1077, %v1091
        %v1095 = vmul.f32 %v1079, %v1092
        %v1096 = vmul.f32 %v1081, %v1093
        %v1097 = vpack.c.bf16 %v1095, %v1094
        %v1098 = vpack.c.bf16 %v1096, %v1096
        %v1100 = vsel %vm1063, %v1097, 0
        %v1103 = vsel %vm1063, %v1098, 0
        %vm1105 = vcmask 1043456
        %v1107 = vsel %vm1105, %v998, 0
        %1109 = vmatprep.subr.bf16.mxu0 0
        %1110 = vmatpush1.bf16.msra.mxu0 %v997
        %1111 = vmatprep.subr.bf16.mxu0 0
        %1112 = vmatpush1.bf16.msra.mxu0 %v1107
        %1113 = vmatprep.subr.bf16.mxu0 0
        %1114 = vmatpush1.bf16.msra.mxu0 0
        %1115 = vmatprep.subr.bf16.mxu0 0
        %1116 = vmatpush1.bf16.msra.mxu0 0
        %1117 = vmatprep.subr.bf16.mxu0 0
        %1118 = vmatpush1.bf16.msra.mxu0 0
        %1119 = vmatprep.subr.bf16.mxu0 0
        %1120 = vmatpush1.bf16.msra.mxu0 0
        %1121 = vmatprep.subr.bf16.mxu0 0
        %1122 = vmatpush1.bf16.msra.mxu0 0
        %1123 = vmatprep.subr.bf16.mxu0 0
        %1124 = vmatpush1.bf16.msra.mxu0 0
        %1125 = vmatprep.subr.bf16.mxu0 0
        %1126 = vmatpush1.bf16.msra.mxu0 0
        %1127 = vmatprep.subr.bf16.mxu0 0
        %1128 = vmatpush1.bf16.msra.mxu0 0
        %1129 = vmatprep.subr.bf16.mxu0 0
        %1130 = vmatpush1.bf16.msra.mxu0 0
        %1131 = vmatprep.subr.bf16.mxu0 0
        %1132 = vmatpush1.bf16.msra.mxu0 0
        %1133 = vmatprep.subr.bf16.mxu0 0
        %1134 = vmatpush1.bf16.msra.mxu0 0
        %1135 = vmatprep.subr.bf16.mxu0 0
        %1136 = vmatpush1.bf16.msra.mxu0 0
        %1137 = vmatprep.subr.bf16.mxu0 0
        %1138 = vmatpush1.bf16.msra.mxu0 0
        %1139 = vmatprep.subr.bf16.mxu0 0
        %1140 = vmatpush1.bf16.msra.mxu0 0
        %1141 = vmatprep.mubr.bf16.mxu0 0
        %1142 = vmatmul.mubr.bf16.gmra.mrb[0].mxu0 %v1100
        %v1143 = vpop.f32.mrb[0].mxu0
        %v1144 = vadd.f32 0.0, %v1143
        %v1145 = vpop.f32.mrb[0].mxu0
        %v1146 = vpop.f32.mrb[0].mxu0
        %v1147 = vadd.f32 0.0, %v1146
        %v1148 = vpop.f32.mrb[0].mxu0
        %1149 = vmatprep.mubr.bf16.mxu0 0
        %1150 = vmatmul.mubr.bf16.gmra.mrb[0].mxu0 %v1103
        %v1151 = vpop.f32.mrb[0].mxu0
        %v1152 = vadd.f32 0.0, %v1151
        %v1153 = vpop.f32.mrb[0].mxu0
        %v1154 = vpop.f32.mrb[0].mxu0
        %v1155 = vpop.f32.mrb[0].mxu0
        %1156 = vdwg.mxu0
        %1159 = vrot.lane.b32.xlu0 %v993, 96
        %v1160 = vpop.permute.xlu0 %1159
        %1161 = vrot.lane.b32.xlu0 %v994, 96
        %v1162 = vpop.permute.xlu0 %1161
        %1165 = vrot.lane.b32.xlu0 %v995, 96
        %v1166 = vpop.permute.xlu0 %1165
        %1167 = vrot.lane.b32.xlu0 %v996, 96
        %v1168 = vpop.permute.xlu0 %1167
        %v1170 = vsel %vm999, %v1160, 0
        %v1173 = vsel %vm999, %v1162, 0
        %v1176 = vsel %vm999, %v1166, 0
        %v1179 = vsel %vm999, %v1168, 0
        %1181 = vmatprep.subr.bf16.mxu0 0
        %1182 = vmatpush1.bf16.xpose.msra.mxu0 %v1176
        %1183 = vmatprep.subr.bf16.mxu0 0
        %1184 = vmatpush1.bf16.xpose.msra.mxu0 %v1179
        %1185 = vmatprep.subr.bf16.mxu0 0
        %1186 = vmatpush1.bf16.xpose.msra.mxu0 0
        %1187 = vmatprep.subr.bf16.mxu0 0
        %1188 = vmatpush1.bf16.xpose.msra.mxu0 0
        %1189 = vmatprep.subr.bf16.mxu0 0
        %1190 = vmatpush1.bf16.xpose.msra.mxu0 0
        %1191 = vmatprep.subr.bf16.mxu0 0
        %1192 = vmatpush1.bf16.xpose.msra.mxu0 0
        %1193 = vmatprep.subr.bf16.mxu0 0
        %1194 = vmatpush1.bf16.xpose.msra.mxu0 0
        %1195 = vmatprep.subr.bf16.mxu0 0
        %1196 = vmatpush1.bf16.xpose.msra.mxu0 0
        %1197 = vmatprep.subr.bf16.mxu0 0
        %1198 = vmatpush1.bf16.xpose.msra.mxu0 0
        %1199 = vmatprep.subr.bf16.mxu0 0
        %1200 = vmatpush1.bf16.xpose.msra.mxu0 0
        %1201 = vmatprep.subr.bf16.mxu0 0
        %1202 = vmatpush1.bf16.xpose.msra.mxu0 0
        %1203 = vmatprep.subr.bf16.mxu0 0
        %1204 = vmatpush1.bf16.xpose.msra.mxu0 0
        %1205 = vmatprep.subr.bf16.mxu0 0
        %1206 = vmatpush1.bf16.xpose.msra.mxu0 0
        %1207 = vmatprep.subr.bf16.mxu0 0
        %1208 = vmatpush1.bf16.xpose.msra.mxu0 0
        %1209 = vmatprep.subr.bf16.mxu0 0
        %1210 = vmatpush1.bf16.xpose.msra.mxu0 0
        %1211 = vmatprep.subr.bf16.mxu0 0
        %1212 = vmatpush1.bf16.xpose.msra.mxu0 0
        %1213 = vmatprep.mubr.bf16.mxu0 0
        %1214 = vmatmul.mubr.bf16.gmra.mrb[0].mxu0 %v1170
        %v1215 = vpop.f32.mrb[0].mxu0
        %v1216 = vadd.f32 0.0, %v1215
        %v1217 = vpop.f32.mrb[0].mxu0
        %v1218 = vpop.f32.mrb[0].mxu0
        %v1219 = vadd.f32 0.0, %v1218
        %v1220 = vpop.f32.mrb[0].mxu0
        %1221 = vmatprep.mubr.bf16.mxu0 0
        %1222 = vmatmul.mubr.bf16.gmra.mrb[0].mxu0 %v1173
        %v1223 = vpop.f32.mrb[0].mxu0
        %v1224 = vadd.f32 0.0, %v1223
        %v1225 = vpop.f32.mrb[0].mxu0
        %v1226 = vpop.f32.mrb[0].mxu0
        %v1227 = vpop.f32.mrb[0].mxu0
        %1228 = vdwg.mxu0
        %v1229 = vsel %vm992, %v1216, -1e+30
        %v1230 = vsel %vm992, %v1219, -1e+30
        %v1231 = vsel %vm992, %v1224, -1e+30
        %v1232 = vsel %vm1063, %v1229, -inf
        %1233 = vmax.xlane.f32.xlu0 %v1232
        %v1234 = vpop.xlane.xlu0 %1233
        %v1235 = vsel %vm1063, %v1230, -inf
        %1236 = vmax.xlane.f32.xlu0 %v1235
        %v1237 = vpop.xlane.xlu0 %1236
        %v1238 = vsel %vm1063, %v1231, -inf
        %1239 = vmax.xlane.f32.xlu0 %v1238
        %v1240 = vpop.xlane.xlu0 %1239
        %v1241 = vsub.f32 %v1229, %v1234
        %v1242 = vsub.f32 %v1230, %v1237
        %v1243 = vsub.f32 %v1231, %v1240
        %v1244 = vmul.f32 %v1241, 1.442695
        %v1245 = vpow.pop %v1244
        %v1246 = vmul.f32 %v1242, 1.442695
        %v1247 = vpow.pop %v1246
        %v1248 = vmul.f32 %v1243, 1.442695
        %v1249 = vpow.pop %v1248
        %v1250 = vsel %vm1063, %v1245, 0.0
        %1251 = vadd.xlane.f32.xlu0 %v1250
        %v1252 = vpop.xlane.xlu0 %1251
        %v1253 = vsel %vm1063, %v1247, 0.0
        %1254 = vadd.xlane.f32.xlu0 %v1253
        %v1255 = vpop.xlane.xlu0 %1254
        %v1256 = vsel %vm1063, %v1249, 0.0
        %1257 = vadd.xlane.f32.xlu0 %v1256
        %v1258 = vpop.xlane.xlu0 %1257
        %v1259 = vrcp.pop %v1252
        %v1260 = vrcp.pop %v1255
        %v1261 = vrcp.pop %v1258
        %v1262 = vmul.f32 %v1245, %v1259
        %v1263 = vmul.f32 %v1247, %v1260
        %v1264 = vmul.f32 %v1249, %v1261
        %v1265 = vpack.c.bf16 %v1263, %v1262
        %v1266 = vpack.c.bf16 %v1264, %v1264
        %1269 = vrot.lane.b32.xlu0 %v997, 96
        %v1270 = vpop.permute.xlu0 %1269
        %1271 = vrot.lane.b32.xlu0 %v998, 96
        %v1272 = vpop.permute.xlu0 %1271
        %v1275 = vsel %vm1063, %v1265, 0
        %v1278 = vsel %vm1063, %v1266, 0
        %v1281 = vsel %vm1105, %v1272, 0
        %1283 = vmatprep.subr.bf16.mxu0 0
        %1284 = vmatpush1.bf16.msra.mxu0 %v1270
        %1285 = vmatprep.subr.bf16.mxu0 0
        %1286 = vmatpush1.bf16.msra.mxu0 %v1281
        %1287 = vmatprep.subr.bf16.mxu0 0
        %1288 = vmatpush1.bf16.msra.mxu0 0
        %1289 = vmatprep.subr.bf16.mxu0 0
        %1290 = vmatpush1.bf16.msra.mxu0 0
        %1291 = vmatprep.subr.bf16.mxu0 0
        %1292 = vmatpush1.bf16.msra.mxu0 0
        %1293 = vmatprep.subr.bf16.mxu0 0
        %1294 = vmatpush1.bf16.msra.mxu0 0
        %1295 = vmatprep.subr.bf16.mxu0 0
        %1296 = vmatpush1.bf16.msra.mxu0 0
        %1297 = vmatprep.subr.bf16.mxu0 0
        %1298 = vmatpush1.bf16.msra.mxu0 0
        %1299 = vmatprep.subr.bf16.mxu0 0
        %1300 = vmatpush1.bf16.msra.mxu0 0
        %1301 = vmatprep.subr.bf16.mxu0 0
        %1302 = vmatpush1.bf16.msra.mxu0 0
        %1303 = vmatprep.subr.bf16.mxu0 0
        %1304 = vmatpush1.bf16.msra.mxu0 0
        %1305 = vmatprep.subr.bf16.mxu0 0
        %1306 = vmatpush1.bf16.msra.mxu0 0
        %1307 = vmatprep.subr.bf16.mxu0 0
        %1308 = vmatpush1.bf16.msra.mxu0 0
        %1309 = vmatprep.subr.bf16.mxu0 0
        %1310 = vmatpush1.bf16.msra.mxu0 0
        %1311 = vmatprep.subr.bf16.mxu0 0
        %1312 = vmatpush1.bf16.msra.mxu0 0
        %1313 = vmatprep.subr.bf16.mxu0 0
        %1314 = vmatpush1.bf16.msra.mxu0 0
        %1315 = vmatprep.mubr.bf16.mxu0 0
        %1316 = vmatmul.mubr.bf16.gmra.mrb[0].mxu0 %v1275
        %v1317 = vpop.f32.mrb[0].mxu0
        %v1318 = vadd.f32 0.0, %v1317
        %v1319 = vpop.f32.mrb[0].mxu0
        %v1320 = vpop.f32.mrb[0].mxu0
        %v1321 = vadd.f32 0.0, %v1320
        %v1322 = vpop.f32.mrb[0].mxu0
        %1323 = vmatprep.mubr.bf16.mxu0 0
        %1324 = vmatmul.mubr.bf16.gmra.mrb[0].mxu0 %v1278
        %v1325 = vpop.f32.mrb[0].mxu0
        %v1326 = vadd.f32 0.0, %v1325
        %v1327 = vpop.f32.mrb[0].mxu0
        %v1328 = vpop.f32.mrb[0].mxu0
        %v1329 = vpop.f32.mrb[0].mxu0
        %1330 = vdwg.mxu0
        %1331 = vrot.lane.b32.xlu0 %v993, 64
        %v1332 = vpop.permute.xlu0 %1331
        %1333 = vrot.lane.b32.xlu0 %v994, 64
        %v1334 = vpop.permute.xlu0 %1333
        %1335 = vrot.lane.b32.xlu0 %v995, 64
        %v1336 = vpop.permute.xlu0 %1335
        %1337 = vrot.lane.b32.xlu0 %v996, 64
        %v1338 = vpop.permute.xlu0 %1337
        %v1340 = vsel %vm999, %v1332, 0
        %v1343 = vsel %vm999, %v1334, 0
        %v1346 = vsel %vm999, %v1336, 0
        %v1349 = vsel %vm999, %v1338, 0
        %1351 = vmatprep.subr.bf16.mxu0 0
        %1352 = vmatpush1.bf16.xpose.msra.mxu0 %v1346
        %1353 = vmatprep.subr.bf16.mxu0 0
        %1354 = vmatpush1.bf16.xpose.msra.mxu0 %v1349
        %1355 = vmatprep.subr.bf16.mxu0 0
        %1356 = vmatpush1.bf16.xpose.msra.mxu0 0
        %1357 = vmatprep.subr.bf16.mxu0 0
        %1358 = vmatpush1.bf16.xpose.msra.mxu0 0
        %1359 = vmatprep.subr.bf16.mxu0 0
        %1360 = vmatpush1.bf16.xpose.msra.mxu0 0
        %1361 = vmatprep.subr.bf16.mxu0 0
        %1362 = vmatpush1.bf16.xpose.msra.mxu0 0
        %1363 = vmatprep.subr.bf16.mxu0 0
        %1364 = vmatpush1.bf16.xpose.msra.mxu0 0
        %1365 = vmatprep.subr.bf16.mxu0 0
        %1366 = vmatpush1.bf16.xpose.msra.mxu0 0
        %1367 = vmatprep.subr.bf16.mxu0 0
        %1368 = vmatpush1.bf16.xpose.msra.mxu0 0
        %1369 = vmatprep.subr.bf16.mxu0 0
        %1370 = vmatpush1.bf16.xpose.msra.mxu0 0
        %1371 = vmatprep.subr.bf16.mxu0 0
        %1372 = vmatpush1.bf16.xpose.msra.mxu0 0
        %1373 = vmatprep.subr.bf16.mxu0 0
        %1374 = vmatpush1.bf16.xpose.msra.mxu0 0
        %1375 = vmatprep.subr.bf16.mxu0 0
        %1376 = vmatpush1.bf16.xpose.msra.mxu0 0
        %1377 = vmatprep.subr.bf16.mxu0 0
        %1378 = vmatpush1.bf16.xpose.msra.mxu0 0
        %1379 = vmatprep.subr.bf16.mxu0 0
        %1380 = vmatpush1.bf16.xpose.msra.mxu0 0
        %1381 = vmatprep.subr.bf16.mxu0 0
        %1382 = vmatpush1.bf16.xpose.msra.mxu0 0
        %1383 = vmatprep.mubr.bf16.mxu0 0
        %1384 = vmatmul.mubr.bf16.gmra.mrb[0].mxu0 %v1340
        %v1385 = vpop.f32.mrb[0].mxu0
        %v1386 = vadd.f32 0.0, %v1385
        %v1387 = vpop.f32.mrb[0].mxu0
        %v1388 = vpop.f32.mrb[0].mxu0
        %v1389 = vadd.f32 0.0, %v1388
        %v1390 = vpop.f32.mrb[0].mxu0
        %1391 = vmatprep.mubr.bf16.mxu0 0
        %1392 = vmatmul.mubr.bf16.gmra.mrb[0].mxu0 %v1343
        %v1393 = vpop.f32.mrb[0].mxu0
        %v1394 = vadd.f32 0.0, %v1393
        %v1395 = vpop.f32.mrb[0].mxu0
        %v1396 = vpop.f32.mrb[0].mxu0
        %v1397 = vpop.f32.mrb[0].mxu0
        %1398 = vdwg.mxu0
        %v1399 = vsel %vm992, %v1386, -1e+30
        %v1400 = vsel %vm992, %v1389, -1e+30
        %v1401 = vsel %vm992, %v1394, -1e+30
        %v1402 = vsel %vm1063, %v1399, -inf
        %1403 = vmax.xlane.f32.xlu0 %v1402
        %v1404 = vpop.xlane.xlu0 %1403
        %v1405 = vsel %vm1063, %v1400, -inf
        %1406 = vmax.xlane.f32.xlu0 %v1405
        %v1407 = vpop.xlane.xlu0 %1406
        %v1408 = vsel %vm1063, %v1401, -inf
        %1409 = vmax.xlane.f32.xlu0 %v1408
        %v1410 = vpop.xlane.xlu0 %1409
        %v1411 = vsub.f32 %v1399, %v1404
        %v1412 = vsub.f32 %v1400, %v1407
        %v1413 = vsub.f32 %v1401, %v1410
        %v1414 = vmul.f32 %v1411, 1.442695
        %v1415 = vpow.pop %v1414
        %v1416 = vmul.f32 %v1412, 1.442695
        %v1417 = vpow.pop %v1416
        %v1418 = vmul.f32 %v1413, 1.442695
        %v1419 = vpow.pop %v1418
        %v1420 = vsel %vm1063, %v1415, 0.0
        %1421 = vadd.xlane.f32.xlu0 %v1420
        %v1422 = vpop.xlane.xlu0 %1421
        %v1423 = vsel %vm1063, %v1417, 0.0
        %1424 = vadd.xlane.f32.xlu0 %v1423
        %v1425 = vpop.xlane.xlu0 %1424
        %v1426 = vsel %vm1063, %v1419, 0.0
        %1427 = vadd.xlane.f32.xlu0 %v1426
        %v1428 = vpop.xlane.xlu0 %1427
        %v1429 = vrcp.pop %v1422
        %v1430 = vrcp.pop %v1425
        %v1431 = vrcp.pop %v1428
        %v1432 = vmul.f32 %v1415, %v1429
        %v1433 = vmul.f32 %v1417, %v1430
        %v1434 = vmul.f32 %v1419, %v1431
        %v1435 = vpack.c.bf16 %v1433, %v1432
        %v1436 = vpack.c.bf16 %v1434, %v1434
        %1437 = vrot.lane.b32.xlu0 %v997, 64
        %v1438 = vpop.permute.xlu0 %1437
        %1439 = vrot.lane.b32.xlu0 %v998, 64
        %v1440 = vpop.permute.xlu0 %1439
        %v1443 = vsel %vm1063, %v1435, 0
        %v1446 = vsel %vm1063, %v1436, 0
        %v1449 = vsel %vm1105, %v1440, 0
        %1451 = vmatprep.subr.bf16.mxu0 0
        %1452 = vmatpush1.bf16.msra.mxu0 %v1438
        %1453 = vmatprep.subr.bf16.mxu0 0
        %1454 = vmatpush1.bf16.msra.mxu0 %v1449
        %1455 = vmatprep.subr.bf16.mxu0 0
        %1456 = vmatpush1.bf16.msra.mxu0 0
        %1457 = vmatprep.subr.bf16.mxu0 0
        %1458 = vmatpush1.bf16.msra.mxu0 0
        %1459 = vmatprep.subr.bf16.mxu0 0
        %1460 = vmatpush1.bf16.msra.mxu0 0
        %1461 = vmatprep.subr.bf16.mxu0 0
        %1462 = vmatpush1.bf16.msra.mxu0 0
        %1463 = vmatprep.subr.bf16.mxu0 0
        %1464 = vmatpush1.bf16.msra.mxu0 0
        %1465 = vmatprep.subr.bf16.mxu0 0
        %1466 = vmatpush1.bf16.msra.mxu0 0
        %1467 = vmatprep.subr.bf16.mxu0 0
        %1468 = vmatpush1.bf16.msra.mxu0 0
        %1469 = vmatprep.subr.bf16.mxu0 0
        %1470 = vmatpush1.bf16.msra.mxu0 0
        %1471 = vmatprep.subr.bf16.mxu0 0
        %1472 = vmatpush1.bf16.msra.mxu0 0
        %1473 = vmatprep.subr.bf16.mxu0 0
        %1474 = vmatpush1.bf16.msra.mxu0 0
        %1475 = vmatprep.subr.bf16.mxu0 0
        %1476 = vmatpush1.bf16.msra.mxu0 0
        %1477 = vmatprep.subr.bf16.mxu0 0
        %1478 = vmatpush1.bf16.msra.mxu0 0
        %1479 = vmatprep.subr.bf16.mxu0 0
        %1480 = vmatpush1.bf16.msra.mxu0 0
        %1481 = vmatprep.subr.bf16.mxu0 0
        %1482 = vmatpush1.bf16.msra.mxu0 0
        %1483 = vmatprep.mubr.bf16.mxu0 0
        %1484 = vmatmul.mubr.bf16.gmra.mrb[0].mxu0 %v1443
        %v1485 = vpop.f32.mrb[0].mxu0
        %v1486 = vadd.f32 0.0, %v1485
        %v1487 = vpop.f32.mrb[0].mxu0
        %v1488 = vpop.f32.mrb[0].mxu0
        %v1489 = vadd.f32 0.0, %v1488
        %v1490 = vpop.f32.mrb[0].mxu0
        %1491 = vmatprep.mubr.bf16.mxu0 0
        %1492 = vmatmul.mubr.bf16.gmra.mrb[0].mxu0 %v1446
        %v1493 = vpop.f32.mrb[0].mxu0
        %v1494 = vadd.f32 0.0, %v1493
        %v1495 = vpop.f32.mrb[0].mxu0
        %v1496 = vpop.f32.mrb[0].mxu0
        %v1497 = vpop.f32.mrb[0].mxu0
        %1498 = vdwg.mxu0
        %1499 = vrot.lane.b32.xlu0 %v993, 32
        %v1500 = vpop.permute.xlu0 %1499
        %1501 = vrot.lane.b32.xlu0 %v994, 32
        %v1502 = vpop.permute.xlu0 %1501
        %1503 = vrot.lane.b32.xlu0 %v995, 32
        %v1504 = vpop.permute.xlu0 %1503
        %1505 = vrot.lane.b32.xlu0 %v996, 32
        %v1506 = vpop.permute.xlu0 %1505
        %v1508 = vsel %vm999, %v1500, 0
        %v1511 = vsel %vm999, %v1502, 0
        %v1514 = vsel %vm999, %v1504, 0
        %v1517 = vsel %vm999, %v1506, 0
        %1519 = vmatprep.subr.bf16.mxu0 0
        %1520 = vmatpush1.bf16.xpose.msra.mxu0 %v1514
        %1521 = vmatprep.subr.bf16.mxu0 0
        %1522 = vmatpush1.bf16.xpose.msra.mxu0 %v1517
        %1523 = vmatprep.subr.bf16.mxu0 0
        %1524 = vmatpush1.bf16.xpose.msra.mxu0 0
        %1525 = vmatprep.subr.bf16.mxu0 0
        %1526 = vmatpush1.bf16.xpose.msra.mxu0 0
        %1527 = vmatprep.subr.bf16.mxu0 0
        %1528 = vmatpush1.bf16.xpose.msra.mxu0 0
        %1529 = vmatprep.subr.bf16.mxu0 0
        %1530 = vmatpush1.bf16.xpose.msra.mxu0 0
        %1531 = vmatprep.subr.bf16.mxu0 0
        %1532 = vmatpush1.bf16.xpose.msra.mxu0 0
        %1533 = vmatprep.subr.bf16.mxu0 0
        %1534 = vmatpush1.bf16.xpose.msra.mxu0 0
        %1535 = vmatprep.subr.bf16.mxu0 0
        %1536 = vmatpush1.bf16.xpose.msra.mxu0 0
        %1537 = vmatprep.subr.bf16.mxu0 0
        %1538 = vmatpush1.bf16.xpose.msra.mxu0 0
        %1539 = vmatprep.subr.bf16.mxu0 0
        %1540 = vmatpush1.bf16.xpose.msra.mxu0 0
        %1541 = vmatprep.subr.bf16.mxu0 0
        %1542 = vmatpush1.bf16.xpose.msra.mxu0 0
        %1543 = vmatprep.subr.bf16.mxu0 0
        %1544 = vmatpush1.bf16.xpose.msra.mxu0 0
        %1545 = vmatprep.subr.bf16.mxu0 0
        %1546 = vmatpush1.bf16.xpose.msra.mxu0 0
        %1547 = vmatprep.subr.bf16.mxu0 0
        %1548 = vmatpush1.bf16.xpose.msra.mxu0 0
        %1549 = vmatprep.subr.bf16.mxu0 0
        %1550 = vmatpush1.bf16.xpose.msra.mxu0 0
        %1551 = vmatprep.mubr.bf16.mxu0 0
        %1552 = vmatmul.mubr.bf16.gmra.mrb[0].mxu0 %v1508
        %v1553 = vpop.f32.mrb[0].mxu0
        %v1554 = vadd.f32 0.0, %v1553
        %v1555 = vpop.f32.mrb[0].mxu0
        %v1556 = vpop.f32.mrb[0].mxu0
        %v1557 = vadd.f32 0.0, %v1556
        %v1558 = vpop.f32.mrb[0].mxu0
        %1559 = vmatprep.mubr.bf16.mxu0 0
        %1560 = vmatmul.mubr.bf16.gmra.mrb[0].mxu0 %v1511
        %v1561 = vpop.f32.mrb[0].mxu0
        %v1562 = vadd.f32 0.0, %v1561
        %v1563 = vpop.f32.mrb[0].mxu0
        %v1564 = vpop.f32.mrb[0].mxu0
        %v1565 = vpop.f32.mrb[0].mxu0
        %1566 = vdwg.mxu0
        %v1567 = vsel %vm992, %v1554, -1e+30
        %v1568 = vsel %vm992, %v1557, -1e+30
        %v1569 = vsel %vm992, %v1562, -1e+30
        %v1570 = vsel %vm1063, %v1567, -inf
        %1571 = vmax.xlane.f32.xlu0 %v1570
        %v1572 = vpop.xlane.xlu0 %1571
        %v1573 = vsel %vm1063, %v1568, -inf
        %1574 = vmax.xlane.f32.xlu0 %v1573
        %v1575 = vpop.xlane.xlu0 %1574
        %v1576 = vsel %vm1063, %v1569, -inf
        %1577 = vmax.xlane.f32.xlu0 %v1576
        %v1578 = vpop.xlane.xlu0 %1577
        %v1579 = vsub.f32 %v1567, %v1572
        %v1580 = vsub.f32 %v1568, %v1575
        %v1581 = vsub.f32 %v1569, %v1578
        %v1582 = vmul.f32 %v1579, 1.442695
        %v1583 = vpow.pop %v1582
        %v1584 = vmul.f32 %v1580, 1.442695
        %v1585 = vpow.pop %v1584
        %v1586 = vmul.f32 %v1581, 1.442695
        %v1587 = vpow.pop %v1586
        %v1588 = vsel %vm1063, %v1583, 0.0
        %1589 = vadd.xlane.f32.xlu0 %v1588
        %v1590 = vpop.xlane.xlu0 %1589
        %v1591 = vsel %vm1063, %v1585, 0.0
        %1592 = vadd.xlane.f32.xlu0 %v1591
        %v1593 = vpop.xlane.xlu0 %1592
        %v1594 = vsel %vm1063, %v1587, 0.0
        %1595 = vadd.xlane.f32.xlu0 %v1594
        %v1596 = vpop.xlane.xlu0 %1595
        %v1597 = vrcp.pop %v1590
        %v1598 = vrcp.pop %v1593
        %v1599 = vrcp.pop %v1596
        %v1600 = vmul.f32 %v1583, %v1597
        %v1601 = vmul.f32 %v1585, %v1598
        %v1602 = vmul.f32 %v1587, %v1599
        %v1603 = vpack.c.bf16 %v1601, %v1600
        %v1604 = vpack.c.bf16 %v1602, %v1602
        %1605 = vrot.lane.b32.xlu0 %v997, 32
        %v1606 = vpop.permute.xlu0 %1605
        %1607 = vrot.lane.b32.xlu0 %v998, 32
        %v1608 = vpop.permute.xlu0 %1607
        %v1611 = vsel %vm1063, %v1603, 0
        %v1614 = vsel %vm1063, %v1604, 0
        %v1617 = vsel %vm1105, %v1608, 0
        %1619 = vmatprep.subr.bf16.mxu0 0
        %1620 = vmatpush1.bf16.msra.mxu0 %v1606
        %1621 = vmatprep.subr.bf16.mxu0 0
        %1622 = vmatpush1.bf16.msra.mxu0 %v1617
        %1623 = vmatprep.subr.bf16.mxu0 0
        %1624 = vmatpush1.bf16.msra.mxu0 0
        %1625 = vmatprep.subr.bf16.mxu0 0
        %1626 = vmatpush1.bf16.msra.mxu0 0
        %1627 = vmatprep.subr.bf16.mxu0 0
        %1628 = vmatpush1.bf16.msra.mxu0 0
        %1629 = vmatprep.subr.bf16.mxu0 0
        %1630 = vmatpush1.bf16.msra.mxu0 0
        %1631 = vmatprep.subr.bf16.mxu0 0
        %1632 = vmatpush1.bf16.msra.mxu0 0
        %1633 = vmatprep.subr.bf16.mxu0 0
        %1634 = vmatpush1.bf16.msra.mxu0 0
        %1635 = vmatprep.subr.bf16.mxu0 0
        %1636 = vmatpush1.bf16.msra.mxu0 0
        %1637 = vmatprep.subr.bf16.mxu0 0
        %1638 = vmatpush1.bf16.msra.mxu0 0
        %1639 = vmatprep.subr.bf16.mxu0 0
        %1640 = vmatpush1.bf16.msra.mxu0 0
        %1641 = vmatprep.subr.bf16.mxu0 0
        %1642 = vmatpush1.bf16.msra.mxu0 0
        %1643 = vmatprep.subr.bf16.mxu0 0
        %1644 = vmatpush1.bf16.msra.mxu0 0
        %1645 = vmatprep.subr.bf16.mxu0 0
        %1646 = vmatpush1.bf16.msra.mxu0 0
        %1647 = vmatprep.subr.bf16.mxu0 0
        %1648 = vmatpush1.bf16.msra.mxu0 0
        %1649 = vmatprep.subr.bf16.mxu0 0
        %1650 = vmatpush1.bf16.msra.mxu0 0
        %1651 = vmatprep.mubr.bf16.mxu0 0
        %1652 = vmatmul.mubr.bf16.gmra.mrb[0].mxu0 %v1611
        %v1653 = vpop.f32.mrb[0].mxu0
        %v1654 = vadd.f32 0.0, %v1653
        %v1655 = vpop.f32.mrb[0].mxu0
        %v1656 = vpop.f32.mrb[0].mxu0
        %v1657 = vadd.f32 0.0, %v1656
        %v1658 = vpop.f32.mrb[0].mxu0
        %1659 = vmatprep.mubr.bf16.mxu0 0
        %1660 = vmatmul.mubr.bf16.gmra.mrb[0].mxu0 %v1614
        %v1661 = vpop.f32.mrb[0].mxu0
        %v1662 = vadd.f32 0.0, %v1661
        %v1663 = vpop.f32.mrb[0].mxu0
        %v1664 = vpop.f32.mrb[0].mxu0
        %v1665 = vpop.f32.mrb[0].mxu0
        %1666 = vdwg.mxu0
        %1670 = vrot.lane.b32.xlu0 %v1318, 32
        %v1671 = vpop.permute.xlu0 %1670
        %1672 = vrot.lane.b32.xlu0 %v1321, 32
        %v1673 = vpop.permute.xlu0 %1672
        %1674 = vrot.lane.b32.xlu0 %v1326, 32
        %v1675 = vpop.permute.xlu0 %1674
        %1682 = vrot.lane.b32.xlu0 %v1486, 64
        %v1683 = vpop.permute.xlu0 %1682
        %1684 = vrot.lane.b32.xlu0 %v1489, 64
        %v1685 = vpop.permute.xlu0 %1684
        %1686 = vrot.lane.b32.xlu0 %v1494, 64
        %v1687 = vpop.permute.xlu0 %1686
        %1694 = vrot.lane.b32.xlu0 %v1654, 96
        %v1695 = vpop.permute.xlu0 %1694
        %1696 = vrot.lane.b32.xlu0 %v1657, 96
        %v1697 = vpop.permute.xlu0 %1696
        %1698 = vrot.lane.b32.xlu0 %v1662, 96
        %v1699 = vpop.permute.xlu0 %1698
        %v1703 = vsel %vm999, %v1144, %v1671
        %v1704 = vsel %vm999, %v1147, %v1673
        %v1705 = vsel %vm999, %v1152, %v1675
        %vm1706 = vcmask 523264
        %v1707 = vsel %vm1706, %v1703, %v1683
        %v1708 = vsel %vm1706, %v1704, %v1685
        %v1709 = vsel %vm1706, %v1705, %v1687
        %vm1710 = vcmask 785408
        %v1711 = vsel %vm1710, %v1707, %v1695
        %v1712 = vsel %vm1710, %v1708, %v1697
        %v1713 = vsel %vm1710, %v1709, %v1699
        %v1714 = vpack.c.bf16 %v1712, %v1711
        %v1715 = vpack.c.bf16 %v1713, %v1713
        %v1716 = vld [vmem:[%s7] sm:$0xf]
        %v1717 = vld [vmem:[%s7 + $0x4] sm:$0xf]
        %v1718 = vld [vmem:[%s7 + $0x8] sm:$0xf]
        %v1719 = vld [vmem:[%s7 + $0xc] sm:$0xf]
        %v1720 = vld [vmem:[%s7 + $0x10] sm:$0xf]
        %v1721 = vld [vmem:[%s7 + $0x14] sm:$0xf]
        %v1722 = vld [vmem:[%s7 + $0x18] sm:$0xf]
        %v1723 = vld [vmem:[%s7 + $0x1c] sm:$0xf]
        %v1724 = vld [vmem:[%s7 + $0x20] sm:$0xf]
        %v1725 = vld [vmem:[%s7 + $0x24] sm:$0xf]
        %v1726 = vld [vmem:[%s7 + $0x28] sm:$0xf]
        %v1727 = vld [vmem:[%s7 + $0x2c] sm:$0xf]
        %v1728 = vld [vmem:[%s7 + $0x30] sm:$0xf]
        %v1729 = vld [vmem:[%s7 + $0x34] sm:$0xf]
        %v1730 = vld [vmem:[%s7 + $0x38] sm:$0xf]
        %v1731 = vld [vmem:[%s7 + $0x3c] sm:$0xf]
        %v1732 = vld [vmem:[#allocation10] sm:$0x1]
        %v1734 = vlaneseq
        %v1735 = vshrl.u32 %v1734, 7
        %v1736 = vsub.s32 0, %v1735
        %v1737 = vrot.slane %v1732, %v1736
        %v1755 = vunpack.c.l.b16 %v1716
        %v1756 = vunpack.c.l.b16 %v1717
        %v1757 = vunpack.c.l.b16 %v1718
        %v1758 = vunpack.c.l.b16 %v1719
        %v1759 = vunpack.c.l.b16 %v1720
        %v1760 = vunpack.c.l.b16 %v1721
        %v1761 = vunpack.c.l.b16 %v1722
        %v1762 = vunpack.c.l.b16 %v1723
        %v1763 = vunpack.c.l.b16 %v1724
        %v1764 = vunpack.c.l.b16 %v1725
        %v1765 = vunpack.c.l.b16 %v1726
        %v1766 = vunpack.c.l.b16 %v1727
        %v1767 = vunpack.c.l.b16 %v1728
        %v1768 = vunpack.c.l.b16 %v1729
        %v1769 = vunpack.c.l.b16 %v1730
        %v1770 = vunpack.c.l.b16 %v1731
        %v1771 = vpack.c.b16 %v1756, %v1755
        %v1772 = vpack.c.b16 %v1758, %v1757
        %v1773 = vpack.c.b16 %v1760, %v1759
        %v1774 = vpack.c.b16 %v1762, %v1761
        %v1775 = vpack.c.b16 %v1764, %v1763
        %v1776 = vpack.c.b16 %v1766, %v1765
        %v1777 = vpack.c.b16 %v1768, %v1767
        %v1778 = vpack.c.b16 %v1770, %v1769
        %1787 = vmatprep.subr.bf16.mxu0 0
        %1788 = vmatpush1.bf16.msra.mxu0 %v1771
        %1789 = vmatprep.subr.bf16.mxu0 0
        %1790 = vmatpush1.bf16.msra.mxu0 %v1772
        %1791 = vmatprep.subr.bf16.mxu0 0
        %1792 = vmatpush1.bf16.msra.mxu0 %v1773
        %1793 = vmatprep.subr.bf16.mxu0 0
        %1794 = vmatpush1.bf16.msra.mxu0 %v1774
        %1795 = vmatprep.subr.bf16.mxu0 0
        %1796 = vmatpush1.bf16.msra.mxu0 %v1775
        %1797 = vmatprep.subr.bf16.mxu0 0
        %1798 = vmatpush1.bf16.msra.mxu0 %v1776
        %1799 = vmatprep.subr.bf16.mxu0 0
        %1800 = vmatpush1.bf16.msra.mxu0 %v1777
        %1801 = vmatprep.subr.bf16.mxu0 0
        %1802 = vmatpush1.bf16.msra.mxu0 %v1778
        %1803 = vmatprep.subr.bf16.mxu0 0
        %1804 = vmatpush1.bf16.msra.mxu0 0
        %1805 = vmatprep.subr.bf16.mxu0 0
        %1806 = vmatpush1.bf16.msra.mxu0 0
        %1807 = vmatprep.subr.bf16.mxu0 0
        %1808 = vmatpush1.bf16.msra.mxu0 0
        %1809 = vmatprep.subr.bf16.mxu0 0
        %1810 = vmatpush1.bf16.msra.mxu0 0
        %1811 = vmatprep.subr.bf16.mxu0 0
        %1812 = vmatpush1.bf16.msra.mxu0 0
        %1813 = vmatprep.subr.bf16.mxu0 0
        %1814 = vmatpush1.bf16.msra.mxu0 0
        %1815 = vmatprep.subr.bf16.mxu0 0
        %1816 = vmatpush1.bf16.msra.mxu0 0
        %1817 = vmatprep.subr.bf16.mxu0 0
        %1818 = vmatpush1.bf16.msra.mxu0 0
        %1819 = vmatprep.mubr.bf16.mxu0 0
        %1820 = vmatmul.mubr.bf16.gmra.mrb[0].mxu0 %v1714
        %v1821 = vpop.f32.mrb[0].mxu0
        %v1822 = vadd.f32 %v1737, %v1821
        %v1823 = vpop.f32.mrb[0].mxu0
        %v1824 = vpop.f32.mrb[0].mxu0
        %v1825 = vadd.f32 %v1737, %v1824
        %v1826 = vpop.f32.mrb[0].mxu0
        %1827 = vmatprep.mubr.bf16.mxu0 0
        %1828 = vmatmul.mubr.bf16.gmra.mrb[0].mxu0 %v1715
        %v1829 = vpop.f32.mrb[0].mxu0
        %v1830 = vadd.f32 %v1737, %v1829
        %v1831 = vpop.f32.mrb[0].mxu0
        %v1832 = vpop.f32.mrb[0].mxu0
        %v1833 = vpop.f32.mrb[0].mxu0
        %1834 = vdwg.mxu0
        %v1835 = vadd.f32 %v622, %v1822
        %v1836 = vadd.f32 %v623, %v1825
        %v1837 = vadd.f32 %v624, %v1830
        %v1838 = vld [vmem:[#allocation12] sm:$0x1]
        %v1839 = vld [vmem:[#allocation13] sm:$0x1]
        %1840 = vadd.xlane.f32.xlu0 %v1835
        %v1841 = vpop.xlane.xlu0 %1840
        %1842 = vadd.xlane.f32.xlu0 %v1836
        %v1843 = vpop.xlane.xlu0 %1842
        %1844 = vadd.xlane.f32.xlu0 %v1837
        %v1845 = vpop.xlane.xlu0 %1844
        %v1846 = vmul.f32 %v1841, %v633
        %v1847 = vmul.f32 %v1843, %v633
        %v1848 = vmul.f32 %v1845, %v633
        %v1849 = vsub.f32 %v1835, %v1846
        %v1850 = vsub.f32 %v1836, %v1847
        %v1851 = vsub.f32 %v1837, %v1848
        %v1852 = vmul.f32 %v1849, %v1849
        %v1853 = vmul.f32 %v1850, %v1850
        %v1854 = vmul.f32 %v1851, %v1851
        %1855 = vadd.xlane.f32.xlu0 %v1852
        %v1856 = vpop.xlane.xlu0 %1855
        %1857 = vadd.xlane.f32.xlu0 %v1853
        %v1858 = vpop.xlane.xlu0 %1857
        %1859 = vadd.xlane.f32.xlu0 %v1854
        %v1860 = vpop.xlane.xlu0 %1859
        %v1861 = vmul.f32 %v1856, %v633
        %v1862 = vmul.f32 %v1858, %v633
        %v1863 = vmul.f32 %v1860, %v633
        %v1864 = vadd.f32 %v1861, 1e-06
        %v1865 = vadd.f32 %v1862, 1e-06
        %v1866 = vadd.f32 %v1863, 1e-06
        %v1867 = vrsqrt.pop %v1864
        %v1868 = vrsqrt.pop %v1865
        %v1869 = vrsqrt.pop %v1866
        %v1870 = vmul.f32 %v1849, %v1867
        %v1871 = vmul.f32 %v1850, %v1868
        %v1872 = vmul.f32 %v1851, %v1869
        %v1874 = vlaneseq
        %v1875 = vshrl.u32 %v1874, 7
        %v1876 = vsub.s32 0, %v1875
        %v1877 = vrot.slane %v1838, %v1876
        %v1879 = vmul.f32 %v1870, %v1877
        %v1880 = vmul.f32 %v1871, %v1877
        %v1881 = vmul.f32 %v1872, %v1877
        %v1883 = vlaneseq
        %v1884 = vshrl.u32 %v1883, 7
        %v1885 = vsub.s32 0, %v1884
        %v1886 = vrot.slane %v1839, %v1885
        %v1888 = vadd.f32 %v1879, %v1886
        %v1889 = vadd.f32 %v1880, %v1886
        %v1890 = vadd.f32 %v1881, %v1886
        %v1891 = vpack.c.bf16 %v1889, %v1888
        %v1892 = vpack.c.bf16 %v1890, %v1890
        %v1893 = vld [vmem:[%s11] sm:$0xff]
        %v1894 = vld [vmem:[%s11 + $0x8] sm:$0xff]
        %v1895 = vld [vmem:[%s11 + $0x10] sm:$0xff]
        %v1896 = vld [vmem:[%s11 + $0x18] sm:$0xff]
        %v1897 = vld [vmem:[%s11 + $0x20] sm:$0xff]
        %v1898 = vld [vmem:[%s11 + $0x28] sm:$0xff]
        %v1899 = vld [vmem:[%s11 + $0x30] sm:$0xff]
        %v1900 = vld [vmem:[%s11 + $0x38] sm:$0xff]
        %v1901 = vld [vmem:[%s11 + $0x40] sm:$0xff]
        %v1902 = vld [vmem:[%s11 + $0x48] sm:$0xff]
        %v1903 = vld [vmem:[%s11 + $0x50] sm:$0xff]
        %v1904 = vld [vmem:[%s11 + $0x58] sm:$0xff]
        %v1905 = vld [vmem:[%s11 + $0x60] sm:$0xff]
        %v1906 = vld [vmem:[%s11 + $0x68] sm:$0xff]
        %v1907 = vld [vmem:[%s11 + $0x70] sm:$0xff]
        %v1908 = vld [vmem:[%s11 + $0x78] sm:$0xff]
        %v1909 = vld [vmem:[%s11 + $0x80] sm:$0xff]
        %v1910 = vld [vmem:[%s11 + $0x88] sm:$0xff]
        %v1911 = vld [vmem:[%s11 + $0x90] sm:$0xff]
        %v1912 = vld [vmem:[%s11 + $0x98] sm:$0xff]
        %v1913 = vld [vmem:[%s11 + $0xa0] sm:$0xff]
        %v1914 = vld [vmem:[%s11 + $0xa8] sm:$0xff]
        %v1915 = vld [vmem:[%s11 + $0xb0] sm:$0xff]
        %v1916 = vld [vmem:[%s11 + $0xb8] sm:$0xff]
        %v1917 = vld [vmem:[%s11 + $0xc0] sm:$0xff]
        %v1918 = vld [vmem:[%s11 + $0xc8] sm:$0xff]
        %v1919 = vld [vmem:[%s11 + $0xd0] sm:$0xff]
        %v1920 = vld [vmem:[%s11 + $0xd8] sm:$0xff]
        %v1921 = vld [vmem:[%s11 + $0xe0] sm:$0xff]
        %v1922 = vld [vmem:[%s11 + $0xe8] sm:$0xff]
        %v1923 = vld [vmem:[%s11 + $0xf0] sm:$0xff]
        %v1924 = vld [vmem:[%s11 + $0xf8] sm:$0xff]
        %v1925 = vld [vmem:[#allocation15] sm:$0xf]
        %v1927 = vlaneseq
        %v1928 = vshrl.u32 %v1927, 7
        %v1929 = vsub.s32 0, %v1928
        %v1930 = vrot.slane %v1925, %v1929
        %v1931 = vlaneseq
        %v1932 = vshrl.u32 %v1931, 7
        %v1933 = vsub.s32 1, %v1932
        %v1934 = vrot.slane %v1925, %v1933
        %v1935 = vlaneseq
        %v1936 = vshrl.u32 %v1935, 7
        %v1937 = vsub.s32 2, %v1936
        %v1938 = vrot.slane %v1925, %v1937
        %v1939 = vlaneseq
        %v1940 = vshrl.u32 %v1939, 7
        %v1941 = vsub.s32 3, %v1940
        %v1942 = vrot.slane %v1925, %v1941
        %v1979 = vunpack.c.l.b16 %v1893
        %v1980 = vunpack.c.h.b16 %v1893
        %v1981 = vunpack.c.l.b16 %v1894
        %v1982 = vunpack.c.h.b16 %v1894
        %v1983 = vunpack.c.l.b16 %v1895
        %v1984 = vunpack.c.h.b16 %v1895
        %v1985 = vunpack.c.l.b16 %v1896
        %v1986 = vunpack.c.h.b16 %v1896
        %v1987 = vunpack.c.l.b16 %v1897
        %v1988 = vunpack.c.h.b16 %v1897
        %v1989 = vunpack.c.l.b16 %v1898
        %v1990 = vunpack.c.h.b16 %v1898
        %v1991 = vunpack.c.l.b16 %v1899
        %v1992 = vunpack.c.h.b16 %v1899
        %v1993 = vunpack.c.l.b16 %v1900
        %v1994 = vunpack.c.h.b16 %v1900
        %v1995 = vunpack.c.l.b16 %v1901
        %v1996 = vunpack.c.h.b16 %v1901
        %v1997 = vunpack.c.l.b16 %v1902
        %v1998 = vunpack.c.h.b16 %v1902
        %v1999 = vunpack.c.l.b16 %v1903
        %v2000 = vunpack.c.h.b16 %v1903
        %v2001 = vunpack.c.l.b16 %v1904
        %v2002 = vunpack.c.h.b16 %v1904
        %v2003 = vunpack.c.l.b16 %v1905
        %v2004 = vunpack.c.h.b16 %v1905
        %v2005 = vunpack.c.l.b16 %v1906
        %v2006 = vunpack.c.h.b16 %v1906
        %v2007 = vunpack.c.l.b16 %v1907
        %v2008 = vunpack.c.h.b16 %v1907
        %v2009 = vunpack.c.l.b16 %v1908
        %v2010 = vunpack.c.h.b16 %v1908
        %v2011 = vunpack.c.l.b16 %v1909
        %v2012 = vunpack.c.h.b16 %v1909
        %v2013 = vunpack.c.l.b16 %v1910
        %v2014 = vunpack.c.h.b16 %v1910
        %v2015 = vunpack.c.l.b16 %v1911
        %v2016 = vunpack.c.h.b16 %v1911
        %v2017 = vunpack.c.l.b16 %v1912
        %v2018 = vunpack.c.h.b16 %v1912
        %v2019 = vunpack.c.l.b16 %v1913
        %v2020 = vunpack.c.h.b16 %v1913
        %v2021 = vunpack.c.l.b16 %v1914
        %v2022 = vunpack.c.h.b16 %v1914
        %v2023 = vunpack.c.l.b16 %v1915
        %v2024 = vunpack.c.h.b16 %v1915
        %v2025 = vunpack.c.l.b16 %v1916
        %v2026 = vunpack.c.h.b16 %v1916
        %v2027 = vunpack.c.l.b16 %v1917
        %v2028 = vunpack.c.h.b16 %v1917
        %v2029 = vunpack.c.l.b16 %v1918
        %v2030 = vunpack.c.h.b16 %v1918
        %v2031 = vunpack.c.l.b16 %v1919
        %v2032 = vunpack.c.h.b16 %v1919
        %v2033 = vunpack.c.l.b16 %v1920
        %v2034 = vunpack.c.h.b16 %v1920
        %v2035 = vunpack.c.l.b16 %v1921
        %v2036 = vunpack.c.h.b16 %v1921
        %v2037 = vunpack.c.l.b16 %v1922
        %v2038 = vunpack.c.h.b16 %v1922
        %v2039 = vunpack.c.l.b16 %v1923
        %v2040 = vunpack.c.h.b16 %v1923
        %v2041 = vunpack.c.l.b16 %v1924
        %v2042 = vunpack.c.h.b16 %v1924
        %v2043 = vpack.c.b16 %v1983, %v1979
        %v2044 = vpack.c.b16 %v1984, %v1980
        %v2045 = vpack.c.b16 %v1985, %v1981
        %v2046 = vpack.c.b16 %v1986, %v1982
        %v2047 = vpack.c.b16 %v1991, %v1987
        %v2048 = vpack.c.b16 %v1992, %v1988
        %v2049 = vpack.c.b16 %v1993, %v1989
        %v2050 = vpack.c.b16 %v1994, %v1990
        %v2051 = vpack.c.b16 %v1999, %v1995
        %v2052 = vpack.c.b16 %v2000, %v1996
        %v2053 = vpack.c.b16 %v2001, %v1997
        %v2054 = vpack.c.b16 %v2002, %v1998
        %v2055 = vpack.c.b16 %v2007, %v2003
        %v2056 = vpack.c.b16 %v2008, %v2004
        %v2057 = vpack.c.b16 %v2009, %v2005
        %v2058 = vpack.c.b16 %v2010, %v2006
        %v2059 = vpack.c.b16 %v2015, %v2011
        %v2060 = vpack.c.b16 %v2016, %v2012
        %v2061 = vpack.c.b16 %v2017, %v2013
        %v2062 = vpack.c.b16 %v2018, %v2014
        %v2063 = vpack.c.b16 %v2023, %v2019
        %v2064 = vpack.c.b16 %v2024, %v2020
        %v2065 = vpack.c.b16 %v2025, %v2021
        %v2066 = vpack.c.b16 %v2026, %v2022
        %v2067 = vpack.c.b16 %v2031, %v2027
        %v2068 = vpack.c.b16 %v2032, %v2028
        %v2069 = vpack.c.b16 %v2033, %v2029
        %v2070 = vpack.c.b16 %v2034, %v2030
        %v2071 = vpack.c.b16 %v2039, %v2035
        %v2072 = vpack.c.b16 %v2040, %v2036
        %v2073 = vpack.c.b16 %v2041, %v2037
        %v2074 = vpack.c.b16 %v2042, %v2038
        %2107 = vmatprep.subr.bf16.mxu0 %v2044
        %2108 = vmatpush1.bf16.msra.mxu0 %v2043
        %2109 = vmatprep.subr.bf16.mxu0 %v2048
        %2110 = vmatpush1.bf16.msra.mxu0 %v2047
        %2111 = vmatprep.subr.bf16.mxu0 %v2052
        %2112 = vmatpush1.bf16.msra.mxu0 %v2051
        %2113 = vmatprep.subr.bf16.mxu0 %v2056
        %2114 = vmatpush1.bf16.msra.mxu0 %v2055
        %2115 = vmatprep.subr.bf16.mxu0 %v2060
        %2116 = vmatpush1.bf16.msra.mxu0 %v2059
        %2117 = vmatprep.subr.bf16.mxu0 %v2064
        %2118 = vmatpush1.bf16.msra.mxu0 %v2063
        %2119 = vmatprep.subr.bf16.mxu0 %v2068
        %2120 = vmatpush1.bf16.msra.mxu0 %v2067
        %2121 = vmatprep.subr.bf16.mxu0 %v2072
        %2122 = vmatpush1.bf16.msra.mxu0 %v2071
        %2123 = vmatprep.subr.bf16.mxu0 0
        %2124 = vmatpush1.bf16.msra.mxu0 0
        %2125 = vmatprep.subr.bf16.mxu0 0
        %2126 = vmatpush1.bf16.msra.mxu0 0
        %2127 = vmatprep.subr.bf16.mxu0 0
        %2128 = vmatpush1.bf16.msra.mxu0 0
        %2129 = vmatprep.subr.bf16.mxu0 0
        %2130 = vmatpush1.bf16.msra.mxu0 0
        %2131 = vmatprep.subr.bf16.mxu0 0
        %2132 = vmatpush1.bf16.msra.mxu0 0
        %2133 = vmatprep.subr.bf16.mxu0 0
        %2134 = vmatpush1.bf16.msra.mxu0 0
        %2135 = vmatprep.subr.bf16.mxu0 0
        %2136 = vmatpush1.bf16.msra.mxu0 0
        %2137 = vmatprep.subr.bf16.mxu0 0
        %2138 = vmatpush1.bf16.msra.mxu0 0
        %2139 = vmatprep.mubr.bf16.mxu0 0
        %2140 = vmatmul.mubr.bf16.gmra.mrb[0].mxu0 %v1891
        %v2141 = vpop.f32.mrb[0].mxu0
        %v2142 = vadd.f32 %v1930, %v2141
        %v2143 = vpop.f32.mrb[0].mxu0
        %v2144 = vadd.f32 %v1934, %v2143
        %v2145 = vpop.f32.mrb[0].mxu0
        %v2146 = vadd.f32 %v1930, %v2145
        %v2147 = vpop.f32.mrb[0].mxu0
        %v2148 = vadd.f32 %v1934, %v2147
        %2149 = vmatprep.mubr.bf16.mxu0 0
        %2150 = vmatmul.mubr.bf16.gmra.mrb[0].mxu0 %v1892
        %v2151 = vpop.f32.mrb[0].mxu0
        %v2152 = vadd.f32 %v1930, %v2151
        %v2153 = vpop.f32.mrb[0].mxu0
        %v2154 = vadd.f32 %v1934, %v2153
        %v2155 = vpop.f32.mrb[0].mxu0
        %v2156 = vpop.f32.mrb[0].mxu0
        %2157 = vdwg.mxu0
        %2158 = vmatprep.subr.bf16.mxu0 %v2046
        %2159 = vmatpush1.bf16.msra.mxu0 %v2045
        %2160 = vmatprep.subr.bf16.mxu0 %v2050
        %2161 = vmatpush1.bf16.msra.mxu0 %v2049
        %2162 = vmatprep.subr.bf16.mxu0 %v2054
        %2163 = vmatpush1.bf16.msra.mxu0 %v2053
        %2164 = vmatprep.subr.bf16.mxu0 %v2058
        %2165 = vmatpush1.bf16.msra.mxu0 %v2057
        %2166 = vmatprep.subr.bf16.mxu0 %v2062
        %2167 = vmatpush1.bf16.msra.mxu0 %v2061
        %2168 = vmatprep.subr.bf16.mxu0 %v2066
        %2169 = vmatpush1.bf16.msra.mxu0 %v2065
        %2170 = vmatprep.subr.bf16.mxu0 %v2070
        %2171 = vmatpush1.bf16.msra.mxu0 %v2069
        %2172 = vmatprep.subr.bf16.mxu0 %v2074
        %2173 = vmatpush1.bf16.msra.mxu0 %v2073
        %2174 = vmatprep.subr.bf16.mxu0 0
        %2175 = vmatpush1.bf16.msra.mxu0 0
        %2176 = vmatprep.subr.bf16.mxu0 0
        %2177 = vmatpush1.bf16.msra.mxu0 0
        %2178 = vmatprep.subr.bf16.mxu0 0
        %2179 = vmatpush1.bf16.msra.mxu0 0
        %2180 = vmatprep.subr.bf16.mxu0 0
        %2181 = vmatpush1.bf16.msra.mxu0 0
        %2182 = vmatprep.subr.bf16.mxu0 0
        %2183 = vmatpush1.bf16.msra.mxu0 0
        %2184 = vmatprep.subr.bf16.mxu0 0
        %2185 = vmatpush1.bf16.msra.mxu0 0
        %2186 = vmatprep.subr.bf16.mxu0 0
        %2187 = vmatpush1.bf16.msra.mxu0 0
        %2188 = vmatprep.subr.bf16.mxu0 0
        %2189 = vmatpush1.bf16.msra.mxu0 0
        %2190 = vmatprep.mubr.bf16.mxu0 0
        %2191 = vmatmul.mubr.bf16.gmra.mrb[0].mxu0 %v1891
        %v2192 = vpop.f32.mrb[0].mxu0
        %v2193 = vadd.f32 %v1938, %v2192
        %v2194 = vpop.f32.mrb[0].mxu0
        %v2195 = vadd.f32 %v1942, %v2194
        %v2196 = vpop.f32.mrb[0].mxu0
        %v2197 = vadd.f32 %v1938, %v2196
        %v2198 = vpop.f32.mrb[0].mxu0
        %v2199 = vadd.f32 %v1942, %v2198
        %2200 = vmatprep.mubr.bf16.mxu0 0
        %2201 = vmatmul.mubr.bf16.gmra.mrb[0].mxu0 %v1892
        %v2202 = vpop.f32.mrb[0].mxu0
        %v2203 = vadd.f32 %v1938, %v2202
        %v2204 = vpop.f32.mrb[0].mxu0
        %v2205 = vadd.f32 %v1942, %v2204
        %v2206 = vpop.f32.mrb[0].mxu0
        %v2207 = vpop.f32.mrb[0].mxu0
        %2208 = vdwg.mxu0
        %v2209 = vmul.f32 %v2142, 0.5
        %v2210 = vmul.f32 %v2144, 0.5
        %v2211 = vmul.f32 %v2193, 0.5
        %v2212 = vmul.f32 %v2195, 0.5
        %v2213 = vmul.f32 %v2146, 0.5
        %v2214 = vmul.f32 %v2148, 0.5
        %v2215 = vmul.f32 %v2197, 0.5
        %v2216 = vmul.f32 %v2199, 0.5
        %v2217 = vmul.f32 %v2152, 0.5
        %v2218 = vmul.f32 %v2154, 0.5
        %v2219 = vmul.f32 %v2203, 0.5
        %v2220 = vmul.f32 %v2205, 0.5
        %v2221 = vmul.f32 %v2142, 0.70710677
        %v2222 = vmul.f32 %v2144, 0.70710677
        %v2223 = vmul.f32 %v2193, 0.70710677
        %v2224 = vmul.f32 %v2195, 0.70710677
        %v2225 = vmul.f32 %v2146, 0.70710677
        %v2226 = vmul.f32 %v2148, 0.70710677
        %v2227 = vmul.f32 %v2197, 0.70710677
        %v2228 = vmul.f32 %v2199, 0.70710677
        %v2229 = vmul.f32 %v2152, 0.70710677
        %v2230 = vmul.f32 %v2154, 0.70710677
        %v2231 = vmul.f32 %v2203, 0.70710677
        %v2232 = vmul.f32 %v2205, 0.70710677
        %v2233 = vand.u32 2147483647, %v2221
        %v2234 = vand.u32 2147483647, %v2222
        %v2235 = vand.u32 2147483647, %v2223
        %v2236 = vand.u32 2147483647, %v2224
        %v2237 = vand.u32 2147483647, %v2225
        %v2238 = vand.u32 2147483647, %v2226
        %v2239 = vand.u32 2147483647, %v2227
        %v2240 = vand.u32 2147483647, %v2228
        %v2241 = vand.u32 2147483647, %v2229
        %v2242 = vand.u32 2147483647, %v2230
        %v2243 = vand.u32 2147483647, %v2231
        %v2244 = vand.u32 2147483647, %v2232
        %v2245 = vmul.f32 %v2233, 0.3275911
        %v2246 = vmul.f32 %v2234, 0.3275911
        %v2247 = vmul.f32 %v2235, 0.3275911
        %v2248 = vmul.f32 %v2236, 0.3275911
        %v2249 = vmul.f32 %v2237, 0.3275911
        %v2250 = vmul.f32 %v2238, 0.3275911
        %v2251 = vmul.f32 %v2239, 0.3275911
        %v2252 = vmul.f32 %v2240, 0.3275911
        %v2253 = vmul.f32 %v2241, 0.3275911
        %v2254 = vmul.f32 %v2242, 0.3275911
        %v2255 = vmul.f32 %v2243, 0.3275911
        %v2256 = vmul.f32 %v2244, 0.3275911
        %v2257 = vadd.f32 %v2245, 1.0
        %v2258 = vadd.f32 %v2246, 1.0
        %v2259 = vadd.f32 %v2247, 1.0
        %v2260 = vadd.f32 %v2248, 1.0
        %v2261 = vadd.f32 %v2249, 1.0
        %v2262 = vadd.f32 %v2250, 1.0
        %v2263 = vadd.f32 %v2251, 1.0
        %v2264 = vadd.f32 %v2252, 1.0
        %v2265 = vadd.f32 %v2253, 1.0
        %v2266 = vadd.f32 %v2254, 1.0
        %v2267 = vadd.f32 %v2255, 1.0
        %v2268 = vadd.f32 %v2256, 1.0
        %v2269 = vrcp.pop %v2257
        %v2270 = vmul.f32 1.0, %v2269
        %v2271 = vrcp.pop %v2258
        %v2272 = vmul.f32 1.0, %v2271
        %v2273 = vrcp.pop %v2259
        %v2274 = vmul.f32 1.0, %v2273
        %v2275 = vrcp.pop %v2260
        %v2276 = vmul.f32 1.0, %v2275
        %v2277 = vrcp.pop %v2261
        %v2278 = vmul.f32 1.0, %v2277
        %v2279 = vrcp.pop %v2262
        %v2280 = vmul.f32 1.0, %v2279
        %v2281 = vrcp.pop %v2263
        %v2282 = vmul.f32 1.0, %v2281
        %v2283 = vrcp.pop %v2264
        %v2284 = vmul.f32 1.0, %v2283
        %v2285 = vrcp.pop %v2265
        %v2286 = vmul.f32 1.0, %v2285
        %v2287 = vrcp.pop %v2266
        %v2288 = vmul.f32 1.0, %v2287
        %v2289 = vrcp.pop %v2267
        %v2290 = vmul.f32 1.0, %v2289
        %v2291 = vrcp.pop %v2268
        %v2292 = vmul.f32 1.0, %v2291
        %v2293 = vmul.f32 %v2270, 1.0614054
        %v2294 = vmul.f32 %v2272, 1.0614054
        %v2295 = vmul.f32 %v2274, 1.0614054
        %v2296 = vmul.f32 %v2276, 1.0614054
        %v2297 = vmul.f32 %v2278, 1.0614054
        %v2298 = vmul.f32 %v2280, 1.0614054
        %v2299 = vmul.f32 %v2282, 1.0614054
        %v2300 = vmul.f32 %v2284, 1.0614054
        %v2301 = vmul.f32 %v2286, 1.0614054
        %v2302 = vmul.f32 %v2288, 1.0614054
        %v2303 = vmul.f32 %v2290, 1.0614054
        %v2304 = vmul.f32 %v2292, 1.0614054
        %v2305 = vadd.f32 %v2293, -1.4531521
        %v2306 = vadd.f32 %v2294, -1.4531521
        %v2307 = vadd.f32 %v2295, -1.4531521
        %v2308 = vadd.f32 %v2296, -1.4531521
        %v2309 = vadd.f32 %v2297, -1.4531521
        %v2310 = vadd.f32 %v2298, -1.4531521
        %v2311 = vadd.f32 %v2299, -1.4531521
        %v2312 = vadd.f32 %v2300, -1.4531521
        %v2313 = vadd.f32 %v2301, -1.4531521
        %v2314 = vadd.f32 %v2302, -1.4531521
        %v2315 = vadd.f32 %v2303, -1.4531521
        %v2316 = vadd.f32 %v2304, -1.4531521
        %v2317 = vmul.f32 %v2305, %v2270
        %v2318 = vmul.f32 %v2306, %v2272
        %v2319 = vmul.f32 %v2307, %v2274
        %v2320 = vmul.f32 %v2308, %v2276
        %v2321 = vmul.f32 %v2309, %v2278
        %v2322 = vmul.f32 %v2310, %v2280
        %v2323 = vmul.f32 %v2311, %v2282
        %v2324 = vmul.f32 %v2312, %v2284
        %v2325 = vmul.f32 %v2313, %v2286
        %v2326 = vmul.f32 %v2314, %v2288
        %v2327 = vmul.f32 %v2315, %v2290
        %v2328 = vmul.f32 %v2316, %v2292
        %v2329 = vadd.f32 %v2317, 1.4214138
        %v2330 = vadd.f32 %v2318, 1.4214138
        %v2331 = vadd.f32 %v2319, 1.4214138
        %v2332 = vadd.f32 %v2320, 1.4214138
        %v2333 = vadd.f32 %v2321, 1.4214138
        %v2334 = vadd.f32 %v2322, 1.4214138
        %v2335 = vadd.f32 %v2323, 1.4214138
        %v2336 = vadd.f32 %v2324, 1.4214138
        %v2337 = vadd.f32 %v2325, 1.4214138
        %v2338 = vadd.f32 %v2326, 1.4214138
        %v2339 = vadd.f32 %v2327, 1.4214138
        %v2340 = vadd.f32 %v2328, 1.4214138
        %v2341 = vmul.f32 %v2329, %v2270
        %v2342 = vmul.f32 %v2330, %v2272
        %v2343 = vmul.f32 %v2331, %v2274
        %v2344 = vmul.f32 %v2332, %v2276
        %v2345 = vmul.f32 %v2333, %v2278
        %v2346 = vmul.f32 %v2334, %v2280
        %v2347 = vmul.f32 %v2335, %v2282
        %v2348 = vmul.f32 %v2336, %v2284
        %v2349 = vmul.f32 %v2337, %v2286
        %v2350 = vmul.f32 %v2338, %v2288
        %v2351 = vmul.f32 %v2339, %v2290
        %v2352 = vmul.f32 %v2340, %v2292
        %v2353 = vadd.f32 %v2341, -0.28449672
        %v2354 = vadd.f32 %v2342, -0.28449672
        %v2355 = vadd.f32 %v2343, -0.28449672
        %v2356 = vadd.f32 %v2344, -0.28449672
        %v2357 = vadd.f32 %v2345, -0.28449672
        %v2358 = vadd.f32 %v2346, -0.28449672
        %v2359 = vadd.f32 %v2347, -0.28449672
        %v2360 = vadd.f32 %v2348, -0.28449672
        %v2361 = vadd.f32 %v2349, -0.28449672
        %v2362 = vadd.f32 %v2350, -0.28449672
        %v2363 = vadd.f32 %v2351, -0.28449672
        %v2364 = vadd.f32 %v2352, -0.28449672
        %v2365 = vmul.f32 %v2353, %v2270
        %v2366 = vmul.f32 %v2354, %v2272
        %v2367 = vmul.f32 %v2355, %v2274
        %v2368 = vmul.f32 %v2356, %v2276
        %v2369 = vmul.f32 %v2357, %v2278
        %v2370 = vmul.f32 %v2358, %v2280
        %v2371 = vmul.f32 %v2359, %v2282
        %v2372 = vmul.f32 %v2360, %v2284
        %v2373 = vmul.f32 %v2361, %v2286
        %v2374 = vmul.f32 %v2362, %v2288
        %v2375 = vmul.f32 %v2363, %v2290
        %v2376 = vmul.f32 %v2364, %v2292
        %v2377 = vadd.f32 %v2365, 0.2548296
        %v2378 = vadd.f32 %v2366, 0.2548296
        %v2379 = vadd.f32 %v2367, 0.2548296
        %v2380 = vadd.f32 %v2368, 0.2548296
        %v2381 = vadd.f32 %v2369, 0.2548296
        %v2382 = vadd.f32 %v2370, 0.2548296
        %v2383 = vadd.f32 %v2371, 0.2548296
        %v2384 = vadd.f32 %v2372, 0.2548296
        %v2385 = vadd.f32 %v2373, 0.2548296
        %v2386 = vadd.f32 %v2374, 0.2548296
        %v2387 = vadd.f32 %v2375, 0.2548296
        %v2388 = vadd.f32 %v2376, 0.2548296
        %v2389 = vmul.f32 %v2377, %v2270
        %v2390 = vmul.f32 %v2378, %v2272
        %v2391 = vmul.f32 %v2379, %v2274
        %v2392 = vmul.f32 %v2380, %v2276
        %v2393 = vmul.f32 %v2381, %v2278
        %v2394 = vmul.f32 %v2382, %v2280
        %v2395 = vmul.f32 %v2383, %v2282
        %v2396 = vmul.f32 %v2384, %v2284
        %v2397 = vmul.f32 %v2385, %v2286
        %v2398 = vmul.f32 %v2386, %v2288
        %v2399 = vmul.f32 %v2387, %v2290
        %v2400 = vmul.f32 %v2388, %v2292
        %v2401 = vsub.f32 0.0, %v2233
        %v2402 = vsub.f32 0.0, %v2234
        %v2403 = vsub.f32 0.0, %v2235
        %v2404 = vsub.f32 0.0, %v2236
        %v2405 = vsub.f32 0.0, %v2237
        %v2406 = vsub.f32 0.0, %v2238
        %v2407 = vsub.f32 0.0, %v2239
        %v2408 = vsub.f32 0.0, %v2240
        %v2409 = vsub.f32 0.0, %v2241
        %v2410 = vsub.f32 0.0, %v2242
        %v2411 = vsub.f32 0.0, %v2243
        %v2412 = vsub.f32 0.0, %v2244
        %v2413 = vmul.f32 %v2401, %v2233
        %v2414 = vmul.f32 %v2402, %v2234
        %v2415 = vmul.f32 %v2403, %v2235
        %v2416 = vmul.f32 %v2404, %v2236
        %v2417 = vmul.f32 %v2405, %v2237
        %v2418 = vmul.f32 %v2406, %v2238
        %v2419 = vmul.f32 %v2407, %v2239
        %v2420 = vmul.f32 %v2408, %v2240
        %v2421 = vmul.f32 %v2409, %v2241
        %v2422 = vmul.f32 %v2410, %v2242
        %v2423 = vmul.f32 %v2411, %v2243
        %v2424 = vmul.f32 %v2412, %v2244
        %v2425 = vmul.f32 %v2413, 1.442695
        %v2426 = vpow.pop %v2425
        %v2427 = vmul.f32 %v2414, 1.442695
        %v2428 = vpow.pop %v2427
        %v2429 = vmul.f32 %v2415, 1.442695
        %v2430 = vpow.pop %v2429
        %v2431 = vmul.f32 %v2416, 1.442695
        %v2432 = vpow.pop %v2431
        %v2433 = vmul.f32 %v2417, 1.442695
        %v2434 = vpow.pop %v2433
        %v2435 = vmul.f32 %v2418, 1.442695
        %v2436 = vpow.pop %v2435
        %v2437 = vmul.f32 %v2419, 1.442695
        %v2438 = vpow.pop %v2437
        %v2439 = vmul.f32 %v2420, 1.442695
        %v2440 = vpow.pop %v2439
        %v2441 = vmul.f32 %v2421, 1.442695
        %v2442 = vpow.pop %v2441
        %v2443 = vmul.f32 %v2422, 1.442695
        %v2444 = vpow.pop %v2443
        %v2445 = vmul.f32 %v2423, 1.442695
        %v2446 = vpow.pop %v2445
        %v2447 = vmul.f32 %v2424, 1.442695
        %v2448 = vpow.pop %v2447
        %v2449 = vmul.f32 %v2389, %v2426
        %v2450 = vmul.f32 %v2390, %v2428
        %v2451 = vmul.f32 %v2391, %v2430
        %v2452 = vmul.f32 %v2392, %v2432
        %v2453 = vmul.f32 %v2393, %v2434
        %v2454 = vmul.f32 %v2394, %v2436
        %v2455 = vmul.f32 %v2395, %v2438
        %v2456 = vmul.f32 %v2396, %v2440
        %v2457 = vmul.f32 %v2397, %v2442
        %v2458 = vmul.f32 %v2398, %v2444
        %v2459 = vmul.f32 %v2399, %v2446
        %v2460 = vmul.f32 %v2400, %v2448
        %v2461 = vsub.f32 1.0, %v2449
        %v2462 = vsub.f32 1.0, %v2450
        %v2463 = vsub.f32 1.0, %v2451
        %v2464 = vsub.f32 1.0, %v2452
        %v2465 = vsub.f32 1.0, %v2453
        %v2466 = vsub.f32 1.0, %v2454
        %v2467 = vsub.f32 1.0, %v2455
        %v2468 = vsub.f32 1.0, %v2456
        %v2469 = vsub.f32 1.0, %v2457
        %v2470 = vsub.f32 1.0, %v2458
        %v2471 = vsub.f32 1.0, %v2459
        %v2472 = vsub.f32 1.0, %v2460
        %vm2473 = vcmp.lt.f32.partialorder %v2221, 0.0
        %vm2474 = vcmp.lt.f32.partialorder %v2222, 0.0
        %vm2475 = vcmp.lt.f32.partialorder %v2223, 0.0
        %vm2476 = vcmp.lt.f32.partialorder %v2224, 0.0
        %vm2477 = vcmp.lt.f32.partialorder %v2225, 0.0
        %vm2478 = vcmp.lt.f32.partialorder %v2226, 0.0
        %vm2479 = vcmp.lt.f32.partialorder %v2227, 0.0
        %vm2480 = vcmp.lt.f32.partialorder %v2228, 0.0
        %vm2481 = vcmp.lt.f32.partialorder %v2229, 0.0
        %vm2482 = vcmp.lt.f32.partialorder %v2230, 0.0
        %vm2483 = vcmp.lt.f32.partialorder %v2231, 0.0
        %vm2484 = vcmp.lt.f32.partialorder %v2232, 0.0
        %v2485 = vsub.f32 0.0, %v2461
        %v2486 = vsub.f32 0.0, %v2462
        %v2487 = vsub.f32 0.0, %v2463
        %v2488 = vsub.f32 0.0, %v2464
        %v2489 = vsub.f32 0.0, %v2465
        %v2490 = vsub.f32 0.0, %v2466
        %v2491 = vsub.f32 0.0, %v2467
        %v2492 = vsub.f32 0.0, %v2468
        %v2493 = vsub.f32 0.0, %v2469
        %v2494 = vsub.f32 0.0, %v2470
        %v2495 = vsub.f32 0.0, %v2471
        %v2496 = vsub.f32 0.0, %v2472
        %v2497 = vsel %vm2473, %v2485, %v2461
        %v2498 = vsel %vm2474, %v2486, %v2462
        %v2499 = vsel %vm2475, %v2487, %v2463
        %v2500 = vsel %vm2476, %v2488, %v2464
        %v2501 = vsel %vm2477, %v2489, %v2465
        %v2502 = vsel %vm2478, %v2490, %v2466
        %v2503 = vsel %vm2479, %v2491, %v2467
        %v2504 = vsel %vm2480, %v2492, %v2468
        %v2505 = vsel %vm2481, %v2493, %v2469
        %v2506 = vsel %vm2482, %v2494, %v2470
        %v2507 = vsel %vm2483, %v2495, %v2471
        %v2508 = vsel %vm2484, %v2496, %v2472
        %v2509 = vadd.f32 %v2497, 1.0
        %v2510 = vadd.f32 %v2498, 1.0
        %v2511 = vadd.f32 %v2499, 1.0
        %v2512 = vadd.f32 %v2500, 1.0
        %v2513 = vadd.f32 %v2501, 1.0
        %v2514 = vadd.f32 %v2502, 1.0
        %v2515 = vadd.f32 %v2503, 1.0
        %v2516 = vadd.f32 %v2504, 1.0
        %v2517 = vadd.f32 %v2505, 1.0
        %v2518 = vadd.f32 %v2506, 1.0
        %v2519 = vadd.f32 %v2507, 1.0
        %v2520 = vadd.f32 %v2508, 1.0
        %v2521 = vmul.f32 %v2209, %v2509
        %v2522 = vmul.f32 %v2210, %v2510
        %v2523 = vmul.f32 %v2211, %v2511
        %v2524 = vmul.f32 %v2212, %v2512
        %v2525 = vmul.f32 %v2213, %v2513
        %v2526 = vmul.f32 %v2214, %v2514
        %v2527 = vmul.f32 %v2215, %v2515
        %v2528 = vmul.f32 %v2216, %v2516
        %v2529 = vmul.f32 %v2217, %v2517
        %v2530 = vmul.f32 %v2218, %v2518
        %v2531 = vmul.f32 %v2219, %v2519
        %v2532 = vmul.f32 %v2220, %v2520
        %v2533 = vpack.c.bf16 %v2525, %v2521
        %v2534 = vpack.c.bf16 %v2526, %v2522
        %v2535 = vpack.c.bf16 %v2527, %v2523
        %v2536 = vpack.c.bf16 %v2528, %v2524
        %v2537 = vpack.c.bf16 %v2529, %v2529
        %v2538 = vpack.c.bf16 %v2530, %v2530
        %v2539 = vpack.c.bf16 %v2531, %v2531
        %v2540 = vpack.c.bf16 %v2532, %v2532
        %v2541 = vld [vmem:[%s13] sm:$0xf]
        %v2542 = vld [vmem:[%s13 + $0x4] sm:$0xf]
        %v2543 = vld [vmem:[%s13 + $0x8] sm:$0xf]
        %v2544 = vld [vmem:[%s13 + $0xc] sm:$0xf]
        %v2545 = vld [vmem:[%s13 + $0x10] sm:$0xf]
        %v2546 = vld [vmem:[%s13 + $0x14] sm:$0xf]
        %v2547 = vld [vmem:[%s13 + $0x18] sm:$0xf]
        %v2548 = vld [vmem:[%s13 + $0x1c] sm:$0xf]
        %v2549 = vld [vmem:[%s13 + $0x20] sm:$0xf]
        %v2550 = vld [vmem:[%s13 + $0x24] sm:$0xf]
        %v2551 = vld [vmem:[%s13 + $0x28] sm:$0xf]
        %v2552 = vld [vmem:[%s13 + $0x2c] sm:$0xf]
        %v2553 = vld [vmem:[%s13 + $0x30] sm:$0xf]
        %v2554 = vld [vmem:[%s13 + $0x34] sm:$0xf]
        %v2555 = vld [vmem:[%s13 + $0x38] sm:$0xf]
        %v2556 = vld [vmem:[%s13 + $0x3c] sm:$0xf]
        %v2557 = vld [vmem:[%s13 + $0x40] sm:$0xf]
        %v2558 = vld [vmem:[%s13 + $0x44] sm:$0xf]
        %v2559 = vld [vmem:[%s13 + $0x48] sm:$0xf]
        %v2560 = vld [vmem:[%s13 + $0x4c] sm:$0xf]
        %v2561 = vld [vmem:[%s13 + $0x50] sm:$0xf]
        %v2562 = vld [vmem:[%s13 + $0x54] sm:$0xf]
        %v2563 = vld [vmem:[%s13 + $0x58] sm:$0xf]
        %v2564 = vld [vmem:[%s13 + $0x5c] sm:$0xf]
        %v2565 = vld [vmem:[%s13 + $0x60] sm:$0xf]
        %v2566 = vld [vmem:[%s13 + $0x64] sm:$0xf]
        %v2567 = vld [vmem:[%s13 + $0x68] sm:$0xf]
        %v2568 = vld [vmem:[%s13 + $0x6c] sm:$0xf]
        %v2569 = vld [vmem:[%s13 + $0x70] sm:$0xf]
        %v2570 = vld [vmem:[%s13 + $0x74] sm:$0xf]
        %v2571 = vld [vmem:[%s13 + $0x78] sm:$0xf]
        %v2572 = vld [vmem:[%s13 + $0x7c] sm:$0xf]
        %v2573 = vld [vmem:[%s13 + $0x80] sm:$0xf]
        %v2574 = vld [vmem:[%s13 + $0x84] sm:$0xf]
        %v2575 = vld [vmem:[%s13 + $0x88] sm:$0xf]
        %v2576 = vld [vmem:[%s13 + $0x8c] sm:$0xf]
        %v2577 = vld [vmem:[%s13 + $0x90] sm:$0xf]
        %v2578 = vld [vmem:[%s13 + $0x94] sm:$0xf]
        %v2579 = vld [vmem:[%s13 + $0x98] sm:$0xf]
        %v2580 = vld [vmem:[%s13 + $0x9c] sm:$0xf]
        %v2581 = vld [vmem:[%s13 + $0xa0] sm:$0xf]
        %v2582 = vld [vmem:[%s13 + $0xa4] sm:$0xf]
        %v2583 = vld [vmem:[%s13 + $0xa8] sm:$0xf]
        %v2584 = vld [vmem:[%s13 + $0xac] sm:$0xf]
        %v2585 = vld [vmem:[%s13 + $0xb0] sm:$0xf]
        %v2586 = vld [vmem:[%s13 + $0xb4] sm:$0xf]
        %v2587 = vld [vmem:[%s13 + $0xb8] sm:$0xf]
        %v2588 = vld [vmem:[%s13 + $0xbc] sm:$0xf]
        %v2589 = vld [vmem:[%s13 + $0xc0] sm:$0xf]
        %v2590 = vld [vmem:[%s13 + $0xc4] sm:$0xf]
        %v2591 = vld [vmem:[%s13 + $0xc8] sm:$0xf]
        %v2592 = vld [vmem:[%s13 + $0xcc] sm:$0xf]
        %v2593 = vld [vmem:[%s13 + $0xd0] sm:$0xf]
        %v2594 = vld [vmem:[%s13 + $0xd4] sm:$0xf]
        %v2595 = vld [vmem:[%s13 + $0xd8] sm:$0xf]
        %v2596 = vld [vmem:[%s13 + $0xdc] sm:$0xf]
        %v2597 = vld [vmem:[%s13 + $0xe0] sm:$0xf]
        %v2598 = vld [vmem:[%s13 + $0xe4] sm:$0xf]
        %v2599 = vld [vmem:[%s13 + $0xe8] sm:$0xf]
        %v2600 = vld [vmem:[%s13 + $0xec] sm:$0xf]
        %v2601 = vld [vmem:[%s13 + $0xf0] sm:$0xf]
        %v2602 = vld [vmem:[%s13 + $0xf4] sm:$0xf]
        %v2603 = vld [vmem:[%s13 + $0xf8] sm:$0xf]
        %v2604 = vld [vmem:[%s13 + $0xfc] sm:$0xf]
        %v2605 = vld [vmem:[#allocation16] sm:$0x1]
        %v2607 = vlaneseq
        %v2608 = vshrl.u32 %v2607, 7
        %v2609 = vsub.s32 0, %v2608
        %v2610 = vrot.slane %v2605, %v2609
        %v2676 = vunpack.c.l.b16 %v2541
        %v2677 = vunpack.c.l.b16 %v2542
        %v2678 = vunpack.c.l.b16 %v2543
        %v2679 = vunpack.c.l.b16 %v2544
        %v2680 = vunpack.c.l.b16 %v2545
        %v2681 = vunpack.c.l.b16 %v2546
        %v2682 = vunpack.c.l.b16 %v2547
        %v2683 = vunpack.c.l.b16 %v2548
        %v2684 = vunpack.c.l.b16 %v2549
        %v2685 = vunpack.c.l.b16 %v2550
        %v2686 = vunpack.c.l.b16 %v2551
        %v2687 = vunpack.c.l.b16 %v2552
        %v2688 = vunpack.c.l.b16 %v2553
        %v2689 = vunpack.c.l.b16 %v2554
        %v2690 = vunpack.c.l.b16 %v2555
        %v2691 = vunpack.c.l.b16 %v2556
        %v2692 = vunpack.c.l.b16 %v2557
        %v2693 = vunpack.c.l.b16 %v2558
        %v2694 = vunpack.c.l.b16 %v2559
        %v2695 = vunpack.c.l.b16 %v2560
        %v2696 = vunpack.c.l.b16 %v2561
        %v2697 = vunpack.c.l.b16 %v2562
        %v2698 = vunpack.c.l.b16 %v2563
        %v2699 = vunpack.c.l.b16 %v2564
        %v2700 = vunpack.c.l.b16 %v2565
        %v2701 = vunpack.c.l.b16 %v2566
        %v2702 = vunpack.c.l.b16 %v2567
        %v2703 = vunpack.c.l.b16 %v2568
        %v2704 = vunpack.c.l.b16 %v2569
        %v2705 = vunpack.c.l.b16 %v2570
        %v2706 = vunpack.c.l.b16 %v2571
        %v2707 = vunpack.c.l.b16 %v2572
        %v2708 = vunpack.c.l.b16 %v2573
        %v2709 = vunpack.c.l.b16 %v2574
        %v2710 = vunpack.c.l.b16 %v2575
        %v2711 = vunpack.c.l.b16 %v2576
        %v2712 = vunpack.c.l.b16 %v2577
        %v2713 = vunpack.c.l.b16 %v2578
        %v2714 = vunpack.c.l.b16 %v2579
        %v2715 = vunpack.c.l.b16 %v2580
        %v2716 = vunpack.c.l.b16 %v2581
        %v2717 = vunpack.c.l.b16 %v2582
        %v2718 = vunpack.c.l.b16 %v2583
        %v2719 = vunpack.c.l.b16 %v2584
        %v2720 = vunpack.c.l.b16 %v2585
        %v2721 = vunpack.c.l.b16 %v2586
        %v2722 = vunpack.c.l.b16 %v2587
        %v2723 = vunpack.c.l.b16 %v2588
        %v2724 = vunpack.c.l.b16 %v2589
        %v2725 = vunpack.c.l.b16 %v2590
        %v2726 = vunpack.c.l.b16 %v2591
        %v2727 = vunpack.c.l.b16 %v2592
        %v2728 = vunpack.c.l.b16 %v2593
        %v2729 = vunpack.c.l.b16 %v2594
        %v2730 = vunpack.c.l.b16 %v2595
        %v2731 = vunpack.c.l.b16 %v2596
        %v2732 = vunpack.c.l.b16 %v2597
        %v2733 = vunpack.c.l.b16 %v2598
        %v2734 = vunpack.c.l.b16 %v2599
        %v2735 = vunpack.c.l.b16 %v2600
        %v2736 = vunpack.c.l.b16 %v2601
        %v2737 = vunpack.c.l.b16 %v2602
        %v2738 = vunpack.c.l.b16 %v2603
        %v2739 = vunpack.c.l.b16 %v2604
        %v2740 = vpack.c.b16 %v2677, %v2676
        %v2741 = vpack.c.b16 %v2679, %v2678
        %v2742 = vpack.c.b16 %v2681, %v2680
        %v2743 = vpack.c.b16 %v2683, %v2682
        %v2744 = vpack.c.b16 %v2685, %v2684
        %v2745 = vpack.c.b16 %v2687, %v2686
        %v2746 = vpack.c.b16 %v2689, %v2688
        %v2747 = vpack.c.b16 %v2691, %v2690
        %v2748 = vpack.c.b16 %v2693, %v2692
        %v2749 = vpack.c.b16 %v2695, %v2694
        %v2750 = vpack.c.b16 %v2697, %v2696
        %v2751 = vpack.c.b16 %v2699, %v2698
        %v2752 = vpack.c.b16 %v2701, %v2700
        %v2753 = vpack.c.b16 %v2703, %v2702
        %v2754 = vpack.c.b16 %v2705, %v2704
        %v2755 = vpack.c.b16 %v2707, %v2706
        %v2756 = vpack.c.b16 %v2709, %v2708
        %v2757 = vpack.c.b16 %v2711, %v2710
        %v2758 = vpack.c.b16 %v2713, %v2712
        %v2759 = vpack.c.b16 %v2715, %v2714
        %v2760 = vpack.c.b16 %v2717, %v2716
        %v2761 = vpack.c.b16 %v2719, %v2718
        %v2762 = vpack.c.b16 %v2721, %v2720
        %v2763 = vpack.c.b16 %v2723, %v2722
        %v2764 = vpack.c.b16 %v2725, %v2724
        %v2765 = vpack.c.b16 %v2727, %v2726
        %v2766 = vpack.c.b16 %v2729, %v2728
        %v2767 = vpack.c.b16 %v2731, %v2730
        %v2768 = vpack.c.b16 %v2733, %v2732
        %v2769 = vpack.c.b16 %v2735, %v2734
        %v2770 = vpack.c.b16 %v2737, %v2736
        %v2771 = vpack.c.b16 %v2739, %v2738
        %2804 = vmatprep.subr.bf16.mxu0 0
        %2805 = vmatpush1.bf16.msra.mxu0 %v2740
        %2806 = vmatprep.subr.bf16.mxu0 0
        %2807 = vmatpush1.bf16.msra.mxu0 %v2741
        %2808 = vmatprep.subr.bf16.mxu0 0
        %2809 = vmatpush1.bf16.msra.mxu0 %v2742
        %2810 = vmatprep.subr.bf16.mxu0 0
        %2811 = vmatpush1.bf16.msra.mxu0 %v2743
        %2812 = vmatprep.subr.bf16.mxu0 0
        %2813 = vmatpush1.bf16.msra.mxu0 %v2744
        %2814 = vmatprep.subr.bf16.mxu0 0
        %2815 = vmatpush1.bf16.msra.mxu0 %v2745
        %2816 = vmatprep.subr.bf16.mxu0 0
        %2817 = vmatpush1.bf16.msra.mxu0 %v2746
        %2818 = vmatprep.subr.bf16.mxu0 0
        %2819 = vmatpush1.bf16.msra.mxu0 %v2747
        %2820 = vmatprep.subr.bf16.mxu0 0
        %2821 = vmatpush1.bf16.msra.mxu0 %v2748
        %2822 = vmatprep.subr.bf16.mxu0 0
        %2823 = vmatpush1.bf16.msra.mxu0 %v2749
        %2824 = vmatprep.subr.bf16.mxu0 0
        %2825 = vmatpush1.bf16.msra.mxu0 %v2750
        %2826 = vmatprep.subr.bf16.mxu0 0
        %2827 = vmatpush1.bf16.msra.mxu0 %v2751
        %2828 = vmatprep.subr.bf16.mxu0 0
        %2829 = vmatpush1.bf16.msra.mxu0 %v2752
        %2830 = vmatprep.subr.bf16.mxu0 0
        %2831 = vmatpush1.bf16.msra.mxu0 %v2753
        %2832 = vmatprep.subr.bf16.mxu0 0
        %2833 = vmatpush1.bf16.msra.mxu0 %v2754
        %2834 = vmatprep.subr.bf16.mxu0 0
        %2835 = vmatpush1.bf16.msra.mxu0 %v2755
        %2836 = vmatprep.mubr.bf16.mxu0 %v2534
        %2837 = vmatmul.mubr.bf16.gmra.mrb[0].mxu0 %v2533
        %v2838 = vpop.f32.mrb[0].mxu0
        %v2839 = vadd.f32 %v2610, %v2838
        %v2840 = vpop.f32.mrb[0].mxu0
        %v2841 = vpop.f32.mrb[0].mxu0
        %v2842 = vadd.f32 %v2610, %v2841
        %v2843 = vpop.f32.mrb[0].mxu0
        %2844 = vmatprep.mubr.bf16.mxu0 %v2538
        %2845 = vmatmul.mubr.bf16.gmra.mrb[0].mxu0 %v2537
        %v2846 = vpop.f32.mrb[0].mxu0
        %v2847 = vadd.f32 %v2610, %v2846
        %v2848 = vpop.f32.mrb[0].mxu0
        %v2849 = vpop.f32.mrb[0].mxu0
        %v2850 = vpop.f32.mrb[0].mxu0
        %2851 = vdwg.mxu0
        %2852 = vmatprep.subr.bf16.mxu0 0
        %2853 = vmatpush1.bf16.msra.mxu0 %v2756
        %2854 = vmatprep.subr.bf16.mxu0 0
        %2855 = vmatpush1.bf16.msra.mxu0 %v2757
        %2856 = vmatprep.subr.bf16.mxu0 0
        %2857 = vmatpush1.bf16.msra.mxu0 %v2758
        %2858 = vmatprep.subr.bf16.mxu0 0
        %2859 = vmatpush1.bf16.msra.mxu0 %v2759
        %2860 = vmatprep.subr.bf16.mxu0 0
        %2861 = vmatpush1.bf16.msra.mxu0 %v2760
        %2862 = vmatprep.subr.bf16.mxu0 0
        %2863 = vmatpush1.bf16.msra.mxu0 %v2761
        %2864 = vmatprep.subr.bf16.mxu0 0
        %2865 = vmatpush1.bf16.msra.mxu0 %v2762
        %2866 = vmatprep.subr.bf16.mxu0 0
        %2867 = vmatpush1.bf16.msra.mxu0 %v2763
        %2868 = vmatprep.subr.bf16.mxu0 0
        %2869 = vmatpush1.bf16.msra.mxu0 %v2764
        %2870 = vmatprep.subr.bf16.mxu0 0
        %2871 = vmatpush1.bf16.msra.mxu0 %v2765
        %2872 = vmatprep.subr.bf16.mxu0 0
        %2873 = vmatpush1.bf16.msra.mxu0 %v2766
        %2874 = vmatprep.subr.bf16.mxu0 0
        %2875 = vmatpush1.bf16.msra.mxu0 %v2767
        %2876 = vmatprep.subr.bf16.mxu0 0
        %2877 = vmatpush1.bf16.msra.mxu0 %v2768
        %2878 = vmatprep.subr.bf16.mxu0 0
        %2879 = vmatpush1.bf16.msra.mxu0 %v2769
        %2880 = vmatprep.subr.bf16.mxu0 0
        %2881 = vmatpush1.bf16.msra.mxu0 %v2770
        %2882 = vmatprep.subr.bf16.mxu0 0
        %2883 = vmatpush1.bf16.msra.mxu0 %v2771
        %2884 = vmatprep.mubr.bf16.mxu0 %v2536
        %2885 = vmatmul.mubr.bf16.gmra.mrb[0].mxu0 %v2535
        %v2886 = vpop.f32.mrb[0].mxu0
        %v2887 = vadd.f32 %v2839, %v2886
        %v2888 = vpop.f32.mrb[0].mxu0
        %v2889 = vpop.f32.mrb[0].mxu0
        %v2890 = vadd.f32 %v2842, %v2889
        %v2891 = vpop.f32.mrb[0].mxu0
        %2892 = vmatprep.mubr.bf16.mxu0 %v2540
        %2893 = vmatmul.mubr.bf16.gmra.mrb[0].mxu0 %v2539
        %v2894 = vpop.f32.mrb[0].mxu0
        %v2895 = vadd.f32 %v2847, %v2894
        %v2896 = vpop.f32.mrb[0].mxu0
        %v2897 = vpop.f32.mrb[0].mxu0
        %v2898 = vpop.f32.mrb[0].mxu0
        %2899 = vdwg.mxu0
        %v2900 = vadd.f32 %v1835, %v2887
        %v2901 = vadd.f32 %v1836, %v2890
        %v2902 = vadd.f32 %v1837, %v2895
        %2903 = vst [vmem:[%s620] sm:$0xff] %v2900
        %2904 = vst [vmem:[%s620 + $0x8] sm:$0xff] %v2901
        %2905 = vst [vmem:[%s620 + $0x10] sm:$0xff] %v2902
        %p2906 = scmp.lt.s32.totalorder %s32, 1
        %s2907 = scalar_select %p2906, %s32, 1
        %s2908 = smul.addr %s2907, 3
        %s2909 = smul.addr %s2908, 8
        %s2910 = scalar_lea.vmem %s15, %s2909
        // Predicated region
        $region121: #{imu_encoder_forward.5} parent=79 // pred_check
          %p2911 = pneg %p370
        $region122: #{imu_encoder_forward.5} parent=79 // pred_check_branch
          %2913 = sbr.rel (%p2911) target = $region124
        $region123: #{imu_encoder_forward.5} parent=79 // pred_region
          _
        $region124: #{imu_encoder_forward.5} parent=79 // pred_fallthru
          _
      $region80: #{imu_encoder_forward.5} parent=5 // pred_fallthru
        _
      %p2914 = scmp.le.s32.totalorder 2, %s27
      // Predicated region
      $region125: #{imu_encoder_forward.5} parent=5 // pred_check
        %p2915 = pneg %p2914
      $region126: #{imu_encoder_forward.5} parent=5 // pred_check_branch
        %2917 = sbr.rel (%p2915) target = $region128
      $region127: #{imu_encoder_forward.5} parent=5 // pred_region
        %s2918 = ssub.s32 %s27, 2
        // Predicated region
        $region129: #{imu_encoder_forward.5} parent=127 // pred_check
          %p2919 = pneg %p376
        $region130: #{imu_encoder_forward.5} parent=127 // pred_check_branch
          %2921 = sbr.rel (%p2919) target = $region132
        $region131: #{imu_encoder_forward.5} parent=127 // pred_region
          %p2922 = scmp.lt.s32.totalorder %s33, 1
          %s2923 = scalar_select %p2922, %s33, 1
          %s2924 = smul.addr %s2923, 3
          %s2925 = smul.addr %s2924, 8
          %s2926 = scalar_lea.vmem %s15, %s2925
        $region132: #{imu_encoder_forward.5} parent=127 // pred_fallthru
          _
      $region128: #{imu_encoder_forward.5} parent=5 // pred_fallthru
        _
    $region6: #{imu_encoder_forward.5} parent=1 // loop_footer
      %s31 = sadd.s32 1, %s27
    $region7: #{imu_encoder_forward.5} parent=1 // loop_footer_branch
      %26 = sbr.rel target = $region3
    $region8: #{imu_encoder_forward.5} parent=1 // loop_exit
      _
    %2927 = vsyncpa [#allocation3], 1
    %s2928 = scalar_lea.sflag [#allocation3], 1
    %2929 = vsyncpa %s2928, 1
    %2930 = vsyncpa [#allocation5], 1
    %2931 = vsyncpa [#allocation8], 1
    %2932 = vsyncpa [#allocation11], 1
    %2933 = vsyncpa [#allocation14], 1
    %2934 = vsyncpa [#allocation17], 1

</llo_original>
